<compile_context>
chip_gen: v7x
topology: tpu7x:2x2x1
jax: 0.10.0
libtpu: 0.0.40
codegen_flags: <defaults>
</compile_context>

<pallas_src>
import functools

import numpy as np
import jax
import jax.numpy as jnp
from jax.experimental import pallas as pl
from jax.experimental.pallas import tpu as pltpu


# ---------------------------------------------------------------------------
# Kernel 1: conv1 (1->64, 5x5) + 2x2 maxpool + ReLU, one image per grid step.
# Patches are pre-grouped by pool offset q=(ph,pw): block (1, 4, 144, 25).
# Pooling = elementwise max over the 4 offset groups (bias commutes with max).
# ---------------------------------------------------------------------------
def _conv1_pool_kernel(p_ref, w_ref, b_ref, o_ref):
    w = w_ref[...]
    y = jnp.dot(p_ref[0, 0], w, preferred_element_type=jnp.float32)
    for q in range(1, 4):
        y = jnp.maximum(
            y, jnp.dot(p_ref[0, q], w, preferred_element_type=jnp.float32))
    y = jnp.maximum(y + b_ref[...], 0.0)
    o_ref[0] = y.astype(o_ref.dtype)                      # (144, 64)


def conv1_pool(patches, w, b):
    # patches: (N, 4, 144, 25) bf16, w: (25, 64) bf16, b: (1, 64) f32
    N = patches.shape[0]
    return pl.pallas_call(
        _conv1_pool_kernel,
        out_shape=jax.ShapeDtypeStruct((N, 144, 64), jnp.float32),
        grid=(N,),
        in_specs=[
            pl.BlockSpec((1, 4, 144, 25), lambda n: (n, 0, 0, 0)),
            pl.BlockSpec((25, 64), lambda n: (0, 0)),
            pl.BlockSpec((1, 64), lambda n: (0, 0)),
        ],
        out_specs=pl.BlockSpec((1, 144, 64), lambda n: (n, 0, 0)),
        compiler_params=pltpu.CompilerParams(
            dimension_semantics=("parallel",)),
    )(patches, w, b)


# ---------------------------------------------------------------------------
# Kernel 2: conv2 (64->64, 5x5) + 2x2 maxpool + ReLU, one image per grid step.
# No im2col in HBM: accumulate the 25 kernel taps from static slices of the
# (12,12,64) NHWC block.  Pool via 4 constant (16,64) selection matmuls.
# ---------------------------------------------------------------------------
def _conv2_pool_kernel(y_ref, w_ref, s_ref, b_ref, o_ref):
    # y_ref: (1, 12, 12, 64) f32   w_ref: (25, 64, 64) f32
    # s_ref: (4, 16, 64) f32       b_ref: (1, 64) f32
    acc = jnp.zeros((64, 64), jnp.float32)                # rows = oh*8 + ow
    for k in range(25):
        i, j = k // 5, k % 5
        a = y_ref[0, i:i + 8, j:j + 8, :].reshape(64, 64)  # (oh*8+ow, cin)
        acc = acc + jnp.dot(a, w_ref[k], preferred_element_type=jnp.float32)
    pooled = jnp.dot(s_ref[0], acc, preferred_element_type=jnp.float32)
    for q in range(1, 4):
        pooled = jnp.maximum(
            pooled, jnp.dot(s_ref[q], acc, preferred_element_type=jnp.float32))
    o_ref[0] = jnp.maximum(pooled + b_ref[...], 0.0).astype(o_ref.dtype)


def conv2_pool(y1, w, sel, b):
    # y1: (N, 12, 12, 64) f32, w: (25, 64, 64) f32, sel: (4, 16, 64) f32
    N = y1.shape[0]
    return pl.pallas_call(
        _conv2_pool_kernel,
        out_shape=jax.ShapeDtypeStruct((N, 16, 64), jnp.bfloat16),
        grid=(N,),
        in_specs=[
            pl.BlockSpec((1, 12, 12, 64), lambda n: (n, 0, 0, 0)),
            pl.BlockSpec((25, 64, 64), lambda n: (0, 0, 0)),
            pl.BlockSpec((4, 16, 64), lambda n: (0, 0, 0)),
            pl.BlockSpec((1, 64), lambda n: (0, 0)),
        ],
        out_specs=pl.BlockSpec((1, 16, 64), lambda n: (n, 0, 0)),
        compiler_params=pltpu.CompilerParams(
            dimension_semantics=("parallel",)),
    )(y1, w, sel, b)


# ---------------------------------------------------------------------------
# Kernel 3: fc1(1024->128) + ReLU + fc2(128->10, padded to 128 lanes), fused,
# gridded over M tiles of the (padded) batch.
# ---------------------------------------------------------------------------
_FC_TILE_M = 128


def _fc_kernel(f_ref, w1_ref, b1_ref, w2_ref, b2_ref, o_ref):
    h = jnp.dot(f_ref[...], w1_ref[...], preferred_element_type=jnp.float32)
    h = jnp.maximum(h + b1_ref[...], 0.0)
    o = jnp.dot(h.astype(jnp.bfloat16), w2_ref[...],
                preferred_element_type=jnp.float32)
    o_ref[...] = (o + b2_ref[...]).astype(o_ref.dtype)


def fc_head(f, w1, b1, w2, b2):
    # f: (N, 1024) bf16, w1: (1024, 128) bf16, w2: (128, 128) bf16 (padded)
    N = f.shape[0]
    Np = ((N + _FC_TILE_M - 1) // _FC_TILE_M) * _FC_TILE_M
    if Np != N:
        f = jnp.pad(f, ((0, Np - N), (0, 0)))
    out = pl.pallas_call(
        _fc_kernel,
        out_shape=jax.ShapeDtypeStruct((Np, 128), jnp.float32),
        grid=(Np // _FC_TILE_M,),
        in_specs=[
            pl.BlockSpec((_FC_TILE_M, 1024), lambda i: (i, 0)),
            pl.BlockSpec((1024, 128), lambda i: (0, 0)),
            pl.BlockSpec((1, 128), lambda i: (0, 0)),
            pl.BlockSpec((128, 128), lambda i: (0, 0)),
            pl.BlockSpec((1, 128), lambda i: (0, 0)),
        ],
        out_specs=pl.BlockSpec((_FC_TILE_M, 128), lambda i: (i, 0)),
        compiler_params=pltpu.CompilerParams(
            dimension_semantics=("parallel",)),
    )(f, w1, b1, w2, b2)
    return out[:N, :10]


# ---------------------------------------------------------------------------
# Parameter prep: fold normalization, NHWC/matmul layouts, bf16 casts,
# fc1 column permutation (NCHW flatten -> NHWC flatten), fc2 lane padding,
# and the constant 2x2-pool selection matrices for conv2.
# ---------------------------------------------------------------------------
def prepare_params(params, mean, std):
    inv_std = 1.0 / std
    # conv1 (64,1,5,5) -> (25,64); fold (x - mean)/std into w and b.
    w1 = params["conv1_w"].reshape(64, 25).T                     # k = kh*5+kw
    b1 = params["conv1_b"] - (mean * inv_std) * jnp.sum(w1, axis=0)
    w1 = w1 * inv_std
    # conv2 (64,64,5,5) -> (25, cin=64, cout=64)
    w2 = params["conv2_w"].transpose(2, 3, 1, 0).reshape(25, 64, 64)
    b2 = params["conv2_b"]
    # fc1: permute input columns from NCHW-flatten to NHWC-flatten order.
    wf1 = params["fc1_w"].reshape(128, 64, 4, 4).transpose(0, 2, 3, 1)
    wf1 = wf1.reshape(128, 1024).T                               # (1024, 128)
    bf1 = params["fc1_b"]
    # fc2: pad output width 10 -> 128 for lane-dense stores.
    wf2 = jnp.zeros((128, 128), jnp.float32).at[:, :10].set(params["fc2_w"].T)
    bf2 = jnp.zeros((128,), jnp.float32).at[:10].set(params["fc2_b"])
    # Constant selection matrices for conv2's 2x2 max pool.
    sel = np.zeros((4, 16, 64), np.float32)
    for q in range(4):
        ph, pw = q // 2, q % 2
        for m in range(16):
            ho, wo = m // 4, m % 4
            sel[q, m, (2 * ho + ph) * 8 + (2 * wo + pw)] = 1.0
    return {
        "w1": w1.astype(jnp.bfloat16),
        "b1": b1.reshape(1, 64).astype(jnp.float32),
        "w2": w2.astype(jnp.float32),
        "b2": b2.reshape(1, 64).astype(jnp.float32),
        "sel": jnp.asarray(sel),
        "wf1": wf1.astype(jnp.bfloat16),
        "bf1": bf1.reshape(1, 128).astype(jnp.float32),
        "wf2": wf2.astype(jnp.bfloat16),
        "bf2": bf2.reshape(1, 128).astype(jnp.float32),
    }


# ---------------------------------------------------------------------------
# Forward pass (matches mnist_conv.forward).
# ---------------------------------------------------------------------------
def mnist_conv_forward(x, params, mean=0.0, std=1.0):
    N = x.shape[0]
    p = prepare_params(params, mean, std)

    # conv1 patches (small: 28.8 KB/img bf16), pre-grouped by pool offset.
    # TODO(synk): conv1's patch extraction/regroup stays as plain-JAX glue;
    # only conv2 avoids im2col materialization.
    xs = x.reshape(N, 28, 28).astype(jnp.bfloat16)
    cols = [xs[:, i:i + 24, j:j + 24] for i in range(5) for j in range(5)]
    p1 = jnp.stack(cols, axis=-1)                        # (N, 24, 24, 25)
    p1 = p1.reshape(N, 12, 2, 12, 2, 25).transpose(0, 2, 4, 1, 3, 5)
    p1 = p1.reshape(N, 4, 144, 25)                       # (n, q, ho*12+wo, k)

    y1 = conv1_pool(p1, p["w1"], p["b1"])                # (N, 144, 64) f32
    y1 = y1.reshape(N, 12, 12, 64)                       # NHWC, free reshape

    y2 = conv2_pool(y1, p["w2"], p["sel"], p["b2"])      # (N, 16, 64) bf16
    f = y2.reshape(N, 1024)                              # NHWC flatten

    return fc_head(f, p["wf1"], p["bf1"], p["wf2"], p["bf2"])   # (N, 10) f32


# ---------------------------------------------------------------------------
# Deterministic, PyTorch-shaped parameters.
# ---------------------------------------------------------------------------
def init_params(key):
    ks = jax.random.split(key, 8)
    scale = 0.05
    return {
        "conv1_w": scale * jax.random.normal(ks[0], (64, 1, 5, 5), jnp.float32),
        "conv1_b": scale * jax.random.normal(ks[1], (64,), jnp.float32),
        "conv2_w": scale * jax.random.normal(ks[2], (64, 64, 5, 5), jnp.float32),
        "conv2_b": scale * jax.random.normal(ks[3], (64,), jnp.float32),
        "fc1_w": scale * jax.random.normal(ks[4], (128, 1024), jnp.float32),
        "fc1_b": scale * jax.random.normal(ks[5], (128,), jnp.float32),
        "fc2_w": scale * jax.random.normal(ks[6], (10, 128), jnp.float32),
        "fc2_b": scale * jax.random.normal(ks[7], (10,), jnp.float32),
    }


if __name__ == "__main__":
    key = jax.random.PRNGKey(0)
    k_params, k_x = jax.random.split(key)

    params = init_params(k_params)

    batch = 2  # MNIST-shaped input (Flatten->Linear(4*4*64) fixes 28x28).
    x = jax.random.normal(k_x, (batch, 1, 28, 28), jnp.float32)

    fwd = jax.jit(functools.partial(mnist_conv_forward, mean=0.0, std=1.0))
    logits = fwd(x, params)
    jax.block_until_ready(logits)

    assert logits.shape == (batch, 10), logits.shape
    assert bool(jnp.all(jnp.isfinite(logits)))
    print("KERNEL_OK")
</pallas_src>

<mosaic_0001>
module attributes {stable_mosaic.version = 11 : i64} {
  func.func @_conv1_pool_kernel(%arg0: i32, %arg1: memref<1x4x144x25xbf16, #tpu.memory_space<vmem>>, %arg2: memref<25x64xbf16, #tpu.memory_space<vmem>>, %arg3: memref<1x64xf32, #tpu.memory_space<vmem>>, %arg4: memref<1x144x64xf32, #tpu.memory_space<vmem>>) attributes {dimension_semantics = [#tpu.dimension_semantics<parallel>], iteration_bounds = array<i64: 2>, scalar_prefetch = 0 : i64, scratch_operands = 0 : i64, tpu.core_type = #tpu.core_type<tc>, window_params = [{transform_indices = @transform_0, window_bounds = array<i64: 1, 4, 144, 25>}, {pipeline_mode = #tpu.pipeline_mode<synchronous>, transform_indices = @transform_1, window_bounds = array<i64: 25, 64>}, {pipeline_mode = #tpu.pipeline_mode<synchronous>, transform_indices = @transform_2, window_bounds = array<i64: 1, 64>}, {transform_indices = @transform_3, window_bounds = array<i64: 1, 144, 64>}]} {
    %c0 = arith.constant 0 : index
    %c0_0 = arith.constant 0 : index
    %0 = vector.load %arg2[%c0, %c0_0] : memref<25x64xbf16, #tpu.memory_space<vmem>>, vector<25x64xbf16>
    %c0_1 = arith.constant 0 : index
    %c0_2 = arith.constant 0 : index
    %c0_3 = arith.constant 0 : index
    %c0_4 = arith.constant 0 : index
    %1 = vector.load %arg1[%c0_1, %c0_2, %c0_3, %c0_4] : memref<1x4x144x25xbf16, #tpu.memory_space<vmem>>, vector<1x1x144x25xbf16>
    %2 = vector.shape_cast %1 : vector<1x1x144x25xbf16> to vector<144x25xbf16>
    %cst = arith.constant dense<0.000000e+00> : vector<144x64xf32>
    %3 = tpu.matmul %2, %0, %cst {dimension_numbers = #tpu.dot_dimension_numbers<[1], [0], [0], [1], [0, 0, 1, 1], [], []>} : vector<144x25xbf16>, vector<25x64xbf16>, vector<144x64xf32> -> vector<144x64xf32>
    %c0_5 = arith.constant 0 : index
    %c1 = arith.constant 1 : index
    %c0_6 = arith.constant 0 : index
    %c0_7 = arith.constant 0 : index
    %4 = vector.load %arg1[%c0_5, %c1, %c0_6, %c0_7] : memref<1x4x144x25xbf16, #tpu.memory_space<vmem>>, vector<1x1x144x25xbf16>
    %5 = vector.shape_cast %4 : vector<1x1x144x25xbf16> to vector<144x25xbf16>
    %cst_8 = arith.constant dense<0.000000e+00> : vector<144x64xf32>
    %6 = tpu.matmul %5, %0, %cst_8 {dimension_numbers = #tpu.dot_dimension_numbers<[1], [0], [0], [1], [0, 0, 1, 1], [], []>} : vector<144x25xbf16>, vector<25x64xbf16>, vector<144x64xf32> -> vector<144x64xf32>
    %7 = arith.maximumf %3, %6 : vector<144x64xf32>
    %c0_9 = arith.constant 0 : index
    %c2 = arith.constant 2 : index
    %c0_10 = arith.constant 0 : index
    %c0_11 = arith.constant 0 : index
    %8 = vector.load %arg1[%c0_9, %c2, %c0_10, %c0_11] : memref<1x4x144x25xbf16, #tpu.memory_space<vmem>>, vector<1x1x144x25xbf16>
    %9 = vector.shape_cast %8 : vector<1x1x144x25xbf16> to vector<144x25xbf16>
    %cst_12 = arith.constant dense<0.000000e+00> : vector<144x64xf32>
    %10 = tpu.matmul %9, %0, %cst_12 {dimension_numbers = #tpu.dot_dimension_numbers<[1], [0], [0], [1], [0, 0, 1, 1], [], []>} : vector<144x25xbf16>, vector<25x64xbf16>, vector<144x64xf32> -> vector<144x64xf32>
    %11 = arith.maximumf %7, %10 : vector<144x64xf32>
    %c0_13 = arith.constant 0 : index
    %c3 = arith.constant 3 : index
    %c0_14 = arith.constant 0 : index
    %c0_15 = arith.constant 0 : index
    %12 = vector.load %arg1[%c0_13, %c3, %c0_14, %c0_15] : memref<1x4x144x25xbf16, #tpu.memory_space<vmem>>, vector<1x1x144x25xbf16>
    %13 = vector.shape_cast %12 : vector<1x1x144x25xbf16> to vector<144x25xbf16>
    %cst_16 = arith.constant dense<0.000000e+00> : vector<144x64xf32>
    %14 = tpu.matmul %13, %0, %cst_16 {dimension_numbers = #tpu.dot_dimension_numbers<[1], [0], [0], [1], [0, 0, 1, 1], [], []>} : vector<144x25xbf16>, vector<25x64xbf16>, vector<144x64xf32> -> vector<144x64xf32>
    %15 = arith.maximumf %11, %14 : vector<144x64xf32>
    %c0_17 = arith.constant 0 : index
    %c0_18 = arith.constant 0 : index
    %16 = vector.load %arg3[%c0_17, %c0_18] : memref<1x64xf32, #tpu.memory_space<vmem>>, vector<1x64xf32>
    %17 = vector.broadcast %16 : vector<1x64xf32> to vector<144x64xf32>
    %18 = arith.addf %15, %17 : vector<144x64xf32>
    %cst_19 = arith.constant 0.000000e+00 : f32
    %19 = vector.broadcast %cst_19 : f32 to vector<144x64xf32>
    %20 = arith.maximumf %18, %19 : vector<144x64xf32>
    %c0_20 = arith.constant 0 : index
    %c0_21 = arith.constant 0 : index
    %c0_22 = arith.constant 0 : index
    %21 = vector.load %arg4[%c0_20, %c0_21, %c0_22] : memref<1x144x64xf32, #tpu.memory_space<vmem>>, vector<1x144x64xf32>
    %22 = vector.shape_cast %21 : vector<1x144x64xf32> to vector<144x64xf32>
    %23 = vector.shape_cast %20 : vector<144x64xf32> to vector<1x144x64xf32>
    tpu.vector_store %arg4[%c0_20, %c0_21, %c0_22], %23 {strides = array<i32>} : memref<1x144x64xf32, #tpu.memory_space<vmem>>, vector<1x144x64xf32>,
    return
  }
  func.func @transform_0(%arg0: i32) -> (i32, i32, i32, i32) {
    %c0_i32 = arith.constant 0 : i32
    %c0_i32_0 = arith.constant 0 : i32
    %c0_i32_1 = arith.constant 0 : i32
    %c0_i32_2 = arith.constant 0 : i32
    return %arg0, %c0_i32, %c0_i32_0, %c0_i32_1 : i32, i32, i32, i32
  }
  func.func @transform_1(%arg0: i32) -> (i32, i32) {
    %c0_i32 = arith.constant 0 : i32
    %c0_i32_0 = arith.constant 0 : i32
    %c0_i32_1 = arith.constant 0 : i32
    return %c0_i32, %c0_i32_0 : i32, i32
  }
  func.func @transform_2(%arg0: i32) -> (i32, i32) {
    %c0_i32 = arith.constant 0 : i32
    %c0_i32_0 = arith.constant 0 : i32
    %c0_i32_1 = arith.constant 0 : i32
    return %c0_i32, %c0_i32_0 : i32, i32
  }
  func.func @transform_3(%arg0: i32) -> (i32, i32, i32) {
    %c0_i32 = arith.constant 0 : i32
    %c0_i32_0 = arith.constant 0 : i32
    %c0_i32_1 = arith.constant 0 : i32
    return %arg0, %c0_i32, %c0_i32_0 : i32, i32, i32
  }
}

module attributes {stable_mosaic.version = 11 : i64} {
  func.func @_conv2_pool_kernel(%arg0: i32, %arg1: memref<1x12x12x64xf32, #tpu.memory_space<vmem>>, %arg2: memref<25x64x64xf32, #tpu.memory_space<vmem>>, %arg3: memref<4x16x64xf32, #tpu.memory_space<vmem>>, %arg4: memref<1x64xf32, #tpu.memory_space<vmem>>, %arg5: memref<1x16x64xbf16, #tpu.memory_space<vmem>>) attributes {dimension_semantics = [#tpu.dimension_semantics<parallel>], iteration_bounds = array<i64: 2>, scalar_prefetch = 0 : i64, scratch_operands = 0 : i64, tpu.core_type = #tpu.core_type<tc>, window_params = [{transform_indices = @transform_0, window_bounds = array<i64: 1, 12, 12, 64>}, {pipeline_mode = #tpu.pipeline_mode<synchronous>, transform_indices = @transform_1, window_bounds = array<i64: 25, 64, 64>}, {pipeline_mode = #tpu.pipeline_mode<synchronous>, transform_indices = @transform_2, window_bounds = array<i64: 4, 16, 64>}, {pipeline_mode = #tpu.pipeline_mode<synchronous>, transform_indices = @transform_3, window_bounds = array<i64: 1, 64>}, {transform_indices = @transform_4, window_bounds = array<i64: 1, 16, 64>}]} {
    %cst = arith.constant 0.000000e+00 : f32
    %0 = vector.broadcast %cst : f32 to vector<64x64xf32>
    %c0 = arith.constant 0 : index
    %c0_0 = arith.constant 0 : index
    %c0_1 = arith.constant 0 : index
    %c0_2 = arith.constant 0 : index
    %1 = vector.load %arg1[%c0, %c0_0, %c0_1, %c0_2] : memref<1x12x12x64xf32, #tpu.memory_space<vmem>>, vector<1x8x8x64xf32>
    %2 = vector.shape_cast %1 : vector<1x8x8x64xf32> to vector<8x8x64xf32>
    %3 = vector.shape_cast %2 : vector<8x8x64xf32> to vector<64x64xf32>
    %c0_3 = arith.constant 0 : index
    %c0_4 = arith.constant 0 : index
    %c0_5 = arith.constant 0 : index
    %4 = vector.load %arg2[%c0_3, %c0_4, %c0_5] : memref<25x64x64xf32, #tpu.memory_space<vmem>>, vector<1x64x64xf32>
    %5 = vector.shape_cast %4 : vector<1x64x64xf32> to vector<64x64xf32>
    %cst_6 = arith.constant dense<0.000000e+00> : vector<64x64xf32>
    %6 = tpu.matmul %3, %5, %cst_6 {dimension_numbers = #tpu.dot_dimension_numbers<[1], [0], [0], [1], [0, 0, 1, 1], [], []>} : vector<64x64xf32>, vector<64x64xf32>, vector<64x64xf32> -> vector<64x64xf32>
    %7 = arith.addf %0, %6 : vector<64x64xf32>
    %c0_7 = arith.constant 0 : index
    %c0_8 = arith.constant 0 : index
    %c1 = arith.constant 1 : index
    %c0_9 = arith.constant 0 : index
    %8 = vector.load %arg1[%c0_7, %c0_8, %c1, %c0_9] : memref<1x12x12x64xf32, #tpu.memory_space<vmem>>, vector<1x8x8x64xf32>
    %9 = vector.shape_cast %8 : vector<1x8x8x64xf32> to vector<8x8x64xf32>
    %10 = vector.shape_cast %9 : vector<8x8x64xf32> to vector<64x64xf32>
    %c1_10 = arith.constant 1 : index
    %c0_11 = arith.constant 0 : index
    %c0_12 = arith.constant 0 : index
    %11 = vector.load %arg2[%c1_10, %c0_11, %c0_12] : memref<25x64x64xf32, #tpu.memory_space<vmem>>, vector<1x64x64xf32>
    %12 = vector.shape_cast %11 : vector<1x64x64xf32> to vector<64x64xf32>
    %cst_13 = arith.constant dense<0.000000e+00> : vector<64x64xf32>
    %13 = tpu.matmul %10, %12, %cst_13 {dimension_numbers = #tpu.dot_dimension_numbers<[1], [0], [0], [1], [0, 0, 1, 1], [], []>} : vector<64x64xf32>, vector<64x64xf32>, vector<64x64xf32> -> vector<64x64xf32>
    %14 = arith.addf %7, %13 : vector<64x64xf32>
    %c0_14 = arith.constant 0 : index
    %c0_15 = arith.constant 0 : index
    %c2 = arith.constant 2 : index
    %c0_16 = arith.constant 0 : index
    %15 = vector.load %arg1[%c0_14, %c0_15, %c2, %c0_16] : memref<1x12x12x64xf32, #tpu.memory_space<vmem>>, vector<1x8x8x64xf32>
    %16 = vector.shape_cast %15 : vector<1x8x8x64xf32> to vector<8x8x64xf32>
    %17 = vector.shape_cast %16 : vector<8x8x64xf32> to vector<64x64xf32>
    %c2_17 = arith.constant 2 : index
    %c0_18 = arith.constant 0 : index
    %c0_19 = arith.constant 0 : index
    %18 = vector.load %arg2[%c2_17, %c0_18, %c0_19] : memref<25x64x64xf32, #tpu.memory_space<vmem>>, vector<1x64x64xf32>
    %19 = vector.shape_cast %18 : vector<1x64x64xf32> to vector<64x64xf32>
    %cst_20 = arith.constant dense<0.000000e+00> : vector<64x64xf32>
    %20 = tpu.matmul %17, %19, %cst_20 {dimension_numbers = #tpu.dot_dimension_numbers<[1], [0], [0], [1], [0, 0, 1, 1], [], []>} : vector<64x64xf32>, vector<64x64xf32>, vector<64x64xf32> -> vector<64x64xf32>
    %21 = arith.addf %14, %20 : vector<64x64xf32>
    %c0_21 = arith.constant 0 : index
    %c0_22 = arith.constant 0 : index
    %c3 = arith.constant 3 : index
    %c0_23 = arith.constant 0 : index
    %22 = vector.load %arg1[%c0_21, %c0_22, %c3, %c0_23] : memref<1x12x12x64xf32, #tpu.memory_space<vmem>>, vector<1x8x8x64xf32>
    %23 = vector.shape_cast %22 : vector<1x8x8x64xf32> to vector<8x8x64xf32>
    %24 = vector.shape_cast %23 : vector<8x8x64xf32> to vector<64x64xf32>
    %c3_24 = arith.constant 3 : index
    %c0_25 = arith.constant 0 : index
    %c0_26 = arith.constant 0 : index
    %25 = vector.load %arg2[%c3_24, %c0_25, %c0_26] : memref<25x64x64xf32, #tpu.memory_space<vmem>>, vector<1x64x64xf32>
    %26 = vector.shape_cast %25 : vector<1x64x64xf32> to vector<64x64xf32>
    %cst_27 = arith.constant dense<0.000000e+00> : vector<64x64xf32>
    %27 = tpu.matmul %24, %26, %cst_27 {dimension_numbers = #tpu.dot_dimension_numbers<[1], [0], [0], [1], [0, 0, 1, 1], [], []>} : vector<64x64xf32>, vector<64x64xf32>, vector<64x64xf32> -> vector<64x64xf32>
    %28 = arith.addf %21, %27 : vector<64x64xf32>
    %c0_28 = arith.constant 0 : index
    %c0_29 = arith.constant 0 : index
    %c4 = arith.constant 4 : index
    %c0_30 = arith.constant 0 : index
    %29 = vector.load %arg1[%c0_28, %c0_29, %c4, %c0_30] : memref<1x12x12x64xf32, #tpu.memory_space<vmem>>, vector<1x8x8x64xf32>
    %30 = vector.shape_cast %29 : vector<1x8x8x64xf32> to vector<8x8x64xf32>
    %31 = vector.shape_cast %30 : vector<8x8x64xf32> to vector<64x64xf32>
    %c4_31 = arith.constant 4 : index
    %c0_32 = arith.constant 0 : index
    %c0_33 = arith.constant 0 : index
    %32 = vector.load %arg2[%c4_31, %c0_32, %c0_33] : memref<25x64x64xf32, #tpu.memory_space<vmem>>, vector<1x64x64xf32>
    %33 = vector.shape_cast %32 : vector<1x64x64xf32> to vector<64x64xf32>
    %cst_34 = arith.constant dense<0.000000e+00> : vector<64x64xf32>
    %34 = tpu.matmul %31, %33, %cst_34 {dimension_numbers = #tpu.dot_dimension_numbers<[1], [0], [0], [1], [0, 0, 1, 1], [], []>} : vector<64x64xf32>, vector<64x64xf32>, vector<64x64xf32> -> vector<64x64xf32>
    %35 = arith.addf %28, %34 : vector<64x64xf32>
    %c0_35 = arith.constant 0 : index
    %c1_36 = arith.constant 1 : index
    %c0_37 = arith.constant 0 : index
    %c0_38 = arith.constant 0 : index
    %36 = vector.load %arg1[%c0_35, %c1_36, %c0_37, %c0_38] : memref<1x12x12x64xf32, #tpu.memory_space<vmem>>, vector<1x8x8x64xf32>
    %37 = vector.shape_cast %36 : vector<1x8x8x64xf32> to vector<8x8x64xf32>
    %38 = vector.shape_cast %37 : vector<8x8x64xf32> to vector<64x64xf32>
    %c5 = arith.constant 5 : index
    %c0_39 = arith.constant 0 : index
    %c0_40 = arith.constant 0 : index
    %39 = vector.load %arg2[%c5, %c0_39, %c0_40] : memref<25x64x64xf32, #tpu.memory_space<vmem>>, vector<1x64x64xf32>
    %40 = vector.shape_cast %39 : vector<1x64x64xf32> to vector<64x64xf32>
    %cst_41 = arith.constant dense<0.000000e+00> : vector<64x64xf32>
    %41 = tpu.matmul %38, %40, %cst_41 {dimension_numbers = #tpu.dot_dimension_numbers<[1], [0], [0], [1], [0, 0, 1, 1], [], []>} : vector<64x64xf32>, vector<64x64xf32>, vector<64x64xf32> -> vector<64x64xf32>
    %42 = arith.addf %35, %41 : vector<64x64xf32>
    %c0_42 = arith.constant 0 : index
    %c1_43 = arith.constant 1 : index
    %c1_44 = arith.constant 1 : index
    %c0_45 = arith.constant 0 : index
    %43 = vector.load %arg1[%c0_42, %c1_43, %c1_44, %c0_45] : memref<1x12x12x64xf32, #tpu.memory_space<vmem>>, vector<1x8x8x64xf32>
    %44 = vector.shape_cast %43 : vector<1x8x8x64xf32> to vector<8x8x64xf32>
    %45 = vector.shape_cast %44 : vector<8x8x64xf32> to vector<64x64xf32>
    %c6 = arith.constant 6 : index
    %c0_46 = arith.constant 0 : index
    %c0_47 = arith.constant 0 : index
    %46 = vector.load %arg2[%c6, %c0_46, %c0_47] : memref<25x64x64xf32, #tpu.memory_space<vmem>>, vector<1x64x64xf32>
    %47 = vector.shape_cast %46 : vector<1x64x64xf32> to vector<64x64xf32>
    %cst_48 = arith.constant dense<0.000000e+00> : vector<64x64xf32>
    %48 = tpu.matmul %45, %47, %cst_48 {dimension_numbers = #tpu.dot_dimension_numbers<[1], [0], [0], [1], [0, 0, 1, 1], [], []>} : vector<64x64xf32>, vector<64x64xf32>, vector<64x64xf32> -> vector<64x64xf32>
    %49 = arith.addf %42, %48 : vector<64x64xf32>
    %c0_49 = arith.constant 0 : index
    %c1_50 = arith.constant 1 : index
    %c2_51 = arith.constant 2 : index
    %c0_52 = arith.constant 0 : index
    %50 = vector.load %arg1[%c0_49, %c1_50, %c2_51, %c0_52] : memref<1x12x12x64xf32, #tpu.memory_space<vmem>>, vector<1x8x8x64xf32>
    %51 = vector.shape_cast %50 : vector<1x8x8x64xf32> to vector<8x8x64xf32>
    %52 = vector.shape_cast %51 : vector<8x8x64xf32> to vector<64x64xf32>
    %c7 = arith.constant 7 : index
    %c0_53 = arith.constant 0 : index
    %c0_54 = arith.constant 0 : index
    %53 = vector.load %arg2[%c7, %c0_53, %c0_54] : memref<25x64x64xf32, #tpu.memory_space<vmem>>, vector<1x64x64xf32>
    %54 = vector.shape_cast %53 : vector<1x64x64xf32> to vector<64x64xf32>
    %cst_55 = arith.constant dense<0.000000e+00> : vector<64x64xf32>
    %55 = tpu.matmul %52, %54, %cst_55 {dimension_numbers = #tpu.dot_dimension_numbers<[1], [0], [0], [1], [0, 0, 1, 1], [], []>} : vector<64x64xf32>, vector<64x64xf32>, vector<64x64xf32> -> vector<64x64xf32>
    %56 = arith.addf %49, %55 : vector<64x64xf32>
    %c0_56 = arith.constant 0 : index
    %c1_57 = arith.constant 1 : index
    %c3_58 = arith.constant 3 : index
    %c0_59 = arith.constant 0 : index
    %57 = vector.load %arg1[%c0_56, %c1_57, %c3_58, %c0_59] : memref<1x12x12x64xf32, #tpu.memory_space<vmem>>, vector<1x8x8x64xf32>
    %58 = vector.shape_cast %57 : vector<1x8x8x64xf32> to vector<8x8x64xf32>
    %59 = vector.shape_cast %58 : vector<8x8x64xf32> to vector<64x64xf32>
    %c8 = arith.constant 8 : index
    %c0_60 = arith.constant 0 : index
    %c0_61 = arith.constant 0 : index
    %60 = vector.load %arg2[%c8, %c0_60, %c0_61] : memref<25x64x64xf32, #tpu.memory_space<vmem>>, vector<1x64x64xf32>
    %61 = vector.shape_cast %60 : vector<1x64x64xf32> to vector<64x64xf32>
    %cst_62 = arith.constant dense<0.000000e+00> : vector<64x64xf32>
    %62 = tpu.matmul %59, %61, %cst_62 {dimension_numbers = #tpu.dot_dimension_numbers<[1], [0], [0], [1], [0, 0, 1, 1], [], []>} : vector<64x64xf32>, vector<64x64xf32>, vector<64x64xf32> -> vector<64x64xf32>
    %63 = arith.addf %56, %62 : vector<64x64xf32>
    %c0_63 = arith.constant 0 : index
    %c1_64 = arith.constant 1 : index
    %c4_65 = arith.constant 4 : index
    %c0_66 = arith.constant 0 : index
    %64 = vector.load %arg1[%c0_63, %c1_64, %c4_65, %c0_66] : memref<1x12x12x64xf32, #tpu.memory_space<vmem>>, vector<1x8x8x64xf32>
    %65 = vector.shape_cast %64 : vector<1x8x8x64xf32> to vector<8x8x64xf32>
    %66 = vector.shape_cast %65 : vector<8x8x64xf32> to vector<64x64xf32>
    %c9 = arith.constant 9 : index
    %c0_67 = arith.constant 0 : index
    %c0_68 = arith.constant 0 : index
    %67 = vector.load %arg2[%c9, %c0_67, %c0_68] : memref<25x64x64xf32, #tpu.memory_space<vmem>>, vector<1x64x64xf32>
    %68 = vector.shape_cast %67 : vector<1x64x64xf32> to vector<64x64xf32>
    %cst_69 = arith.constant dense<0.000000e+00> : vector<64x64xf32>
    %69 = tpu.matmul %66, %68, %cst_69 {dimension_numbers = #tpu.dot_dimension_numbers<[1], [0], [0], [1], [0, 0, 1, 1], [], []>} : vector<64x64xf32>, vector<64x64xf32>, vector<64x64xf32> -> vector<64x64xf32>
    %70 = arith.addf %63, %69 : vector<64x64xf32>
    %c0_70 = arith.constant 0 : index
    %c2_71 = arith.constant 2 : index
    %c0_72 = arith.constant 0 : index
    %c0_73 = arith.constant 0 : index
    %71 = vector.load %arg1[%c0_70, %c2_71, %c0_72, %c0_73] : memref<1x12x12x64xf32, #tpu.memory_space<vmem>>, vector<1x8x8x64xf32>
    %72 = vector.shape_cast %71 : vector<1x8x8x64xf32> to vector<8x8x64xf32>
    %73 = vector.shape_cast %72 : vector<8x8x64xf32> to vector<64x64xf32>
    %c10 = arith.constant 10 : index
    %c0_74 = arith.constant 0 : index
    %c0_75 = arith.constant 0 : index
    %74 = vector.load %arg2[%c10, %c0_74, %c0_75] : memref<25x64x64xf32, #tpu.memory_space<vmem>>, vector<1x64x64xf32>
    %75 = vector.shape_cast %74 : vector<1x64x64xf32> to vector<64x64xf32>
    %cst_76 = arith.constant dense<0.000000e+00> : vector<64x64xf32>
    %76 = tpu.matmul %73, %75, %cst_76 {dimension_numbers = #tpu.dot_dimension_numbers<[1], [0], [0], [1], [0, 0, 1, 1], [], []>} : vector<64x64xf32>, vector<64x64xf32>, vector<64x64xf32> -> vector<64x64xf32>
    %77 = arith.addf %70, %76 : vector<64x64xf32>
    %c0_77 = arith.constant 0 : index
    %c2_78 = arith.constant 2 : index
    %c1_79 = arith.constant 1 : index
    %c0_80 = arith.constant 0 : index
    %78 = vector.load %arg1[%c0_77, %c2_78, %c1_79, %c0_80] : memref<1x12x12x64xf32, #tpu.memory_space<vmem>>, vector<1x8x8x64xf32>
    %79 = vector.shape_cast %78 : vector<1x8x8x64xf32> to vector<8x8x64xf32>
    %80 = vector.shape_cast %79 : vector<8x8x64xf32> to vector<64x64xf32>
    %c11 = arith.constant 11 : index
    %c0_81 = arith.constant 0 : index
    %c0_82 = arith.constant 0 : index
    %81 = vector.load %arg2[%c11, %c0_81, %c0_82] : memref<25x64x64xf32, #tpu.memory_space<vmem>>, vector<1x64x64xf32>
    %82 = vector.shape_cast %81 : vector<1x64x64xf32> to vector<64x64xf32>
    %cst_83 = arith.constant dense<0.000000e+00> : vector<64x64xf32>
    %83 = tpu.matmul %80, %82, %cst_83 {dimension_numbers = #tpu.dot_dimension_numbers<[1], [0], [0], [1], [0, 0, 1, 1], [], []>} : vector<64x64xf32>, vector<64x64xf32>, vector<64x64xf32> -> vector<64x64xf32>
    %84 = arith.addf %77, %83 : vector<64x64xf32>
    %c0_84 = arith.constant 0 : index
    %c2_85 = arith.constant 2 : index
    %c2_86 = arith.constant 2 : index
    %c0_87 = arith.constant 0 : index
    %85 = vector.load %arg1[%c0_84, %c2_85, %c2_86, %c0_87] : memref<1x12x12x64xf32, #tpu.memory_space<vmem>>, vector<1x8x8x64xf32>
    %86 = vector.shape_cast %85 : vector<1x8x8x64xf32> to vector<8x8x64xf32>
    %87 = vector.shape_cast %86 : vector<8x8x64xf32> to vector<64x64xf32>
    %c12 = arith.constant 12 : index
    %c0_88 = arith.constant 0 : index
    %c0_89 = arith.constant 0 : index
    %88 = vector.load %arg2[%c12, %c0_88, %c0_89] : memref<25x64x64xf32, #tpu.memory_space<vmem>>, vector<1x64x64xf32>
    %89 = vector.shape_cast %88 : vector<1x64x64xf32> to vector<64x64xf32>
    %cst_90 = arith.constant dense<0.000000e+00> : vector<64x64xf32>
    %90 = tpu.matmul %87, %89, %cst_90 {dimension_numbers = #tpu.dot_dimension_numbers<[1], [0], [0], [1], [0, 0, 1, 1], [], []>} : vector<64x64xf32>, vector<64x64xf32>, vector<64x64xf32> -> vector<64x64xf32>
    %91 = arith.addf %84, %90 : vector<64x64xf32>
    %c0_91 = arith.constant 0 : index
    %c2_92 = arith.constant 2 : index
    %c3_93 = arith.constant 3 : index
    %c0_94 = arith.constant 0 : index
    %92 = vector.load %arg1[%c0_91, %c2_92, %c3_93, %c0_94] : memref<1x12x12x64xf32, #tpu.memory_space<vmem>>, vector<1x8x8x64xf32>
    %93 = vector.shape_cast %92 : vector<1x8x8x64xf32> to vector<8x8x64xf32>
    %94 = vector.shape_cast %93 : vector<8x8x64xf32> to vector<64x64xf32>
    %c13 = arith.constant 13 : index
    %c0_95 = arith.constant 0 : index
    %c0_96 = arith.constant 0 : index
    %95 = vector.load %arg2[%c13, %c0_95, %c0_96] : memref<25x64x64xf32, #tpu.memory_space<vmem>>, vector<1x64x64xf32>
    %96 = vector.shape_cast %95 : vector<1x64x64xf32> to vector<64x64xf32>
    %cst_97 = arith.constant dense<0.000000e+00> : vector<64x64xf32>
    %97 = tpu.matmul %94, %96, %cst_97 {dimension_numbers = #tpu.dot_dimension_numbers<[1], [0], [0], [1], [0, 0, 1, 1], [], []>} : vector<64x64xf32>, vector<64x64xf32>, vector<64x64xf32> -> vector<64x64xf32>
    %98 = arith.addf %91, %97 : vector<64x64xf32>
    %c0_98 = arith.constant 0 : index
    %c2_99 = arith.constant 2 : index
    %c4_100 = arith.constant 4 : index
    %c0_101 = arith.constant 0 : index
    %99 = vector.load %arg1[%c0_98, %c2_99, %c4_100, %c0_101] : memref<1x12x12x64xf32, #tpu.memory_space<vmem>>, vector<1x8x8x64xf32>
    %100 = vector.shape_cast %99 : vector<1x8x8x64xf32> to vector<8x8x64xf32>
    %101 = vector.shape_cast %100 : vector<8x8x64xf32> to vector<64x64xf32>
    %c14 = arith.constant 14 : index
    %c0_102 = arith.constant 0 : index
    %c0_103 = arith.constant 0 : index
    %102 = vector.load %arg2[%c14, %c0_102, %c0_103] : memref<25x64x64xf32, #tpu.memory_space<vmem>>, vector<1x64x64xf32>
    %103 = vector.shape_cast %102 : vector<1x64x64xf32> to vector<64x64xf32>
    %cst_104 = arith.constant dense<0.000000e+00> : vector<64x64xf32>
    %104 = tpu.matmul %101, %103, %cst_104 {dimension_numbers = #tpu.dot_dimension_numbers<[1], [0], [0], [1], [0, 0, 1, 1], [], []>} : vector<64x64xf32>, vector<64x64xf32>, vector<64x64xf32> -> vector<64x64xf32>
    %105 = arith.addf %98, %104 : vector<64x64xf32>
    %c0_105 = arith.constant 0 : index
    %c3_106 = arith.constant 3 : index
    %c0_107 = arith.constant 0 : index
    %c0_108 = arith.constant 0 : index
    %106 = vector.load %arg1[%c0_105, %c3_106, %c0_107, %c0_108] : memref<1x12x12x64xf32, #tpu.memory_space<vmem>>, vector<1x8x8x64xf32>
    %107 = vector.shape_cast %106 : vector<1x8x8x64xf32> to vector<8x8x64xf32>
    %108 = vector.shape_cast %107 : vector<8x8x64xf32> to vector<64x64xf32>
    %c15 = arith.constant 15 : index
    %c0_109 = arith.constant 0 : index
    %c0_110 = arith.constant 0 : index
    %109 = vector.load %arg2[%c15, %c0_109, %c0_110] : memref<25x64x64xf32, #tpu.memory_space<vmem>>, vector<1x64x64xf32>
    %110 = vector.shape_cast %109 : vector<1x64x64xf32> to vector<64x64xf32>
    %cst_111 = arith.constant dense<0.000000e+00> : vector<64x64xf32>
    %111 = tpu.matmul %108, %110, %cst_111 {dimension_numbers = #tpu.dot_dimension_numbers<[1], [0], [0], [1], [0, 0, 1, 1], [], []>} : vector<64x64xf32>, vector<64x64xf32>, vector<64x64xf32> -> vector<64x64xf32>
    %112 = arith.addf %105, %111 : vector<64x64xf32>
    %c0_112 = arith.constant 0 : index
    %c3_113 = arith.constant 3 : index
    %c1_114 = arith.constant 1 : index
    %c0_115 = arith.constant 0 : index
    %113 = vector.load %arg1[%c0_112, %c3_113, %c1_114, %c0_115] : memref<1x12x12x64xf32, #tpu.memory_space<vmem>>, vector<1x8x8x64xf32>
    %114 = vector.shape_cast %113 : vector<1x8x8x64xf32> to vector<8x8x64xf32>
    %115 = vector.shape_cast %114 : vector<8x8x64xf32> to vector<64x64xf32>
    %c16 = arith.constant 16 : index
    %c0_116 = arith.constant 0 : index
    %c0_117 = arith.constant 0 : index
    %116 = vector.load %arg2[%c16, %c0_116, %c0_117] : memref<25x64x64xf32, #tpu.memory_space<vmem>>, vector<1x64x64xf32>
    %117 = vector.shape_cast %116 : vector<1x64x64xf32> to vector<64x64xf32>
    %cst_118 = arith.constant dense<0.000000e+00> : vector<64x64xf32>
    %118 = tpu.matmul %115, %117, %cst_118 {dimension_numbers = #tpu.dot_dimension_numbers<[1], [0], [0], [1], [0, 0, 1, 1], [], []>} : vector<64x64xf32>, vector<64x64xf32>, vector<64x64xf32> -> vector<64x64xf32>
    %119 = arith.addf %112, %118 : vector<64x64xf32>
    %c0_119 = arith.constant 0 : index
    %c3_120 = arith.constant 3 : index
    %c2_121 = arith.constant 2 : index
    %c0_122 = arith.constant 0 : index
    %120 = vector.load %arg1[%c0_119, %c3_120, %c2_121, %c0_122] : memref<1x12x12x64xf32, #tpu.memory_space<vmem>>, vector<1x8x8x64xf32>
    %121 = vector.shape_cast %120 : vector<1x8x8x64xf32> to vector<8x8x64xf32>
    %122 = vector.shape_cast %121 : vector<8x8x64xf32> to vector<64x64xf32>
    %c17 = arith.constant 17 : index
    %c0_123 = arith.constant 0 : index
    %c0_124 = arith.constant 0 : index
    %123 = vector.load %arg2[%c17, %c0_123, %c0_124] : memref<25x64x64xf32, #tpu.memory_space<vmem>>, vector<1x64x64xf32>
    %124 = vector.shape_cast %123 : vector<1x64x64xf32> to vector<64x64xf32>
    %cst_125 = arith.constant dense<0.000000e+00> : vector<64x64xf32>
    %125 = tpu.matmul %122, %124, %cst_125 {dimension_numbers = #tpu.dot_dimension_numbers<[1], [0], [0], [1], [0, 0, 1, 1], [], []>} : vector<64x64xf32>, vector<64x64xf32>, vector<64x64xf32> -> vector<64x64xf32>
    %126 = arith.addf %119, %125 : vector<64x64xf32>
    %c0_126 = arith.constant 0 : index
    %c3_127 = arith.constant 3 : index
    %c3_128 = arith.constant 3 : index
    %c0_129 = arith.constant 0 : index
    %127 = vector.load %arg1[%c0_126, %c3_127, %c3_128, %c0_129] : memref<1x12x12x64xf32, #tpu.memory_space<vmem>>, vector<1x8x8x64xf32>
    %128 = vector.shape_cast %127 : vector<1x8x8x64xf32> to vector<8x8x64xf32>
    %129 = vector.shape_cast %128 : vector<8x8x64xf32> to vector<64x64xf32>
    %c18 = arith.constant 18 : index
    %c0_130 = arith.constant 0 : index
    %c0_131 = arith.constant 0 : index
    %130 = vector.load %arg2[%c18, %c0_130, %c0_131] : memref<25x64x64xf32, #tpu.memory_space<vmem>>, vector<1x64x64xf32>
    %131 = vector.shape_cast %130 : vector<1x64x64xf32> to vector<64x64xf32>
    %cst_132 = arith.constant dense<0.000000e+00> : vector<64x64xf32>
    %132 = tpu.matmul %129, %131, %cst_132 {dimension_numbers = #tpu.dot_dimension_numbers<[1], [0], [0], [1], [0, 0, 1, 1], [], []>} : vector<64x64xf32>, vector<64x64xf32>, vector<64x64xf32> -> vector<64x64xf32>
    %133 = arith.addf %126, %132 : vector<64x64xf32>
    %c0_133 = arith.constant 0 : index
    %c3_134 = arith.constant 3 : index
    %c4_135 = arith.constant 4 : index
    %c0_136 = arith.constant 0 : index
    %134 = vector.load %arg1[%c0_133, %c3_134, %c4_135, %c0_136] : memref<1x12x12x64xf32, #tpu.memory_space<vmem>>, vector<1x8x8x64xf32>
    %135 = vector.shape_cast %134 : vector<1x8x8x64xf32> to vector<8x8x64xf32>
    %136 = vector.shape_cast %135 : vector<8x8x64xf32> to vector<64x64xf32>
    %c19 = arith.constant 19 : index
    %c0_137 = arith.constant 0 : index
    %c0_138 = arith.constant 0 : index
    %137 = vector.load %arg2[%c19, %c0_137, %c0_138] : memref<25x64x64xf32, #tpu.memory_space<vmem>>, vector<1x64x64xf32>
    %138 = vector.shape_cast %137 : vector<1x64x64xf32> to vector<64x64xf32>
    %cst_139 = arith.constant dense<0.000000e+00> : vector<64x64xf32>
    %139 = tpu.matmul %136, %138, %cst_139 {dimension_numbers = #tpu.dot_dimension_numbers<[1], [0], [0], [1], [0, 0, 1, 1], [], []>} : vector<64x64xf32>, vector<64x64xf32>, vector<64x64xf32> -> vector<64x64xf32>
    %140 = arith.addf %133, %139 : vector<64x64xf32>
    %c0_140 = arith.constant 0 : index
    %c4_141 = arith.constant 4 : index
    %c0_142 = arith.constant 0 : index
    %c0_143 = arith.constant 0 : index
    %141 = vector.load %arg1[%c0_140, %c4_141, %c0_142, %c0_143] : memref<1x12x12x64xf32, #tpu.memory_space<vmem>>, vector<1x8x8x64xf32>
    %142 = vector.shape_cast %141 : vector<1x8x8x64xf32> to vector<8x8x64xf32>
    %143 = vector.shape_cast %142 : vector<8x8x64xf32> to vector<64x64xf32>
    %c20 = arith.constant 20 : index
    %c0_144 = arith.constant 0 : index
    %c0_145 = arith.constant 0 : index
    %144 = vector.load %arg2[%c20, %c0_144, %c0_145] : memref<25x64x64xf32, #tpu.memory_space<vmem>>, vector<1x64x64xf32>
    %145 = vector.shape_cast %144 : vector<1x64x64xf32> to vector<64x64xf32>
    %cst_146 = arith.constant dense<0.000000e+00> : vector<64x64xf32>
    %146 = tpu.matmul %143, %145, %cst_146 {dimension_numbers = #tpu.dot_dimension_numbers<[1], [0], [0], [1], [0, 0, 1, 1], [], []>} : vector<64x64xf32>, vector<64x64xf32>, vector<64x64xf32> -> vector<64x64xf32>
    %147 = arith.addf %140, %146 : vector<64x64xf32>
    %c0_147 = arith.constant 0 : index
    %c4_148 = arith.constant 4 : index
    %c1_149 = arith.constant 1 : index
    %c0_150 = arith.constant 0 : index
    %148 = vector.load %arg1[%c0_147, %c4_148, %c1_149, %c0_150] : memref<1x12x12x64xf32, #tpu.memory_space<vmem>>, vector<1x8x8x64xf32>
    %149 = vector.shape_cast %148 : vector<1x8x8x64xf32> to vector<8x8x64xf32>
    %150 = vector.shape_cast %149 : vector<8x8x64xf32> to vector<64x64xf32>
    %c21 = arith.constant 21 : index
    %c0_151 = arith.constant 0 : index
    %c0_152 = arith.constant 0 : index
    %151 = vector.load %arg2[%c21, %c0_151, %c0_152] : memref<25x64x64xf32, #tpu.memory_space<vmem>>, vector<1x64x64xf32>
    %152 = vector.shape_cast %151 : vector<1x64x64xf32> to vector<64x64xf32>
    %cst_153 = arith.constant dense<0.000000e+00> : vector<64x64xf32>
    %153 = tpu.matmul %150, %152, %cst_153 {dimension_numbers = #tpu.dot_dimension_numbers<[1], [0], [0], [1], [0, 0, 1, 1], [], []>} : vector<64x64xf32>, vector<64x64xf32>, vector<64x64xf32> -> vector<64x64xf32>
    %154 = arith.addf %147, %153 : vector<64x64xf32>
    %c0_154 = arith.constant 0 : index
    %c4_155 = arith.constant 4 : index
    %c2_156 = arith.constant 2 : index
    %c0_157 = arith.constant 0 : index
    %155 = vector.load %arg1[%c0_154, %c4_155, %c2_156, %c0_157] : memref<1x12x12x64xf32, #tpu.memory_space<vmem>>, vector<1x8x8x64xf32>
    %156 = vector.shape_cast %155 : vector<1x8x8x64xf32> to vector<8x8x64xf32>
    %157 = vector.shape_cast %156 : vector<8x8x64xf32> to vector<64x64xf32>
    %c22 = arith.constant 22 : index
    %c0_158 = arith.constant 0 : index
    %c0_159 = arith.constant 0 : index
    %158 = vector.load %arg2[%c22, %c0_158, %c0_159] : memref<25x64x64xf32, #tpu.memory_space<vmem>>, vector<1x64x64xf32>
    %159 = vector.shape_cast %158 : vector<1x64x64xf32> to vector<64x64xf32>
    %cst_160 = arith.constant dense<0.000000e+00> : vector<64x64xf32>
    %160 = tpu.matmul %157, %159, %cst_160 {dimension_numbers = #tpu.dot_dimension_numbers<[1], [0], [0], [1], [0, 0, 1, 1], [], []>} : vector<64x64xf32>, vector<64x64xf32>, vector<64x64xf32> -> vector<64x64xf32>
    %161 = arith.addf %154, %160 : vector<64x64xf32>
    %c0_161 = arith.constant 0 : index
    %c4_162 = arith.constant 4 : index
    %c3_163 = arith.constant 3 : index
    %c0_164 = arith.constant 0 : index
    %162 = vector.load %arg1[%c0_161, %c4_162, %c3_163, %c0_164] : memref<1x12x12x64xf32, #tpu.memory_space<vmem>>, vector<1x8x8x64xf32>
    %163 = vector.shape_cast %162 : vector<1x8x8x64xf32> to vector<8x8x64xf32>
    %164 = vector.shape_cast %163 : vector<8x8x64xf32> to vector<64x64xf32>
    %c23 = arith.constant 23 : index
    %c0_165 = arith.constant 0 : index
    %c0_166 = arith.constant 0 : index
    %165 = vector.load %arg2[%c23, %c0_165, %c0_166] : memref<25x64x64xf32, #tpu.memory_space<vmem>>, vector<1x64x64xf32>
    %166 = vector.shape_cast %165 : vector<1x64x64xf32> to vector<64x64xf32>
    %cst_167 = arith.constant dense<0.000000e+00> : vector<64x64xf32>
    %167 = tpu.matmul %164, %166, %cst_167 {dimension_numbers = #tpu.dot_dimension_numbers<[1], [0], [0], [1], [0, 0, 1, 1], [], []>} : vector<64x64xf32>, vector<64x64xf32>, vector<64x64xf32> -> vector<64x64xf32>
    %168 = arith.addf %161, %167 : vector<64x64xf32>
    %c0_168 = arith.constant 0 : index
    %c4_169 = arith.constant 4 : index
    %c4_170 = arith.constant 4 : index
    %c0_171 = arith.constant 0 : index
    %169 = vector.load %arg1[%c0_168, %c4_169, %c4_170, %c0_171] : memref<1x12x12x64xf32, #tpu.memory_space<vmem>>, vector<1x8x8x64xf32>
    %170 = vector.shape_cast %169 : vector<1x8x8x64xf32> to vector<8x8x64xf32>
    %171 = vector.shape_cast %170 : vector<8x8x64xf32> to vector<64x64xf32>
    %c24 = arith.constant 24 : index
    %c0_172 = arith.constant 0 : index
    %c0_173 = arith.constant 0 : index
    %172 = vector.load %arg2[%c24, %c0_172, %c0_173] : memref<25x64x64xf32, #tpu.memory_space<vmem>>, vector<1x64x64xf32>
    %173 = vector.shape_cast %172 : vector<1x64x64xf32> to vector<64x64xf32>
    %cst_174 = arith.constant dense<0.000000e+00> : vector<64x64xf32>
    %174 = tpu.matmul %171, %173, %cst_174 {dimension_numbers = #tpu.dot_dimension_numbers<[1], [0], [0], [1], [0, 0, 1, 1], [], []>} : vector<64x64xf32>, vector<64x64xf32>, vector<64x64xf32> -> vector<64x64xf32>
    %175 = arith.addf %168, %174 : vector<64x64xf32>
    %c0_175 = arith.constant 0 : index
    %c0_176 = arith.constant 0 : index
    %c0_177 = arith.constant 0 : index
    %176 = vector.load %arg3[%c0_175, %c0_176, %c0_177] : memref<4x16x64xf32, #tpu.memory_space<vmem>>, vector<1x16x64xf32>
    %177 = vector.shape_cast %176 : vector<1x16x64xf32> to vector<16x64xf32>
    %cst_178 = arith.constant dense<0.000000e+00> : vector<16x64xf32>
    %178 = tpu.matmul %177, %175, %cst_178 {dimension_numbers = #tpu.dot_dimension_numbers<[1], [0], [0], [1], [0, 0, 1, 1], [], []>} : vector<16x64xf32>, vector<64x64xf32>, vector<16x64xf32> -> vector<16x64xf32>
    %c1_179 = arith.constant 1 : index
    %c0_180 = arith.constant 0 : index
    %c0_181 = arith.constant 0 : index
    %179 = vector.load %arg3[%c1_179, %c0_180, %c0_181] : memref<4x16x64xf32, #tpu.memory_space<vmem>>, vector<1x16x64xf32>
    %180 = vector.shape_cast %179 : vector<1x16x64xf32> to vector<16x64xf32>
    %cst_182 = arith.constant dense<0.000000e+00> : vector<16x64xf32>
    %181 = tpu.matmul %180, %175, %cst_182 {dimension_numbers = #tpu.dot_dimension_numbers<[1], [0], [0], [1], [0, 0, 1, 1], [], []>} : vector<16x64xf32>, vector<64x64xf32>, vector<16x64xf32> -> vector<16x64xf32>
    %182 = arith.maximumf %178, %181 : vector<16x64xf32>
    %c2_183 = arith.constant 2 : index
    %c0_184 = arith.constant 0 : index
    %c0_185 = arith.constant 0 : index
    %183 = vector.load %arg3[%c2_183, %c0_184, %c0_185] : memref<4x16x64xf32, #tpu.memory_space<vmem>>, vector<1x16x64xf32>
    %184 = vector.shape_cast %183 : vector<1x16x64xf32> to vector<16x64xf32>
    %cst_186 = arith.constant dense<0.000000e+00> : vector<16x64xf32>
    %185 = tpu.matmul %184, %175, %cst_186 {dimension_numbers = #tpu.dot_dimension_numbers<[1], [0], [0], [1], [0, 0, 1, 1], [], []>} : vector<16x64xf32>, vector<64x64xf32>, vector<16x64xf32> -> vector<16x64xf32>
    %186 = arith.maximumf %182, %185 : vector<16x64xf32>
    %c3_187 = arith.constant 3 : index
    %c0_188 = arith.constant 0 : index
    %c0_189 = arith.constant 0 : index
    %187 = vector.load %arg3[%c3_187, %c0_188, %c0_189] : memref<4x16x64xf32, #tpu.memory_space<vmem>>, vector<1x16x64xf32>
    %188 = vector.shape_cast %187 : vector<1x16x64xf32> to vector<16x64xf32>
    %cst_190 = arith.constant dense<0.000000e+00> : vector<16x64xf32>
    %189 = tpu.matmul %188, %175, %cst_190 {dimension_numbers = #tpu.dot_dimension_numbers<[1], [0], [0], [1], [0, 0, 1, 1], [], []>} : vector<16x64xf32>, vector<64x64xf32>, vector<16x64xf32> -> vector<16x64xf32>
    %190 = arith.maximumf %186, %189 : vector<16x64xf32>
    %c0_191 = arith.constant 0 : index
    %c0_192 = arith.constant 0 : index
    %191 = vector.load %arg4[%c0_191, %c0_192] : memref<1x64xf32, #tpu.memory_space<vmem>>, vector<1x64xf32>
    %192 = vector.broadcast %191 : vector<1x64xf32> to vector<16x64xf32>
    %193 = arith.addf %190, %192 : vector<16x64xf32>
    %cst_193 = arith.constant 0.000000e+00 : f32
    %194 = vector.broadcast %cst_193 : f32 to vector<16x64xf32>
    %195 = arith.maximumf %193, %194 : vector<16x64xf32>
    %196 = arith.truncf %195 : vector<16x64xf32> to vector<16x64xbf16>
    %c0_194 = arith.constant 0 : index
    %c0_195 = arith.constant 0 : index
    %c0_196 = arith.constant 0 : index
    %197 = vector.load %arg5[%c0_194, %c0_195, %c0_196] : memref<1x16x64xbf16, #tpu.memory_space<vmem>>, vector<1x16x64xbf16>
    %198 = vector.shape_cast %197 : vector<1x16x64xbf16> to vector<16x64xbf16>
    %199 = vector.shape_cast %196 : vector<16x64xbf16> to vector<1x16x64xbf16>
    tpu.vector_store %arg5[%c0_194, %c0_195, %c0_196], %199 {strides = array<i32>} : memref<1x16x64xbf16, #tpu.memory_space<vmem>>, vector<1x16x64xbf16>,
    return
  }
  func.func @transform_0(%arg0: i32) -> (i32, i32, i32, i32) {
    %c0_i32 = arith.constant 0 : i32
    %c0_i32_0 = arith.constant 0 : i32
    %c0_i32_1 = arith.constant 0 : i32
    %c0_i32_2 = arith.constant 0 : i32
    return %arg0, %c0_i32, %c0_i32_0, %c0_i32_1 : i32, i32, i32, i32
  }
  func.func @transform_1(%arg0: i32) -> (i32, i32, i32) {
    %c0_i32 = arith.constant 0 : i32
    %c0_i32_0 = arith.constant 0 : i32
    %c0_i32_1 = arith.constant 0 : i32
    %c0_i32_2 = arith.constant 0 : i32
    return %c0_i32, %c0_i32_0, %c0_i32_1 : i32, i32, i32
  }
  func.func @transform_2(%arg0: i32) -> (i32, i32, i32) {
    %c0_i32 = arith.constant 0 : i32
    %c0_i32_0 = arith.constant 0 : i32
    %c0_i32_1 = arith.constant 0 : i32
    %c0_i32_2 = arith.constant 0 : i32
    return %c0_i32, %c0_i32_0, %c0_i32_1 : i32, i32, i32
  }
  func.func @transform_3(%arg0: i32) -> (i32, i32) {
    %c0_i32 = arith.constant 0 : i32
    %c0_i32_0 = arith.constant 0 : i32
    %c0_i32_1 = arith.constant 0 : i32
    return %c0_i32, %c0_i32_0 : i32, i32
  }
  func.func @transform_4(%arg0: i32) -> (i32, i32, i32) {
    %c0_i32 = arith.constant 0 : i32
    %c0_i32_0 = arith.constant 0 : i32
    %c0_i32_1 = arith.constant 0 : i32
    return %arg0, %c0_i32, %c0_i32_0 : i32, i32, i32
  }
}

module attributes {stable_mosaic.version = 11 : i64} {
  func.func @_fc_kernel(%arg0: i32, %arg1: memref<128x1024xbf16, #tpu.memory_space<vmem>>, %arg2: memref<1024x128xbf16, #tpu.memory_space<vmem>>, %arg3: memref<1x128xf32, #tpu.memory_space<vmem>>, %arg4: memref<128x128xbf16, #tpu.memory_space<vmem>>, %arg5: memref<1x128xf32, #tpu.memory_space<vmem>>, %arg6: memref<128x128xf32, #tpu.memory_space<vmem>>) attributes {dimension_semantics = [#tpu.dimension_semantics<parallel>], iteration_bounds = array<i64: 1>, scalar_prefetch = 0 : i64, scratch_operands = 0 : i64, tpu.core_type = #tpu.core_type<tc>, window_params = [{transform_indices = @transform_0, window_bounds = array<i64: 128, 1024>}, {pipeline_mode = #tpu.pipeline_mode<synchronous>, transform_indices = @transform_1, window_bounds = array<i64: 1024, 128>}, {pipeline_mode = #tpu.pipeline_mode<synchronous>, transform_indices = @transform_2, window_bounds = array<i64: 1, 128>}, {pipeline_mode = #tpu.pipeline_mode<synchronous>, transform_indices = @transform_3, window_bounds = array<i64: 128, 128>}, {pipeline_mode = #tpu.pipeline_mode<synchronous>, transform_indices = @transform_4, window_bounds = array<i64: 1, 128>}, {transform_indices = @transform_5, window_bounds = array<i64: 128, 128>}]} {
    %c0 = arith.constant 0 : index
    %c0_0 = arith.constant 0 : index
    %0 = vector.load %arg1[%c0, %c0_0] : memref<128x1024xbf16, #tpu.memory_space<vmem>>, vector<128x1024xbf16>
    %c0_1 = arith.constant 0 : index
    %c0_2 = arith.constant 0 : index
    %1 = vector.load %arg2[%c0_1, %c0_2] : memref<1024x128xbf16, #tpu.memory_space<vmem>>, vector<1024x128xbf16>
    %cst = arith.constant dense<0.000000e+00> : vector<128x128xf32>
    %2 = tpu.matmul %0, %1, %cst {dimension_numbers = #tpu.dot_dimension_numbers<[1], [0], [0], [1], [0, 0, 1, 1], [], []>} : vector<128x1024xbf16>, vector<1024x128xbf16>, vector<128x128xf32> -> vector<128x128xf32>
    %c0_3 = arith.constant 0 : index
    %c0_4 = arith.constant 0 : index
    %3 = vector.load %arg3[%c0_3, %c0_4] : memref<1x128xf32, #tpu.memory_space<vmem>>, vector<1x128xf32>
    %4 = vector.broadcast %3 : vector<1x128xf32> to vector<128x128xf32>
    %5 = arith.addf %2, %4 : vector<128x128xf32>
    %cst_5 = arith.constant 0.000000e+00 : f32
    %6 = vector.broadcast %cst_5 : f32 to vector<128x128xf32>
    %7 = arith.maximumf %5, %6 : vector<128x128xf32>
    %8 = arith.truncf %7 : vector<128x128xf32> to vector<128x128xbf16>
    %c0_6 = arith.constant 0 : index
    %c0_7 = arith.constant 0 : index
    %9 = vector.load %arg4[%c0_6, %c0_7] : memref<128x128xbf16, #tpu.memory_space<vmem>>, vector<128x128xbf16>
    %cst_8 = arith.constant dense<0.000000e+00> : vector<128x128xf32>
    %10 = tpu.matmul %8, %9, %cst_8 {dimension_numbers = #tpu.dot_dimension_numbers<[1], [0], [0], [1], [0, 0, 1, 1], [], []>} : vector<128x128xbf16>, vector<128x128xbf16>, vector<128x128xf32> -> vector<128x128xf32>
    %c0_9 = arith.constant 0 : index
    %c0_10 = arith.constant 0 : index
    %11 = vector.load %arg5[%c0_9, %c0_10] : memref<1x128xf32, #tpu.memory_space<vmem>>, vector<1x128xf32>
    %12 = vector.broadcast %11 : vector<1x128xf32> to vector<128x128xf32>
    %13 = arith.addf %10, %12 : vector<128x128xf32>
    %c0_11 = arith.constant 0 : index
    %c0_12 = arith.constant 0 : index
    %14 = vector.load %arg6[%c0_11, %c0_12] : memref<128x128xf32, #tpu.memory_space<vmem>>, vector<128x128xf32>
    tpu.vector_store %arg6[%c0_11, %c0_12], %13 {strides = array<i32>} : memref<128x128xf32, #tpu.memory_space<vmem>>, vector<128x128xf32>,
    return
  }
  func.func @transform_0(%arg0: i32) -> (i32, i32) {
    %c0_i32 = arith.constant 0 : i32
    %c0_i32_0 = arith.constant 0 : i32
    return %arg0, %c0_i32 : i32, i32
  }
  func.func @transform_1(%arg0: i32) -> (i32, i32) {
    %c0_i32 = arith.constant 0 : i32
    %c0_i32_0 = arith.constant 0 : i32
    %c0_i32_1 = arith.constant 0 : i32
    return %c0_i32, %c0_i32_0 : i32, i32
  }
  func.func @transform_2(%arg0: i32) -> (i32, i32) {
    %c0_i32 = arith.constant 0 : i32
    %c0_i32_0 = arith.constant 0 : i32
    %c0_i32_1 = arith.constant 0 : i32
    return %c0_i32, %c0_i32_0 : i32, i32
  }
  func.func @transform_3(%arg0: i32) -> (i32, i32) {
    %c0_i32 = arith.constant 0 : i32
    %c0_i32_0 = arith.constant 0 : i32
    %c0_i32_1 = arith.constant 0 : i32
    return %c0_i32, %c0_i32_0 : i32, i32
  }
  func.func @transform_4(%arg0: i32) -> (i32, i32) {
    %c0_i32 = arith.constant 0 : i32
    %c0_i32_0 = arith.constant 0 : i32
    %c0_i32_1 = arith.constant 0 : i32
    return %c0_i32, %c0_i32_0 : i32, i32
  }
  func.func @transform_5(%arg0: i32) -> (i32, i32) {
    %c0_i32 = arith.constant 0 : i32
    %c0_i32_0 = arith.constant 0 : i32
    return %arg0, %c0_i32 : i32, i32
  }
}

</mosaic_0001>

<llo_original>
// kernel: mnist_conv_forward.3
$region0: #{mnist_conv_forward.3}
  #allocation0 [shape = 'u32[]', space=smem, size = 0x4, offset = 0x4, fixed_abs, tag = 'smem constant byte address 0x4 - core index']
  #allocation1 [shape = 'u32[144,128]{1,0:T(1,128)}', space=vmem, size = 0x12000, scoped, tag = 'internal scratch']
  %s0 = inlined_call_operand.vmem [shape: bf16[2,4,144,25], index: 0, kind: input, shape index: {}]
  %s1 = inlined_call_operand.vmem [shape: bf16[25,64], index: 1, kind: input, shape index: {}]
  %s2 = inlined_call_operand.vmem [shape: f32[1,64], index: 2, kind: input, shape index: {}]
  %s3 = inlined_call_operand.vmem [shape: f32[2,144,64], index: 3, kind: output, shape index: {}]
  %s4 = sld [smem:[#allocation0]]
  $region45: #{mnist_conv_forward.3} parent=0
    _
  %s6 = ssub.s32 1, %s4
  %s7 = scalar_select 0, %s6, %s4
  loop: start=0, step=1, limit=4
  $region2: #{mnist_conv_forward.3} parent=0 // loop_pre_header
    _
  $region3: #{mnist_conv_forward.3} parent=0 // loop_header
    %s9 = sphi 0, %s13
    %p10 = scmp.ge.s32.totalorder %s9, 4
    %s19 = sphi 0, %s21
    %s22 = sphi 0, %s19
    %s23 = sphi 0, %s22
    %s39 = sphi 0, %s23
    %s43 = sphi 0, %s43
    %s45 = sphi 0, %s43
    %s46 = sphi 0, %s45
    %s60 = sphi 0, %s46
    %s64 = sphi 0, %s64
    %s66 = sphi 0, %s64
    %s67 = sphi 0, %s66
    %s81 = sphi 0, %s67
    %s87 = sphi 0, %s89
    %s90 = sphi 0, %s87
    %s91 = sphi 0, %s90
    %s107 = sphi 0, %s91
  $region4: #{mnist_conv_forward.3} parent=0 // loop_header_branch
    %12 = sbr.rel (%p10) target = $region8
  $region5: #{mnist_conv_forward.3} parent=0 // loop_body
    %s14 = ssub.s32 %s9, 1
    %s15 = ssub.s32 %s9, 2
    %s16 = sadd.s32 %s9, 1
    %s17 = ssub.s32 %s9, %s16
    %p18 = scmp.eq.s32.totalorder %s17, 0
    %s20 = sadd.s32 %s19, 1
    %s21 = scalar_select %p18, %s19, %s20
    %p24 = pneg %p18
    %p25 = scmp.eq.s32.totalorder %s9, 1
    %p26 = por %p24, %p25
    %p27 = scmp.ne.s32.totalorder %s19, %s22
    %p28 = scmp.eq.s32.totalorder %s9, 0
    %p29 = por %p27, %p28
    %p30 = scmp.ne.s32.totalorder %s19, %s22
    %p31 = scmp.eq.s32.totalorder %s14, 1
    %p32 = por %p30, %p31
    %p33 = scmp.ne.s32.totalorder %s22, %s23
    %p34 = scmp.eq.s32.totalorder %s14, 0
    %p35 = por %p33, %p34
    %p36 = scmp.ne.s32.totalorder %s22, %s23
    %p37 = scmp.eq.s32.totalorder %s15, 1
    %p38 = por %p36, %p37
    %p40 = scmp.ne.s32.totalorder %s23, %s39
    %p41 = scmp.eq.s32.totalorder %s15, 0
    %p42 = por %p40, %p41
    %s44 = sadd.s32 %s43, 1
    %p47 = scmp.eq.s32.totalorder %s9, 1
    %p48 = scmp.ne.s32.totalorder %s43, %s45
    %p49 = scmp.eq.s32.totalorder %s9, 0
    %p50 = por %p48, %p49
    %p51 = scmp.ne.s32.totalorder %s43, %s45
    %p52 = scmp.eq.s32.totalorder %s14, 1
    %p53 = por %p51, %p52
    %p54 = scmp.ne.s32.totalorder %s45, %s46
    %p55 = scmp.eq.s32.totalorder %s14, 0
    %p56 = por %p54, %p55
    %p57 = scmp.ne.s32.totalorder %s45, %s46
    %p58 = scmp.eq.s32.totalorder %s15, 1
    %p59 = por %p57, %p58
    %p61 = scmp.ne.s32.totalorder %s46, %s60
    %p62 = scmp.eq.s32.totalorder %s15, 0
    %p63 = por %p61, %p62
    %s65 = sadd.s32 %s64, 1
    %p68 = scmp.eq.s32.totalorder %s9, 1
    %p69 = scmp.ne.s32.totalorder %s64, %s66
    %p70 = scmp.eq.s32.totalorder %s9, 0
    %p71 = por %p69, %p70
    %p72 = scmp.ne.s32.totalorder %s64, %s66
    %p73 = scmp.eq.s32.totalorder %s14, 1
    %p74 = por %p72, %p73
    %p75 = scmp.ne.s32.totalorder %s66, %s67
    %p76 = scmp.eq.s32.totalorder %s14, 0
    %p77 = por %p75, %p76
    %p78 = scmp.ne.s32.totalorder %s66, %s67
    %p79 = scmp.eq.s32.totalorder %s15, 1
    %p80 = por %p78, %p79
    %p82 = scmp.ne.s32.totalorder %s67, %s81
    %p83 = scmp.eq.s32.totalorder %s15, 0
    %p84 = por %p82, %p83
    %s85 = ssub.s32 %s9, %s16
    %p86 = scmp.eq.s32.totalorder %s85, 0
    %s88 = sadd.s32 %s87, 1
    %s89 = scalar_select %p86, %s87, %s88
    %p92 = pneg %p86
    %p93 = scmp.eq.s32.totalorder %s9, 1
    %p94 = por %p92, %p93
    %p95 = scmp.ne.s32.totalorder %s87, %s90
    %p96 = scmp.eq.s32.totalorder %s9, 0
    %p97 = por %p95, %p96
    %p98 = scmp.ne.s32.totalorder %s87, %s90
    %p99 = scmp.eq.s32.totalorder %s14, 1
    %p100 = por %p98, %p99
    %p101 = scmp.ne.s32.totalorder %s90, %s91
    %p102 = scmp.eq.s32.totalorder %s14, 0
    %p103 = por %p101, %p102
    %p104 = scmp.ne.s32.totalorder %s90, %s91
    %p105 = scmp.eq.s32.totalorder %s15, 1
    %p106 = por %p104, %p105
    %p108 = scmp.ne.s32.totalorder %s91, %s107
    %p109 = scmp.eq.s32.totalorder %s15, 0
    %p110 = por %p108, %p109
    %p111 = scmp.le.s32.totalorder 1, %s9
    %p112 = scmp.lt.s32.totalorder %s9, 3
    %p113 = pnand %p111, %p112
    %p114 = pneg %p113
    // Predicated region
    $region9: #{mnist_conv_forward.3} parent=5 // pred_check
      _
    $region10: #{mnist_conv_forward.3} parent=5 // pred_check_branch
      %116 = sbr.rel (%p113) target = $region12
    $region11: #{mnist_conv_forward.3} parent=5 // pred_region
      %s117 = ssub.s32 %s9, 1
      // Predicated region
      $region13: #{mnist_conv_forward.3} parent=11 // pred_check
        %p118 = pneg %p56
      $region14: #{mnist_conv_forward.3} parent=11 // pred_check_branch
        %120 = sbr.rel (%p118) target = $region16
      $region15: #{mnist_conv_forward.3} parent=11 // pred_region
        _
      $region16: #{mnist_conv_forward.3} parent=11 // pred_fallthru
        _
      // Predicated region
      $region17: #{mnist_conv_forward.3} parent=11 // pred_check
        %p121 = pneg %p77
      $region18: #{mnist_conv_forward.3} parent=11 // pred_check_branch
        %123 = sbr.rel (%p121) target = $region20
      $region19: #{mnist_conv_forward.3} parent=11 // pred_region
        _
      $region20: #{mnist_conv_forward.3} parent=11 // pred_fallthru
        _
    $region12: #{mnist_conv_forward.3} parent=5 // pred_fallthru
      _
    %p124 = scmp.lt.s32.totalorder %s9, 2
    // Predicated region
    $region21: #{mnist_conv_forward.3} parent=5 // pred_check
      %p125 = pneg %p124
    $region22: #{mnist_conv_forward.3} parent=5 // pred_check_branch
      %127 = sbr.rel (%p125) target = $region24
    $region23: #{mnist_conv_forward.3} parent=5 // pred_region
      // Predicated region
      $region25: #{mnist_conv_forward.3} parent=23 // pred_check
        %p128 = pneg %p29
      $region26: #{mnist_conv_forward.3} parent=23 // pred_check_branch
        %130 = sbr.rel (%p128) target = $region28
      $region27: #{mnist_conv_forward.3} parent=23 // pred_region
        %p131 = scmp.lt.s32.totalorder %s9, 1
        %s132 = scalar_select %p131, %s9, 1
        %s133 = smul.addr %s132, 72
        %s134 = smul.addr %s133, 4
        %s135 = scalar_lea.vmem %s0, %s134
      $region28: #{mnist_conv_forward.3} parent=23 // pred_fallthru
        _
    $region24: #{mnist_conv_forward.3} parent=5 // pred_fallthru
      _
    %p136 = scmp.le.s32.totalorder 1, %s9
    %p137 = scmp.lt.s32.totalorder %s9, 3
    %p138 = pnand %p136, %p137
    %p139 = pneg %p138
    // Predicated region
    $region29: #{mnist_conv_forward.3} parent=5 // pred_check
      _
    $region30: #{mnist_conv_forward.3} parent=5 // pred_check_branch
      %141 = sbr.rel (%p138) target = $region32
    $region31: #{mnist_conv_forward.3} parent=5 // pred_region
      %s142 = ssub.s32 %s9, 1
      %p143 = scmp.lt.s32.totalorder %s14, 1
      %s144 = scalar_select %p143, %s14, 1
      %s145 = smul.addr %s144, 72
      %s146 = smul.addr %s145, 4
      %s147 = scalar_lea.vmem %s0, %s146
      %p148 = pneg %p35
      %p149 = pneg %p32
      %p150 = pneg %p56
      %p151 = pneg %p53
      %p152 = pneg %p77
      %p153 = pneg %p74
      %p154 = pneg %p103
      %p155 = pneg %p100
      %p156 = scmp.lt.s32.totalorder %s14, 1
      %s157 = scalar_select %p156, %s14, 1
      %s158 = smul.addr %s157, 18
      %s159 = smul.addr %s158, 8
      %s160 = scalar_lea.vmem %s3, %s159
      %p161 = scmp.lt.s32.totalorder %s14, 1
      %s162 = scalar_select %p161, %s14, 1
      %s163 = smul.addr %s162, 72
      %s164 = smul.addr %s163, 4
      %s165 = scalar_lea.vmem %s0, %s164
      %p166 = scmp.lt.s32.totalorder %s14, 1
      %s167 = scalar_select %p166, %s14, 1
      %s168 = smul.addr %s167, 18
      %s169 = smul.addr %s168, 8
      %s170 = scalar_lea.vmem %s3, %s169
      %v172 = vld [vmem:[%s1] sm:$0xf]
      %v173 = vld [vmem:[%s1 + $0x4] sm:$0xf]
      %v174 = vld [vmem:[%s1 + $0x8] sm:$0xf]
      %v175 = vld [vmem:[%s1 + $0xc] sm:$0x1]
      %v176 = vld [vmem:[%s165] sm:$0xf]
      %v177 = vld [vmem:[%s165 + $0x4] sm:$0xf]
      %v178 = vld [vmem:[%s165 + $0x8] sm:$0xf]
      %v179 = vld [vmem:[%s165 + $0xc] sm:$0xf]
      %v180 = vld [vmem:[%s165 + $0x10] sm:$0xf]
      %v181 = vld [vmem:[%s165 + $0x14] sm:$0xf]
      %v182 = vld [vmem:[%s165 + $0x18] sm:$0xf]
      %v183 = vld [vmem:[%s165 + $0x1c] sm:$0xf]
      %v184 = vld [vmem:[%s165 + $0x20] sm:$0xf]
      %v185 = vld [vmem:[%s165 + $0x24] sm:$0xf]
      %v186 = vld [vmem:[%s165 + $0x28] sm:$0xf]
      %v187 = vld [vmem:[%s165 + $0x2c] sm:$0xf]
      %v188 = vld [vmem:[%s165 + $0x30] sm:$0xf]
      %v189 = vld [vmem:[%s165 + $0x34] sm:$0xf]
      %v190 = vld [vmem:[%s165 + $0x38] sm:$0xf]
      %v191 = vld [vmem:[%s165 + $0x3c] sm:$0xf]
      %v192 = vld [vmem:[%s165 + $0x40] sm:$0xf]
      %v193 = vld [vmem:[%s165 + $0x44] sm:$0xf]
      %v212 = vunpack.c.l.b16 %v176
      %v213 = vunpack.c.l.b16 %v177
      %v214 = vunpack.c.l.b16 %v178
      %v215 = vunpack.c.l.b16 %v179
      %v216 = vunpack.c.l.b16 %v180
      %v217 = vunpack.c.l.b16 %v181
      %v218 = vunpack.c.l.b16 %v182
      %v219 = vunpack.c.l.b16 %v183
      %v220 = vunpack.c.l.b16 %v184
      %v221 = vunpack.c.l.b16 %v185
      %v222 = vunpack.c.l.b16 %v186
      %v223 = vunpack.c.l.b16 %v187
      %v224 = vunpack.c.l.b16 %v188
      %v225 = vunpack.c.l.b16 %v189
      %v226 = vunpack.c.l.b16 %v190
      %v227 = vunpack.c.l.b16 %v191
      %v228 = vunpack.c.l.b16 %v192
      %v229 = vunpack.c.l.b16 %v193
      %v230 = vpack.c.b16 %v213, %v212
      %v231 = vpack.c.b16 %v215, %v214
      %v232 = vpack.c.b16 %v217, %v216
      %v233 = vpack.c.b16 %v219, %v218
      %v234 = vpack.c.b16 %v221, %v220
      %v235 = vpack.c.b16 %v223, %v222
      %v236 = vpack.c.b16 %v225, %v224
      %v237 = vpack.c.b16 %v227, %v226
      %v238 = vpack.c.b16 %v229, %v228
      %v243 = vunpack.c.l.b16 %v172
      %v244 = vunpack.c.l.b16 %v173
      %v245 = vunpack.c.l.b16 %v174
      %v246 = vunpack.c.l.b16 %v175
      %v247 = vpack.c.b16 %v244, %v243
      %v248 = vpack.c.b16 %v246, %v245
      %vm250 = vcmask 203776
      %v252 = vsel %vm250, %v230, 0
      %v255 = vsel %vm250, %v231, 0
      %v258 = vsel %vm250, %v232, 0
      %v261 = vsel %vm250, %v233, 0
      %v264 = vsel %vm250, %v234, 0
      %v267 = vsel %vm250, %v235, 0
      %v270 = vsel %vm250, %v236, 0
      %v273 = vsel %vm250, %v237, 0
      %v276 = vsel %vm250, %v238, 0
      %vm278 = vcmask 1043456
      %vm279 = vcmask 1044480
      %v280 = vsel %vm278, 4294967295, 65535
      %v281 = vsel %vm279, %v280, 0
      %v283 = vand.u32 %v248, %v281
      %285 = vmatprep.subr.bf16.mxu0 0
      %286 = vmatpush1.bf16.msra.mxu0 %v247
      %287 = vmatprep.subr.bf16.mxu0 0
      %288 = vmatpush1.bf16.msra.mxu0 %v283
      %289 = vmatprep.subr.bf16.mxu0 0
      %290 = vmatpush1.bf16.msra.mxu0 0
      %291 = vmatprep.subr.bf16.mxu0 0
      %292 = vmatpush1.bf16.msra.mxu0 0
      %293 = vmatprep.subr.bf16.mxu0 0
      %294 = vmatpush1.bf16.msra.mxu0 0
      %295 = vmatprep.subr.bf16.mxu0 0
      %296 = vmatpush1.bf16.msra.mxu0 0
      %297 = vmatprep.subr.bf16.mxu0 0
      %298 = vmatpush1.bf16.msra.mxu0 0
      %299 = vmatprep.subr.bf16.mxu0 0
      %300 = vmatpush1.bf16.msra.mxu0 0
      %301 = vmatprep.subr.bf16.mxu0 0
      %302 = vmatpush1.bf16.msra.mxu0 0
      %303 = vmatprep.subr.bf16.mxu0 0
      %304 = vmatpush1.bf16.msra.mxu0 0
      %305 = vmatprep.subr.bf16.mxu0 0
      %306 = vmatpush1.bf16.msra.mxu0 0
      %307 = vmatprep.subr.bf16.mxu0 0
      %308 = vmatpush1.bf16.msra.mxu0 0
      %309 = vmatprep.subr.bf16.mxu0 0
      %310 = vmatpush1.bf16.msra.mxu0 0
      %311 = vmatprep.subr.bf16.mxu0 0
      %312 = vmatpush1.bf16.msra.mxu0 0
      %313 = vmatprep.subr.bf16.mxu0 0
      %314 = vmatpush1.bf16.msra.mxu0 0
      %315 = vmatprep.subr.bf16.mxu0 0
      %316 = vmatpush1.bf16.msra.mxu0 0
      %317 = vmatprep.mubr.bf16.mxu0 0
      %318 = vmatmul.mubr.bf16.gmra.mrb[0].mxu0 %v252
      %v319 = vpop.f32.mrb[0].mxu0
      %v320 = vadd.f32 0.0, %v319
      %v321 = vpop.f32.mrb[0].mxu0
      %v322 = vpop.f32.mrb[0].mxu0
      %v323 = vadd.f32 0.0, %v322
      %v324 = vpop.f32.mrb[0].mxu0
      %325 = vmatprep.mubr.bf16.mxu0 0
      %326 = vmatmul.mubr.bf16.gmra.mrb[0].mxu0 %v255
      %v327 = vpop.f32.mrb[0].mxu0
      %v328 = vadd.f32 0.0, %v327
      %v329 = vpop.f32.mrb[0].mxu0
      %v330 = vpop.f32.mrb[0].mxu0
      %v331 = vadd.f32 0.0, %v330
      %v332 = vpop.f32.mrb[0].mxu0
      %333 = vmatprep.mubr.bf16.mxu0 0
      %334 = vmatmul.mubr.bf16.gmra.mrb[0].mxu0 %v258
      %v335 = vpop.f32.mrb[0].mxu0
      %v336 = vadd.f32 0.0, %v335
      %v337 = vpop.f32.mrb[0].mxu0
      %v338 = vpop.f32.mrb[0].mxu0
      %v339 = vadd.f32 0.0, %v338
      %v340 = vpop.f32.mrb[0].mxu0
      %341 = vmatprep.mubr.bf16.mxu0 0
      %342 = vmatmul.mubr.bf16.gmra.mrb[0].mxu0 %v261
      %v343 = vpop.f32.mrb[0].mxu0
      %v344 = vadd.f32 0.0, %v343
      %v345 = vpop.f32.mrb[0].mxu0
      %v346 = vpop.f32.mrb[0].mxu0
      %v347 = vadd.f32 0.0, %v346
      %v348 = vpop.f32.mrb[0].mxu0
      %349 = vmatprep.mubr.bf16.mxu0 0
      %350 = vmatmul.mubr.bf16.gmra.mrb[0].mxu0 %v264
      %v351 = vpop.f32.mrb[0].mxu0
      %v352 = vadd.f32 0.0, %v351
      %v353 = vpop.f32.mrb[0].mxu0
      %v354 = vpop.f32.mrb[0].mxu0
      %v355 = vadd.f32 0.0, %v354
      %v356 = vpop.f32.mrb[0].mxu0
      %357 = vmatprep.mubr.bf16.mxu0 0
      %358 = vmatmul.mubr.bf16.gmra.mrb[0].mxu0 %v267
      %v359 = vpop.f32.mrb[0].mxu0
      %v360 = vadd.f32 0.0, %v359
      %v361 = vpop.f32.mrb[0].mxu0
      %v362 = vpop.f32.mrb[0].mxu0
      %v363 = vadd.f32 0.0, %v362
      %v364 = vpop.f32.mrb[0].mxu0
      %365 = vmatprep.mubr.bf16.mxu0 0
      %366 = vmatmul.mubr.bf16.gmra.mrb[0].mxu0 %v270
      %v367 = vpop.f32.mrb[0].mxu0
      %v368 = vadd.f32 0.0, %v367
      %v369 = vpop.f32.mrb[0].mxu0
      %v370 = vpop.f32.mrb[0].mxu0
      %v371 = vadd.f32 0.0, %v370
      %v372 = vpop.f32.mrb[0].mxu0
      %373 = vmatprep.mubr.bf16.mxu0 0
      %374 = vmatmul.mubr.bf16.gmra.mrb[0].mxu0 %v273
      %v375 = vpop.f32.mrb[0].mxu0
      %v376 = vadd.f32 0.0, %v375
      %v377 = vpop.f32.mrb[0].mxu0
      %v378 = vpop.f32.mrb[0].mxu0
      %v379 = vadd.f32 0.0, %v378
      %v380 = vpop.f32.mrb[0].mxu0
      %381 = vmatprep.mubr.bf16.mxu0 0
      %382 = vmatmul.mubr.bf16.gmra.mrb[0].mxu0 %v276
      %v383 = vpop.f32.mrb[0].mxu0
      %v384 = vadd.f32 0.0, %v383
      %v385 = vpop.f32.mrb[0].mxu0
      %v386 = vpop.f32.mrb[0].mxu0
      %v387 = vadd.f32 0.0, %v386
      %v388 = vpop.f32.mrb[0].mxu0
      %389 = vdwg.mxu0
      %s390 = scalar_lea.vmem %s165, 72
      %v391 = vld [vmem:[%s390] sm:$0xf]
      %v392 = vld [vmem:[%s390 + $0x4] sm:$0xf]
      %v393 = vld [vmem:[%s390 + $0x8] sm:$0xf]
      %v394 = vld [vmem:[%s390 + $0xc] sm:$0xf]
      %v395 = vld [vmem:[%s390 + $0x10] sm:$0xf]
      %v396 = vld [vmem:[%s390 + $0x14] sm:$0xf]
      %v397 = vld [vmem:[%s390 + $0x18] sm:$0xf]
      %v398 = vld [vmem:[%s390 + $0x1c] sm:$0xf]
      %v399 = vld [vmem:[%s390 + $0x20] sm:$0xf]
      %v400 = vld [vmem:[%s390 + $0x24] sm:$0xf]
      %v401 = vld [vmem:[%s390 + $0x28] sm:$0xf]
      %v402 = vld [vmem:[%s390 + $0x2c] sm:$0xf]
      %v403 = vld [vmem:[%s390 + $0x30] sm:$0xf]
      %v404 = vld [vmem:[%s390 + $0x34] sm:$0xf]
      %v405 = vld [vmem:[%s390 + $0x38] sm:$0xf]
      %v406 = vld [vmem:[%s390 + $0x3c] sm:$0xf]
      %v407 = vld [vmem:[%s390 + $0x40] sm:$0xf]
      %v408 = vld [vmem:[%s390 + $0x44] sm:$0xf]
      %v427 = vunpack.c.l.b16 %v391
      %v428 = vunpack.c.l.b16 %v392
      %v429 = vunpack.c.l.b16 %v393
      %v430 = vunpack.c.l.b16 %v394
      %v431 = vunpack.c.l.b16 %v395
      %v432 = vunpack.c.l.b16 %v396
      %v433 = vunpack.c.l.b16 %v397
      %v434 = vunpack.c.l.b16 %v398
      %v435 = vunpack.c.l.b16 %v399
      %v436 = vunpack.c.l.b16 %v400
      %v437 = vunpack.c.l.b16 %v401
      %v438 = vunpack.c.l.b16 %v402
      %v439 = vunpack.c.l.b16 %v403
      %v440 = vunpack.c.l.b16 %v404
      %v441 = vunpack.c.l.b16 %v405
      %v442 = vunpack.c.l.b16 %v406
      %v443 = vunpack.c.l.b16 %v407
      %v444 = vunpack.c.l.b16 %v408
      %v445 = vpack.c.b16 %v428, %v427
      %v446 = vpack.c.b16 %v430, %v429
      %v447 = vpack.c.b16 %v432, %v431
      %v448 = vpack.c.b16 %v434, %v433
      %v449 = vpack.c.b16 %v436, %v435
      %v450 = vpack.c.b16 %v438, %v437
      %v451 = vpack.c.b16 %v440, %v439
      %v452 = vpack.c.b16 %v442, %v441
      %v453 = vpack.c.b16 %v444, %v443
      %v455 = vsel %vm250, %v445, 0
      %v458 = vsel %vm250, %v446, 0
      %v461 = vsel %vm250, %v447, 0
      %v464 = vsel %vm250, %v448, 0
      %v467 = vsel %vm250, %v449, 0
      %v470 = vsel %vm250, %v450, 0
      %v473 = vsel %vm250, %v451, 0
      %v476 = vsel %vm250, %v452, 0
      %v479 = vsel %vm250, %v453, 0
      %481 = vmatprep.subr.bf16.mxu0 0
      %482 = vmatpush1.bf16.msra.mxu0 %v247
      %483 = vmatprep.subr.bf16.mxu0 0
      %484 = vmatpush1.bf16.msra.mxu0 %v283
      %485 = vmatprep.subr.bf16.mxu0 0
      %486 = vmatpush1.bf16.msra.mxu0 0
      %487 = vmatprep.subr.bf16.mxu0 0
      %488 = vmatpush1.bf16.msra.mxu0 0
      %489 = vmatprep.subr.bf16.mxu0 0
      %490 = vmatpush1.bf16.msra.mxu0 0
      %491 = vmatprep.subr.bf16.mxu0 0
      %492 = vmatpush1.bf16.msra.mxu0 0
      %493 = vmatprep.subr.bf16.mxu0 0
      %494 = vmatpush1.bf16.msra.mxu0 0
      %495 = vmatprep.subr.bf16.mxu0 0
      %496 = vmatpush1.bf16.msra.mxu0 0
      %497 = vmatprep.subr.bf16.mxu0 0
      %498 = vmatpush1.bf16.msra.mxu0 0
      %499 = vmatprep.subr.bf16.mxu0 0
      %500 = vmatpush1.bf16.msra.mxu0 0
      %501 = vmatprep.subr.bf16.mxu0 0
      %502 = vmatpush1.bf16.msra.mxu0 0
      %503 = vmatprep.subr.bf16.mxu0 0
      %504 = vmatpush1.bf16.msra.mxu0 0
      %505 = vmatprep.subr.bf16.mxu0 0
      %506 = vmatpush1.bf16.msra.mxu0 0
      %507 = vmatprep.subr.bf16.mxu0 0
      %508 = vmatpush1.bf16.msra.mxu0 0
      %509 = vmatprep.subr.bf16.mxu0 0
      %510 = vmatpush1.bf16.msra.mxu0 0
      %511 = vmatprep.subr.bf16.mxu0 0
      %512 = vmatpush1.bf16.msra.mxu0 0
      %513 = vmatprep.mubr.bf16.mxu0 0
      %514 = vmatmul.mubr.bf16.gmra.mrb[0].mxu0 %v455
      %v515 = vpop.f32.mrb[0].mxu0
      %v516 = vadd.f32 0.0, %v515
      %v517 = vpop.f32.mrb[0].mxu0
      %v518 = vpop.f32.mrb[0].mxu0
      %v519 = vadd.f32 0.0, %v518
      %v520 = vpop.f32.mrb[0].mxu0
      %521 = vmatprep.mubr.bf16.mxu0 0
      %522 = vmatmul.mubr.bf16.gmra.mrb[0].mxu0 %v458
      %v523 = vpop.f32.mrb[0].mxu0
      %v524 = vadd.f32 0.0, %v523
      %v525 = vpop.f32.mrb[0].mxu0
      %v526 = vpop.f32.mrb[0].mxu0
      %v527 = vadd.f32 0.0, %v526
      %v528 = vpop.f32.mrb[0].mxu0
      %529 = vmatprep.mubr.bf16.mxu0 0
      %530 = vmatmul.mubr.bf16.gmra.mrb[0].mxu0 %v461
      %v531 = vpop.f32.mrb[0].mxu0
      %v532 = vadd.f32 0.0, %v531
      %v533 = vpop.f32.mrb[0].mxu0
      %v534 = vpop.f32.mrb[0].mxu0
      %v535 = vadd.f32 0.0, %v534
      %v536 = vpop.f32.mrb[0].mxu0
      %537 = vmatprep.mubr.bf16.mxu0 0
      %538 = vmatmul.mubr.bf16.gmra.mrb[0].mxu0 %v464
      %v539 = vpop.f32.mrb[0].mxu0
      %v540 = vadd.f32 0.0, %v539
      %v541 = vpop.f32.mrb[0].mxu0
      %v542 = vpop.f32.mrb[0].mxu0
      %v543 = vadd.f32 0.0, %v542
      %v544 = vpop.f32.mrb[0].mxu0
      %545 = vmatprep.mubr.bf16.mxu0 0
      %546 = vmatmul.mubr.bf16.gmra.mrb[0].mxu0 %v467
      %v547 = vpop.f32.mrb[0].mxu0
      %v548 = vadd.f32 0.0, %v547
      %v549 = vpop.f32.mrb[0].mxu0
      %v550 = vpop.f32.mrb[0].mxu0
      %v551 = vadd.f32 0.0, %v550
      %v552 = vpop.f32.mrb[0].mxu0
      %553 = vmatprep.mubr.bf16.mxu0 0
      %554 = vmatmul.mubr.bf16.gmra.mrb[0].mxu0 %v470
      %v555 = vpop.f32.mrb[0].mxu0
      %v556 = vadd.f32 0.0, %v555
      %v557 = vpop.f32.mrb[0].mxu0
      %v558 = vpop.f32.mrb[0].mxu0
      %v559 = vadd.f32 0.0, %v558
      %v560 = vpop.f32.mrb[0].mxu0
      %561 = vmatprep.mubr.bf16.mxu0 0
      %562 = vmatmul.mubr.bf16.gmra.mrb[0].mxu0 %v473
      %v563 = vpop.f32.mrb[0].mxu0
      %v564 = vadd.f32 0.0, %v563
      %v565 = vpop.f32.mrb[0].mxu0
      %v566 = vpop.f32.mrb[0].mxu0
      %v567 = vadd.f32 0.0, %v566
      %v568 = vpop.f32.mrb[0].mxu0
      %569 = vmatprep.mubr.bf16.mxu0 0
      %570 = vmatmul.mubr.bf16.gmra.mrb[0].mxu0 %v476
      %v571 = vpop.f32.mrb[0].mxu0
      %v572 = vadd.f32 0.0, %v571
      %v573 = vpop.f32.mrb[0].mxu0
      %v574 = vpop.f32.mrb[0].mxu0
      %v575 = vadd.f32 0.0, %v574
      %v576 = vpop.f32.mrb[0].mxu0
      %577 = vmatprep.mubr.bf16.mxu0 0
      %578 = vmatmul.mubr.bf16.gmra.mrb[0].mxu0 %v479
      %v579 = vpop.f32.mrb[0].mxu0
      %v580 = vadd.f32 0.0, %v579
      %v581 = vpop.f32.mrb[0].mxu0
      %v582 = vpop.f32.mrb[0].mxu0
      %v583 = vadd.f32 0.0, %v582
      %v584 = vpop.f32.mrb[0].mxu0
      %585 = vdwg.mxu0
      %v586 = vmax.f32 %v320, %v516
      %v587 = vmax.f32 %v323, %v519
      %v588 = vmax.f32 %v328, %v524
      %v589 = vmax.f32 %v331, %v527
      %v590 = vmax.f32 %v336, %v532
      %v591 = vmax.f32 %v339, %v535
      %v592 = vmax.f32 %v344, %v540
      %v593 = vmax.f32 %v347, %v543
      %v594 = vmax.f32 %v352, %v548
      %v595 = vmax.f32 %v355, %v551
      %v596 = vmax.f32 %v360, %v556
      %v597 = vmax.f32 %v363, %v559
      %v598 = vmax.f32 %v368, %v564
      %v599 = vmax.f32 %v371, %v567
      %v600 = vmax.f32 %v376, %v572
      %v601 = vmax.f32 %v379, %v575
      %v602 = vmax.f32 %v384, %v580
      %v603 = vmax.f32 %v387, %v583
      %s604 = scalar_lea.vmem %s165, 144
      %v605 = vld [vmem:[%s604] sm:$0xf]
      %v606 = vld [vmem:[%s604 + $0x4] sm:$0xf]
      %v607 = vld [vmem:[%s604 + $0x8] sm:$0xf]
      %v608 = vld [vmem:[%s604 + $0xc] sm:$0xf]
      %v609 = vld [vmem:[%s604 + $0x10] sm:$0xf]
      %v610 = vld [vmem:[%s604 + $0x14] sm:$0xf]
      %v611 = vld [vmem:[%s604 + $0x18] sm:$0xf]
      %v612 = vld [vmem:[%s604 + $0x1c] sm:$0xf]
      %v613 = vld [vmem:[%s604 + $0x20] sm:$0xf]
      %v614 = vld [vmem:[%s604 + $0x24] sm:$0xf]
      %v615 = vld [vmem:[%s604 + $0x28] sm:$0xf]
      %v616 = vld [vmem:[%s604 + $0x2c] sm:$0xf]
      %v617 = vld [vmem:[%s604 + $0x30] sm:$0xf]
      %v618 = vld [vmem:[%s604 + $0x34] sm:$0xf]
      %v619 = vld [vmem:[%s604 + $0x38] sm:$0xf]
      %v620 = vld [vmem:[%s604 + $0x3c] sm:$0xf]
      %v621 = vld [vmem:[%s604 + $0x40] sm:$0xf]
      %v622 = vld [vmem:[%s604 + $0x44] sm:$0xf]
      %v641 = vunpack.c.l.b16 %v605
      %v642 = vunpack.c.l.b16 %v606
      %v643 = vunpack.c.l.b16 %v607
      %v644 = vunpack.c.l.b16 %v608
      %v645 = vunpack.c.l.b16 %v609
      %v646 = vunpack.c.l.b16 %v610
      %v647 = vunpack.c.l.b16 %v611
      %v648 = vunpack.c.l.b16 %v612
      %v649 = vunpack.c.l.b16 %v613
      %v650 = vunpack.c.l.b16 %v614
      %v651 = vunpack.c.l.b16 %v615
      %v652 = vunpack.c.l.b16 %v616
      %v653 = vunpack.c.l.b16 %v617
      %v654 = vunpack.c.l.b16 %v618
      %v655 = vunpack.c.l.b16 %v619
      %v656 = vunpack.c.l.b16 %v620
      %v657 = vunpack.c.l.b16 %v621
      %v658 = vunpack.c.l.b16 %v622
      %v659 = vpack.c.b16 %v642, %v641
      %v660 = vpack.c.b16 %v644, %v643
      %v661 = vpack.c.b16 %v646, %v645
      %v662 = vpack.c.b16 %v648, %v647
      %v663 = vpack.c.b16 %v650, %v649
      %v664 = vpack.c.b16 %v652, %v651
      %v665 = vpack.c.b16 %v654, %v653
      %v666 = vpack.c.b16 %v656, %v655
      %v667 = vpack.c.b16 %v658, %v657
      %v669 = vsel %vm250, %v659, 0
      %v672 = vsel %vm250, %v660, 0
      %v675 = vsel %vm250, %v661, 0
      %v678 = vsel %vm250, %v662, 0
      %v681 = vsel %vm250, %v663, 0
      %v684 = vsel %vm250, %v664, 0
      %v687 = vsel %vm250, %v665, 0
      %v690 = vsel %vm250, %v666, 0
      %v693 = vsel %vm250, %v667, 0
      %695 = vmatprep.subr.bf16.mxu0 0
      %696 = vmatpush1.bf16.msra.mxu0 %v247
      %697 = vmatprep.subr.bf16.mxu0 0
      %698 = vmatpush1.bf16.msra.mxu0 %v283
      %699 = vmatprep.subr.bf16.mxu0 0
      %700 = vmatpush1.bf16.msra.mxu0 0
      %701 = vmatprep.subr.bf16.mxu0 0
      %702 = vmatpush1.bf16.msra.mxu0 0
      %703 = vmatprep.subr.bf16.mxu0 0
      %704 = vmatpush1.bf16.msra.mxu0 0
      %705 = vmatprep.subr.bf16.mxu0 0
      %706 = vmatpush1.bf16.msra.mxu0 0
      %707 = vmatprep.subr.bf16.mxu0 0
      %708 = vmatpush1.bf16.msra.mxu0 0
      %709 = vmatprep.subr.bf16.mxu0 0
      %710 = vmatpush1.bf16.msra.mxu0 0
      %711 = vmatprep.subr.bf16.mxu0 0
      %712 = vmatpush1.bf16.msra.mxu0 0
      %713 = vmatprep.subr.bf16.mxu0 0
      %714 = vmatpush1.bf16.msra.mxu0 0
      %715 = vmatprep.subr.bf16.mxu0 0
      %716 = vmatpush1.bf16.msra.mxu0 0
      %717 = vmatprep.subr.bf16.mxu0 0
      %718 = vmatpush1.bf16.msra.mxu0 0
      %719 = vmatprep.subr.bf16.mxu0 0
      %720 = vmatpush1.bf16.msra.mxu0 0
      %721 = vmatprep.subr.bf16.mxu0 0
      %722 = vmatpush1.bf16.msra.mxu0 0
      %723 = vmatprep.subr.bf16.mxu0 0
      %724 = vmatpush1.bf16.msra.mxu0 0
      %725 = vmatprep.subr.bf16.mxu0 0
      %726 = vmatpush1.bf16.msra.mxu0 0
      %727 = vmatprep.mubr.bf16.mxu0 0
      %728 = vmatmul.mubr.bf16.gmra.mrb[0].mxu0 %v669
      %v729 = vpop.f32.mrb[0].mxu0
      %v730 = vadd.f32 0.0, %v729
      %v731 = vpop.f32.mrb[0].mxu0
      %v732 = vpop.f32.mrb[0].mxu0
      %v733 = vadd.f32 0.0, %v732
      %v734 = vpop.f32.mrb[0].mxu0
      %735 = vmatprep.mubr.bf16.mxu0 0
      %736 = vmatmul.mubr.bf16.gmra.mrb[0].mxu0 %v672
      %v737 = vpop.f32.mrb[0].mxu0
      %v738 = vadd.f32 0.0, %v737
      %v739 = vpop.f32.mrb[0].mxu0
      %v740 = vpop.f32.mrb[0].mxu0
      %v741 = vadd.f32 0.0, %v740
      %v742 = vpop.f32.mrb[0].mxu0
      %743 = vmatprep.mubr.bf16.mxu0 0
      %744 = vmatmul.mubr.bf16.gmra.mrb[0].mxu0 %v675
      %v745 = vpop.f32.mrb[0].mxu0
      %v746 = vadd.f32 0.0, %v745
      %v747 = vpop.f32.mrb[0].mxu0
      %v748 = vpop.f32.mrb[0].mxu0
      %v749 = vadd.f32 0.0, %v748
      %v750 = vpop.f32.mrb[0].mxu0
      %751 = vmatprep.mubr.bf16.mxu0 0
      %752 = vmatmul.mubr.bf16.gmra.mrb[0].mxu0 %v678
      %v753 = vpop.f32.mrb[0].mxu0
      %v754 = vadd.f32 0.0, %v753
      %v755 = vpop.f32.mrb[0].mxu0
      %v756 = vpop.f32.mrb[0].mxu0
      %v757 = vadd.f32 0.0, %v756
      %v758 = vpop.f32.mrb[0].mxu0
      %759 = vmatprep.mubr.bf16.mxu0 0
      %760 = vmatmul.mubr.bf16.gmra.mrb[0].mxu0 %v681
      %v761 = vpop.f32.mrb[0].mxu0
      %v762 = vadd.f32 0.0, %v761
      %v763 = vpop.f32.mrb[0].mxu0
      %v764 = vpop.f32.mrb[0].mxu0
      %v765 = vadd.f32 0.0, %v764
      %v766 = vpop.f32.mrb[0].mxu0
      %767 = vmatprep.mubr.bf16.mxu0 0
      %768 = vmatmul.mubr.bf16.gmra.mrb[0].mxu0 %v684
      %v769 = vpop.f32.mrb[0].mxu0
      %v770 = vadd.f32 0.0, %v769
      %v771 = vpop.f32.mrb[0].mxu0
      %v772 = vpop.f32.mrb[0].mxu0
      %v773 = vadd.f32 0.0, %v772
      %v774 = vpop.f32.mrb[0].mxu0
      %775 = vmatprep.mubr.bf16.mxu0 0
      %776 = vmatmul.mubr.bf16.gmra.mrb[0].mxu0 %v687
      %v777 = vpop.f32.mrb[0].mxu0
      %v778 = vadd.f32 0.0, %v777
      %v779 = vpop.f32.mrb[0].mxu0
      %v780 = vpop.f32.mrb[0].mxu0
      %v781 = vadd.f32 0.0, %v780
      %v782 = vpop.f32.mrb[0].mxu0
      %783 = vmatprep.mubr.bf16.mxu0 0
      %784 = vmatmul.mubr.bf16.gmra.mrb[0].mxu0 %v690
      %v785 = vpop.f32.mrb[0].mxu0
      %v786 = vadd.f32 0.0, %v785
      %v787 = vpop.f32.mrb[0].mxu0
      %v788 = vpop.f32.mrb[0].mxu0
      %v789 = vadd.f32 0.0, %v788
      %v790 = vpop.f32.mrb[0].mxu0
      %791 = vmatprep.mubr.bf16.mxu0 0
      %792 = vmatmul.mubr.bf16.gmra.mrb[0].mxu0 %v693
      %v793 = vpop.f32.mrb[0].mxu0
      %v794 = vadd.f32 0.0, %v793
      %v795 = vpop.f32.mrb[0].mxu0
      %v796 = vpop.f32.mrb[0].mxu0
      %v797 = vadd.f32 0.0, %v796
      %v798 = vpop.f32.mrb[0].mxu0
      %799 = vdwg.mxu0
      %v800 = vmax.f32 %v586, %v730
      %v801 = vmax.f32 %v587, %v733
      %v802 = vmax.f32 %v588, %v738
      %v803 = vmax.f32 %v589, %v741
      %v804 = vmax.f32 %v590, %v746
      %v805 = vmax.f32 %v591, %v749
      %v806 = vmax.f32 %v592, %v754
      %v807 = vmax.f32 %v593, %v757
      %v808 = vmax.f32 %v594, %v762
      %v809 = vmax.f32 %v595, %v765
      %v810 = vmax.f32 %v596, %v770
      %v811 = vmax.f32 %v597, %v773
      %v812 = vmax.f32 %v598, %v778
      %v813 = vmax.f32 %v599, %v781
      %v814 = vmax.f32 %v600, %v786
      %v815 = vmax.f32 %v601, %v789
      %v816 = vmax.f32 %v602, %v794
      %v817 = vmax.f32 %v603, %v797
      %s818 = scalar_lea.vmem %s165, 216
      %v819 = vld [vmem:[%s818] sm:$0xf]
      %v820 = vld [vmem:[%s818 + $0x4] sm:$0xf]
      %v821 = vld [vmem:[%s818 + $0x8] sm:$0xf]
      %v822 = vld [vmem:[%s818 + $0xc] sm:$0xf]
      %v823 = vld [vmem:[%s818 + $0x10] sm:$0xf]
      %v824 = vld [vmem:[%s818 + $0x14] sm:$0xf]
      %v825 = vld [vmem:[%s818 + $0x18] sm:$0xf]
      %v826 = vld [vmem:[%s818 + $0x1c] sm:$0xf]
      %v827 = vld [vmem:[%s818 + $0x20] sm:$0xf]
      %v828 = vld [vmem:[%s818 + $0x24] sm:$0xf]
      %v829 = vld [vmem:[%s818 + $0x28] sm:$0xf]
      %v830 = vld [vmem:[%s818 + $0x2c] sm:$0xf]
      %v831 = vld [vmem:[%s818 + $0x30] sm:$0xf]
      %v832 = vld [vmem:[%s818 + $0x34] sm:$0xf]
      %v833 = vld [vmem:[%s818 + $0x38] sm:$0xf]
      %v834 = vld [vmem:[%s818 + $0x3c] sm:$0xf]
      %v835 = vld [vmem:[%s818 + $0x40] sm:$0xf]
      %v836 = vld [vmem:[%s818 + $0x44] sm:$0xf]
      %v855 = vunpack.c.l.b16 %v819
      %v856 = vunpack.c.l.b16 %v820
      %v857 = vunpack.c.l.b16 %v821
      %v858 = vunpack.c.l.b16 %v822
      %v859 = vunpack.c.l.b16 %v823
      %v860 = vunpack.c.l.b16 %v824
      %v861 = vunpack.c.l.b16 %v825
      %v862 = vunpack.c.l.b16 %v826
      %v863 = vunpack.c.l.b16 %v827
      %v864 = vunpack.c.l.b16 %v828
      %v865 = vunpack.c.l.b16 %v829
      %v866 = vunpack.c.l.b16 %v830
      %v867 = vunpack.c.l.b16 %v831
      %v868 = vunpack.c.l.b16 %v832
      %v869 = vunpack.c.l.b16 %v833
      %v870 = vunpack.c.l.b16 %v834
      %v871 = vunpack.c.l.b16 %v835
      %v872 = vunpack.c.l.b16 %v836
      %v873 = vpack.c.b16 %v856, %v855
      %v874 = vpack.c.b16 %v858, %v857
      %v875 = vpack.c.b16 %v860, %v859
      %v876 = vpack.c.b16 %v862, %v861
      %v877 = vpack.c.b16 %v864, %v863
      %v878 = vpack.c.b16 %v866, %v865
      %v879 = vpack.c.b16 %v868, %v867
      %v880 = vpack.c.b16 %v870, %v869
      %v881 = vpack.c.b16 %v872, %v871
      %v883 = vsel %vm250, %v873, 0
      %v886 = vsel %vm250, %v874, 0
      %v889 = vsel %vm250, %v875, 0
      %v892 = vsel %vm250, %v876, 0
      %v895 = vsel %vm250, %v877, 0
      %v898 = vsel %vm250, %v878, 0
      %v901 = vsel %vm250, %v879, 0
      %v904 = vsel %vm250, %v880, 0
      %v907 = vsel %vm250, %v881, 0
      %909 = vmatprep.subr.bf16.mxu0 0
      %910 = vmatpush1.bf16.msra.mxu0 %v247
      %911 = vmatprep.subr.bf16.mxu0 0
      %912 = vmatpush1.bf16.msra.mxu0 %v283
      %913 = vmatprep.subr.bf16.mxu0 0
      %914 = vmatpush1.bf16.msra.mxu0 0
      %915 = vmatprep.subr.bf16.mxu0 0
      %916 = vmatpush1.bf16.msra.mxu0 0
      %917 = vmatprep.subr.bf16.mxu0 0
      %918 = vmatpush1.bf16.msra.mxu0 0
      %919 = vmatprep.subr.bf16.mxu0 0
      %920 = vmatpush1.bf16.msra.mxu0 0
      %921 = vmatprep.subr.bf16.mxu0 0
      %922 = vmatpush1.bf16.msra.mxu0 0
      %923 = vmatprep.subr.bf16.mxu0 0
      %924 = vmatpush1.bf16.msra.mxu0 0
      %925 = vmatprep.subr.bf16.mxu0 0
      %926 = vmatpush1.bf16.msra.mxu0 0
      %927 = vmatprep.subr.bf16.mxu0 0
      %928 = vmatpush1.bf16.msra.mxu0 0
      %929 = vmatprep.subr.bf16.mxu0 0
      %930 = vmatpush1.bf16.msra.mxu0 0
      %931 = vmatprep.subr.bf16.mxu0 0
      %932 = vmatpush1.bf16.msra.mxu0 0
      %933 = vmatprep.subr.bf16.mxu0 0
      %934 = vmatpush1.bf16.msra.mxu0 0
      %935 = vmatprep.subr.bf16.mxu0 0
      %936 = vmatpush1.bf16.msra.mxu0 0
      %937 = vmatprep.subr.bf16.mxu0 0
      %938 = vmatpush1.bf16.msra.mxu0 0
      %939 = vmatprep.subr.bf16.mxu0 0
      %940 = vmatpush1.bf16.msra.mxu0 0
      %941 = vmatprep.mubr.bf16.mxu0 0
      %942 = vmatmul.mubr.bf16.gmra.mrb[0].mxu0 %v883
      %v943 = vpop.f32.mrb[0].mxu0
      %v944 = vadd.f32 0.0, %v943
      %v945 = vpop.f32.mrb[0].mxu0
      %v946 = vpop.f32.mrb[0].mxu0
      %v947 = vadd.f32 0.0, %v946
      %v948 = vpop.f32.mrb[0].mxu0
      %949 = vmatprep.mubr.bf16.mxu0 0
      %950 = vmatmul.mubr.bf16.gmra.mrb[0].mxu0 %v886
      %v951 = vpop.f32.mrb[0].mxu0
      %v952 = vadd.f32 0.0, %v951
      %v953 = vpop.f32.mrb[0].mxu0
      %v954 = vpop.f32.mrb[0].mxu0
      %v955 = vadd.f32 0.0, %v954
      %v956 = vpop.f32.mrb[0].mxu0
      %957 = vmatprep.mubr.bf16.mxu0 0
      %958 = vmatmul.mubr.bf16.gmra.mrb[0].mxu0 %v889
      %v959 = vpop.f32.mrb[0].mxu0
      %v960 = vadd.f32 0.0, %v959
      %v961 = vpop.f32.mrb[0].mxu0
      %v962 = vpop.f32.mrb[0].mxu0
      %v963 = vadd.f32 0.0, %v962
      %v964 = vpop.f32.mrb[0].mxu0
      %965 = vmatprep.mubr.bf16.mxu0 0
      %966 = vmatmul.mubr.bf16.gmra.mrb[0].mxu0 %v892
      %v967 = vpop.f32.mrb[0].mxu0
      %v968 = vadd.f32 0.0, %v967
      %v969 = vpop.f32.mrb[0].mxu0
      %v970 = vpop.f32.mrb[0].mxu0
      %v971 = vadd.f32 0.0, %v970
      %v972 = vpop.f32.mrb[0].mxu0
      %973 = vmatprep.mubr.bf16.mxu0 0
      %974 = vmatmul.mubr.bf16.gmra.mrb[0].mxu0 %v895
      %v975 = vpop.f32.mrb[0].mxu0
      %v976 = vadd.f32 0.0, %v975
      %v977 = vpop.f32.mrb[0].mxu0
      %v978 = vpop.f32.mrb[0].mxu0
      %v979 = vadd.f32 0.0, %v978
      %v980 = vpop.f32.mrb[0].mxu0
      %981 = vmatprep.mubr.bf16.mxu0 0
      %982 = vmatmul.mubr.bf16.gmra.mrb[0].mxu0 %v898
      %v983 = vpop.f32.mrb[0].mxu0
      %v984 = vadd.f32 0.0, %v983
      %v985 = vpop.f32.mrb[0].mxu0
      %v986 = vpop.f32.mrb[0].mxu0
      %v987 = vadd.f32 0.0, %v986
      %v988 = vpop.f32.mrb[0].mxu0
      %989 = vmatprep.mubr.bf16.mxu0 0
      %990 = vmatmul.mubr.bf16.gmra.mrb[0].mxu0 %v901
      %v991 = vpop.f32.mrb[0].mxu0
      %v992 = vadd.f32 0.0, %v991
      %v993 = vpop.f32.mrb[0].mxu0
      %v994 = vpop.f32.mrb[0].mxu0
      %v995 = vadd.f32 0.0, %v994
      %v996 = vpop.f32.mrb[0].mxu0
      %997 = vmatprep.mubr.bf16.mxu0 0
      %998 = vmatmul.mubr.bf16.gmra.mrb[0].mxu0 %v904
      %v999 = vpop.f32.mrb[0].mxu0
      %v1000 = vadd.f32 0.0, %v999
      %v1001 = vpop.f32.mrb[0].mxu0
      %v1002 = vpop.f32.mrb[0].mxu0
      %v1003 = vadd.f32 0.0, %v1002
      %v1004 = vpop.f32.mrb[0].mxu0
      %1005 = vmatprep.mubr.bf16.mxu0 0
      %1006 = vmatmul.mubr.bf16.gmra.mrb[0].mxu0 %v907
      %v1007 = vpop.f32.mrb[0].mxu0
      %v1008 = vadd.f32 0.0, %v1007
      %v1009 = vpop.f32.mrb[0].mxu0
      %v1010 = vpop.f32.mrb[0].mxu0
      %v1011 = vadd.f32 0.0, %v1010
      %v1012 = vpop.f32.mrb[0].mxu0
      %1013 = vdwg.mxu0
      %v1014 = vmax.f32 %v800, %v944
      %v1015 = vmax.f32 %v801, %v947
      %v1016 = vmax.f32 %v802, %v952
      %v1017 = vmax.f32 %v803, %v955
      %v1018 = vmax.f32 %v804, %v960
      %v1019 = vmax.f32 %v805, %v963
      %v1020 = vmax.f32 %v806, %v968
      %v1021 = vmax.f32 %v807, %v971
      %v1022 = vmax.f32 %v808, %v976
      %v1023 = vmax.f32 %v809, %v979
      %v1024 = vmax.f32 %v810, %v984
      %v1025 = vmax.f32 %v811, %v987
      %v1026 = vmax.f32 %v812, %v992
      %v1027 = vmax.f32 %v813, %v995
      %v1028 = vmax.f32 %v814, %v1000
      %v1029 = vmax.f32 %v815, %v1003
      %v1030 = vmax.f32 %v816, %v1008
      %v1031 = vmax.f32 %v817, %v1011
      %v1032 = vld [vmem:[%s2] sm:$0x1]
      %v1034 = vlaneseq
      %v1035 = vshrl.u32 %v1034, 7
      %v1036 = vsub.s32 0, %v1035
      %v1037 = vrot.slane %v1032, %v1036
      %v1039 = vadd.f32 %v1014, %v1037
      %v1040 = vadd.f32 %v1015, %v1037
      %v1041 = vadd.f32 %v1016, %v1037
      %v1042 = vadd.f32 %v1017, %v1037
      %v1043 = vadd.f32 %v1018, %v1037
      %v1044 = vadd.f32 %v1019, %v1037
      %v1045 = vadd.f32 %v1020, %v1037
      %v1046 = vadd.f32 %v1021, %v1037
      %v1047 = vadd.f32 %v1022, %v1037
      %v1048 = vadd.f32 %v1023, %v1037
      %v1049 = vadd.f32 %v1024, %v1037
      %v1050 = vadd.f32 %v1025, %v1037
      %v1051 = vadd.f32 %v1026, %v1037
      %v1052 = vadd.f32 %v1027, %v1037
      %v1053 = vadd.f32 %v1028, %v1037
      %v1054 = vadd.f32 %v1029, %v1037
      %v1055 = vadd.f32 %v1030, %v1037
      %v1056 = vadd.f32 %v1031, %v1037
      %v1057 = vmax.f32 %v1039, 0.0
      %v1058 = vmax.f32 %v1040, 0.0
      %v1059 = vmax.f32 %v1041, 0.0
      %v1060 = vmax.f32 %v1042, 0.0
      %v1061 = vmax.f32 %v1043, 0.0
      %v1062 = vmax.f32 %v1044, 0.0
      %v1063 = vmax.f32 %v1045, 0.0
      %v1064 = vmax.f32 %v1046, 0.0
      %v1065 = vmax.f32 %v1047, 0.0
      %v1066 = vmax.f32 %v1048, 0.0
      %v1067 = vmax.f32 %v1049, 0.0
      %v1068 = vmax.f32 %v1050, 0.0
      %v1069 = vmax.f32 %v1051, 0.0
      %v1070 = vmax.f32 %v1052, 0.0
      %v1071 = vmax.f32 %v1053, 0.0
      %v1072 = vmax.f32 %v1054, 0.0
      %v1073 = vmax.f32 %v1055, 0.0
      %v1074 = vmax.f32 %v1056, 0.0
      %vm1075 = vcmask 523264
      %1076 = vst.msk [vmem:[%s170] sm:$0xff] %vm1075, %v1057
      %1077 = vst.msk [vmem:[%s170 + $0x8] sm:$0xff] %vm1075, %v1058
      %1078 = vst.msk [vmem:[%s170 + $0x10] sm:$0xff] %vm1075, %v1059
      %1079 = vst.msk [vmem:[%s170 + $0x18] sm:$0xff] %vm1075, %v1060
      %1080 = vst.msk [vmem:[%s170 + $0x20] sm:$0xff] %vm1075, %v1061
      %1081 = vst.msk [vmem:[%s170 + $0x28] sm:$0xff] %vm1075, %v1062
      %1082 = vst.msk [vmem:[%s170 + $0x30] sm:$0xff] %vm1075, %v1063
      %1083 = vst.msk [vmem:[%s170 + $0x38] sm:$0xff] %vm1075, %v1064
      %1084 = vst.msk [vmem:[%s170 + $0x40] sm:$0xff] %vm1075, %v1065
      %1085 = vst.msk [vmem:[%s170 + $0x48] sm:$0xff] %vm1075, %v1066
      %1086 = vst.msk [vmem:[%s170 + $0x50] sm:$0xff] %vm1075, %v1067
      %1087 = vst.msk [vmem:[%s170 + $0x58] sm:$0xff] %vm1075, %v1068
      %1088 = vst.msk [vmem:[%s170 + $0x60] sm:$0xff] %vm1075, %v1069
      %1089 = vst.msk [vmem:[%s170 + $0x68] sm:$0xff] %vm1075, %v1070
      %1090 = vst.msk [vmem:[%s170 + $0x70] sm:$0xff] %vm1075, %v1071
      %1091 = vst.msk [vmem:[%s170 + $0x78] sm:$0xff] %vm1075, %v1072
      %1092 = vst.msk [vmem:[%s170 + $0x80] sm:$0xff] %vm1075, %v1073
      %1093 = vst.msk [vmem:[%s170 + $0x88] sm:$0xff] %vm1075, %v1074
      %p1094 = scmp.lt.s32.totalorder %s14, 1
      %s1095 = scalar_select %p1094, %s14, 1
      %s1096 = smul.addr %s1095, 18
      %s1097 = smul.addr %s1096, 8
      %s1098 = scalar_lea.vmem %s3, %s1097
      // Predicated region
      $region33: #{mnist_conv_forward.3} parent=31 // pred_check
        %p1099 = pneg %p100
      $region34: #{mnist_conv_forward.3} parent=31 // pred_check_branch
        %1101 = sbr.rel (%p1099) target = $region36
      $region35: #{mnist_conv_forward.3} parent=31 // pred_region
        _
      $region36: #{mnist_conv_forward.3} parent=31 // pred_fallthru
        _
    $region32: #{mnist_conv_forward.3} parent=5 // pred_fallthru
      _
    %p1102 = scmp.le.s32.totalorder 2, %s9
    // Predicated region
    $region37: #{mnist_conv_forward.3} parent=5 // pred_check
      %p1103 = pneg %p1102
    $region38: #{mnist_conv_forward.3} parent=5 // pred_check_branch
      %1105 = sbr.rel (%p1103) target = $region40
    $region39: #{mnist_conv_forward.3} parent=5 // pred_region
      %s1106 = ssub.s32 %s9, 2
      // Predicated region
      $region41: #{mnist_conv_forward.3} parent=39 // pred_check
        %p1107 = pneg %p106
      $region42: #{mnist_conv_forward.3} parent=39 // pred_check_branch
        %1109 = sbr.rel (%p1107) target = $region44
      $region43: #{mnist_conv_forward.3} parent=39 // pred_region
        %p1110 = scmp.lt.s32.totalorder %s15, 1
        %s1111 = scalar_select %p1110, %s15, 1
        %s1112 = smul.addr %s1111, 18
        %s1113 = smul.addr %s1112, 8
        %s1114 = scalar_lea.vmem %s3, %s1113
      $region44: #{mnist_conv_forward.3} parent=39 // pred_fallthru
        _
    $region40: #{mnist_conv_forward.3} parent=5 // pred_fallthru
      _
  $region6: #{mnist_conv_forward.3} parent=0 // loop_footer
    %s13 = sadd.s32 1, %s9
  $region7: #{mnist_conv_forward.3} parent=0 // loop_footer_branch
    %8 = sbr.rel target = $region3
  $region8: #{mnist_conv_forward.3} parent=0 // loop_exit
    _

// kernel: mnist_conv_forward.4
$region0: #{mnist_conv_forward.4}
  #allocation0 [shape = 'u32[]', space=smem, size = 0x4, offset = 0x4, fixed_abs, tag = 'smem constant byte address 0x4 - core index']
  #allocation1 [shape = 'u32[144,128]{1,0:T(1,128)}', space=vmem, size = 0x12000, scoped, tag = 'internal scratch']
  %s0 = inlined_call_operand.vmem [shape: f32[2,12,12,64], index: 0, kind: input, shape index: {}]
  %s1 = inlined_call_operand.vmem [shape: f32[25,64,64], index: 1, kind: input, shape index: {}]
  %s2 = inlined_call_operand.vmem [shape: f32[4,16,64], index: 2, kind: input, shape index: {}]
  %s3 = inlined_call_operand.vmem [shape: f32[1,64], index: 3, kind: input, shape index: {}]
  %s4 = inlined_call_operand.vmem [shape: bf16[2,16,64], index: 4, kind: output, shape index: {}]
  %s5 = sld [smem:[#allocation0]]
  $region49: #{mnist_conv_forward.4} parent=0
    _
  %s7 = ssub.s32 1, %s5
  %s8 = scalar_select 0, %s7, %s5
  loop: start=0, step=1, limit=4
  $region2: #{mnist_conv_forward.4} parent=0 // loop_pre_header
    _
  $region3: #{mnist_conv_forward.4} parent=0 // loop_header
    %s10 = sphi 0, %s14
    %p11 = scmp.ge.s32.totalorder %s10, 4
    %s20 = sphi 0, %s22
    %s23 = sphi 0, %s20
    %s24 = sphi 0, %s23
    %s40 = sphi 0, %s24
    %s44 = sphi 0, %s44
    %s46 = sphi 0, %s44
    %s47 = sphi 0, %s46
    %s61 = sphi 0, %s47
    %s65 = sphi 0, %s65
    %s67 = sphi 0, %s65
    %s68 = sphi 0, %s67
    %s82 = sphi 0, %s68
    %s86 = sphi 0, %s86
    %s88 = sphi 0, %s86
    %s89 = sphi 0, %s88
    %s103 = sphi 0, %s89
    %s109 = sphi 0, %s111
    %s112 = sphi 0, %s109
    %s113 = sphi 0, %s112
    %s129 = sphi 0, %s113
  $region4: #{mnist_conv_forward.4} parent=0 // loop_header_branch
    %13 = sbr.rel (%p11) target = $region8
  $region5: #{mnist_conv_forward.4} parent=0 // loop_body
    %s15 = ssub.s32 %s10, 1
    %s16 = ssub.s32 %s10, 2
    %s17 = sadd.s32 %s10, 1
    %s18 = ssub.s32 %s10, %s17
    %p19 = scmp.eq.s32.totalorder %s18, 0
    %s21 = sadd.s32 %s20, 1
    %s22 = scalar_select %p19, %s20, %s21
    %p25 = pneg %p19
    %p26 = scmp.eq.s32.totalorder %s10, 1
    %p27 = por %p25, %p26
    %p28 = scmp.ne.s32.totalorder %s20, %s23
    %p29 = scmp.eq.s32.totalorder %s10, 0
    %p30 = por %p28, %p29
    %p31 = scmp.ne.s32.totalorder %s20, %s23
    %p32 = scmp.eq.s32.totalorder %s15, 1
    %p33 = por %p31, %p32
    %p34 = scmp.ne.s32.totalorder %s23, %s24
    %p35 = scmp.eq.s32.totalorder %s15, 0
    %p36 = por %p34, %p35
    %p37 = scmp.ne.s32.totalorder %s23, %s24
    %p38 = scmp.eq.s32.totalorder %s16, 1
    %p39 = por %p37, %p38
    %p41 = scmp.ne.s32.totalorder %s24, %s40
    %p42 = scmp.eq.s32.totalorder %s16, 0
    %p43 = por %p41, %p42
    %s45 = sadd.s32 %s44, 1
    %p48 = scmp.eq.s32.totalorder %s10, 1
    %p49 = scmp.ne.s32.totalorder %s44, %s46
    %p50 = scmp.eq.s32.totalorder %s10, 0
    %p51 = por %p49, %p50
    %p52 = scmp.ne.s32.totalorder %s44, %s46
    %p53 = scmp.eq.s32.totalorder %s15, 1
    %p54 = por %p52, %p53
    %p55 = scmp.ne.s32.totalorder %s46, %s47
    %p56 = scmp.eq.s32.totalorder %s15, 0
    %p57 = por %p55, %p56
    %p58 = scmp.ne.s32.totalorder %s46, %s47
    %p59 = scmp.eq.s32.totalorder %s16, 1
    %p60 = por %p58, %p59
    %p62 = scmp.ne.s32.totalorder %s47, %s61
    %p63 = scmp.eq.s32.totalorder %s16, 0
    %p64 = por %p62, %p63
    %s66 = sadd.s32 %s65, 1
    %p69 = scmp.eq.s32.totalorder %s10, 1
    %p70 = scmp.ne.s32.totalorder %s65, %s67
    %p71 = scmp.eq.s32.totalorder %s10, 0
    %p72 = por %p70, %p71
    %p73 = scmp.ne.s32.totalorder %s65, %s67
    %p74 = scmp.eq.s32.totalorder %s15, 1
    %p75 = por %p73, %p74
    %p76 = scmp.ne.s32.totalorder %s67, %s68
    %p77 = scmp.eq.s32.totalorder %s15, 0
    %p78 = por %p76, %p77
    %p79 = scmp.ne.s32.totalorder %s67, %s68
    %p80 = scmp.eq.s32.totalorder %s16, 1
    %p81 = por %p79, %p80
    %p83 = scmp.ne.s32.totalorder %s68, %s82
    %p84 = scmp.eq.s32.totalorder %s16, 0
    %p85 = por %p83, %p84
    %s87 = sadd.s32 %s86, 1
    %p90 = scmp.eq.s32.totalorder %s10, 1
    %p91 = scmp.ne.s32.totalorder %s86, %s88
    %p92 = scmp.eq.s32.totalorder %s10, 0
    %p93 = por %p91, %p92
    %p94 = scmp.ne.s32.totalorder %s86, %s88
    %p95 = scmp.eq.s32.totalorder %s15, 1
    %p96 = por %p94, %p95
    %p97 = scmp.ne.s32.totalorder %s88, %s89
    %p98 = scmp.eq.s32.totalorder %s15, 0
    %p99 = por %p97, %p98
    %p100 = scmp.ne.s32.totalorder %s88, %s89
    %p101 = scmp.eq.s32.totalorder %s16, 1
    %p102 = por %p100, %p101
    %p104 = scmp.ne.s32.totalorder %s89, %s103
    %p105 = scmp.eq.s32.totalorder %s16, 0
    %p106 = por %p104, %p105
    %s107 = ssub.s32 %s10, %s17
    %p108 = scmp.eq.s32.totalorder %s107, 0
    %s110 = sadd.s32 %s109, 1
    %s111 = scalar_select %p108, %s109, %s110
    %p114 = pneg %p108
    %p115 = scmp.eq.s32.totalorder %s10, 1
    %p116 = por %p114, %p115
    %p117 = scmp.ne.s32.totalorder %s109, %s112
    %p118 = scmp.eq.s32.totalorder %s10, 0
    %p119 = por %p117, %p118
    %p120 = scmp.ne.s32.totalorder %s109, %s112
    %p121 = scmp.eq.s32.totalorder %s15, 1
    %p122 = por %p120, %p121
    %p123 = scmp.ne.s32.totalorder %s112, %s113
    %p124 = scmp.eq.s32.totalorder %s15, 0
    %p125 = por %p123, %p124
    %p126 = scmp.ne.s32.totalorder %s112, %s113
    %p127 = scmp.eq.s32.totalorder %s16, 1
    %p128 = por %p126, %p127
    %p130 = scmp.ne.s32.totalorder %s113, %s129
    %p131 = scmp.eq.s32.totalorder %s16, 0
    %p132 = por %p130, %p131
    %p133 = scmp.le.s32.totalorder 1, %s10
    %p134 = scmp.lt.s32.totalorder %s10, 3
    %p135 = pnand %p133, %p134
    %p136 = pneg %p135
    // Predicated region
    $region9: #{mnist_conv_forward.4} parent=5 // pred_check
      _
    $region10: #{mnist_conv_forward.4} parent=5 // pred_check_branch
      %138 = sbr.rel (%p135) target = $region12
    $region11: #{mnist_conv_forward.4} parent=5 // pred_region
      %s139 = ssub.s32 %s10, 1
      // Predicated region
      $region13: #{mnist_conv_forward.4} parent=11 // pred_check
        %p140 = pneg %p57
      $region14: #{mnist_conv_forward.4} parent=11 // pred_check_branch
        %142 = sbr.rel (%p140) target = $region16
      $region15: #{mnist_conv_forward.4} parent=11 // pred_region
        _
      $region16: #{mnist_conv_forward.4} parent=11 // pred_fallthru
        _
      // Predicated region
      $region17: #{mnist_conv_forward.4} parent=11 // pred_check
        %p143 = pneg %p78
      $region18: #{mnist_conv_forward.4} parent=11 // pred_check_branch
        %145 = sbr.rel (%p143) target = $region20
      $region19: #{mnist_conv_forward.4} parent=11 // pred_region
        _
      $region20: #{mnist_conv_forward.4} parent=11 // pred_fallthru
        _
      // Predicated region
      $region21: #{mnist_conv_forward.4} parent=11 // pred_check
        %p146 = pneg %p99
      $region22: #{mnist_conv_forward.4} parent=11 // pred_check_branch
        %148 = sbr.rel (%p146) target = $region24
      $region23: #{mnist_conv_forward.4} parent=11 // pred_region
        _
      $region24: #{mnist_conv_forward.4} parent=11 // pred_fallthru
        _
    $region12: #{mnist_conv_forward.4} parent=5 // pred_fallthru
      _
    %p149 = scmp.lt.s32.totalorder %s10, 2
    // Predicated region
    $region25: #{mnist_conv_forward.4} parent=5 // pred_check
      %p150 = pneg %p149
    $region26: #{mnist_conv_forward.4} parent=5 // pred_check_branch
      %152 = sbr.rel (%p150) target = $region28
    $region27: #{mnist_conv_forward.4} parent=5 // pred_region
      // Predicated region
      $region29: #{mnist_conv_forward.4} parent=27 // pred_check
        %p153 = pneg %p30
      $region30: #{mnist_conv_forward.4} parent=27 // pred_check_branch
        %155 = sbr.rel (%p153) target = $region32
      $region31: #{mnist_conv_forward.4} parent=27 // pred_region
        %p156 = scmp.lt.s32.totalorder %s10, 1
        %s157 = scalar_select %p156, %s10, 1
        %s158 = smul.addr %s157, 24
        %s159 = smul.addr %s158, 8
        %s160 = scalar_lea.vmem %s0, %s159
      $region32: #{mnist_conv_forward.4} parent=27 // pred_fallthru
        _
    $region28: #{mnist_conv_forward.4} parent=5 // pred_fallthru
      _
    %p161 = scmp.le.s32.totalorder 1, %s10
    %p162 = scmp.lt.s32.totalorder %s10, 3
    %p163 = pnand %p161, %p162
    %p164 = pneg %p163
    // Predicated region
    $region33: #{mnist_conv_forward.4} parent=5 // pred_check
      _
    $region34: #{mnist_conv_forward.4} parent=5 // pred_check_branch
      %166 = sbr.rel (%p163) target = $region36
    $region35: #{mnist_conv_forward.4} parent=5 // pred_region
      %s167 = ssub.s32 %s10, 1
      %p168 = scmp.lt.s32.totalorder %s15, 1
      %s169 = scalar_select %p168, %s15, 1
      %s170 = smul.addr %s169, 24
      %s171 = smul.addr %s170, 8
      %s172 = scalar_lea.vmem %s0, %s171
      %p173 = pneg %p36
      %p174 = pneg %p33
      %p175 = pneg %p57
      %p176 = pneg %p54
      %p177 = pneg %p78
      %p178 = pneg %p75
      %p179 = pneg %p99
      %p180 = pneg %p96
      %p181 = pneg %p125
      %p182 = pneg %p122
      %p183 = scmp.lt.s32.totalorder %s15, 1
      %s184 = scalar_select %p183, %s15, 1
      %s185 = smul.addr %s184, 2
      %s186 = smul.addr %s185, 4
      %s187 = scalar_lea.vmem %s4, %s186
      %p188 = scmp.lt.s32.totalorder %s15, 1
      %s189 = scalar_select %p188, %s15, 1
      %s190 = smul.addr %s189, 24
      %s191 = smul.addr %s190, 8
      %s192 = scalar_lea.vmem %s0, %s191
      %p193 = scmp.lt.s32.totalorder %s15, 1
      %s194 = scalar_select %p193, %s15, 1
      %s195 = smul.addr %s194, 2
      %s196 = smul.addr %s195, 4
      %s197 = scalar_lea.vmem %s4, %s196
      %v198 = vld [vmem:[%s192] sm:$0xff]
      %v199 = vld [vmem:[%s192 + $0x10] sm:$0xff]
      %v200 = vld [vmem:[%s192 + $0x20] sm:$0xff]
      %v201 = vld [vmem:[%s192 + $0x30] sm:$0xff]
      %v202 = vld [vmem:[%s192 + $0x40] sm:$0xff]
      %v203 = vld [vmem:[%s192 + $0x50] sm:$0xff]
      %v204 = vld [vmem:[%s192 + $0x60] sm:$0xff]
      %v205 = vld [vmem:[%s192 + $0x70] sm:$0xff]
      %v206 = vld [vmem:[%s1] sm:$0xff]
      %v207 = vld [vmem:[%s1 + $0x8] sm:$0xff]
      %v208 = vld [vmem:[%s1 + $0x10] sm:$0xff]
      %v209 = vld [vmem:[%s1 + $0x18] sm:$0xff]
      %v210 = vld [vmem:[%s1 + $0x20] sm:$0xff]
      %v211 = vld [vmem:[%s1 + $0x28] sm:$0xff]
      %v212 = vld [vmem:[%s1 + $0x30] sm:$0xff]
      %v213 = vld [vmem:[%s1 + $0x38] sm:$0xff]
      %v214 = vld [vmem:[%s192 + $0x1] sm:$0xff]
      %v215 = vld [vmem:[%s192 + $0x11] sm:$0xff]
      %v216 = vld [vmem:[%s192 + $0x21] sm:$0xff]
      %v217 = vld [vmem:[%s192 + $0x31] sm:$0xff]
      %v218 = vld [vmem:[%s192 + $0x41] sm:$0xff]
      %v219 = vld [vmem:[%s192 + $0x51] sm:$0xff]
      %v220 = vld [vmem:[%s192 + $0x61] sm:$0xff]
      %v221 = vld [vmem:[%s192 + $0x71] sm:$0xff]
      %s222 = scalar_lea.vmem %s1, 64
      %v223 = vld [vmem:[%s222] sm:$0xff]
      %v224 = vld [vmem:[%s222 + $0x8] sm:$0xff]
      %v225 = vld [vmem:[%s222 + $0x10] sm:$0xff]
      %v226 = vld [vmem:[%s222 + $0x18] sm:$0xff]
      %v227 = vld [vmem:[%s222 + $0x20] sm:$0xff]
      %v228 = vld [vmem:[%s222 + $0x28] sm:$0xff]
      %v229 = vld [vmem:[%s222 + $0x30] sm:$0xff]
      %v230 = vld [vmem:[%s222 + $0x38] sm:$0xff]
      %vm231 = vcmask 523264
      %v233 = vsel %vm231, %v214, 0
      %v236 = vsel %vm231, %v215, 0
      %v239 = vsel %vm231, %v216, 0
      %v242 = vsel %vm231, %v217, 0
      %v245 = vsel %vm231, %v218, 0
      %v248 = vsel %vm231, %v219, 0
      %v251 = vsel %vm231, %v220, 0
      %v254 = vsel %vm231, %v221, 0
      %256 = vmatprep.subr.mxu0 0.0
      %257 = vmatpush1.msra.mxu0 %v223
      %258 = vmatprep.subr.mxu0 0.0
      %259 = vmatpush1.msra.mxu0 %v224
      %260 = vmatprep.subr.mxu0 0.0
      %261 = vmatpush1.msra.mxu0 %v225
      %262 = vmatprep.subr.mxu0 0.0
      %263 = vmatpush1.msra.mxu0 %v226
      %264 = vmatprep.subr.mxu0 0.0
      %265 = vmatpush1.msra.mxu0 %v227
      %266 = vmatprep.subr.mxu0 0.0
      %267 = vmatpush1.msra.mxu0 %v228
      %268 = vmatprep.subr.mxu0 0.0
      %269 = vmatpush1.msra.mxu0 %v229
      %270 = vmatprep.subr.mxu0 0.0
      %271 = vmatpush1.msra.mxu0 %v230
      %272 = vmatprep.subr.mxu0 0.0
      %273 = vmatpush1.msra.mxu0 0.0
      %274 = vmatprep.subr.mxu0 0.0
      %275 = vmatpush1.msra.mxu0 0.0
      %276 = vmatprep.subr.mxu0 0.0
      %277 = vmatpush1.msra.mxu0 0.0
      %278 = vmatprep.subr.mxu0 0.0
      %279 = vmatpush1.msra.mxu0 0.0
      %280 = vmatprep.subr.mxu0 0.0
      %281 = vmatpush1.msra.mxu0 0.0
      %282 = vmatprep.subr.mxu0 0.0
      %283 = vmatpush1.msra.mxu0 0.0
      %284 = vmatprep.subr.mxu0 0.0
      %285 = vmatpush1.msra.mxu0 0.0
      %286 = vmatprep.subr.mxu0 0.0
      %287 = vmatpush1.msra.mxu0 0.0
      %288 = vmatprep.subr.mxu0 0.0
      %289 = vmatpush1.msra.mxu0 0.0
      %290 = vmatprep.subr.mxu0 0.0
      %291 = vmatpush1.msra.mxu0 0.0
      %292 = vmatprep.subr.mxu0 0.0
      %293 = vmatpush1.msra.mxu0 0.0
      %294 = vmatprep.subr.mxu0 0.0
      %295 = vmatpush1.msra.mxu0 0.0
      %296 = vmatprep.subr.mxu0 0.0
      %297 = vmatpush1.msra.mxu0 0.0
      %298 = vmatprep.subr.mxu0 0.0
      %299 = vmatpush1.msra.mxu0 0.0
      %300 = vmatprep.subr.mxu0 0.0
      %301 = vmatpush1.msra.mxu0 0.0
      %302 = vmatprep.subr.mxu0 0.0
      %303 = vmatpush1.msra.mxu0 0.0
      %304 = vmatprep.subr.mxu0 0.0
      %305 = vmatpush1.msra.mxu0 0.0
      %306 = vmatprep.subr.mxu0 0.0
      %307 = vmatpush1.msra.mxu0 0.0
      %308 = vmatprep.subr.mxu0 0.0
      %309 = vmatpush1.msra.mxu0 0.0
      %310 = vmatprep.subr.mxu0 0.0
      %311 = vmatpush1.msra.mxu0 0.0
      %312 = vmatprep.subr.mxu0 0.0
      %313 = vmatpush1.msra.mxu0 0.0
      %314 = vmatprep.subr.mxu0 0.0
      %315 = vmatpush1.msra.mxu0 0.0
      %316 = vmatprep.subr.mxu0 0.0
      %317 = vmatpush1.msra.mxu0 0.0
      %318 = vmatprep.subr.mxu0 0.0
      %319 = vmatpush1.msra.mxu0 0.0
      %320 = vmatprep.mubr.f32.mxu0 0.0
      %321 = vmatmul.mubr.f32.gmra.mrb[0].mxu0 %v233
      %v322 = vpop.f32.mrb[0].mxu0
      %v323 = vadd.f32 0.0, %v322
      %v324 = vpop.f32.mrb[0].mxu0
      %325 = vmatprep.mubr.f32.mxu0 0.0
      %326 = vmatmul.mubr.f32.gmra.mrb[0].mxu0 %v236
      %v327 = vpop.f32.mrb[0].mxu0
      %v328 = vadd.f32 0.0, %v327
      %v329 = vpop.f32.mrb[0].mxu0
      %330 = vmatprep.mubr.f32.mxu0 0.0
      %331 = vmatmul.mubr.f32.gmra.mrb[0].mxu0 %v239
      %v332 = vpop.f32.mrb[0].mxu0
      %v333 = vadd.f32 0.0, %v332
      %v334 = vpop.f32.mrb[0].mxu0
      %335 = vmatprep.mubr.f32.mxu0 0.0
      %336 = vmatmul.mubr.f32.gmra.mrb[0].mxu0 %v242
      %v337 = vpop.f32.mrb[0].mxu0
      %v338 = vadd.f32 0.0, %v337
      %v339 = vpop.f32.mrb[0].mxu0
      %340 = vmatprep.mubr.f32.mxu0 0.0
      %341 = vmatmul.mubr.f32.gmra.mrb[0].mxu0 %v245
      %v342 = vpop.f32.mrb[0].mxu0
      %v343 = vadd.f32 0.0, %v342
      %v344 = vpop.f32.mrb[0].mxu0
      %345 = vmatprep.mubr.f32.mxu0 0.0
      %346 = vmatmul.mubr.f32.gmra.mrb[0].mxu0 %v248
      %v347 = vpop.f32.mrb[0].mxu0
      %v348 = vadd.f32 0.0, %v347
      %v349 = vpop.f32.mrb[0].mxu0
      %350 = vmatprep.mubr.f32.mxu0 0.0
      %351 = vmatmul.mubr.f32.gmra.mrb[0].mxu0 %v251
      %v352 = vpop.f32.mrb[0].mxu0
      %v353 = vadd.f32 0.0, %v352
      %v354 = vpop.f32.mrb[0].mxu0
      %355 = vmatprep.mubr.f32.mxu0 0.0
      %356 = vmatmul.mubr.f32.gmra.mrb[0].mxu0 %v254
      %v357 = vpop.f32.mrb[0].mxu0
      %v358 = vadd.f32 0.0, %v357
      %v359 = vpop.f32.mrb[0].mxu0
      %360 = vdwg.mxu0
      %v362 = vsel %vm231, %v198, 0
      %v365 = vsel %vm231, %v199, 0
      %v368 = vsel %vm231, %v200, 0
      %v371 = vsel %vm231, %v201, 0
      %v374 = vsel %vm231, %v202, 0
      %v377 = vsel %vm231, %v203, 0
      %v380 = vsel %vm231, %v204, 0
      %v383 = vsel %vm231, %v205, 0
      %385 = vmatprep.subr.mxu0 0.0
      %386 = vmatpush1.msra.mxu0 %v206
      %387 = vmatprep.subr.mxu0 0.0
      %388 = vmatpush1.msra.mxu0 %v207
      %389 = vmatprep.subr.mxu0 0.0
      %390 = vmatpush1.msra.mxu0 %v208
      %391 = vmatprep.subr.mxu0 0.0
      %392 = vmatpush1.msra.mxu0 %v209
      %393 = vmatprep.subr.mxu0 0.0
      %394 = vmatpush1.msra.mxu0 %v210
      %395 = vmatprep.subr.mxu0 0.0
      %396 = vmatpush1.msra.mxu0 %v211
      %397 = vmatprep.subr.mxu0 0.0
      %398 = vmatpush1.msra.mxu0 %v212
      %399 = vmatprep.subr.mxu0 0.0
      %400 = vmatpush1.msra.mxu0 %v213
      %401 = vmatprep.subr.mxu0 0.0
      %402 = vmatpush1.msra.mxu0 0.0
      %403 = vmatprep.subr.mxu0 0.0
      %404 = vmatpush1.msra.mxu0 0.0
      %405 = vmatprep.subr.mxu0 0.0
      %406 = vmatpush1.msra.mxu0 0.0
      %407 = vmatprep.subr.mxu0 0.0
      %408 = vmatpush1.msra.mxu0 0.0
      %409 = vmatprep.subr.mxu0 0.0
      %410 = vmatpush1.msra.mxu0 0.0
      %411 = vmatprep.subr.mxu0 0.0
      %412 = vmatpush1.msra.mxu0 0.0
      %413 = vmatprep.subr.mxu0 0.0
      %414 = vmatpush1.msra.mxu0 0.0
      %415 = vmatprep.subr.mxu0 0.0
      %416 = vmatpush1.msra.mxu0 0.0
      %417 = vmatprep.subr.mxu0 0.0
      %418 = vmatpush1.msra.mxu0 0.0
      %419 = vmatprep.subr.mxu0 0.0
      %420 = vmatpush1.msra.mxu0 0.0
      %421 = vmatprep.subr.mxu0 0.0
      %422 = vmatpush1.msra.mxu0 0.0
      %423 = vmatprep.subr.mxu0 0.0
      %424 = vmatpush1.msra.mxu0 0.0
      %425 = vmatprep.subr.mxu0 0.0
      %426 = vmatpush1.msra.mxu0 0.0
      %427 = vmatprep.subr.mxu0 0.0
      %428 = vmatpush1.msra.mxu0 0.0
      %429 = vmatprep.subr.mxu0 0.0
      %430 = vmatpush1.msra.mxu0 0.0
      %431 = vmatprep.subr.mxu0 0.0
      %432 = vmatpush1.msra.mxu0 0.0
      %433 = vmatprep.subr.mxu0 0.0
      %434 = vmatpush1.msra.mxu0 0.0
      %435 = vmatprep.subr.mxu0 0.0
      %436 = vmatpush1.msra.mxu0 0.0
      %437 = vmatprep.subr.mxu0 0.0
      %438 = vmatpush1.msra.mxu0 0.0
      %439 = vmatprep.subr.mxu0 0.0
      %440 = vmatpush1.msra.mxu0 0.0
      %441 = vmatprep.subr.mxu0 0.0
      %442 = vmatpush1.msra.mxu0 0.0
      %443 = vmatprep.subr.mxu0 0.0
      %444 = vmatpush1.msra.mxu0 0.0
      %445 = vmatprep.subr.mxu0 0.0
      %446 = vmatpush1.msra.mxu0 0.0
      %447 = vmatprep.subr.mxu0 0.0
      %448 = vmatpush1.msra.mxu0 0.0
      %449 = vmatprep.mubr.f32.mxu0 0.0
      %450 = vmatmul.mubr.f32.gmra.mrb[0].mxu0 %v362
      %v451 = vpop.f32.mrb[0].mxu0
      %v452 = vadd.f32 %v323, %v451
      %v453 = vpop.f32.mrb[0].mxu0
      %454 = vmatprep.mubr.f32.mxu0 0.0
      %455 = vmatmul.mubr.f32.gmra.mrb[0].mxu0 %v365
      %v456 = vpop.f32.mrb[0].mxu0
      %v457 = vadd.f32 %v328, %v456
      %v458 = vpop.f32.mrb[0].mxu0
      %459 = vmatprep.mubr.f32.mxu0 0.0
      %460 = vmatmul.mubr.f32.gmra.mrb[0].mxu0 %v368
      %v461 = vpop.f32.mrb[0].mxu0
      %v462 = vadd.f32 %v333, %v461
      %v463 = vpop.f32.mrb[0].mxu0
      %464 = vmatprep.mubr.f32.mxu0 0.0
      %465 = vmatmul.mubr.f32.gmra.mrb[0].mxu0 %v371
      %v466 = vpop.f32.mrb[0].mxu0
      %v467 = vadd.f32 %v338, %v466
      %v468 = vpop.f32.mrb[0].mxu0
      %469 = vmatprep.mubr.f32.mxu0 0.0
      %470 = vmatmul.mubr.f32.gmra.mrb[0].mxu0 %v374
      %v471 = vpop.f32.mrb[0].mxu0
      %v472 = vadd.f32 %v343, %v471
      %v473 = vpop.f32.mrb[0].mxu0
      %474 = vmatprep.mubr.f32.mxu0 0.0
      %475 = vmatmul.mubr.f32.gmra.mrb[0].mxu0 %v377
      %v476 = vpop.f32.mrb[0].mxu0
      %v477 = vadd.f32 %v348, %v476
      %v478 = vpop.f32.mrb[0].mxu0
      %479 = vmatprep.mubr.f32.mxu0 0.0
      %480 = vmatmul.mubr.f32.gmra.mrb[0].mxu0 %v380
      %v481 = vpop.f32.mrb[0].mxu0
      %v482 = vadd.f32 %v353, %v481
      %v483 = vpop.f32.mrb[0].mxu0
      %484 = vmatprep.mubr.f32.mxu0 0.0
      %485 = vmatmul.mubr.f32.gmra.mrb[0].mxu0 %v383
      %v486 = vpop.f32.mrb[0].mxu0
      %v487 = vadd.f32 %v358, %v486
      %v488 = vpop.f32.mrb[0].mxu0
      %489 = vdwg.mxu0
      %v490 = vld [vmem:[%s192 + $0x2] sm:$0xff]
      %v491 = vld [vmem:[%s192 + $0x12] sm:$0xff]
      %v492 = vld [vmem:[%s192 + $0x22] sm:$0xff]
      %v493 = vld [vmem:[%s192 + $0x32] sm:$0xff]
      %v494 = vld [vmem:[%s192 + $0x42] sm:$0xff]
      %v495 = vld [vmem:[%s192 + $0x52] sm:$0xff]
      %v496 = vld [vmem:[%s192 + $0x62] sm:$0xff]
      %v497 = vld [vmem:[%s192 + $0x72] sm:$0xff]
      %s498 = scalar_lea.vmem %s1, 128
      %v499 = vld [vmem:[%s498] sm:$0xff]
      %v500 = vld [vmem:[%s498 + $0x8] sm:$0xff]
      %v501 = vld [vmem:[%s498 + $0x10] sm:$0xff]
      %v502 = vld [vmem:[%s498 + $0x18] sm:$0xff]
      %v503 = vld [vmem:[%s498 + $0x20] sm:$0xff]
      %v504 = vld [vmem:[%s498 + $0x28] sm:$0xff]
      %v505 = vld [vmem:[%s498 + $0x30] sm:$0xff]
      %v506 = vld [vmem:[%s498 + $0x38] sm:$0xff]
      %v508 = vsel %vm231, %v490, 0
      %v511 = vsel %vm231, %v491, 0
      %v514 = vsel %vm231, %v492, 0
      %v517 = vsel %vm231, %v493, 0
      %v520 = vsel %vm231, %v494, 0
      %v523 = vsel %vm231, %v495, 0
      %v526 = vsel %vm231, %v496, 0
      %v529 = vsel %vm231, %v497, 0
      %531 = vmatprep.subr.mxu0 0.0
      %532 = vmatpush1.msra.mxu0 %v499
      %533 = vmatprep.subr.mxu0 0.0
      %534 = vmatpush1.msra.mxu0 %v500
      %535 = vmatprep.subr.mxu0 0.0
      %536 = vmatpush1.msra.mxu0 %v501
      %537 = vmatprep.subr.mxu0 0.0
      %538 = vmatpush1.msra.mxu0 %v502
      %539 = vmatprep.subr.mxu0 0.0
      %540 = vmatpush1.msra.mxu0 %v503
      %541 = vmatprep.subr.mxu0 0.0
      %542 = vmatpush1.msra.mxu0 %v504
      %543 = vmatprep.subr.mxu0 0.0
      %544 = vmatpush1.msra.mxu0 %v505
      %545 = vmatprep.subr.mxu0 0.0
      %546 = vmatpush1.msra.mxu0 %v506
      %547 = vmatprep.subr.mxu0 0.0
      %548 = vmatpush1.msra.mxu0 0.0
      %549 = vmatprep.subr.mxu0 0.0
      %550 = vmatpush1.msra.mxu0 0.0
      %551 = vmatprep.subr.mxu0 0.0
      %552 = vmatpush1.msra.mxu0 0.0
      %553 = vmatprep.subr.mxu0 0.0
      %554 = vmatpush1.msra.mxu0 0.0
      %555 = vmatprep.subr.mxu0 0.0
      %556 = vmatpush1.msra.mxu0 0.0
      %557 = vmatprep.subr.mxu0 0.0
      %558 = vmatpush1.msra.mxu0 0.0
      %559 = vmatprep.subr.mxu0 0.0
      %560 = vmatpush1.msra.mxu0 0.0
      %561 = vmatprep.subr.mxu0 0.0
      %562 = vmatpush1.msra.mxu0 0.0
      %563 = vmatprep.subr.mxu0 0.0
      %564 = vmatpush1.msra.mxu0 0.0
      %565 = vmatprep.subr.mxu0 0.0
      %566 = vmatpush1.msra.mxu0 0.0
      %567 = vmatprep.subr.mxu0 0.0
      %568 = vmatpush1.msra.mxu0 0.0
      %569 = vmatprep.subr.mxu0 0.0
      %570 = vmatpush1.msra.mxu0 0.0
      %571 = vmatprep.subr.mxu0 0.0
      %572 = vmatpush1.msra.mxu0 0.0
      %573 = vmatprep.subr.mxu0 0.0
      %574 = vmatpush1.msra.mxu0 0.0
      %575 = vmatprep.subr.mxu0 0.0
      %576 = vmatpush1.msra.mxu0 0.0
      %577 = vmatprep.subr.mxu0 0.0
      %578 = vmatpush1.msra.mxu0 0.0
      %579 = vmatprep.subr.mxu0 0.0
      %580 = vmatpush1.msra.mxu0 0.0
      %581 = vmatprep.subr.mxu0 0.0
      %582 = vmatpush1.msra.mxu0 0.0
      %583 = vmatprep.subr.mxu0 0.0
      %584 = vmatpush1.msra.mxu0 0.0
      %585 = vmatprep.subr.mxu0 0.0
      %586 = vmatpush1.msra.mxu0 0.0
      %587 = vmatprep.subr.mxu0 0.0
      %588 = vmatpush1.msra.mxu0 0.0
      %589 = vmatprep.subr.mxu0 0.0
      %590 = vmatpush1.msra.mxu0 0.0
      %591 = vmatprep.subr.mxu0 0.0
      %592 = vmatpush1.msra.mxu0 0.0
      %593 = vmatprep.subr.mxu0 0.0
      %594 = vmatpush1.msra.mxu0 0.0
      %595 = vmatprep.mubr.f32.mxu0 0.0
      %596 = vmatmul.mubr.f32.gmra.mrb[0].mxu0 %v508
      %v597 = vpop.f32.mrb[0].mxu0
      %v598 = vadd.f32 0.0, %v597
      %v599 = vpop.f32.mrb[0].mxu0
      %600 = vmatprep.mubr.f32.mxu0 0.0
      %601 = vmatmul.mubr.f32.gmra.mrb[0].mxu0 %v511
      %v602 = vpop.f32.mrb[0].mxu0
      %v603 = vadd.f32 0.0, %v602
      %v604 = vpop.f32.mrb[0].mxu0
      %605 = vmatprep.mubr.f32.mxu0 0.0
      %606 = vmatmul.mubr.f32.gmra.mrb[0].mxu0 %v514
      %v607 = vpop.f32.mrb[0].mxu0
      %v608 = vadd.f32 0.0, %v607
      %v609 = vpop.f32.mrb[0].mxu0
      %610 = vmatprep.mubr.f32.mxu0 0.0
      %611 = vmatmul.mubr.f32.gmra.mrb[0].mxu0 %v517
      %v612 = vpop.f32.mrb[0].mxu0
      %v613 = vadd.f32 0.0, %v612
      %v614 = vpop.f32.mrb[0].mxu0
      %615 = vmatprep.mubr.f32.mxu0 0.0
      %616 = vmatmul.mubr.f32.gmra.mrb[0].mxu0 %v520
      %v617 = vpop.f32.mrb[0].mxu0
      %v618 = vadd.f32 0.0, %v617
      %v619 = vpop.f32.mrb[0].mxu0
      %620 = vmatprep.mubr.f32.mxu0 0.0
      %621 = vmatmul.mubr.f32.gmra.mrb[0].mxu0 %v523
      %v622 = vpop.f32.mrb[0].mxu0
      %v623 = vadd.f32 0.0, %v622
      %v624 = vpop.f32.mrb[0].mxu0
      %625 = vmatprep.mubr.f32.mxu0 0.0
      %626 = vmatmul.mubr.f32.gmra.mrb[0].mxu0 %v526
      %v627 = vpop.f32.mrb[0].mxu0
      %v628 = vadd.f32 0.0, %v627
      %v629 = vpop.f32.mrb[0].mxu0
      %630 = vmatprep.mubr.f32.mxu0 0.0
      %631 = vmatmul.mubr.f32.gmra.mrb[0].mxu0 %v529
      %v632 = vpop.f32.mrb[0].mxu0
      %v633 = vadd.f32 0.0, %v632
      %v634 = vpop.f32.mrb[0].mxu0
      %635 = vdwg.mxu0
      %v636 = vadd.f32 %v452, %v598
      %v637 = vadd.f32 %v457, %v603
      %v638 = vadd.f32 %v462, %v608
      %v639 = vadd.f32 %v467, %v613
      %v640 = vadd.f32 %v472, %v618
      %v641 = vadd.f32 %v477, %v623
      %v642 = vadd.f32 %v482, %v628
      %v643 = vadd.f32 %v487, %v633
      %v644 = vld [vmem:[%s192 + $0x3] sm:$0xff]
      %v645 = vld [vmem:[%s192 + $0x13] sm:$0xff]
      %v646 = vld [vmem:[%s192 + $0x23] sm:$0xff]
      %v647 = vld [vmem:[%s192 + $0x33] sm:$0xff]
      %v648 = vld [vmem:[%s192 + $0x43] sm:$0xff]
      %v649 = vld [vmem:[%s192 + $0x53] sm:$0xff]
      %v650 = vld [vmem:[%s192 + $0x63] sm:$0xff]
      %v651 = vld [vmem:[%s192 + $0x73] sm:$0xff]
      %s652 = scalar_lea.vmem %s1, 192
      %v653 = vld [vmem:[%s652] sm:$0xff]
      %v654 = vld [vmem:[%s652 + $0x8] sm:$0xff]
      %v655 = vld [vmem:[%s652 + $0x10] sm:$0xff]
      %v656 = vld [vmem:[%s652 + $0x18] sm:$0xff]
      %v657 = vld [vmem:[%s652 + $0x20] sm:$0xff]
      %v658 = vld [vmem:[%s652 + $0x28] sm:$0xff]
      %v659 = vld [vmem:[%s652 + $0x30] sm:$0xff]
      %v660 = vld [vmem:[%s652 + $0x38] sm:$0xff]
      %v662 = vsel %vm231, %v644, 0
      %v665 = vsel %vm231, %v645, 0
      %v668 = vsel %vm231, %v646, 0
      %v671 = vsel %vm231, %v647, 0
      %v674 = vsel %vm231, %v648, 0
      %v677 = vsel %vm231, %v649, 0
      %v680 = vsel %vm231, %v650, 0
      %v683 = vsel %vm231, %v651, 0
      %685 = vmatprep.subr.mxu0 0.0
      %686 = vmatpush1.msra.mxu0 %v653
      %687 = vmatprep.subr.mxu0 0.0
      %688 = vmatpush1.msra.mxu0 %v654
      %689 = vmatprep.subr.mxu0 0.0
      %690 = vmatpush1.msra.mxu0 %v655
      %691 = vmatprep.subr.mxu0 0.0
      %692 = vmatpush1.msra.mxu0 %v656
      %693 = vmatprep.subr.mxu0 0.0
      %694 = vmatpush1.msra.mxu0 %v657
      %695 = vmatprep.subr.mxu0 0.0
      %696 = vmatpush1.msra.mxu0 %v658
      %697 = vmatprep.subr.mxu0 0.0
      %698 = vmatpush1.msra.mxu0 %v659
      %699 = vmatprep.subr.mxu0 0.0
      %700 = vmatpush1.msra.mxu0 %v660
      %701 = vmatprep.subr.mxu0 0.0
      %702 = vmatpush1.msra.mxu0 0.0
      %703 = vmatprep.subr.mxu0 0.0
      %704 = vmatpush1.msra.mxu0 0.0
      %705 = vmatprep.subr.mxu0 0.0
      %706 = vmatpush1.msra.mxu0 0.0
      %707 = vmatprep.subr.mxu0 0.0
      %708 = vmatpush1.msra.mxu0 0.0
      %709 = vmatprep.subr.mxu0 0.0
      %710 = vmatpush1.msra.mxu0 0.0
      %711 = vmatprep.subr.mxu0 0.0
      %712 = vmatpush1.msra.mxu0 0.0
      %713 = vmatprep.subr.mxu0 0.0
      %714 = vmatpush1.msra.mxu0 0.0
      %715 = vmatprep.subr.mxu0 0.0
      %716 = vmatpush1.msra.mxu0 0.0
      %717 = vmatprep.subr.mxu0 0.0
      %718 = vmatpush1.msra.mxu0 0.0
      %719 = vmatprep.subr.mxu0 0.0
      %720 = vmatpush1.msra.mxu0 0.0
      %721 = vmatprep.subr.mxu0 0.0
      %722 = vmatpush1.msra.mxu0 0.0
      %723 = vmatprep.subr.mxu0 0.0
      %724 = vmatpush1.msra.mxu0 0.0
      %725 = vmatprep.subr.mxu0 0.0
      %726 = vmatpush1.msra.mxu0 0.0
      %727 = vmatprep.subr.mxu0 0.0
      %728 = vmatpush1.msra.mxu0 0.0
      %729 = vmatprep.subr.mxu0 0.0
      %730 = vmatpush1.msra.mxu0 0.0
      %731 = vmatprep.subr.mxu0 0.0
      %732 = vmatpush1.msra.mxu0 0.0
      %733 = vmatprep.subr.mxu0 0.0
      %734 = vmatpush1.msra.mxu0 0.0
      %735 = vmatprep.subr.mxu0 0.0
      %736 = vmatpush1.msra.mxu0 0.0
      %737 = vmatprep.subr.mxu0 0.0
      %738 = vmatpush1.msra.mxu0 0.0
      %739 = vmatprep.subr.mxu0 0.0
      %740 = vmatpush1.msra.mxu0 0.0
      %741 = vmatprep.subr.mxu0 0.0
      %742 = vmatpush1.msra.mxu0 0.0
      %743 = vmatprep.subr.mxu0 0.0
      %744 = vmatpush1.msra.mxu0 0.0
      %745 = vmatprep.subr.mxu0 0.0
      %746 = vmatpush1.msra.mxu0 0.0
      %747 = vmatprep.subr.mxu0 0.0
      %748 = vmatpush1.msra.mxu0 0.0
      %749 = vmatprep.mubr.f32.mxu0 0.0
      %750 = vmatmul.mubr.f32.gmra.mrb[0].mxu0 %v662
      %v751 = vpop.f32.mrb[0].mxu0
      %v752 = vadd.f32 0.0, %v751
      %v753 = vpop.f32.mrb[0].mxu0
      %754 = vmatprep.mubr.f32.mxu0 0.0
      %755 = vmatmul.mubr.f32.gmra.mrb[0].mxu0 %v665
      %v756 = vpop.f32.mrb[0].mxu0
      %v757 = vadd.f32 0.0, %v756
      %v758 = vpop.f32.mrb[0].mxu0
      %759 = vmatprep.mubr.f32.mxu0 0.0
      %760 = vmatmul.mubr.f32.gmra.mrb[0].mxu0 %v668
      %v761 = vpop.f32.mrb[0].mxu0
      %v762 = vadd.f32 0.0, %v761
      %v763 = vpop.f32.mrb[0].mxu0
      %764 = vmatprep.mubr.f32.mxu0 0.0
      %765 = vmatmul.mubr.f32.gmra.mrb[0].mxu0 %v671
      %v766 = vpop.f32.mrb[0].mxu0
      %v767 = vadd.f32 0.0, %v766
      %v768 = vpop.f32.mrb[0].mxu0
      %769 = vmatprep.mubr.f32.mxu0 0.0
      %770 = vmatmul.mubr.f32.gmra.mrb[0].mxu0 %v674
      %v771 = vpop.f32.mrb[0].mxu0
      %v772 = vadd.f32 0.0, %v771
      %v773 = vpop.f32.mrb[0].mxu0
      %774 = vmatprep.mubr.f32.mxu0 0.0
      %775 = vmatmul.mubr.f32.gmra.mrb[0].mxu0 %v677
      %v776 = vpop.f32.mrb[0].mxu0
      %v777 = vadd.f32 0.0, %v776
      %v778 = vpop.f32.mrb[0].mxu0
      %779 = vmatprep.mubr.f32.mxu0 0.0
      %780 = vmatmul.mubr.f32.gmra.mrb[0].mxu0 %v680
      %v781 = vpop.f32.mrb[0].mxu0
      %v782 = vadd.f32 0.0, %v781
      %v783 = vpop.f32.mrb[0].mxu0
      %784 = vmatprep.mubr.f32.mxu0 0.0
      %785 = vmatmul.mubr.f32.gmra.mrb[0].mxu0 %v683
      %v786 = vpop.f32.mrb[0].mxu0
      %v787 = vadd.f32 0.0, %v786
      %v788 = vpop.f32.mrb[0].mxu0
      %789 = vdwg.mxu0
      %v790 = vadd.f32 %v636, %v752
      %v791 = vadd.f32 %v637, %v757
      %v792 = vadd.f32 %v638, %v762
      %v793 = vadd.f32 %v639, %v767
      %v794 = vadd.f32 %v640, %v772
      %v795 = vadd.f32 %v641, %v777
      %v796 = vadd.f32 %v642, %v782
      %v797 = vadd.f32 %v643, %v787
      %v798 = vld [vmem:[%s192 + $0x4] sm:$0xff]
      %v799 = vld [vmem:[%s192 + $0x14] sm:$0xff]
      %v800 = vld [vmem:[%s192 + $0x24] sm:$0xff]
      %v801 = vld [vmem:[%s192 + $0x34] sm:$0xff]
      %v802 = vld [vmem:[%s192 + $0x44] sm:$0xff]
      %v803 = vld [vmem:[%s192 + $0x54] sm:$0xff]
      %v804 = vld [vmem:[%s192 + $0x64] sm:$0xff]
      %v805 = vld [vmem:[%s192 + $0x74] sm:$0xff]
      %s806 = scalar_lea.vmem %s1, 256
      %v807 = vld [vmem:[%s806] sm:$0xff]
      %v808 = vld [vmem:[%s806 + $0x8] sm:$0xff]
      %v809 = vld [vmem:[%s806 + $0x10] sm:$0xff]
      %v810 = vld [vmem:[%s806 + $0x18] sm:$0xff]
      %v811 = vld [vmem:[%s806 + $0x20] sm:$0xff]
      %v812 = vld [vmem:[%s806 + $0x28] sm:$0xff]
      %v813 = vld [vmem:[%s806 + $0x30] sm:$0xff]
      %v814 = vld [vmem:[%s806 + $0x38] sm:$0xff]
      %v816 = vsel %vm231, %v798, 0
      %v819 = vsel %vm231, %v799, 0
      %v822 = vsel %vm231, %v800, 0
      %v825 = vsel %vm231, %v801, 0
      %v828 = vsel %vm231, %v802, 0
      %v831 = vsel %vm231, %v803, 0
      %v834 = vsel %vm231, %v804, 0
      %v837 = vsel %vm231, %v805, 0
      %839 = vmatprep.subr.mxu0 0.0
      %840 = vmatpush1.msra.mxu0 %v807
      %841 = vmatprep.subr.mxu0 0.0
      %842 = vmatpush1.msra.mxu0 %v808
      %843 = vmatprep.subr.mxu0 0.0
      %844 = vmatpush1.msra.mxu0 %v809
      %845 = vmatprep.subr.mxu0 0.0
      %846 = vmatpush1.msra.mxu0 %v810
      %847 = vmatprep.subr.mxu0 0.0
      %848 = vmatpush1.msra.mxu0 %v811
      %849 = vmatprep.subr.mxu0 0.0
      %850 = vmatpush1.msra.mxu0 %v812
      %851 = vmatprep.subr.mxu0 0.0
      %852 = vmatpush1.msra.mxu0 %v813
      %853 = vmatprep.subr.mxu0 0.0
      %854 = vmatpush1.msra.mxu0 %v814
      %855 = vmatprep.subr.mxu0 0.0
      %856 = vmatpush1.msra.mxu0 0.0
      %857 = vmatprep.subr.mxu0 0.0
      %858 = vmatpush1.msra.mxu0 0.0
      %859 = vmatprep.subr.mxu0 0.0
      %860 = vmatpush1.msra.mxu0 0.0
      %861 = vmatprep.subr.mxu0 0.0
      %862 = vmatpush1.msra.mxu0 0.0
      %863 = vmatprep.subr.mxu0 0.0
      %864 = vmatpush1.msra.mxu0 0.0
      %865 = vmatprep.subr.mxu0 0.0
      %866 = vmatpush1.msra.mxu0 0.0
      %867 = vmatprep.subr.mxu0 0.0
      %868 = vmatpush1.msra.mxu0 0.0
      %869 = vmatprep.subr.mxu0 0.0
      %870 = vmatpush1.msra.mxu0 0.0
      %871 = vmatprep.subr.mxu0 0.0
      %872 = vmatpush1.msra.mxu0 0.0
      %873 = vmatprep.subr.mxu0 0.0
      %874 = vmatpush1.msra.mxu0 0.0
      %875 = vmatprep.subr.mxu0 0.0
      %876 = vmatpush1.msra.mxu0 0.0
      %877 = vmatprep.subr.mxu0 0.0
      %878 = vmatpush1.msra.mxu0 0.0
      %879 = vmatprep.subr.mxu0 0.0
      %880 = vmatpush1.msra.mxu0 0.0
      %881 = vmatprep.subr.mxu0 0.0
      %882 = vmatpush1.msra.mxu0 0.0
      %883 = vmatprep.subr.mxu0 0.0
      %884 = vmatpush1.msra.mxu0 0.0
      %885 = vmatprep.subr.mxu0 0.0
      %886 = vmatpush1.msra.mxu0 0.0
      %887 = vmatprep.subr.mxu0 0.0
      %888 = vmatpush1.msra.mxu0 0.0
      %889 = vmatprep.subr.mxu0 0.0
      %890 = vmatpush1.msra.mxu0 0.0
      %891 = vmatprep.subr.mxu0 0.0
      %892 = vmatpush1.msra.mxu0 0.0
      %893 = vmatprep.subr.mxu0 0.0
      %894 = vmatpush1.msra.mxu0 0.0
      %895 = vmatprep.subr.mxu0 0.0
      %896 = vmatpush1.msra.mxu0 0.0
      %897 = vmatprep.subr.mxu0 0.0
      %898 = vmatpush1.msra.mxu0 0.0
      %899 = vmatprep.subr.mxu0 0.0
      %900 = vmatpush1.msra.mxu0 0.0
      %901 = vmatprep.subr.mxu0 0.0
      %902 = vmatpush1.msra.mxu0 0.0
      %903 = vmatprep.mubr.f32.mxu0 0.0
      %904 = vmatmul.mubr.f32.gmra.mrb[0].mxu0 %v816
      %v905 = vpop.f32.mrb[0].mxu0
      %v906 = vadd.f32 0.0, %v905
      %v907 = vpop.f32.mrb[0].mxu0
      %908 = vmatprep.mubr.f32.mxu0 0.0
      %909 = vmatmul.mubr.f32.gmra.mrb[0].mxu0 %v819
      %v910 = vpop.f32.mrb[0].mxu0
      %v911 = vadd.f32 0.0, %v910
      %v912 = vpop.f32.mrb[0].mxu0
      %913 = vmatprep.mubr.f32.mxu0 0.0
      %914 = vmatmul.mubr.f32.gmra.mrb[0].mxu0 %v822
      %v915 = vpop.f32.mrb[0].mxu0
      %v916 = vadd.f32 0.0, %v915
      %v917 = vpop.f32.mrb[0].mxu0
      %918 = vmatprep.mubr.f32.mxu0 0.0
      %919 = vmatmul.mubr.f32.gmra.mrb[0].mxu0 %v825
      %v920 = vpop.f32.mrb[0].mxu0
      %v921 = vadd.f32 0.0, %v920
      %v922 = vpop.f32.mrb[0].mxu0
      %923 = vmatprep.mubr.f32.mxu0 0.0
      %924 = vmatmul.mubr.f32.gmra.mrb[0].mxu0 %v828
      %v925 = vpop.f32.mrb[0].mxu0
      %v926 = vadd.f32 0.0, %v925
      %v927 = vpop.f32.mrb[0].mxu0
      %928 = vmatprep.mubr.f32.mxu0 0.0
      %929 = vmatmul.mubr.f32.gmra.mrb[0].mxu0 %v831
      %v930 = vpop.f32.mrb[0].mxu0
      %v931 = vadd.f32 0.0, %v930
      %v932 = vpop.f32.mrb[0].mxu0
      %933 = vmatprep.mubr.f32.mxu0 0.0
      %934 = vmatmul.mubr.f32.gmra.mrb[0].mxu0 %v834
      %v935 = vpop.f32.mrb[0].mxu0
      %v936 = vadd.f32 0.0, %v935
      %v937 = vpop.f32.mrb[0].mxu0
      %938 = vmatprep.mubr.f32.mxu0 0.0
      %939 = vmatmul.mubr.f32.gmra.mrb[0].mxu0 %v837
      %v940 = vpop.f32.mrb[0].mxu0
      %v941 = vadd.f32 0.0, %v940
      %v942 = vpop.f32.mrb[0].mxu0
      %943 = vdwg.mxu0
      %v944 = vadd.f32 %v790, %v906
      %v945 = vadd.f32 %v791, %v911
      %v946 = vadd.f32 %v792, %v916
      %v947 = vadd.f32 %v793, %v921
      %v948 = vadd.f32 %v794, %v926
      %v949 = vadd.f32 %v795, %v931
      %v950 = vadd.f32 %v796, %v936
      %v951 = vadd.f32 %v797, %v941
      %s952 = scalar_lea.vmem %s192, 16
      %v953 = vld [vmem:[%s952] sm:$0xff]
      %v954 = vld [vmem:[%s952 + $0x10] sm:$0xff]
      %v955 = vld [vmem:[%s952 + $0x20] sm:$0xff]
      %v956 = vld [vmem:[%s952 + $0x30] sm:$0xff]
      %v957 = vld [vmem:[%s952 + $0x40] sm:$0xff]
      %v958 = vld [vmem:[%s952 + $0x50] sm:$0xff]
      %v959 = vld [vmem:[%s952 + $0x60] sm:$0xff]
      %v960 = vld [vmem:[%s952 + $0x70] sm:$0xff]
      %s961 = scalar_lea.vmem %s1, 320
      %v962 = vld [vmem:[%s961] sm:$0xff]
      %v963 = vld [vmem:[%s961 + $0x8] sm:$0xff]
      %v964 = vld [vmem:[%s961 + $0x10] sm:$0xff]
      %v965 = vld [vmem:[%s961 + $0x18] sm:$0xff]
      %v966 = vld [vmem:[%s961 + $0x20] sm:$0xff]
      %v967 = vld [vmem:[%s961 + $0x28] sm:$0xff]
      %v968 = vld [vmem:[%s961 + $0x30] sm:$0xff]
      %v969 = vld [vmem:[%s961 + $0x38] sm:$0xff]
      %v971 = vsel %vm231, %v953, 0
      %v974 = vsel %vm231, %v954, 0
      %v977 = vsel %vm231, %v955, 0
      %v980 = vsel %vm231, %v956, 0
      %v983 = vsel %vm231, %v957, 0
      %v986 = vsel %vm231, %v958, 0
      %v989 = vsel %vm231, %v959, 0
      %v992 = vsel %vm231, %v960, 0
      %994 = vmatprep.subr.mxu0 0.0
      %995 = vmatpush1.msra.mxu0 %v962
      %996 = vmatprep.subr.mxu0 0.0
      %997 = vmatpush1.msra.mxu0 %v963
      %998 = vmatprep.subr.mxu0 0.0
      %999 = vmatpush1.msra.mxu0 %v964
      %1000 = vmatprep.subr.mxu0 0.0
      %1001 = vmatpush1.msra.mxu0 %v965
      %1002 = vmatprep.subr.mxu0 0.0
      %1003 = vmatpush1.msra.mxu0 %v966
      %1004 = vmatprep.subr.mxu0 0.0
      %1005 = vmatpush1.msra.mxu0 %v967
      %1006 = vmatprep.subr.mxu0 0.0
      %1007 = vmatpush1.msra.mxu0 %v968
      %1008 = vmatprep.subr.mxu0 0.0
      %1009 = vmatpush1.msra.mxu0 %v969
      %1010 = vmatprep.subr.mxu0 0.0
      %1011 = vmatpush1.msra.mxu0 0.0
      %1012 = vmatprep.subr.mxu0 0.0
      %1013 = vmatpush1.msra.mxu0 0.0
      %1014 = vmatprep.subr.mxu0 0.0
      %1015 = vmatpush1.msra.mxu0 0.0
      %1016 = vmatprep.subr.mxu0 0.0
      %1017 = vmatpush1.msra.mxu0 0.0
      %1018 = vmatprep.subr.mxu0 0.0
      %1019 = vmatpush1.msra.mxu0 0.0
      %1020 = vmatprep.subr.mxu0 0.0
      %1021 = vmatpush1.msra.mxu0 0.0
      %1022 = vmatprep.subr.mxu0 0.0
      %1023 = vmatpush1.msra.mxu0 0.0
      %1024 = vmatprep.subr.mxu0 0.0
      %1025 = vmatpush1.msra.mxu0 0.0
      %1026 = vmatprep.subr.mxu0 0.0
      %1027 = vmatpush1.msra.mxu0 0.0
      %1028 = vmatprep.subr.mxu0 0.0
      %1029 = vmatpush1.msra.mxu0 0.0
      %1030 = vmatprep.subr.mxu0 0.0
      %1031 = vmatpush1.msra.mxu0 0.0
      %1032 = vmatprep.subr.mxu0 0.0
      %1033 = vmatpush1.msra.mxu0 0.0
      %1034 = vmatprep.subr.mxu0 0.0
      %1035 = vmatpush1.msra.mxu0 0.0
      %1036 = vmatprep.subr.mxu0 0.0
      %1037 = vmatpush1.msra.mxu0 0.0
      %1038 = vmatprep.subr.mxu0 0.0
      %1039 = vmatpush1.msra.mxu0 0.0
      %1040 = vmatprep.subr.mxu0 0.0
      %1041 = vmatpush1.msra.mxu0 0.0
      %1042 = vmatprep.subr.mxu0 0.0
      %1043 = vmatpush1.msra.mxu0 0.0
      %1044 = vmatprep.subr.mxu0 0.0
      %1045 = vmatpush1.msra.mxu0 0.0
      %1046 = vmatprep.subr.mxu0 0.0
      %1047 = vmatpush1.msra.mxu0 0.0
      %1048 = vmatprep.subr.mxu0 0.0
      %1049 = vmatpush1.msra.mxu0 0.0
      %1050 = vmatprep.subr.mxu0 0.0
      %1051 = vmatpush1.msra.mxu0 0.0
      %1052 = vmatprep.subr.mxu0 0.0
      %1053 = vmatpush1.msra.mxu0 0.0
      %1054 = vmatprep.subr.mxu0 0.0
      %1055 = vmatpush1.msra.mxu0 0.0
      %1056 = vmatprep.subr.mxu0 0.0
      %1057 = vmatpush1.msra.mxu0 0.0
      %1058 = vmatprep.mubr.f32.mxu0 0.0
      %1059 = vmatmul.mubr.f32.gmra.mrb[0].mxu0 %v971
      %v1060 = vpop.f32.mrb[0].mxu0
      %v1061 = vadd.f32 0.0, %v1060
      %v1062 = vpop.f32.mrb[0].mxu0
      %1063 = vmatprep.mubr.f32.mxu0 0.0
      %1064 = vmatmul.mubr.f32.gmra.mrb[0].mxu0 %v974
      %v1065 = vpop.f32.mrb[0].mxu0
      %v1066 = vadd.f32 0.0, %v1065
      %v1067 = vpop.f32.mrb[0].mxu0
      %1068 = vmatprep.mubr.f32.mxu0 0.0
      %1069 = vmatmul.mubr.f32.gmra.mrb[0].mxu0 %v977
      %v1070 = vpop.f32.mrb[0].mxu0
      %v1071 = vadd.f32 0.0, %v1070
      %v1072 = vpop.f32.mrb[0].mxu0
      %1073 = vmatprep.mubr.f32.mxu0 0.0
      %1074 = vmatmul.mubr.f32.gmra.mrb[0].mxu0 %v980
      %v1075 = vpop.f32.mrb[0].mxu0
      %v1076 = vadd.f32 0.0, %v1075
      %v1077 = vpop.f32.mrb[0].mxu0
      %1078 = vmatprep.mubr.f32.mxu0 0.0
      %1079 = vmatmul.mubr.f32.gmra.mrb[0].mxu0 %v983
      %v1080 = vpop.f32.mrb[0].mxu0
      %v1081 = vadd.f32 0.0, %v1080
      %v1082 = vpop.f32.mrb[0].mxu0
      %1083 = vmatprep.mubr.f32.mxu0 0.0
      %1084 = vmatmul.mubr.f32.gmra.mrb[0].mxu0 %v986
      %v1085 = vpop.f32.mrb[0].mxu0
      %v1086 = vadd.f32 0.0, %v1085
      %v1087 = vpop.f32.mrb[0].mxu0
      %1088 = vmatprep.mubr.f32.mxu0 0.0
      %1089 = vmatmul.mubr.f32.gmra.mrb[0].mxu0 %v989
      %v1090 = vpop.f32.mrb[0].mxu0
      %v1091 = vadd.f32 0.0, %v1090
      %v1092 = vpop.f32.mrb[0].mxu0
      %1093 = vmatprep.mubr.f32.mxu0 0.0
      %1094 = vmatmul.mubr.f32.gmra.mrb[0].mxu0 %v992
      %v1095 = vpop.f32.mrb[0].mxu0
      %v1096 = vadd.f32 0.0, %v1095
      %v1097 = vpop.f32.mrb[0].mxu0
      %1098 = vdwg.mxu0
      %v1099 = vadd.f32 %v944, %v1061
      %v1100 = vadd.f32 %v945, %v1066
      %v1101 = vadd.f32 %v946, %v1071
      %v1102 = vadd.f32 %v947, %v1076
      %v1103 = vadd.f32 %v948, %v1081
      %v1104 = vadd.f32 %v949, %v1086
      %v1105 = vadd.f32 %v950, %v1091
      %v1106 = vadd.f32 %v951, %v1096
      %v1107 = vld [vmem:[%s952 + $0x1] sm:$0xff]
      %v1108 = vld [vmem:[%s952 + $0x11] sm:$0xff]
      %v1109 = vld [vmem:[%s952 + $0x21] sm:$0xff]
      %v1110 = vld [vmem:[%s952 + $0x31] sm:$0xff]
      %v1111 = vld [vmem:[%s952 + $0x41] sm:$0xff]
      %v1112 = vld [vmem:[%s952 + $0x51] sm:$0xff]
      %v1113 = vld [vmem:[%s952 + $0x61] sm:$0xff]
      %v1114 = vld [vmem:[%s952 + $0x71] sm:$0xff]
      %s1115 = scalar_lea.vmem %s1, 384
      %v1116 = vld [vmem:[%s1115] sm:$0xff]
      %v1117 = vld [vmem:[%s1115 + $0x8] sm:$0xff]
      %v1118 = vld [vmem:[%s1115 + $0x10] sm:$0xff]
      %v1119 = vld [vmem:[%s1115 + $0x18] sm:$0xff]
      %v1120 = vld [vmem:[%s1115 + $0x20] sm:$0xff]
      %v1121 = vld [vmem:[%s1115 + $0x28] sm:$0xff]
      %v1122 = vld [vmem:[%s1115 + $0x30] sm:$0xff]
      %v1123 = vld [vmem:[%s1115 + $0x38] sm:$0xff]
      %v1125 = vsel %vm231, %v1107, 0
      %v1128 = vsel %vm231, %v1108, 0
      %v1131 = vsel %vm231, %v1109, 0
      %v1134 = vsel %vm231, %v1110, 0
      %v1137 = vsel %vm231, %v1111, 0
      %v1140 = vsel %vm231, %v1112, 0
      %v1143 = vsel %vm231, %v1113, 0
      %v1146 = vsel %vm231, %v1114, 0
      %1148 = vmatprep.subr.mxu0 0.0
      %1149 = vmatpush1.msra.mxu0 %v1116
      %1150 = vmatprep.subr.mxu0 0.0
      %1151 = vmatpush1.msra.mxu0 %v1117
      %1152 = vmatprep.subr.mxu0 0.0
      %1153 = vmatpush1.msra.mxu0 %v1118
      %1154 = vmatprep.subr.mxu0 0.0
      %1155 = vmatpush1.msra.mxu0 %v1119
      %1156 = vmatprep.subr.mxu0 0.0
      %1157 = vmatpush1.msra.mxu0 %v1120
      %1158 = vmatprep.subr.mxu0 0.0
      %1159 = vmatpush1.msra.mxu0 %v1121
      %1160 = vmatprep.subr.mxu0 0.0
      %1161 = vmatpush1.msra.mxu0 %v1122
      %1162 = vmatprep.subr.mxu0 0.0
      %1163 = vmatpush1.msra.mxu0 %v1123
      %1164 = vmatprep.subr.mxu0 0.0
      %1165 = vmatpush1.msra.mxu0 0.0
      %1166 = vmatprep.subr.mxu0 0.0
      %1167 = vmatpush1.msra.mxu0 0.0
      %1168 = vmatprep.subr.mxu0 0.0
      %1169 = vmatpush1.msra.mxu0 0.0
      %1170 = vmatprep.subr.mxu0 0.0
      %1171 = vmatpush1.msra.mxu0 0.0
      %1172 = vmatprep.subr.mxu0 0.0
      %1173 = vmatpush1.msra.mxu0 0.0
      %1174 = vmatprep.subr.mxu0 0.0
      %1175 = vmatpush1.msra.mxu0 0.0
      %1176 = vmatprep.subr.mxu0 0.0
      %1177 = vmatpush1.msra.mxu0 0.0
      %1178 = vmatprep.subr.mxu0 0.0
      %1179 = vmatpush1.msra.mxu0 0.0
      %1180 = vmatprep.subr.mxu0 0.0
      %1181 = vmatpush1.msra.mxu0 0.0
      %1182 = vmatprep.subr.mxu0 0.0
      %1183 = vmatpush1.msra.mxu0 0.0
      %1184 = vmatprep.subr.mxu0 0.0
      %1185 = vmatpush1.msra.mxu0 0.0
      %1186 = vmatprep.subr.mxu0 0.0
      %1187 = vmatpush1.msra.mxu0 0.0
      %1188 = vmatprep.subr.mxu0 0.0
      %1189 = vmatpush1.msra.mxu0 0.0
      %1190 = vmatprep.subr.mxu0 0.0
      %1191 = vmatpush1.msra.mxu0 0.0
      %1192 = vmatprep.subr.mxu0 0.0
      %1193 = vmatpush1.msra.mxu0 0.0
      %1194 = vmatprep.subr.mxu0 0.0
      %1195 = vmatpush1.msra.mxu0 0.0
      %1196 = vmatprep.subr.mxu0 0.0
      %1197 = vmatpush1.msra.mxu0 0.0
      %1198 = vmatprep.subr.mxu0 0.0
      %1199 = vmatpush1.msra.mxu0 0.0
      %1200 = vmatprep.subr.mxu0 0.0
      %1201 = vmatpush1.msra.mxu0 0.0
      %1202 = vmatprep.subr.mxu0 0.0
      %1203 = vmatpush1.msra.mxu0 0.0
      %1204 = vmatprep.subr.mxu0 0.0
      %1205 = vmatpush1.msra.mxu0 0.0
      %1206 = vmatprep.subr.mxu0 0.0
      %1207 = vmatpush1.msra.mxu0 0.0
      %1208 = vmatprep.subr.mxu0 0.0
      %1209 = vmatpush1.msra.mxu0 0.0
      %1210 = vmatprep.subr.mxu0 0.0
      %1211 = vmatpush1.msra.mxu0 0.0
      %1212 = vmatprep.mubr.f32.mxu0 0.0
      %1213 = vmatmul.mubr.f32.gmra.mrb[0].mxu0 %v1125
      %v1214 = vpop.f32.mrb[0].mxu0
      %v1215 = vadd.f32 0.0, %v1214
      %v1216 = vpop.f32.mrb[0].mxu0
      %1217 = vmatprep.mubr.f32.mxu0 0.0
      %1218 = vmatmul.mubr.f32.gmra.mrb[0].mxu0 %v1128
      %v1219 = vpop.f32.mrb[0].mxu0
      %v1220 = vadd.f32 0.0, %v1219
      %v1221 = vpop.f32.mrb[0].mxu0
      %1222 = vmatprep.mubr.f32.mxu0 0.0
      %1223 = vmatmul.mubr.f32.gmra.mrb[0].mxu0 %v1131
      %v1224 = vpop.f32.mrb[0].mxu0
      %v1225 = vadd.f32 0.0, %v1224
      %v1226 = vpop.f32.mrb[0].mxu0
      %1227 = vmatprep.mubr.f32.mxu0 0.0
      %1228 = vmatmul.mubr.f32.gmra.mrb[0].mxu0 %v1134
      %v1229 = vpop.f32.mrb[0].mxu0
      %v1230 = vadd.f32 0.0, %v1229
      %v1231 = vpop.f32.mrb[0].mxu0
      %1232 = vmatprep.mubr.f32.mxu0 0.0
      %1233 = vmatmul.mubr.f32.gmra.mrb[0].mxu0 %v1137
      %v1234 = vpop.f32.mrb[0].mxu0
      %v1235 = vadd.f32 0.0, %v1234
      %v1236 = vpop.f32.mrb[0].mxu0
      %1237 = vmatprep.mubr.f32.mxu0 0.0
      %1238 = vmatmul.mubr.f32.gmra.mrb[0].mxu0 %v1140
      %v1239 = vpop.f32.mrb[0].mxu0
      %v1240 = vadd.f32 0.0, %v1239
      %v1241 = vpop.f32.mrb[0].mxu0
      %1242 = vmatprep.mubr.f32.mxu0 0.0
      %1243 = vmatmul.mubr.f32.gmra.mrb[0].mxu0 %v1143
      %v1244 = vpop.f32.mrb[0].mxu0
      %v1245 = vadd.f32 0.0, %v1244
      %v1246 = vpop.f32.mrb[0].mxu0
      %1247 = vmatprep.mubr.f32.mxu0 0.0
      %1248 = vmatmul.mubr.f32.gmra.mrb[0].mxu0 %v1146
      %v1249 = vpop.f32.mrb[0].mxu0
      %v1250 = vadd.f32 0.0, %v1249
      %v1251 = vpop.f32.mrb[0].mxu0
      %1252 = vdwg.mxu0
      %v1253 = vadd.f32 %v1099, %v1215
      %v1254 = vadd.f32 %v1100, %v1220
      %v1255 = vadd.f32 %v1101, %v1225
      %v1256 = vadd.f32 %v1102, %v1230
      %v1257 = vadd.f32 %v1103, %v1235
      %v1258 = vadd.f32 %v1104, %v1240
      %v1259 = vadd.f32 %v1105, %v1245
      %v1260 = vadd.f32 %v1106, %v1250
      %v1261 = vld [vmem:[%s952 + $0x2] sm:$0xff]
      %v1262 = vld [vmem:[%s952 + $0x12] sm:$0xff]
      %v1263 = vld [vmem:[%s952 + $0x22] sm:$0xff]
      %v1264 = vld [vmem:[%s952 + $0x32] sm:$0xff]
      %v1265 = vld [vmem:[%s952 + $0x42] sm:$0xff]
      %v1266 = vld [vmem:[%s952 + $0x52] sm:$0xff]
      %v1267 = vld [vmem:[%s952 + $0x62] sm:$0xff]
      %v1268 = vld [vmem:[%s952 + $0x72] sm:$0xff]
      %s1269 = scalar_lea.vmem %s1, 448
      %v1270 = vld [vmem:[%s1269] sm:$0xff]
      %v1271 = vld [vmem:[%s1269 + $0x8] sm:$0xff]
      %v1272 = vld [vmem:[%s1269 + $0x10] sm:$0xff]
      %v1273 = vld [vmem:[%s1269 + $0x18] sm:$0xff]
      %v1274 = vld [vmem:[%s1269 + $0x20] sm:$0xff]
      %v1275 = vld [vmem:[%s1269 + $0x28] sm:$0xff]
      %v1276 = vld [vmem:[%s1269 + $0x30] sm:$0xff]
      %v1277 = vld [vmem:[%s1269 + $0x38] sm:$0xff]
      %v1279 = vsel %vm231, %v1261, 0
      %v1282 = vsel %vm231, %v1262, 0
      %v1285 = vsel %vm231, %v1263, 0
      %v1288 = vsel %vm231, %v1264, 0
      %v1291 = vsel %vm231, %v1265, 0
      %v1294 = vsel %vm231, %v1266, 0
      %v1297 = vsel %vm231, %v1267, 0
      %v1300 = vsel %vm231, %v1268, 0
      %1302 = vmatprep.subr.mxu0 0.0
      %1303 = vmatpush1.msra.mxu0 %v1270
      %1304 = vmatprep.subr.mxu0 0.0
      %1305 = vmatpush1.msra.mxu0 %v1271
      %1306 = vmatprep.subr.mxu0 0.0
      %1307 = vmatpush1.msra.mxu0 %v1272
      %1308 = vmatprep.subr.mxu0 0.0
      %1309 = vmatpush1.msra.mxu0 %v1273
      %1310 = vmatprep.subr.mxu0 0.0
      %1311 = vmatpush1.msra.mxu0 %v1274
      %1312 = vmatprep.subr.mxu0 0.0
      %1313 = vmatpush1.msra.mxu0 %v1275
      %1314 = vmatprep.subr.mxu0 0.0
      %1315 = vmatpush1.msra.mxu0 %v1276
      %1316 = vmatprep.subr.mxu0 0.0
      %1317 = vmatpush1.msra.mxu0 %v1277
      %1318 = vmatprep.subr.mxu0 0.0
      %1319 = vmatpush1.msra.mxu0 0.0
      %1320 = vmatprep.subr.mxu0 0.0
      %1321 = vmatpush1.msra.mxu0 0.0
      %1322 = vmatprep.subr.mxu0 0.0
      %1323 = vmatpush1.msra.mxu0 0.0
      %1324 = vmatprep.subr.mxu0 0.0
      %1325 = vmatpush1.msra.mxu0 0.0
      %1326 = vmatprep.subr.mxu0 0.0
      %1327 = vmatpush1.msra.mxu0 0.0
      %1328 = vmatprep.subr.mxu0 0.0
      %1329 = vmatpush1.msra.mxu0 0.0
      %1330 = vmatprep.subr.mxu0 0.0
      %1331 = vmatpush1.msra.mxu0 0.0
      %1332 = vmatprep.subr.mxu0 0.0
      %1333 = vmatpush1.msra.mxu0 0.0
      %1334 = vmatprep.subr.mxu0 0.0
      %1335 = vmatpush1.msra.mxu0 0.0
      %1336 = vmatprep.subr.mxu0 0.0
      %1337 = vmatpush1.msra.mxu0 0.0
      %1338 = vmatprep.subr.mxu0 0.0
      %1339 = vmatpush1.msra.mxu0 0.0
      %1340 = vmatprep.subr.mxu0 0.0
      %1341 = vmatpush1.msra.mxu0 0.0
      %1342 = vmatprep.subr.mxu0 0.0
      %1343 = vmatpush1.msra.mxu0 0.0
      %1344 = vmatprep.subr.mxu0 0.0
      %1345 = vmatpush1.msra.mxu0 0.0
      %1346 = vmatprep.subr.mxu0 0.0
      %1347 = vmatpush1.msra.mxu0 0.0
      %1348 = vmatprep.subr.mxu0 0.0
      %1349 = vmatpush1.msra.mxu0 0.0
      %1350 = vmatprep.subr.mxu0 0.0
      %1351 = vmatpush1.msra.mxu0 0.0
      %1352 = vmatprep.subr.mxu0 0.0
      %1353 = vmatpush1.msra.mxu0 0.0
      %1354 = vmatprep.subr.mxu0 0.0
      %1355 = vmatpush1.msra.mxu0 0.0
      %1356 = vmatprep.subr.mxu0 0.0
      %1357 = vmatpush1.msra.mxu0 0.0
      %1358 = vmatprep.subr.mxu0 0.0
      %1359 = vmatpush1.msra.mxu0 0.0
      %1360 = vmatprep.subr.mxu0 0.0
      %1361 = vmatpush1.msra.mxu0 0.0
      %1362 = vmatprep.subr.mxu0 0.0
      %1363 = vmatpush1.msra.mxu0 0.0
      %1364 = vmatprep.subr.mxu0 0.0
      %1365 = vmatpush1.msra.mxu0 0.0
      %1366 = vmatprep.mubr.f32.mxu0 0.0
      %1367 = vmatmul.mubr.f32.gmra.mrb[0].mxu0 %v1279
      %v1368 = vpop.f32.mrb[0].mxu0
      %v1369 = vadd.f32 0.0, %v1368
      %v1370 = vpop.f32.mrb[0].mxu0
      %1371 = vmatprep.mubr.f32.mxu0 0.0
      %1372 = vmatmul.mubr.f32.gmra.mrb[0].mxu0 %v1282
      %v1373 = vpop.f32.mrb[0].mxu0
      %v1374 = vadd.f32 0.0, %v1373
      %v1375 = vpop.f32.mrb[0].mxu0
      %1376 = vmatprep.mubr.f32.mxu0 0.0
      %1377 = vmatmul.mubr.f32.gmra.mrb[0].mxu0 %v1285
      %v1378 = vpop.f32.mrb[0].mxu0
      %v1379 = vadd.f32 0.0, %v1378
      %v1380 = vpop.f32.mrb[0].mxu0
      %1381 = vmatprep.mubr.f32.mxu0 0.0
      %1382 = vmatmul.mubr.f32.gmra.mrb[0].mxu0 %v1288
      %v1383 = vpop.f32.mrb[0].mxu0
      %v1384 = vadd.f32 0.0, %v1383
      %v1385 = vpop.f32.mrb[0].mxu0
      %1386 = vmatprep.mubr.f32.mxu0 0.0
      %1387 = vmatmul.mubr.f32.gmra.mrb[0].mxu0 %v1291
      %v1388 = vpop.f32.mrb[0].mxu0
      %v1389 = vadd.f32 0.0, %v1388
      %v1390 = vpop.f32.mrb[0].mxu0
      %1391 = vmatprep.mubr.f32.mxu0 0.0
      %1392 = vmatmul.mubr.f32.gmra.mrb[0].mxu0 %v1294
      %v1393 = vpop.f32.mrb[0].mxu0
      %v1394 = vadd.f32 0.0, %v1393
      %v1395 = vpop.f32.mrb[0].mxu0
      %1396 = vmatprep.mubr.f32.mxu0 0.0
      %1397 = vmatmul.mubr.f32.gmra.mrb[0].mxu0 %v1297
      %v1398 = vpop.f32.mrb[0].mxu0
      %v1399 = vadd.f32 0.0, %v1398
      %v1400 = vpop.f32.mrb[0].mxu0
      %1401 = vmatprep.mubr.f32.mxu0 0.0
      %1402 = vmatmul.mubr.f32.gmra.mrb[0].mxu0 %v1300
      %v1403 = vpop.f32.mrb[0].mxu0
      %v1404 = vadd.f32 0.0, %v1403
      %v1405 = vpop.f32.mrb[0].mxu0
      %1406 = vdwg.mxu0
      %v1407 = vadd.f32 %v1253, %v1369
      %v1408 = vadd.f32 %v1254, %v1374
      %v1409 = vadd.f32 %v1255, %v1379
      %v1410 = vadd.f32 %v1256, %v1384
      %v1411 = vadd.f32 %v1257, %v1389
      %v1412 = vadd.f32 %v1258, %v1394
      %v1413 = vadd.f32 %v1259, %v1399
      %v1414 = vadd.f32 %v1260, %v1404
      %v1415 = vld [vmem:[%s952 + $0x3] sm:$0xff]
      %v1416 = vld [vmem:[%s952 + $0x13] sm:$0xff]
      %v1417 = vld [vmem:[%s952 + $0x23] sm:$0xff]
      %v1418 = vld [vmem:[%s952 + $0x33] sm:$0xff]
      %v1419 = vld [vmem:[%s952 + $0x43] sm:$0xff]
      %v1420 = vld [vmem:[%s952 + $0x53] sm:$0xff]
      %v1421 = vld [vmem:[%s952 + $0x63] sm:$0xff]
      %v1422 = vld [vmem:[%s952 + $0x73] sm:$0xff]
      %s1423 = scalar_lea.vmem %s1, 512
      %v1424 = vld [vmem:[%s1423] sm:$0xff]
      %v1425 = vld [vmem:[%s1423 + $0x8] sm:$0xff]
      %v1426 = vld [vmem:[%s1423 + $0x10] sm:$0xff]
      %v1427 = vld [vmem:[%s1423 + $0x18] sm:$0xff]
      %v1428 = vld [vmem:[%s1423 + $0x20] sm:$0xff]
      %v1429 = vld [vmem:[%s1423 + $0x28] sm:$0xff]
      %v1430 = vld [vmem:[%s1423 + $0x30] sm:$0xff]
      %v1431 = vld [vmem:[%s1423 + $0x38] sm:$0xff]
      %v1433 = vsel %vm231, %v1415, 0
      %v1436 = vsel %vm231, %v1416, 0
      %v1439 = vsel %vm231, %v1417, 0
      %v1442 = vsel %vm231, %v1418, 0
      %v1445 = vsel %vm231, %v1419, 0
      %v1448 = vsel %vm231, %v1420, 0
      %v1451 = vsel %vm231, %v1421, 0
      %v1454 = vsel %vm231, %v1422, 0
      %1456 = vmatprep.subr.mxu0 0.0
      %1457 = vmatpush1.msra.mxu0 %v1424
      %1458 = vmatprep.subr.mxu0 0.0
      %1459 = vmatpush1.msra.mxu0 %v1425
      %1460 = vmatprep.subr.mxu0 0.0
      %1461 = vmatpush1.msra.mxu0 %v1426
      %1462 = vmatprep.subr.mxu0 0.0
      %1463 = vmatpush1.msra.mxu0 %v1427
      %1464 = vmatprep.subr.mxu0 0.0
      %1465 = vmatpush1.msra.mxu0 %v1428
      %1466 = vmatprep.subr.mxu0 0.0
      %1467 = vmatpush1.msra.mxu0 %v1429
      %1468 = vmatprep.subr.mxu0 0.0
      %1469 = vmatpush1.msra.mxu0 %v1430
      %1470 = vmatprep.subr.mxu0 0.0
      %1471 = vmatpush1.msra.mxu0 %v1431
      %1472 = vmatprep.subr.mxu0 0.0
      %1473 = vmatpush1.msra.mxu0 0.0
      %1474 = vmatprep.subr.mxu0 0.0
      %1475 = vmatpush1.msra.mxu0 0.0
      %1476 = vmatprep.subr.mxu0 0.0
      %1477 = vmatpush1.msra.mxu0 0.0
      %1478 = vmatprep.subr.mxu0 0.0
      %1479 = vmatpush1.msra.mxu0 0.0
      %1480 = vmatprep.subr.mxu0 0.0
      %1481 = vmatpush1.msra.mxu0 0.0
      %1482 = vmatprep.subr.mxu0 0.0
      %1483 = vmatpush1.msra.mxu0 0.0
      %1484 = vmatprep.subr.mxu0 0.0
      %1485 = vmatpush1.msra.mxu0 0.0
      %1486 = vmatprep.subr.mxu0 0.0
      %1487 = vmatpush1.msra.mxu0 0.0
      %1488 = vmatprep.subr.mxu0 0.0
      %1489 = vmatpush1.msra.mxu0 0.0
      %1490 = vmatprep.subr.mxu0 0.0
      %1491 = vmatpush1.msra.mxu0 0.0
      %1492 = vmatprep.subr.mxu0 0.0
      %1493 = vmatpush1.msra.mxu0 0.0
      %1494 = vmatprep.subr.mxu0 0.0
      %1495 = vmatpush1.msra.mxu0 0.0
      %1496 = vmatprep.subr.mxu0 0.0
      %1497 = vmatpush1.msra.mxu0 0.0
      %1498 = vmatprep.subr.mxu0 0.0
      %1499 = vmatpush1.msra.mxu0 0.0
      %1500 = vmatprep.subr.mxu0 0.0
      %1501 = vmatpush1.msra.mxu0 0.0
      %1502 = vmatprep.subr.mxu0 0.0
      %1503 = vmatpush1.msra.mxu0 0.0
      %1504 = vmatprep.subr.mxu0 0.0
      %1505 = vmatpush1.msra.mxu0 0.0
      %1506 = vmatprep.subr.mxu0 0.0
      %1507 = vmatpush1.msra.mxu0 0.0
      %1508 = vmatprep.subr.mxu0 0.0
      %1509 = vmatpush1.msra.mxu0 0.0
      %1510 = vmatprep.subr.mxu0 0.0
      %1511 = vmatpush1.msra.mxu0 0.0
      %1512 = vmatprep.subr.mxu0 0.0
      %1513 = vmatpush1.msra.mxu0 0.0
      %1514 = vmatprep.subr.mxu0 0.0
      %1515 = vmatpush1.msra.mxu0 0.0
      %1516 = vmatprep.subr.mxu0 0.0
      %1517 = vmatpush1.msra.mxu0 0.0
      %1518 = vmatprep.subr.mxu0 0.0
      %1519 = vmatpush1.msra.mxu0 0.0
      %1520 = vmatprep.mubr.f32.mxu0 0.0
      %1521 = vmatmul.mubr.f32.gmra.mrb[0].mxu0 %v1433
      %v1522 = vpop.f32.mrb[0].mxu0
      %v1523 = vadd.f32 0.0, %v1522
      %v1524 = vpop.f32.mrb[0].mxu0
      %1525 = vmatprep.mubr.f32.mxu0 0.0
      %1526 = vmatmul.mubr.f32.gmra.mrb[0].mxu0 %v1436
      %v1527 = vpop.f32.mrb[0].mxu0
      %v1528 = vadd.f32 0.0, %v1527
      %v1529 = vpop.f32.mrb[0].mxu0
      %1530 = vmatprep.mubr.f32.mxu0 0.0
      %1531 = vmatmul.mubr.f32.gmra.mrb[0].mxu0 %v1439
      %v1532 = vpop.f32.mrb[0].mxu0
      %v1533 = vadd.f32 0.0, %v1532
      %v1534 = vpop.f32.mrb[0].mxu0
      %1535 = vmatprep.mubr.f32.mxu0 0.0
      %1536 = vmatmul.mubr.f32.gmra.mrb[0].mxu0 %v1442
      %v1537 = vpop.f32.mrb[0].mxu0
      %v1538 = vadd.f32 0.0, %v1537
      %v1539 = vpop.f32.mrb[0].mxu0
      %1540 = vmatprep.mubr.f32.mxu0 0.0
      %1541 = vmatmul.mubr.f32.gmra.mrb[0].mxu0 %v1445
      %v1542 = vpop.f32.mrb[0].mxu0
      %v1543 = vadd.f32 0.0, %v1542
      %v1544 = vpop.f32.mrb[0].mxu0
      %1545 = vmatprep.mubr.f32.mxu0 0.0
      %1546 = vmatmul.mubr.f32.gmra.mrb[0].mxu0 %v1448
      %v1547 = vpop.f32.mrb[0].mxu0
      %v1548 = vadd.f32 0.0, %v1547
      %v1549 = vpop.f32.mrb[0].mxu0
      %1550 = vmatprep.mubr.f32.mxu0 0.0
      %1551 = vmatmul.mubr.f32.gmra.mrb[0].mxu0 %v1451
      %v1552 = vpop.f32.mrb[0].mxu0
      %v1553 = vadd.f32 0.0, %v1552
      %v1554 = vpop.f32.mrb[0].mxu0
      %1555 = vmatprep.mubr.f32.mxu0 0.0
      %1556 = vmatmul.mubr.f32.gmra.mrb[0].mxu0 %v1454
      %v1557 = vpop.f32.mrb[0].mxu0
      %v1558 = vadd.f32 0.0, %v1557
      %v1559 = vpop.f32.mrb[0].mxu0
      %1560 = vdwg.mxu0
      %v1561 = vadd.f32 %v1407, %v1523
      %v1562 = vadd.f32 %v1408, %v1528
      %v1563 = vadd.f32 %v1409, %v1533
      %v1564 = vadd.f32 %v1410, %v1538
      %v1565 = vadd.f32 %v1411, %v1543
      %v1566 = vadd.f32 %v1412, %v1548
      %v1567 = vadd.f32 %v1413, %v1553
      %v1568 = vadd.f32 %v1414, %v1558
      %v1569 = vld [vmem:[%s952 + $0x4] sm:$0xff]
      %v1570 = vld [vmem:[%s952 + $0x14] sm:$0xff]
      %v1571 = vld [vmem:[%s952 + $0x24] sm:$0xff]
      %v1572 = vld [vmem:[%s952 + $0x34] sm:$0xff]
      %v1573 = vld [vmem:[%s952 + $0x44] sm:$0xff]
      %v1574 = vld [vmem:[%s952 + $0x54] sm:$0xff]
      %v1575 = vld [vmem:[%s952 + $0x64] sm:$0xff]
      %v1576 = vld [vmem:[%s952 + $0x74] sm:$0xff]
      %s1577 = scalar_lea.vmem %s1, 576
      %v1578 = vld [vmem:[%s1577] sm:$0xff]
      %v1579 = vld [vmem:[%s1577 + $0x8] sm:$0xff]
      %v1580 = vld [vmem:[%s1577 + $0x10] sm:$0xff]
      %v1581 = vld [vmem:[%s1577 + $0x18] sm:$0xff]
      %v1582 = vld [vmem:[%s1577 + $0x20] sm:$0xff]
      %v1583 = vld [vmem:[%s1577 + $0x28] sm:$0xff]
      %v1584 = vld [vmem:[%s1577 + $0x30] sm:$0xff]
      %v1585 = vld [vmem:[%s1577 + $0x38] sm:$0xff]
      %v1587 = vsel %vm231, %v1569, 0
      %v1590 = vsel %vm231, %v1570, 0
      %v1593 = vsel %vm231, %v1571, 0
      %v1596 = vsel %vm231, %v1572, 0
      %v1599 = vsel %vm231, %v1573, 0
      %v1602 = vsel %vm231, %v1574, 0
      %v1605 = vsel %vm231, %v1575, 0
      %v1608 = vsel %vm231, %v1576, 0
      %1610 = vmatprep.subr.mxu0 0.0
      %1611 = vmatpush1.msra.mxu0 %v1578
      %1612 = vmatprep.subr.mxu0 0.0
      %1613 = vmatpush1.msra.mxu0 %v1579
      %1614 = vmatprep.subr.mxu0 0.0
      %1615 = vmatpush1.msra.mxu0 %v1580
      %1616 = vmatprep.subr.mxu0 0.0
      %1617 = vmatpush1.msra.mxu0 %v1581
      %1618 = vmatprep.subr.mxu0 0.0
      %1619 = vmatpush1.msra.mxu0 %v1582
      %1620 = vmatprep.subr.mxu0 0.0
      %1621 = vmatpush1.msra.mxu0 %v1583
      %1622 = vmatprep.subr.mxu0 0.0
      %1623 = vmatpush1.msra.mxu0 %v1584
      %1624 = vmatprep.subr.mxu0 0.0
      %1625 = vmatpush1.msra.mxu0 %v1585
      %1626 = vmatprep.subr.mxu0 0.0
      %1627 = vmatpush1.msra.mxu0 0.0
      %1628 = vmatprep.subr.mxu0 0.0
      %1629 = vmatpush1.msra.mxu0 0.0
      %1630 = vmatprep.subr.mxu0 0.0
      %1631 = vmatpush1.msra.mxu0 0.0
      %1632 = vmatprep.subr.mxu0 0.0
      %1633 = vmatpush1.msra.mxu0 0.0
      %1634 = vmatprep.subr.mxu0 0.0
      %1635 = vmatpush1.msra.mxu0 0.0
      %1636 = vmatprep.subr.mxu0 0.0
      %1637 = vmatpush1.msra.mxu0 0.0
      %1638 = vmatprep.subr.mxu0 0.0
      %1639 = vmatpush1.msra.mxu0 0.0
      %1640 = vmatprep.subr.mxu0 0.0
      %1641 = vmatpush1.msra.mxu0 0.0
      %1642 = vmatprep.subr.mxu0 0.0
      %1643 = vmatpush1.msra.mxu0 0.0
      %1644 = vmatprep.subr.mxu0 0.0
      %1645 = vmatpush1.msra.mxu0 0.0
      %1646 = vmatprep.subr.mxu0 0.0
      %1647 = vmatpush1.msra.mxu0 0.0
      %1648 = vmatprep.subr.mxu0 0.0
      %1649 = vmatpush1.msra.mxu0 0.0
      %1650 = vmatprep.subr.mxu0 0.0
      %1651 = vmatpush1.msra.mxu0 0.0
      %1652 = vmatprep.subr.mxu0 0.0
      %1653 = vmatpush1.msra.mxu0 0.0
      %1654 = vmatprep.subr.mxu0 0.0
      %1655 = vmatpush1.msra.mxu0 0.0
      %1656 = vmatprep.subr.mxu0 0.0
      %1657 = vmatpush1.msra.mxu0 0.0
      %1658 = vmatprep.subr.mxu0 0.0
      %1659 = vmatpush1.msra.mxu0 0.0
      %1660 = vmatprep.subr.mxu0 0.0
      %1661 = vmatpush1.msra.mxu0 0.0
      %1662 = vmatprep.subr.mxu0 0.0
      %1663 = vmatpush1.msra.mxu0 0.0
      %1664 = vmatprep.subr.mxu0 0.0
      %1665 = vmatpush1.msra.mxu0 0.0
      %1666 = vmatprep.subr.mxu0 0.0
      %1667 = vmatpush1.msra.mxu0 0.0
      %1668 = vmatprep.subr.mxu0 0.0
      %1669 = vmatpush1.msra.mxu0 0.0
      %1670 = vmatprep.subr.mxu0 0.0
      %1671 = vmatpush1.msra.mxu0 0.0
      %1672 = vmatprep.subr.mxu0 0.0
      %1673 = vmatpush1.msra.mxu0 0.0
      %1674 = vmatprep.mubr.f32.mxu0 0.0
      %1675 = vmatmul.mubr.f32.gmra.mrb[0].mxu0 %v1587
      %v1676 = vpop.f32.mrb[0].mxu0
      %v1677 = vadd.f32 0.0, %v1676
      %v1678 = vpop.f32.mrb[0].mxu0
      %1679 = vmatprep.mubr.f32.mxu0 0.0
      %1680 = vmatmul.mubr.f32.gmra.mrb[0].mxu0 %v1590
      %v1681 = vpop.f32.mrb[0].mxu0
      %v1682 = vadd.f32 0.0, %v1681
      %v1683 = vpop.f32.mrb[0].mxu0
      %1684 = vmatprep.mubr.f32.mxu0 0.0
      %1685 = vmatmul.mubr.f32.gmra.mrb[0].mxu0 %v1593
      %v1686 = vpop.f32.mrb[0].mxu0
      %v1687 = vadd.f32 0.0, %v1686
      %v1688 = vpop.f32.mrb[0].mxu0
      %1689 = vmatprep.mubr.f32.mxu0 0.0
      %1690 = vmatmul.mubr.f32.gmra.mrb[0].mxu0 %v1596
      %v1691 = vpop.f32.mrb[0].mxu0
      %v1692 = vadd.f32 0.0, %v1691
      %v1693 = vpop.f32.mrb[0].mxu0
      %1694 = vmatprep.mubr.f32.mxu0 0.0
      %1695 = vmatmul.mubr.f32.gmra.mrb[0].mxu0 %v1599
      %v1696 = vpop.f32.mrb[0].mxu0
      %v1697 = vadd.f32 0.0, %v1696
      %v1698 = vpop.f32.mrb[0].mxu0
      %1699 = vmatprep.mubr.f32.mxu0 0.0
      %1700 = vmatmul.mubr.f32.gmra.mrb[0].mxu0 %v1602
      %v1701 = vpop.f32.mrb[0].mxu0
      %v1702 = vadd.f32 0.0, %v1701
      %v1703 = vpop.f32.mrb[0].mxu0
      %1704 = vmatprep.mubr.f32.mxu0 0.0
      %1705 = vmatmul.mubr.f32.gmra.mrb[0].mxu0 %v1605
      %v1706 = vpop.f32.mrb[0].mxu0
      %v1707 = vadd.f32 0.0, %v1706
      %v1708 = vpop.f32.mrb[0].mxu0
      %1709 = vmatprep.mubr.f32.mxu0 0.0
      %1710 = vmatmul.mubr.f32.gmra.mrb[0].mxu0 %v1608
      %v1711 = vpop.f32.mrb[0].mxu0
      %v1712 = vadd.f32 0.0, %v1711
      %v1713 = vpop.f32.mrb[0].mxu0
      %1714 = vdwg.mxu0
      %v1715 = vadd.f32 %v1561, %v1677
      %v1716 = vadd.f32 %v1562, %v1682
      %v1717 = vadd.f32 %v1563, %v1687
      %v1718 = vadd.f32 %v1564, %v1692
      %v1719 = vadd.f32 %v1565, %v1697
      %v1720 = vadd.f32 %v1566, %v1702
      %v1721 = vadd.f32 %v1567, %v1707
      %v1722 = vadd.f32 %v1568, %v1712
      %s1723 = scalar_lea.vmem %s192, 32
      %v1724 = vld [vmem:[%s1723] sm:$0xff]
      %v1725 = vld [vmem:[%s1723 + $0x10] sm:$0xff]
      %v1726 = vld [vmem:[%s1723 + $0x20] sm:$0xff]
      %v1727 = vld [vmem:[%s1723 + $0x30] sm:$0xff]
      %v1728 = vld [vmem:[%s1723 + $0x40] sm:$0xff]
      %v1729 = vld [vmem:[%s1723 + $0x50] sm:$0xff]
      %v1730 = vld [vmem:[%s1723 + $0x60] sm:$0xff]
      %v1731 = vld [vmem:[%s1723 + $0x70] sm:$0xff]
      %s1732 = scalar_lea.vmem %s1, 640
      %v1733 = vld [vmem:[%s1732] sm:$0xff]
      %v1734 = vld [vmem:[%s1732 + $0x8] sm:$0xff]
      %v1735 = vld [vmem:[%s1732 + $0x10] sm:$0xff]
      %v1736 = vld [vmem:[%s1732 + $0x18] sm:$0xff]
      %v1737 = vld [vmem:[%s1732 + $0x20] sm:$0xff]
      %v1738 = vld [vmem:[%s1732 + $0x28] sm:$0xff]
      %v1739 = vld [vmem:[%s1732 + $0x30] sm:$0xff]
      %v1740 = vld [vmem:[%s1732 + $0x38] sm:$0xff]
      %v1742 = vsel %vm231, %v1724, 0
      %v1745 = vsel %vm231, %v1725, 0
      %v1748 = vsel %vm231, %v1726, 0
      %v1751 = vsel %vm231, %v1727, 0
      %v1754 = vsel %vm231, %v1728, 0
      %v1757 = vsel %vm231, %v1729, 0
      %v1760 = vsel %vm231, %v1730, 0
      %v1763 = vsel %vm231, %v1731, 0
      %1765 = vmatprep.subr.mxu0 0.0
      %1766 = vmatpush1.msra.mxu0 %v1733
      %1767 = vmatprep.subr.mxu0 0.0
      %1768 = vmatpush1.msra.mxu0 %v1734
      %1769 = vmatprep.subr.mxu0 0.0
      %1770 = vmatpush1.msra.mxu0 %v1735
      %1771 = vmatprep.subr.mxu0 0.0
      %1772 = vmatpush1.msra.mxu0 %v1736
      %1773 = vmatprep.subr.mxu0 0.0
      %1774 = vmatpush1.msra.mxu0 %v1737
      %1775 = vmatprep.subr.mxu0 0.0
      %1776 = vmatpush1.msra.mxu0 %v1738
      %1777 = vmatprep.subr.mxu0 0.0
      %1778 = vmatpush1.msra.mxu0 %v1739
      %1779 = vmatprep.subr.mxu0 0.0
      %1780 = vmatpush1.msra.mxu0 %v1740
      %1781 = vmatprep.subr.mxu0 0.0
      %1782 = vmatpush1.msra.mxu0 0.0
      %1783 = vmatprep.subr.mxu0 0.0
      %1784 = vmatpush1.msra.mxu0 0.0
      %1785 = vmatprep.subr.mxu0 0.0
      %1786 = vmatpush1.msra.mxu0 0.0
      %1787 = vmatprep.subr.mxu0 0.0
      %1788 = vmatpush1.msra.mxu0 0.0
      %1789 = vmatprep.subr.mxu0 0.0
      %1790 = vmatpush1.msra.mxu0 0.0
      %1791 = vmatprep.subr.mxu0 0.0
      %1792 = vmatpush1.msra.mxu0 0.0
      %1793 = vmatprep.subr.mxu0 0.0
      %1794 = vmatpush1.msra.mxu0 0.0
      %1795 = vmatprep.subr.mxu0 0.0
      %1796 = vmatpush1.msra.mxu0 0.0
      %1797 = vmatprep.subr.mxu0 0.0
      %1798 = vmatpush1.msra.mxu0 0.0
      %1799 = vmatprep.subr.mxu0 0.0
      %1800 = vmatpush1.msra.mxu0 0.0
      %1801 = vmatprep.subr.mxu0 0.0
      %1802 = vmatpush1.msra.mxu0 0.0
      %1803 = vmatprep.subr.mxu0 0.0
      %1804 = vmatpush1.msra.mxu0 0.0
      %1805 = vmatprep.subr.mxu0 0.0
      %1806 = vmatpush1.msra.mxu0 0.0
      %1807 = vmatprep.subr.mxu0 0.0
      %1808 = vmatpush1.msra.mxu0 0.0
      %1809 = vmatprep.subr.mxu0 0.0
      %1810 = vmatpush1.msra.mxu0 0.0
      %1811 = vmatprep.subr.mxu0 0.0
      %1812 = vmatpush1.msra.mxu0 0.0
      %1813 = vmatprep.subr.mxu0 0.0
      %1814 = vmatpush1.msra.mxu0 0.0
      %1815 = vmatprep.subr.mxu0 0.0
      %1816 = vmatpush1.msra.mxu0 0.0
      %1817 = vmatprep.subr.mxu0 0.0
      %1818 = vmatpush1.msra.mxu0 0.0
      %1819 = vmatprep.subr.mxu0 0.0
      %1820 = vmatpush1.msra.mxu0 0.0
      %1821 = vmatprep.subr.mxu0 0.0
      %1822 = vmatpush1.msra.mxu0 0.0
      %1823 = vmatprep.subr.mxu0 0.0
      %1824 = vmatpush1.msra.mxu0 0.0
      %1825 = vmatprep.subr.mxu0 0.0
      %1826 = vmatpush1.msra.mxu0 0.0
      %1827 = vmatprep.subr.mxu0 0.0
      %1828 = vmatpush1.msra.mxu0 0.0
      %1829 = vmatprep.mubr.f32.mxu0 0.0
      %1830 = vmatmul.mubr.f32.gmra.mrb[0].mxu0 %v1742
      %v1831 = vpop.f32.mrb[0].mxu0
      %v1832 = vadd.f32 0.0, %v1831
      %v1833 = vpop.f32.mrb[0].mxu0
      %1834 = vmatprep.mubr.f32.mxu0 0.0
      %1835 = vmatmul.mubr.f32.gmra.mrb[0].mxu0 %v1745
      %v1836 = vpop.f32.mrb[0].mxu0
      %v1837 = vadd.f32 0.0, %v1836
      %v1838 = vpop.f32.mrb[0].mxu0
      %1839 = vmatprep.mubr.f32.mxu0 0.0
      %1840 = vmatmul.mubr.f32.gmra.mrb[0].mxu0 %v1748
      %v1841 = vpop.f32.mrb[0].mxu0
      %v1842 = vadd.f32 0.0, %v1841
      %v1843 = vpop.f32.mrb[0].mxu0
      %1844 = vmatprep.mubr.f32.mxu0 0.0
      %1845 = vmatmul.mubr.f32.gmra.mrb[0].mxu0 %v1751
      %v1846 = vpop.f32.mrb[0].mxu0
      %v1847 = vadd.f32 0.0, %v1846
      %v1848 = vpop.f32.mrb[0].mxu0
      %1849 = vmatprep.mubr.f32.mxu0 0.0
      %1850 = vmatmul.mubr.f32.gmra.mrb[0].mxu0 %v1754
      %v1851 = vpop.f32.mrb[0].mxu0
      %v1852 = vadd.f32 0.0, %v1851
      %v1853 = vpop.f32.mrb[0].mxu0
      %1854 = vmatprep.mubr.f32.mxu0 0.0
      %1855 = vmatmul.mubr.f32.gmra.mrb[0].mxu0 %v1757
      %v1856 = vpop.f32.mrb[0].mxu0
      %v1857 = vadd.f32 0.0, %v1856
      %v1858 = vpop.f32.mrb[0].mxu0
      %1859 = vmatprep.mubr.f32.mxu0 0.0
      %1860 = vmatmul.mubr.f32.gmra.mrb[0].mxu0 %v1760
      %v1861 = vpop.f32.mrb[0].mxu0
      %v1862 = vadd.f32 0.0, %v1861
      %v1863 = vpop.f32.mrb[0].mxu0
      %1864 = vmatprep.mubr.f32.mxu0 0.0
      %1865 = vmatmul.mubr.f32.gmra.mrb[0].mxu0 %v1763
      %v1866 = vpop.f32.mrb[0].mxu0
      %v1867 = vadd.f32 0.0, %v1866
      %v1868 = vpop.f32.mrb[0].mxu0
      %1869 = vdwg.mxu0
      %v1870 = vadd.f32 %v1715, %v1832
      %v1871 = vadd.f32 %v1716, %v1837
      %v1872 = vadd.f32 %v1717, %v1842
      %v1873 = vadd.f32 %v1718, %v1847
      %v1874 = vadd.f32 %v1719, %v1852
      %v1875 = vadd.f32 %v1720, %v1857
      %v1876 = vadd.f32 %v1721, %v1862
      %v1877 = vadd.f32 %v1722, %v1867
      %v1878 = vld [vmem:[%s1723 + $0x1] sm:$0xff]
      %v1879 = vld [vmem:[%s1723 + $0x11] sm:$0xff]
      %v1880 = vld [vmem:[%s1723 + $0x21] sm:$0xff]
      %v1881 = vld [vmem:[%s1723 + $0x31] sm:$0xff]
      %v1882 = vld [vmem:[%s1723 + $0x41] sm:$0xff]
      %v1883 = vld [vmem:[%s1723 + $0x51] sm:$0xff]
      %v1884 = vld [vmem:[%s1723 + $0x61] sm:$0xff]
      %v1885 = vld [vmem:[%s1723 + $0x71] sm:$0xff]
      %s1886 = scalar_lea.vmem %s1, 704
      %v1887 = vld [vmem:[%s1886] sm:$0xff]
      %v1888 = vld [vmem:[%s1886 + $0x8] sm:$0xff]
      %v1889 = vld [vmem:[%s1886 + $0x10] sm:$0xff]
      %v1890 = vld [vmem:[%s1886 + $0x18] sm:$0xff]
      %v1891 = vld [vmem:[%s1886 + $0x20] sm:$0xff]
      %v1892 = vld [vmem:[%s1886 + $0x28] sm:$0xff]
      %v1893 = vld [vmem:[%s1886 + $0x30] sm:$0xff]
      %v1894 = vld [vmem:[%s1886 + $0x38] sm:$0xff]
      %v1896 = vsel %vm231, %v1878, 0
      %v1899 = vsel %vm231, %v1879, 0
      %v1902 = vsel %vm231, %v1880, 0
      %v1905 = vsel %vm231, %v1881, 0
      %v1908 = vsel %vm231, %v1882, 0
      %v1911 = vsel %vm231, %v1883, 0
      %v1914 = vsel %vm231, %v1884, 0
      %v1917 = vsel %vm231, %v1885, 0
      %1919 = vmatprep.subr.mxu0 0.0
      %1920 = vmatpush1.msra.mxu0 %v1887
      %1921 = vmatprep.subr.mxu0 0.0
      %1922 = vmatpush1.msra.mxu0 %v1888
      %1923 = vmatprep.subr.mxu0 0.0
      %1924 = vmatpush1.msra.mxu0 %v1889
      %1925 = vmatprep.subr.mxu0 0.0
      %1926 = vmatpush1.msra.mxu0 %v1890
      %1927 = vmatprep.subr.mxu0 0.0
      %1928 = vmatpush1.msra.mxu0 %v1891
      %1929 = vmatprep.subr.mxu0 0.0
      %1930 = vmatpush1.msra.mxu0 %v1892
      %1931 = vmatprep.subr.mxu0 0.0
      %1932 = vmatpush1.msra.mxu0 %v1893
      %1933 = vmatprep.subr.mxu0 0.0
      %1934 = vmatpush1.msra.mxu0 %v1894
      %1935 = vmatprep.subr.mxu0 0.0
      %1936 = vmatpush1.msra.mxu0 0.0
      %1937 = vmatprep.subr.mxu0 0.0
      %1938 = vmatpush1.msra.mxu0 0.0
      %1939 = vmatprep.subr.mxu0 0.0
      %1940 = vmatpush1.msra.mxu0 0.0
      %1941 = vmatprep.subr.mxu0 0.0
      %1942 = vmatpush1.msra.mxu0 0.0
      %1943 = vmatprep.subr.mxu0 0.0
      %1944 = vmatpush1.msra.mxu0 0.0
      %1945 = vmatprep.subr.mxu0 0.0
      %1946 = vmatpush1.msra.mxu0 0.0
      %1947 = vmatprep.subr.mxu0 0.0
      %1948 = vmatpush1.msra.mxu0 0.0
      %1949 = vmatprep.subr.mxu0 0.0
      %1950 = vmatpush1.msra.mxu0 0.0
      %1951 = vmatprep.subr.mxu0 0.0
      %1952 = vmatpush1.msra.mxu0 0.0
      %1953 = vmatprep.subr.mxu0 0.0
      %1954 = vmatpush1.msra.mxu0 0.0
      %1955 = vmatprep.subr.mxu0 0.0
      %1956 = vmatpush1.msra.mxu0 0.0
      %1957 = vmatprep.subr.mxu0 0.0
      %1958 = vmatpush1.msra.mxu0 0.0
      %1959 = vmatprep.subr.mxu0 0.0
      %1960 = vmatpush1.msra.mxu0 0.0
      %1961 = vmatprep.subr.mxu0 0.0
      %1962 = vmatpush1.msra.mxu0 0.0
      %1963 = vmatprep.subr.mxu0 0.0
      %1964 = vmatpush1.msra.mxu0 0.0
      %1965 = vmatprep.subr.mxu0 0.0
      %1966 = vmatpush1.msra.mxu0 0.0
      %1967 = vmatprep.subr.mxu0 0.0
      %1968 = vmatpush1.msra.mxu0 0.0
      %1969 = vmatprep.subr.mxu0 0.0
      %1970 = vmatpush1.msra.mxu0 0.0
      %1971 = vmatprep.subr.mxu0 0.0
      %1972 = vmatpush1.msra.mxu0 0.0
      %1973 = vmatprep.subr.mxu0 0.0
      %1974 = vmatpush1.msra.mxu0 0.0
      %1975 = vmatprep.subr.mxu0 0.0
      %1976 = vmatpush1.msra.mxu0 0.0
      %1977 = vmatprep.subr.mxu0 0.0
      %1978 = vmatpush1.msra.mxu0 0.0
      %1979 = vmatprep.subr.mxu0 0.0
      %1980 = vmatpush1.msra.mxu0 0.0
      %1981 = vmatprep.subr.mxu0 0.0
      %1982 = vmatpush1.msra.mxu0 0.0
      %1983 = vmatprep.mubr.f32.mxu0 0.0
      %1984 = vmatmul.mubr.f32.gmra.mrb[0].mxu0 %v1896
      %v1985 = vpop.f32.mrb[0].mxu0
      %v1986 = vadd.f32 0.0, %v1985
      %v1987 = vpop.f32.mrb[0].mxu0
      %1988 = vmatprep.mubr.f32.mxu0 0.0
      %1989 = vmatmul.mubr.f32.gmra.mrb[0].mxu0 %v1899
      %v1990 = vpop.f32.mrb[0].mxu0
      %v1991 = vadd.f32 0.0, %v1990
      %v1992 = vpop.f32.mrb[0].mxu0
      %1993 = vmatprep.mubr.f32.mxu0 0.0
      %1994 = vmatmul.mubr.f32.gmra.mrb[0].mxu0 %v1902
      %v1995 = vpop.f32.mrb[0].mxu0
      %v1996 = vadd.f32 0.0, %v1995
      %v1997 = vpop.f32.mrb[0].mxu0
      %1998 = vmatprep.mubr.f32.mxu0 0.0
      %1999 = vmatmul.mubr.f32.gmra.mrb[0].mxu0 %v1905
      %v2000 = vpop.f32.mrb[0].mxu0
      %v2001 = vadd.f32 0.0, %v2000
      %v2002 = vpop.f32.mrb[0].mxu0
      %2003 = vmatprep.mubr.f32.mxu0 0.0
      %2004 = vmatmul.mubr.f32.gmra.mrb[0].mxu0 %v1908
      %v2005 = vpop.f32.mrb[0].mxu0
      %v2006 = vadd.f32 0.0, %v2005
      %v2007 = vpop.f32.mrb[0].mxu0
      %2008 = vmatprep.mubr.f32.mxu0 0.0
      %2009 = vmatmul.mubr.f32.gmra.mrb[0].mxu0 %v1911
      %v2010 = vpop.f32.mrb[0].mxu0
      %v2011 = vadd.f32 0.0, %v2010
      %v2012 = vpop.f32.mrb[0].mxu0
      %2013 = vmatprep.mubr.f32.mxu0 0.0
      %2014 = vmatmul.mubr.f32.gmra.mrb[0].mxu0 %v1914
      %v2015 = vpop.f32.mrb[0].mxu0
      %v2016 = vadd.f32 0.0, %v2015
      %v2017 = vpop.f32.mrb[0].mxu0
      %2018 = vmatprep.mubr.f32.mxu0 0.0
      %2019 = vmatmul.mubr.f32.gmra.mrb[0].mxu0 %v1917
      %v2020 = vpop.f32.mrb[0].mxu0
      %v2021 = vadd.f32 0.0, %v2020
      %v2022 = vpop.f32.mrb[0].mxu0
      %2023 = vdwg.mxu0
      %v2024 = vadd.f32 %v1870, %v1986
      %v2025 = vadd.f32 %v1871, %v1991
      %v2026 = vadd.f32 %v1872, %v1996
      %v2027 = vadd.f32 %v1873, %v2001
      %v2028 = vadd.f32 %v1874, %v2006
      %v2029 = vadd.f32 %v1875, %v2011
      %v2030 = vadd.f32 %v1876, %v2016
      %v2031 = vadd.f32 %v1877, %v2021
      %v2032 = vld [vmem:[%s1723 + $0x2] sm:$0xff]
      %v2033 = vld [vmem:[%s1723 + $0x12] sm:$0xff]
      %v2034 = vld [vmem:[%s1723 + $0x22] sm:$0xff]
      %v2035 = vld [vmem:[%s1723 + $0x32] sm:$0xff]
      %v2036 = vld [vmem:[%s1723 + $0x42] sm:$0xff]
      %v2037 = vld [vmem:[%s1723 + $0x52] sm:$0xff]
      %v2038 = vld [vmem:[%s1723 + $0x62] sm:$0xff]
      %v2039 = vld [vmem:[%s1723 + $0x72] sm:$0xff]
      %s2040 = scalar_lea.vmem %s1, 768
      %v2041 = vld [vmem:[%s2040] sm:$0xff]
      %v2042 = vld [vmem:[%s2040 + $0x8] sm:$0xff]
      %v2043 = vld [vmem:[%s2040 + $0x10] sm:$0xff]
      %v2044 = vld [vmem:[%s2040 + $0x18] sm:$0xff]
      %v2045 = vld [vmem:[%s2040 + $0x20] sm:$0xff]
      %v2046 = vld [vmem:[%s2040 + $0x28] sm:$0xff]
      %v2047 = vld [vmem:[%s2040 + $0x30] sm:$0xff]
      %v2048 = vld [vmem:[%s2040 + $0x38] sm:$0xff]
      %v2050 = vsel %vm231, %v2032, 0
      %v2053 = vsel %vm231, %v2033, 0
      %v2056 = vsel %vm231, %v2034, 0
      %v2059 = vsel %vm231, %v2035, 0
      %v2062 = vsel %vm231, %v2036, 0
      %v2065 = vsel %vm231, %v2037, 0
      %v2068 = vsel %vm231, %v2038, 0
      %v2071 = vsel %vm231, %v2039, 0
      %2073 = vmatprep.subr.mxu0 0.0
      %2074 = vmatpush1.msra.mxu0 %v2041
      %2075 = vmatprep.subr.mxu0 0.0
      %2076 = vmatpush1.msra.mxu0 %v2042
      %2077 = vmatprep.subr.mxu0 0.0
      %2078 = vmatpush1.msra.mxu0 %v2043
      %2079 = vmatprep.subr.mxu0 0.0
      %2080 = vmatpush1.msra.mxu0 %v2044
      %2081 = vmatprep.subr.mxu0 0.0
      %2082 = vmatpush1.msra.mxu0 %v2045
      %2083 = vmatprep.subr.mxu0 0.0
      %2084 = vmatpush1.msra.mxu0 %v2046
      %2085 = vmatprep.subr.mxu0 0.0
      %2086 = vmatpush1.msra.mxu0 %v2047
      %2087 = vmatprep.subr.mxu0 0.0
      %2088 = vmatpush1.msra.mxu0 %v2048
      %2089 = vmatprep.subr.mxu0 0.0
      %2090 = vmatpush1.msra.mxu0 0.0
      %2091 = vmatprep.subr.mxu0 0.0
      %2092 = vmatpush1.msra.mxu0 0.0
      %2093 = vmatprep.subr.mxu0 0.0
      %2094 = vmatpush1.msra.mxu0 0.0
      %2095 = vmatprep.subr.mxu0 0.0
      %2096 = vmatpush1.msra.mxu0 0.0
      %2097 = vmatprep.subr.mxu0 0.0
      %2098 = vmatpush1.msra.mxu0 0.0
      %2099 = vmatprep.subr.mxu0 0.0
      %2100 = vmatpush1.msra.mxu0 0.0
      %2101 = vmatprep.subr.mxu0 0.0
      %2102 = vmatpush1.msra.mxu0 0.0
      %2103 = vmatprep.subr.mxu0 0.0
      %2104 = vmatpush1.msra.mxu0 0.0
      %2105 = vmatprep.subr.mxu0 0.0
      %2106 = vmatpush1.msra.mxu0 0.0
      %2107 = vmatprep.subr.mxu0 0.0
      %2108 = vmatpush1.msra.mxu0 0.0
      %2109 = vmatprep.subr.mxu0 0.0
      %2110 = vmatpush1.msra.mxu0 0.0
      %2111 = vmatprep.subr.mxu0 0.0
      %2112 = vmatpush1.msra.mxu0 0.0
      %2113 = vmatprep.subr.mxu0 0.0
      %2114 = vmatpush1.msra.mxu0 0.0
      %2115 = vmatprep.subr.mxu0 0.0
      %2116 = vmatpush1.msra.mxu0 0.0
      %2117 = vmatprep.subr.mxu0 0.0
      %2118 = vmatpush1.msra.mxu0 0.0
      %2119 = vmatprep.subr.mxu0 0.0
      %2120 = vmatpush1.msra.mxu0 0.0
      %2121 = vmatprep.subr.mxu0 0.0
      %2122 = vmatpush1.msra.mxu0 0.0
      %2123 = vmatprep.subr.mxu0 0.0
      %2124 = vmatpush1.msra.mxu0 0.0
      %2125 = vmatprep.subr.mxu0 0.0
      %2126 = vmatpush1.msra.mxu0 0.0
      %2127 = vmatprep.subr.mxu0 0.0
      %2128 = vmatpush1.msra.mxu0 0.0
      %2129 = vmatprep.subr.mxu0 0.0
      %2130 = vmatpush1.msra.mxu0 0.0
      %2131 = vmatprep.subr.mxu0 0.0
      %2132 = vmatpush1.msra.mxu0 0.0
      %2133 = vmatprep.subr.mxu0 0.0
      %2134 = vmatpush1.msra.mxu0 0.0
      %2135 = vmatprep.subr.mxu0 0.0
      %2136 = vmatpush1.msra.mxu0 0.0
      %2137 = vmatprep.mubr.f32.mxu0 0.0
      %2138 = vmatmul.mubr.f32.gmra.mrb[0].mxu0 %v2050
      %v2139 = vpop.f32.mrb[0].mxu0
      %v2140 = vadd.f32 0.0, %v2139
      %v2141 = vpop.f32.mrb[0].mxu0
      %2142 = vmatprep.mubr.f32.mxu0 0.0
      %2143 = vmatmul.mubr.f32.gmra.mrb[0].mxu0 %v2053
      %v2144 = vpop.f32.mrb[0].mxu0
      %v2145 = vadd.f32 0.0, %v2144
      %v2146 = vpop.f32.mrb[0].mxu0
      %2147 = vmatprep.mubr.f32.mxu0 0.0
      %2148 = vmatmul.mubr.f32.gmra.mrb[0].mxu0 %v2056
      %v2149 = vpop.f32.mrb[0].mxu0
      %v2150 = vadd.f32 0.0, %v2149
      %v2151 = vpop.f32.mrb[0].mxu0
      %2152 = vmatprep.mubr.f32.mxu0 0.0
      %2153 = vmatmul.mubr.f32.gmra.mrb[0].mxu0 %v2059
      %v2154 = vpop.f32.mrb[0].mxu0
      %v2155 = vadd.f32 0.0, %v2154
      %v2156 = vpop.f32.mrb[0].mxu0
      %2157 = vmatprep.mubr.f32.mxu0 0.0
      %2158 = vmatmul.mubr.f32.gmra.mrb[0].mxu0 %v2062
      %v2159 = vpop.f32.mrb[0].mxu0
      %v2160 = vadd.f32 0.0, %v2159
      %v2161 = vpop.f32.mrb[0].mxu0
      %2162 = vmatprep.mubr.f32.mxu0 0.0
      %2163 = vmatmul.mubr.f32.gmra.mrb[0].mxu0 %v2065
      %v2164 = vpop.f32.mrb[0].mxu0
      %v2165 = vadd.f32 0.0, %v2164
      %v2166 = vpop.f32.mrb[0].mxu0
      %2167 = vmatprep.mubr.f32.mxu0 0.0
      %2168 = vmatmul.mubr.f32.gmra.mrb[0].mxu0 %v2068
      %v2169 = vpop.f32.mrb[0].mxu0
      %v2170 = vadd.f32 0.0, %v2169
      %v2171 = vpop.f32.mrb[0].mxu0
      %2172 = vmatprep.mubr.f32.mxu0 0.0
      %2173 = vmatmul.mubr.f32.gmra.mrb[0].mxu0 %v2071
      %v2174 = vpop.f32.mrb[0].mxu0
      %v2175 = vadd.f32 0.0, %v2174
      %v2176 = vpop.f32.mrb[0].mxu0
      %2177 = vdwg.mxu0
      %v2178 = vadd.f32 %v2024, %v2140
      %v2179 = vadd.f32 %v2025, %v2145
      %v2180 = vadd.f32 %v2026, %v2150
      %v2181 = vadd.f32 %v2027, %v2155
      %v2182 = vadd.f32 %v2028, %v2160
      %v2183 = vadd.f32 %v2029, %v2165
      %v2184 = vadd.f32 %v2030, %v2170
      %v2185 = vadd.f32 %v2031, %v2175
      %v2186 = vld [vmem:[%s1723 + $0x3] sm:$0xff]
      %v2187 = vld [vmem:[%s1723 + $0x13] sm:$0xff]
      %v2188 = vld [vmem:[%s1723 + $0x23] sm:$0xff]
      %v2189 = vld [vmem:[%s1723 + $0x33] sm:$0xff]
      %v2190 = vld [vmem:[%s1723 + $0x43] sm:$0xff]
      %v2191 = vld [vmem:[%s1723 + $0x53] sm:$0xff]
      %v2192 = vld [vmem:[%s1723 + $0x63] sm:$0xff]
      %v2193 = vld [vmem:[%s1723 + $0x73] sm:$0xff]
      %s2194 = scalar_lea.vmem %s1, 832
      %v2195 = vld [vmem:[%s2194] sm:$0xff]
      %v2196 = vld [vmem:[%s2194 + $0x8] sm:$0xff]
      %v2197 = vld [vmem:[%s2194 + $0x10] sm:$0xff]
      %v2198 = vld [vmem:[%s2194 + $0x18] sm:$0xff]
      %v2199 = vld [vmem:[%s2194 + $0x20] sm:$0xff]
      %v2200 = vld [vmem:[%s2194 + $0x28] sm:$0xff]
      %v2201 = vld [vmem:[%s2194 + $0x30] sm:$0xff]
      %v2202 = vld [vmem:[%s2194 + $0x38] sm:$0xff]
      %v2204 = vsel %vm231, %v2186, 0
      %v2207 = vsel %vm231, %v2187, 0
      %v2210 = vsel %vm231, %v2188, 0
      %v2213 = vsel %vm231, %v2189, 0
      %v2216 = vsel %vm231, %v2190, 0
      %v2219 = vsel %vm231, %v2191, 0
      %v2222 = vsel %vm231, %v2192, 0
      %v2225 = vsel %vm231, %v2193, 0
      %2227 = vmatprep.subr.mxu0 0.0
      %2228 = vmatpush1.msra.mxu0 %v2195
      %2229 = vmatprep.subr.mxu0 0.0
      %2230 = vmatpush1.msra.mxu0 %v2196
      %2231 = vmatprep.subr.mxu0 0.0
      %2232 = vmatpush1.msra.mxu0 %v2197
      %2233 = vmatprep.subr.mxu0 0.0
      %2234 = vmatpush1.msra.mxu0 %v2198
      %2235 = vmatprep.subr.mxu0 0.0
      %2236 = vmatpush1.msra.mxu0 %v2199
      %2237 = vmatprep.subr.mxu0 0.0
      %2238 = vmatpush1.msra.mxu0 %v2200
      %2239 = vmatprep.subr.mxu0 0.0
      %2240 = vmatpush1.msra.mxu0 %v2201
      %2241 = vmatprep.subr.mxu0 0.0
      %2242 = vmatpush1.msra.mxu0 %v2202
      %2243 = vmatprep.subr.mxu0 0.0
      %2244 = vmatpush1.msra.mxu0 0.0
      %2245 = vmatprep.subr.mxu0 0.0
      %2246 = vmatpush1.msra.mxu0 0.0
      %2247 = vmatprep.subr.mxu0 0.0
      %2248 = vmatpush1.msra.mxu0 0.0
      %2249 = vmatprep.subr.mxu0 0.0
      %2250 = vmatpush1.msra.mxu0 0.0
      %2251 = vmatprep.subr.mxu0 0.0
      %2252 = vmatpush1.msra.mxu0 0.0
      %2253 = vmatprep.subr.mxu0 0.0
      %2254 = vmatpush1.msra.mxu0 0.0
      %2255 = vmatprep.subr.mxu0 0.0
      %2256 = vmatpush1.msra.mxu0 0.0
      %2257 = vmatprep.subr.mxu0 0.0
      %2258 = vmatpush1.msra.mxu0 0.0
      %2259 = vmatprep.subr.mxu0 0.0
      %2260 = vmatpush1.msra.mxu0 0.0
      %2261 = vmatprep.subr.mxu0 0.0
      %2262 = vmatpush1.msra.mxu0 0.0
      %2263 = vmatprep.subr.mxu0 0.0
      %2264 = vmatpush1.msra.mxu0 0.0
      %2265 = vmatprep.subr.mxu0 0.0
      %2266 = vmatpush1.msra.mxu0 0.0
      %2267 = vmatprep.subr.mxu0 0.0
      %2268 = vmatpush1.msra.mxu0 0.0
      %2269 = vmatprep.subr.mxu0 0.0
      %2270 = vmatpush1.msra.mxu0 0.0
      %2271 = vmatprep.subr.mxu0 0.0
      %2272 = vmatpush1.msra.mxu0 0.0
      %2273 = vmatprep.subr.mxu0 0.0
      %2274 = vmatpush1.msra.mxu0 0.0
      %2275 = vmatprep.subr.mxu0 0.0
      %2276 = vmatpush1.msra.mxu0 0.0
      %2277 = vmatprep.subr.mxu0 0.0
      %2278 = vmatpush1.msra.mxu0 0.0
      %2279 = vmatprep.subr.mxu0 0.0
      %2280 = vmatpush1.msra.mxu0 0.0
      %2281 = vmatprep.subr.mxu0 0.0
      %2282 = vmatpush1.msra.mxu0 0.0
      %2283 = vmatprep.subr.mxu0 0.0
      %2284 = vmatpush1.msra.mxu0 0.0
      %2285 = vmatprep.subr.mxu0 0.0
      %2286 = vmatpush1.msra.mxu0 0.0
      %2287 = vmatprep.subr.mxu0 0.0
      %2288 = vmatpush1.msra.mxu0 0.0
      %2289 = vmatprep.subr.mxu0 0.0
      %2290 = vmatpush1.msra.mxu0 0.0
      %2291 = vmatprep.mubr.f32.mxu0 0.0
      %2292 = vmatmul.mubr.f32.gmra.mrb[0].mxu0 %v2204
      %v2293 = vpop.f32.mrb[0].mxu0
      %v2294 = vadd.f32 0.0, %v2293
      %v2295 = vpop.f32.mrb[0].mxu0
      %2296 = vmatprep.mubr.f32.mxu0 0.0
      %2297 = vmatmul.mubr.f32.gmra.mrb[0].mxu0 %v2207
      %v2298 = vpop.f32.mrb[0].mxu0
      %v2299 = vadd.f32 0.0, %v2298
      %v2300 = vpop.f32.mrb[0].mxu0
      %2301 = vmatprep.mubr.f32.mxu0 0.0
      %2302 = vmatmul.mubr.f32.gmra.mrb[0].mxu0 %v2210
      %v2303 = vpop.f32.mrb[0].mxu0
      %v2304 = vadd.f32 0.0, %v2303
      %v2305 = vpop.f32.mrb[0].mxu0
      %2306 = vmatprep.mubr.f32.mxu0 0.0
      %2307 = vmatmul.mubr.f32.gmra.mrb[0].mxu0 %v2213
      %v2308 = vpop.f32.mrb[0].mxu0
      %v2309 = vadd.f32 0.0, %v2308
      %v2310 = vpop.f32.mrb[0].mxu0
      %2311 = vmatprep.mubr.f32.mxu0 0.0
      %2312 = vmatmul.mubr.f32.gmra.mrb[0].mxu0 %v2216
      %v2313 = vpop.f32.mrb[0].mxu0
      %v2314 = vadd.f32 0.0, %v2313
      %v2315 = vpop.f32.mrb[0].mxu0
      %2316 = vmatprep.mubr.f32.mxu0 0.0
      %2317 = vmatmul.mubr.f32.gmra.mrb[0].mxu0 %v2219
      %v2318 = vpop.f32.mrb[0].mxu0
      %v2319 = vadd.f32 0.0, %v2318
      %v2320 = vpop.f32.mrb[0].mxu0
      %2321 = vmatprep.mubr.f32.mxu0 0.0
      %2322 = vmatmul.mubr.f32.gmra.mrb[0].mxu0 %v2222
      %v2323 = vpop.f32.mrb[0].mxu0
      %v2324 = vadd.f32 0.0, %v2323
      %v2325 = vpop.f32.mrb[0].mxu0
      %2326 = vmatprep.mubr.f32.mxu0 0.0
      %2327 = vmatmul.mubr.f32.gmra.mrb[0].mxu0 %v2225
      %v2328 = vpop.f32.mrb[0].mxu0
      %v2329 = vadd.f32 0.0, %v2328
      %v2330 = vpop.f32.mrb[0].mxu0
      %2331 = vdwg.mxu0
      %v2332 = vadd.f32 %v2178, %v2294
      %v2333 = vadd.f32 %v2179, %v2299
      %v2334 = vadd.f32 %v2180, %v2304
      %v2335 = vadd.f32 %v2181, %v2309
      %v2336 = vadd.f32 %v2182, %v2314
      %v2337 = vadd.f32 %v2183, %v2319
      %v2338 = vadd.f32 %v2184, %v2324
      %v2339 = vadd.f32 %v2185, %v2329
      %v2340 = vld [vmem:[%s1723 + $0x4] sm:$0xff]
      %v2341 = vld [vmem:[%s1723 + $0x14] sm:$0xff]
      %v2342 = vld [vmem:[%s1723 + $0x24] sm:$0xff]
      %v2343 = vld [vmem:[%s1723 + $0x34] sm:$0xff]
      %v2344 = vld [vmem:[%s1723 + $0x44] sm:$0xff]
      %v2345 = vld [vmem:[%s1723 + $0x54] sm:$0xff]
      %v2346 = vld [vmem:[%s1723 + $0x64] sm:$0xff]
      %v2347 = vld [vmem:[%s1723 + $0x74] sm:$0xff]
      %s2348 = scalar_lea.vmem %s1, 896
      %v2349 = vld [vmem:[%s2348] sm:$0xff]
      %v2350 = vld [vmem:[%s2348 + $0x8] sm:$0xff]
      %v2351 = vld [vmem:[%s2348 + $0x10] sm:$0xff]
      %v2352 = vld [vmem:[%s2348 + $0x18] sm:$0xff]
      %v2353 = vld [vmem:[%s2348 + $0x20] sm:$0xff]
      %v2354 = vld [vmem:[%s2348 + $0x28] sm:$0xff]
      %v2355 = vld [vmem:[%s2348 + $0x30] sm:$0xff]
      %v2356 = vld [vmem:[%s2348 + $0x38] sm:$0xff]
      %v2358 = vsel %vm231, %v2340, 0
      %v2361 = vsel %vm231, %v2341, 0
      %v2364 = vsel %vm231, %v2342, 0
      %v2367 = vsel %vm231, %v2343, 0
      %v2370 = vsel %vm231, %v2344, 0
      %v2373 = vsel %vm231, %v2345, 0
      %v2376 = vsel %vm231, %v2346, 0
      %v2379 = vsel %vm231, %v2347, 0
      %2381 = vmatprep.subr.mxu0 0.0
      %2382 = vmatpush1.msra.mxu0 %v2349
      %2383 = vmatprep.subr.mxu0 0.0
      %2384 = vmatpush1.msra.mxu0 %v2350
      %2385 = vmatprep.subr.mxu0 0.0
      %2386 = vmatpush1.msra.mxu0 %v2351
      %2387 = vmatprep.subr.mxu0 0.0
      %2388 = vmatpush1.msra.mxu0 %v2352
      %2389 = vmatprep.subr.mxu0 0.0
      %2390 = vmatpush1.msra.mxu0 %v2353
      %2391 = vmatprep.subr.mxu0 0.0
      %2392 = vmatpush1.msra.mxu0 %v2354
      %2393 = vmatprep.subr.mxu0 0.0
      %2394 = vmatpush1.msra.mxu0 %v2355
      %2395 = vmatprep.subr.mxu0 0.0
      %2396 = vmatpush1.msra.mxu0 %v2356
      %2397 = vmatprep.subr.mxu0 0.0
      %2398 = vmatpush1.msra.mxu0 0.0
      %2399 = vmatprep.subr.mxu0 0.0
      %2400 = vmatpush1.msra.mxu0 0.0
      %2401 = vmatprep.subr.mxu0 0.0
      %2402 = vmatpush1.msra.mxu0 0.0
      %2403 = vmatprep.subr.mxu0 0.0
      %2404 = vmatpush1.msra.mxu0 0.0
      %2405 = vmatprep.subr.mxu0 0.0
      %2406 = vmatpush1.msra.mxu0 0.0
      %2407 = vmatprep.subr.mxu0 0.0
      %2408 = vmatpush1.msra.mxu0 0.0
      %2409 = vmatprep.subr.mxu0 0.0
      %2410 = vmatpush1.msra.mxu0 0.0
      %2411 = vmatprep.subr.mxu0 0.0
      %2412 = vmatpush1.msra.mxu0 0.0
      %2413 = vmatprep.subr.mxu0 0.0
      %2414 = vmatpush1.msra.mxu0 0.0
      %2415 = vmatprep.subr.mxu0 0.0
      %2416 = vmatpush1.msra.mxu0 0.0
      %2417 = vmatprep.subr.mxu0 0.0
      %2418 = vmatpush1.msra.mxu0 0.0
      %2419 = vmatprep.subr.mxu0 0.0
      %2420 = vmatpush1.msra.mxu0 0.0
      %2421 = vmatprep.subr.mxu0 0.0
      %2422 = vmatpush1.msra.mxu0 0.0
      %2423 = vmatprep.subr.mxu0 0.0
      %2424 = vmatpush1.msra.mxu0 0.0
      %2425 = vmatprep.subr.mxu0 0.0
      %2426 = vmatpush1.msra.mxu0 0.0
      %2427 = vmatprep.subr.mxu0 0.0
      %2428 = vmatpush1.msra.mxu0 0.0
      %2429 = vmatprep.subr.mxu0 0.0
      %2430 = vmatpush1.msra.mxu0 0.0
      %2431 = vmatprep.subr.mxu0 0.0
      %2432 = vmatpush1.msra.mxu0 0.0
      %2433 = vmatprep.subr.mxu0 0.0
      %2434 = vmatpush1.msra.mxu0 0.0
      %2435 = vmatprep.subr.mxu0 0.0
      %2436 = vmatpush1.msra.mxu0 0.0
      %2437 = vmatprep.subr.mxu0 0.0
      %2438 = vmatpush1.msra.mxu0 0.0
      %2439 = vmatprep.subr.mxu0 0.0
      %2440 = vmatpush1.msra.mxu0 0.0
      %2441 = vmatprep.subr.mxu0 0.0
      %2442 = vmatpush1.msra.mxu0 0.0
      %2443 = vmatprep.subr.mxu0 0.0
      %2444 = vmatpush1.msra.mxu0 0.0
      %2445 = vmatprep.mubr.f32.mxu0 0.0
      %2446 = vmatmul.mubr.f32.gmra.mrb[0].mxu0 %v2358
      %v2447 = vpop.f32.mrb[0].mxu0
      %v2448 = vadd.f32 0.0, %v2447
      %v2449 = vpop.f32.mrb[0].mxu0
      %2450 = vmatprep.mubr.f32.mxu0 0.0
      %2451 = vmatmul.mubr.f32.gmra.mrb[0].mxu0 %v2361
      %v2452 = vpop.f32.mrb[0].mxu0
      %v2453 = vadd.f32 0.0, %v2452
      %v2454 = vpop.f32.mrb[0].mxu0
      %2455 = vmatprep.mubr.f32.mxu0 0.0
      %2456 = vmatmul.mubr.f32.gmra.mrb[0].mxu0 %v2364
      %v2457 = vpop.f32.mrb[0].mxu0
      %v2458 = vadd.f32 0.0, %v2457
      %v2459 = vpop.f32.mrb[0].mxu0
      %2460 = vmatprep.mubr.f32.mxu0 0.0
      %2461 = vmatmul.mubr.f32.gmra.mrb[0].mxu0 %v2367
      %v2462 = vpop.f32.mrb[0].mxu0
      %v2463 = vadd.f32 0.0, %v2462
      %v2464 = vpop.f32.mrb[0].mxu0
      %2465 = vmatprep.mubr.f32.mxu0 0.0
      %2466 = vmatmul.mubr.f32.gmra.mrb[0].mxu0 %v2370
      %v2467 = vpop.f32.mrb[0].mxu0
      %v2468 = vadd.f32 0.0, %v2467
      %v2469 = vpop.f32.mrb[0].mxu0
      %2470 = vmatprep.mubr.f32.mxu0 0.0
      %2471 = vmatmul.mubr.f32.gmra.mrb[0].mxu0 %v2373
      %v2472 = vpop.f32.mrb[0].mxu0
      %v2473 = vadd.f32 0.0, %v2472
      %v2474 = vpop.f32.mrb[0].mxu0
      %2475 = vmatprep.mubr.f32.mxu0 0.0
      %2476 = vmatmul.mubr.f32.gmra.mrb[0].mxu0 %v2376
      %v2477 = vpop.f32.mrb[0].mxu0
      %v2478 = vadd.f32 0.0, %v2477
      %v2479 = vpop.f32.mrb[0].mxu0
      %2480 = vmatprep.mubr.f32.mxu0 0.0
      %2481 = vmatmul.mubr.f32.gmra.mrb[0].mxu0 %v2379
      %v2482 = vpop.f32.mrb[0].mxu0
      %v2483 = vadd.f32 0.0, %v2482
      %v2484 = vpop.f32.mrb[0].mxu0
      %2485 = vdwg.mxu0
      %v2486 = vadd.f32 %v2332, %v2448
      %v2487 = vadd.f32 %v2333, %v2453
      %v2488 = vadd.f32 %v2334, %v2458
      %v2489 = vadd.f32 %v2335, %v2463
      %v2490 = vadd.f32 %v2336, %v2468
      %v2491 = vadd.f32 %v2337, %v2473
      %v2492 = vadd.f32 %v2338, %v2478
      %v2493 = vadd.f32 %v2339, %v2483
      %s2494 = scalar_lea.vmem %s192, 48
      %v2495 = vld [vmem:[%s2494] sm:$0xff]
      %v2496 = vld [vmem:[%s2494 + $0x10] sm:$0xff]
      %v2497 = vld [vmem:[%s2494 + $0x20] sm:$0xff]
      %v2498 = vld [vmem:[%s2494 + $0x30] sm:$0xff]
      %v2499 = vld [vmem:[%s2494 + $0x40] sm:$0xff]
      %v2500 = vld [vmem:[%s2494 + $0x50] sm:$0xff]
      %v2501 = vld [vmem:[%s2494 + $0x60] sm:$0xff]
      %v2502 = vld [vmem:[%s2494 + $0x70] sm:$0xff]
      %s2503 = scalar_lea.vmem %s1, 960
      %v2504 = vld [vmem:[%s2503] sm:$0xff]
      %v2505 = vld [vmem:[%s2503 + $0x8] sm:$0xff]
      %v2506 = vld [vmem:[%s2503 + $0x10] sm:$0xff]
      %v2507 = vld [vmem:[%s2503 + $0x18] sm:$0xff]
      %v2508 = vld [vmem:[%s2503 + $0x20] sm:$0xff]
      %v2509 = vld [vmem:[%s2503 + $0x28] sm:$0xff]
      %v2510 = vld [vmem:[%s2503 + $0x30] sm:$0xff]
      %v2511 = vld [vmem:[%s2503 + $0x38] sm:$0xff]
      %v2513 = vsel %vm231, %v2495, 0
      %v2516 = vsel %vm231, %v2496, 0
      %v2519 = vsel %vm231, %v2497, 0
      %v2522 = vsel %vm231, %v2498, 0
      %v2525 = vsel %vm231, %v2499, 0
      %v2528 = vsel %vm231, %v2500, 0
      %v2531 = vsel %vm231, %v2501, 0
      %v2534 = vsel %vm231, %v2502, 0
      %2536 = vmatprep.subr.mxu0 0.0
      %2537 = vmatpush1.msra.mxu0 %v2504
      %2538 = vmatprep.subr.mxu0 0.0
      %2539 = vmatpush1.msra.mxu0 %v2505
      %2540 = vmatprep.subr.mxu0 0.0
      %2541 = vmatpush1.msra.mxu0 %v2506
      %2542 = vmatprep.subr.mxu0 0.0
      %2543 = vmatpush1.msra.mxu0 %v2507
      %2544 = vmatprep.subr.mxu0 0.0
      %2545 = vmatpush1.msra.mxu0 %v2508
      %2546 = vmatprep.subr.mxu0 0.0
      %2547 = vmatpush1.msra.mxu0 %v2509
      %2548 = vmatprep.subr.mxu0 0.0
      %2549 = vmatpush1.msra.mxu0 %v2510
      %2550 = vmatprep.subr.mxu0 0.0
      %2551 = vmatpush1.msra.mxu0 %v2511
      %2552 = vmatprep.subr.mxu0 0.0
      %2553 = vmatpush1.msra.mxu0 0.0
      %2554 = vmatprep.subr.mxu0 0.0
      %2555 = vmatpush1.msra.mxu0 0.0
      %2556 = vmatprep.subr.mxu0 0.0
      %2557 = vmatpush1.msra.mxu0 0.0
      %2558 = vmatprep.subr.mxu0 0.0
      %2559 = vmatpush1.msra.mxu0 0.0
      %2560 = vmatprep.subr.mxu0 0.0
      %2561 = vmatpush1.msra.mxu0 0.0
      %2562 = vmatprep.subr.mxu0 0.0
      %2563 = vmatpush1.msra.mxu0 0.0
      %2564 = vmatprep.subr.mxu0 0.0
      %2565 = vmatpush1.msra.mxu0 0.0
      %2566 = vmatprep.subr.mxu0 0.0
      %2567 = vmatpush1.msra.mxu0 0.0
      %2568 = vmatprep.subr.mxu0 0.0
      %2569 = vmatpush1.msra.mxu0 0.0
      %2570 = vmatprep.subr.mxu0 0.0
      %2571 = vmatpush1.msra.mxu0 0.0
      %2572 = vmatprep.subr.mxu0 0.0
      %2573 = vmatpush1.msra.mxu0 0.0
      %2574 = vmatprep.subr.mxu0 0.0
      %2575 = vmatpush1.msra.mxu0 0.0
      %2576 = vmatprep.subr.mxu0 0.0
      %2577 = vmatpush1.msra.mxu0 0.0
      %2578 = vmatprep.subr.mxu0 0.0
      %2579 = vmatpush1.msra.mxu0 0.0
      %2580 = vmatprep.subr.mxu0 0.0
      %2581 = vmatpush1.msra.mxu0 0.0
      %2582 = vmatprep.subr.mxu0 0.0
      %2583 = vmatpush1.msra.mxu0 0.0
      %2584 = vmatprep.subr.mxu0 0.0
      %2585 = vmatpush1.msra.mxu0 0.0
      %2586 = vmatprep.subr.mxu0 0.0
      %2587 = vmatpush1.msra.mxu0 0.0
      %2588 = vmatprep.subr.mxu0 0.0
      %2589 = vmatpush1.msra.mxu0 0.0
      %2590 = vmatprep.subr.mxu0 0.0
      %2591 = vmatpush1.msra.mxu0 0.0
      %2592 = vmatprep.subr.mxu0 0.0
      %2593 = vmatpush1.msra.mxu0 0.0
      %2594 = vmatprep.subr.mxu0 0.0
      %2595 = vmatpush1.msra.mxu0 0.0
      %2596 = vmatprep.subr.mxu0 0.0
      %2597 = vmatpush1.msra.mxu0 0.0
      %2598 = vmatprep.subr.mxu0 0.0
      %2599 = vmatpush1.msra.mxu0 0.0
      %2600 = vmatprep.mubr.f32.mxu0 0.0
      %2601 = vmatmul.mubr.f32.gmra.mrb[0].mxu0 %v2513
      %v2602 = vpop.f32.mrb[0].mxu0
      %v2603 = vadd.f32 0.0, %v2602
      %v2604 = vpop.f32.mrb[0].mxu0
      %2605 = vmatprep.mubr.f32.mxu0 0.0
      %2606 = vmatmul.mubr.f32.gmra.mrb[0].mxu0 %v2516
      %v2607 = vpop.f32.mrb[0].mxu0
      %v2608 = vadd.f32 0.0, %v2607
      %v2609 = vpop.f32.mrb[0].mxu0
      %2610 = vmatprep.mubr.f32.mxu0 0.0
      %2611 = vmatmul.mubr.f32.gmra.mrb[0].mxu0 %v2519
      %v2612 = vpop.f32.mrb[0].mxu0
      %v2613 = vadd.f32 0.0, %v2612
      %v2614 = vpop.f32.mrb[0].mxu0
      %2615 = vmatprep.mubr.f32.mxu0 0.0
      %2616 = vmatmul.mubr.f32.gmra.mrb[0].mxu0 %v2522
      %v2617 = vpop.f32.mrb[0].mxu0
      %v2618 = vadd.f32 0.0, %v2617
      %v2619 = vpop.f32.mrb[0].mxu0
      %2620 = vmatprep.mubr.f32.mxu0 0.0
      %2621 = vmatmul.mubr.f32.gmra.mrb[0].mxu0 %v2525
      %v2622 = vpop.f32.mrb[0].mxu0
      %v2623 = vadd.f32 0.0, %v2622
      %v2624 = vpop.f32.mrb[0].mxu0
      %2625 = vmatprep.mubr.f32.mxu0 0.0
      %2626 = vmatmul.mubr.f32.gmra.mrb[0].mxu0 %v2528
      %v2627 = vpop.f32.mrb[0].mxu0
      %v2628 = vadd.f32 0.0, %v2627
      %v2629 = vpop.f32.mrb[0].mxu0
      %2630 = vmatprep.mubr.f32.mxu0 0.0
      %2631 = vmatmul.mubr.f32.gmra.mrb[0].mxu0 %v2531
      %v2632 = vpop.f32.mrb[0].mxu0
      %v2633 = vadd.f32 0.0, %v2632
      %v2634 = vpop.f32.mrb[0].mxu0
      %2635 = vmatprep.mubr.f32.mxu0 0.0
      %2636 = vmatmul.mubr.f32.gmra.mrb[0].mxu0 %v2534
      %v2637 = vpop.f32.mrb[0].mxu0
      %v2638 = vadd.f32 0.0, %v2637
      %v2639 = vpop.f32.mrb[0].mxu0
      %2640 = vdwg.mxu0
      %v2641 = vadd.f32 %v2486, %v2603
      %v2642 = vadd.f32 %v2487, %v2608
      %v2643 = vadd.f32 %v2488, %v2613
      %v2644 = vadd.f32 %v2489, %v2618
      %v2645 = vadd.f32 %v2490, %v2623
      %v2646 = vadd.f32 %v2491, %v2628
      %v2647 = vadd.f32 %v2492, %v2633
      %v2648 = vadd.f32 %v2493, %v2638
      %v2649 = vld [vmem:[%s2494 + $0x1] sm:$0xff]
      %v2650 = vld [vmem:[%s2494 + $0x11] sm:$0xff]
      %v2651 = vld [vmem:[%s2494 + $0x21] sm:$0xff]
      %v2652 = vld [vmem:[%s2494 + $0x31] sm:$0xff]
      %v2653 = vld [vmem:[%s2494 + $0x41] sm:$0xff]
      %v2654 = vld [vmem:[%s2494 + $0x51] sm:$0xff]
      %v2655 = vld [vmem:[%s2494 + $0x61] sm:$0xff]
      %v2656 = vld [vmem:[%s2494 + $0x71] sm:$0xff]
      %s2657 = scalar_lea.vmem %s1, 1024
      %v2658 = vld [vmem:[%s2657] sm:$0xff]
      %v2659 = vld [vmem:[%s2657 + $0x8] sm:$0xff]
      %v2660 = vld [vmem:[%s2657 + $0x10] sm:$0xff]
      %v2661 = vld [vmem:[%s2657 + $0x18] sm:$0xff]
      %v2662 = vld [vmem:[%s2657 + $0x20] sm:$0xff]
      %v2663 = vld [vmem:[%s2657 + $0x28] sm:$0xff]
      %v2664 = vld [vmem:[%s2657 + $0x30] sm:$0xff]
      %v2665 = vld [vmem:[%s2657 + $0x38] sm:$0xff]
      %v2667 = vsel %vm231, %v2649, 0
      %v2670 = vsel %vm231, %v2650, 0
      %v2673 = vsel %vm231, %v2651, 0
      %v2676 = vsel %vm231, %v2652, 0
      %v2679 = vsel %vm231, %v2653, 0
      %v2682 = vsel %vm231, %v2654, 0
      %v2685 = vsel %vm231, %v2655, 0
      %v2688 = vsel %vm231, %v2656, 0
      %2690 = vmatprep.subr.mxu0 0.0
      %2691 = vmatpush1.msra.mxu0 %v2658
      %2692 = vmatprep.subr.mxu0 0.0
      %2693 = vmatpush1.msra.mxu0 %v2659
      %2694 = vmatprep.subr.mxu0 0.0
      %2695 = vmatpush1.msra.mxu0 %v2660
      %2696 = vmatprep.subr.mxu0 0.0
      %2697 = vmatpush1.msra.mxu0 %v2661
      %2698 = vmatprep.subr.mxu0 0.0
      %2699 = vmatpush1.msra.mxu0 %v2662
      %2700 = vmatprep.subr.mxu0 0.0
      %2701 = vmatpush1.msra.mxu0 %v2663
      %2702 = vmatprep.subr.mxu0 0.0
      %2703 = vmatpush1.msra.mxu0 %v2664
      %2704 = vmatprep.subr.mxu0 0.0
      %2705 = vmatpush1.msra.mxu0 %v2665
      %2706 = vmatprep.subr.mxu0 0.0
      %2707 = vmatpush1.msra.mxu0 0.0
      %2708 = vmatprep.subr.mxu0 0.0
      %2709 = vmatpush1.msra.mxu0 0.0
      %2710 = vmatprep.subr.mxu0 0.0
      %2711 = vmatpush1.msra.mxu0 0.0
      %2712 = vmatprep.subr.mxu0 0.0
      %2713 = vmatpush1.msra.mxu0 0.0
      %2714 = vmatprep.subr.mxu0 0.0
      %2715 = vmatpush1.msra.mxu0 0.0
      %2716 = vmatprep.subr.mxu0 0.0
      %2717 = vmatpush1.msra.mxu0 0.0
      %2718 = vmatprep.subr.mxu0 0.0
      %2719 = vmatpush1.msra.mxu0 0.0
      %2720 = vmatprep.subr.mxu0 0.0
      %2721 = vmatpush1.msra.mxu0 0.0
      %2722 = vmatprep.subr.mxu0 0.0
      %2723 = vmatpush1.msra.mxu0 0.0
      %2724 = vmatprep.subr.mxu0 0.0
      %2725 = vmatpush1.msra.mxu0 0.0
      %2726 = vmatprep.subr.mxu0 0.0
      %2727 = vmatpush1.msra.mxu0 0.0
      %2728 = vmatprep.subr.mxu0 0.0
      %2729 = vmatpush1.msra.mxu0 0.0
      %2730 = vmatprep.subr.mxu0 0.0
      %2731 = vmatpush1.msra.mxu0 0.0
      %2732 = vmatprep.subr.mxu0 0.0
      %2733 = vmatpush1.msra.mxu0 0.0
      %2734 = vmatprep.subr.mxu0 0.0
      %2735 = vmatpush1.msra.mxu0 0.0
      %2736 = vmatprep.subr.mxu0 0.0
      %2737 = vmatpush1.msra.mxu0 0.0
      %2738 = vmatprep.subr.mxu0 0.0
      %2739 = vmatpush1.msra.mxu0 0.0
      %2740 = vmatprep.subr.mxu0 0.0
      %2741 = vmatpush1.msra.mxu0 0.0
      %2742 = vmatprep.subr.mxu0 0.0
      %2743 = vmatpush1.msra.mxu0 0.0
      %2744 = vmatprep.subr.mxu0 0.0
      %2745 = vmatpush1.msra.mxu0 0.0
      %2746 = vmatprep.subr.mxu0 0.0
      %2747 = vmatpush1.msra.mxu0 0.0
      %2748 = vmatprep.subr.mxu0 0.0
      %2749 = vmatpush1.msra.mxu0 0.0
      %2750 = vmatprep.subr.mxu0 0.0
      %2751 = vmatpush1.msra.mxu0 0.0
      %2752 = vmatprep.subr.mxu0 0.0
      %2753 = vmatpush1.msra.mxu0 0.0
      %2754 = vmatprep.mubr.f32.mxu0 0.0
      %2755 = vmatmul.mubr.f32.gmra.mrb[0].mxu0 %v2667
      %v2756 = vpop.f32.mrb[0].mxu0
      %v2757 = vadd.f32 0.0, %v2756
      %v2758 = vpop.f32.mrb[0].mxu0
      %2759 = vmatprep.mubr.f32.mxu0 0.0
      %2760 = vmatmul.mubr.f32.gmra.mrb[0].mxu0 %v2670
      %v2761 = vpop.f32.mrb[0].mxu0
      %v2762 = vadd.f32 0.0, %v2761
      %v2763 = vpop.f32.mrb[0].mxu0
      %2764 = vmatprep.mubr.f32.mxu0 0.0
      %2765 = vmatmul.mubr.f32.gmra.mrb[0].mxu0 %v2673
      %v2766 = vpop.f32.mrb[0].mxu0
      %v2767 = vadd.f32 0.0, %v2766
      %v2768 = vpop.f32.mrb[0].mxu0
      %2769 = vmatprep.mubr.f32.mxu0 0.0
      %2770 = vmatmul.mubr.f32.gmra.mrb[0].mxu0 %v2676
      %v2771 = vpop.f32.mrb[0].mxu0
      %v2772 = vadd.f32 0.0, %v2771
      %v2773 = vpop.f32.mrb[0].mxu0
      %2774 = vmatprep.mubr.f32.mxu0 0.0
      %2775 = vmatmul.mubr.f32.gmra.mrb[0].mxu0 %v2679
      %v2776 = vpop.f32.mrb[0].mxu0
      %v2777 = vadd.f32 0.0, %v2776
      %v2778 = vpop.f32.mrb[0].mxu0
      %2779 = vmatprep.mubr.f32.mxu0 0.0
      %2780 = vmatmul.mubr.f32.gmra.mrb[0].mxu0 %v2682
      %v2781 = vpop.f32.mrb[0].mxu0
      %v2782 = vadd.f32 0.0, %v2781
      %v2783 = vpop.f32.mrb[0].mxu0
      %2784 = vmatprep.mubr.f32.mxu0 0.0
      %2785 = vmatmul.mubr.f32.gmra.mrb[0].mxu0 %v2685
      %v2786 = vpop.f32.mrb[0].mxu0
      %v2787 = vadd.f32 0.0, %v2786
      %v2788 = vpop.f32.mrb[0].mxu0
      %2789 = vmatprep.mubr.f32.mxu0 0.0
      %2790 = vmatmul.mubr.f32.gmra.mrb[0].mxu0 %v2688
      %v2791 = vpop.f32.mrb[0].mxu0
      %v2792 = vadd.f32 0.0, %v2791
      %v2793 = vpop.f32.mrb[0].mxu0
      %2794 = vdwg.mxu0
      %v2795 = vadd.f32 %v2641, %v2757
      %v2796 = vadd.f32 %v2642, %v2762
      %v2797 = vadd.f32 %v2643, %v2767
      %v2798 = vadd.f32 %v2644, %v2772
      %v2799 = vadd.f32 %v2645, %v2777
      %v2800 = vadd.f32 %v2646, %v2782
      %v2801 = vadd.f32 %v2647, %v2787
      %v2802 = vadd.f32 %v2648, %v2792
      %v2803 = vld [vmem:[%s2494 + $0x2] sm:$0xff]
      %v2804 = vld [vmem:[%s2494 + $0x12] sm:$0xff]
      %v2805 = vld [vmem:[%s2494 + $0x22] sm:$0xff]
      %v2806 = vld [vmem:[%s2494 + $0x32] sm:$0xff]
      %v2807 = vld [vmem:[%s2494 + $0x42] sm:$0xff]
      %v2808 = vld [vmem:[%s2494 + $0x52] sm:$0xff]
      %v2809 = vld [vmem:[%s2494 + $0x62] sm:$0xff]
      %v2810 = vld [vmem:[%s2494 + $0x72] sm:$0xff]
      %s2811 = scalar_lea.vmem %s1, 1088
      %v2812 = vld [vmem:[%s2811] sm:$0xff]
      %v2813 = vld [vmem:[%s2811 + $0x8] sm:$0xff]
      %v2814 = vld [vmem:[%s2811 + $0x10] sm:$0xff]
      %v2815 = vld [vmem:[%s2811 + $0x18] sm:$0xff]
      %v2816 = vld [vmem:[%s2811 + $0x20] sm:$0xff]
      %v2817 = vld [vmem:[%s2811 + $0x28] sm:$0xff]
      %v2818 = vld [vmem:[%s2811 + $0x30] sm:$0xff]
      %v2819 = vld [vmem:[%s2811 + $0x38] sm:$0xff]
      %v2821 = vsel %vm231, %v2803, 0
      %v2824 = vsel %vm231, %v2804, 0
      %v2827 = vsel %vm231, %v2805, 0
      %v2830 = vsel %vm231, %v2806, 0
      %v2833 = vsel %vm231, %v2807, 0
      %v2836 = vsel %vm231, %v2808, 0
      %v2839 = vsel %vm231, %v2809, 0
      %v2842 = vsel %vm231, %v2810, 0
      %2844 = vmatprep.subr.mxu0 0.0
      %2845 = vmatpush1.msra.mxu0 %v2812
      %2846 = vmatprep.subr.mxu0 0.0
      %2847 = vmatpush1.msra.mxu0 %v2813
      %2848 = vmatprep.subr.mxu0 0.0
      %2849 = vmatpush1.msra.mxu0 %v2814
      %2850 = vmatprep.subr.mxu0 0.0
      %2851 = vmatpush1.msra.mxu0 %v2815
      %2852 = vmatprep.subr.mxu0 0.0
      %2853 = vmatpush1.msra.mxu0 %v2816
      %2854 = vmatprep.subr.mxu0 0.0
      %2855 = vmatpush1.msra.mxu0 %v2817
      %2856 = vmatprep.subr.mxu0 0.0
      %2857 = vmatpush1.msra.mxu0 %v2818
      %2858 = vmatprep.subr.mxu0 0.0
      %2859 = vmatpush1.msra.mxu0 %v2819
      %2860 = vmatprep.subr.mxu0 0.0
      %2861 = vmatpush1.msra.mxu0 0.0
      %2862 = vmatprep.subr.mxu0 0.0
      %2863 = vmatpush1.msra.mxu0 0.0
      %2864 = vmatprep.subr.mxu0 0.0
      %2865 = vmatpush1.msra.mxu0 0.0
      %2866 = vmatprep.subr.mxu0 0.0
      %2867 = vmatpush1.msra.mxu0 0.0
      %2868 = vmatprep.subr.mxu0 0.0
      %2869 = vmatpush1.msra.mxu0 0.0
      %2870 = vmatprep.subr.mxu0 0.0
      %2871 = vmatpush1.msra.mxu0 0.0
      %2872 = vmatprep.subr.mxu0 0.0
      %2873 = vmatpush1.msra.mxu0 0.0
      %2874 = vmatprep.subr.mxu0 0.0
      %2875 = vmatpush1.msra.mxu0 0.0
      %2876 = vmatprep.subr.mxu0 0.0
      %2877 = vmatpush1.msra.mxu0 0.0
      %2878 = vmatprep.subr.mxu0 0.0
      %2879 = vmatpush1.msra.mxu0 0.0
      %2880 = vmatprep.subr.mxu0 0.0
      %2881 = vmatpush1.msra.mxu0 0.0
      %2882 = vmatprep.subr.mxu0 0.0
      %2883 = vmatpush1.msra.mxu0 0.0
      %2884 = vmatprep.subr.mxu0 0.0
      %2885 = vmatpush1.msra.mxu0 0.0
      %2886 = vmatprep.subr.mxu0 0.0
      %2887 = vmatpush1.msra.mxu0 0.0
      %2888 = vmatprep.subr.mxu0 0.0
      %2889 = vmatpush1.msra.mxu0 0.0
      %2890 = vmatprep.subr.mxu0 0.0
      %2891 = vmatpush1.msra.mxu0 0.0
      %2892 = vmatprep.subr.mxu0 0.0
      %2893 = vmatpush1.msra.mxu0 0.0
      %2894 = vmatprep.subr.mxu0 0.0
      %2895 = vmatpush1.msra.mxu0 0.0
      %2896 = vmatprep.subr.mxu0 0.0
      %2897 = vmatpush1.msra.mxu0 0.0
      %2898 = vmatprep.subr.mxu0 0.0
      %2899 = vmatpush1.msra.mxu0 0.0
      %2900 = vmatprep.subr.mxu0 0.0
      %2901 = vmatpush1.msra.mxu0 0.0
      %2902 = vmatprep.subr.mxu0 0.0
      %2903 = vmatpush1.msra.mxu0 0.0
      %2904 = vmatprep.subr.mxu0 0.0
      %2905 = vmatpush1.msra.mxu0 0.0
      %2906 = vmatprep.subr.mxu0 0.0
      %2907 = vmatpush1.msra.mxu0 0.0
      %2908 = vmatprep.mubr.f32.mxu0 0.0
      %2909 = vmatmul.mubr.f32.gmra.mrb[0].mxu0 %v2821
      %v2910 = vpop.f32.mrb[0].mxu0
      %v2911 = vadd.f32 0.0, %v2910
      %v2912 = vpop.f32.mrb[0].mxu0
      %2913 = vmatprep.mubr.f32.mxu0 0.0
      %2914 = vmatmul.mubr.f32.gmra.mrb[0].mxu0 %v2824
      %v2915 = vpop.f32.mrb[0].mxu0
      %v2916 = vadd.f32 0.0, %v2915
      %v2917 = vpop.f32.mrb[0].mxu0
      %2918 = vmatprep.mubr.f32.mxu0 0.0
      %2919 = vmatmul.mubr.f32.gmra.mrb[0].mxu0 %v2827
      %v2920 = vpop.f32.mrb[0].mxu0
      %v2921 = vadd.f32 0.0, %v2920
      %v2922 = vpop.f32.mrb[0].mxu0
      %2923 = vmatprep.mubr.f32.mxu0 0.0
      %2924 = vmatmul.mubr.f32.gmra.mrb[0].mxu0 %v2830
      %v2925 = vpop.f32.mrb[0].mxu0
      %v2926 = vadd.f32 0.0, %v2925
      %v2927 = vpop.f32.mrb[0].mxu0
      %2928 = vmatprep.mubr.f32.mxu0 0.0
      %2929 = vmatmul.mubr.f32.gmra.mrb[0].mxu0 %v2833
      %v2930 = vpop.f32.mrb[0].mxu0
      %v2931 = vadd.f32 0.0, %v2930
      %v2932 = vpop.f32.mrb[0].mxu0
      %2933 = vmatprep.mubr.f32.mxu0 0.0
      %2934 = vmatmul.mubr.f32.gmra.mrb[0].mxu0 %v2836
      %v2935 = vpop.f32.mrb[0].mxu0
      %v2936 = vadd.f32 0.0, %v2935
      %v2937 = vpop.f32.mrb[0].mxu0
      %2938 = vmatprep.mubr.f32.mxu0 0.0
      %2939 = vmatmul.mubr.f32.gmra.mrb[0].mxu0 %v2839
      %v2940 = vpop.f32.mrb[0].mxu0
      %v2941 = vadd.f32 0.0, %v2940
      %v2942 = vpop.f32.mrb[0].mxu0
      %2943 = vmatprep.mubr.f32.mxu0 0.0
      %2944 = vmatmul.mubr.f32.gmra.mrb[0].mxu0 %v2842
      %v2945 = vpop.f32.mrb[0].mxu0
      %v2946 = vadd.f32 0.0, %v2945
      %v2947 = vpop.f32.mrb[0].mxu0
      %2948 = vdwg.mxu0
      %v2949 = vadd.f32 %v2795, %v2911
      %v2950 = vadd.f32 %v2796, %v2916
      %v2951 = vadd.f32 %v2797, %v2921
      %v2952 = vadd.f32 %v2798, %v2926
      %v2953 = vadd.f32 %v2799, %v2931
      %v2954 = vadd.f32 %v2800, %v2936
      %v2955 = vadd.f32 %v2801, %v2941
      %v2956 = vadd.f32 %v2802, %v2946
      %v2957 = vld [vmem:[%s2494 + $0x3] sm:$0xff]
      %v2958 = vld [vmem:[%s2494 + $0x13] sm:$0xff]
      %v2959 = vld [vmem:[%s2494 + $0x23] sm:$0xff]
      %v2960 = vld [vmem:[%s2494 + $0x33] sm:$0xff]
      %v2961 = vld [vmem:[%s2494 + $0x43] sm:$0xff]
      %v2962 = vld [vmem:[%s2494 + $0x53] sm:$0xff]
      %v2963 = vld [vmem:[%s2494 + $0x63] sm:$0xff]
      %v2964 = vld [vmem:[%s2494 + $0x73] sm:$0xff]
      %s2965 = scalar_lea.vmem %s1, 1152
      %v2966 = vld [vmem:[%s2965] sm:$0xff]
      %v2967 = vld [vmem:[%s2965 + $0x8] sm:$0xff]
      %v2968 = vld [vmem:[%s2965 + $0x10] sm:$0xff]
      %v2969 = vld [vmem:[%s2965 + $0x18] sm:$0xff]
      %v2970 = vld [vmem:[%s2965 + $0x20] sm:$0xff]
      %v2971 = vld [vmem:[%s2965 + $0x28] sm:$0xff]
      %v2972 = vld [vmem:[%s2965 + $0x30] sm:$0xff]
      %v2973 = vld [vmem:[%s2965 + $0x38] sm:$0xff]
      %v2975 = vsel %vm231, %v2957, 0
      %v2978 = vsel %vm231, %v2958, 0
      %v2981 = vsel %vm231, %v2959, 0
      %v2984 = vsel %vm231, %v2960, 0
      %v2987 = vsel %vm231, %v2961, 0
      %v2990 = vsel %vm231, %v2962, 0
      %v2993 = vsel %vm231, %v2963, 0
      %v2996 = vsel %vm231, %v2964, 0
      %2998 = vmatprep.subr.mxu0 0.0
      %2999 = vmatpush1.msra.mxu0 %v2966
      %3000 = vmatprep.subr.mxu0 0.0
      %3001 = vmatpush1.msra.mxu0 %v2967
      %3002 = vmatprep.subr.mxu0 0.0
      %3003 = vmatpush1.msra.mxu0 %v2968
      %3004 = vmatprep.subr.mxu0 0.0
      %3005 = vmatpush1.msra.mxu0 %v2969
      %3006 = vmatprep.subr.mxu0 0.0
      %3007 = vmatpush1.msra.mxu0 %v2970
      %3008 = vmatprep.subr.mxu0 0.0
      %3009 = vmatpush1.msra.mxu0 %v2971
      %3010 = vmatprep.subr.mxu0 0.0
      %3011 = vmatpush1.msra.mxu0 %v2972
      %3012 = vmatprep.subr.mxu0 0.0
      %3013 = vmatpush1.msra.mxu0 %v2973
      %3014 = vmatprep.subr.mxu0 0.0
      %3015 = vmatpush1.msra.mxu0 0.0
      %3016 = vmatprep.subr.mxu0 0.0
      %3017 = vmatpush1.msra.mxu0 0.0
      %3018 = vmatprep.subr.mxu0 0.0
      %3019 = vmatpush1.msra.mxu0 0.0
      %3020 = vmatprep.subr.mxu0 0.0
      %3021 = vmatpush1.msra.mxu0 0.0
      %3022 = vmatprep.subr.mxu0 0.0
      %3023 = vmatpush1.msra.mxu0 0.0
      %3024 = vmatprep.subr.mxu0 0.0
      %3025 = vmatpush1.msra.mxu0 0.0
      %3026 = vmatprep.subr.mxu0 0.0
      %3027 = vmatpush1.msra.mxu0 0.0
      %3028 = vmatprep.subr.mxu0 0.0
      %3029 = vmatpush1.msra.mxu0 0.0
      %3030 = vmatprep.subr.mxu0 0.0
      %3031 = vmatpush1.msra.mxu0 0.0
      %3032 = vmatprep.subr.mxu0 0.0
      %3033 = vmatpush1.msra.mxu0 0.0
      %3034 = vmatprep.subr.mxu0 0.0
      %3035 = vmatpush1.msra.mxu0 0.0
      %3036 = vmatprep.subr.mxu0 0.0
      %3037 = vmatpush1.msra.mxu0 0.0
      %3038 = vmatprep.subr.mxu0 0.0
      %3039 = vmatpush1.msra.mxu0 0.0
      %3040 = vmatprep.subr.mxu0 0.0
      %3041 = vmatpush1.msra.mxu0 0.0
      %3042 = vmatprep.subr.mxu0 0.0
      %3043 = vmatpush1.msra.mxu0 0.0
      %3044 = vmatprep.subr.mxu0 0.0
      %3045 = vmatpush1.msra.mxu0 0.0
      %3046 = vmatprep.subr.mxu0 0.0
      %3047 = vmatpush1.msra.mxu0 0.0
      %3048 = vmatprep.subr.mxu0 0.0
      %3049 = vmatpush1.msra.mxu0 0.0
      %3050 = vmatprep.subr.mxu0 0.0
      %3051 = vmatpush1.msra.mxu0 0.0
      %3052 = vmatprep.subr.mxu0 0.0
      %3053 = vmatpush1.msra.mxu0 0.0
      %3054 = vmatprep.subr.mxu0 0.0
      %3055 = vmatpush1.msra.mxu0 0.0
      %3056 = vmatprep.subr.mxu0 0.0
      %3057 = vmatpush1.msra.mxu0 0.0
      %3058 = vmatprep.subr.mxu0 0.0
      %3059 = vmatpush1.msra.mxu0 0.0
      %3060 = vmatprep.subr.mxu0 0.0
      %3061 = vmatpush1.msra.mxu0 0.0
      %3062 = vmatprep.mubr.f32.mxu0 0.0
      %3063 = vmatmul.mubr.f32.gmra.mrb[0].mxu0 %v2975
      %v3064 = vpop.f32.mrb[0].mxu0
      %v3065 = vadd.f32 0.0, %v3064
      %v3066 = vpop.f32.mrb[0].mxu0
      %3067 = vmatprep.mubr.f32.mxu0 0.0
      %3068 = vmatmul.mubr.f32.gmra.mrb[0].mxu0 %v2978
      %v3069 = vpop.f32.mrb[0].mxu0
      %v3070 = vadd.f32 0.0, %v3069
      %v3071 = vpop.f32.mrb[0].mxu0
      %3072 = vmatprep.mubr.f32.mxu0 0.0
      %3073 = vmatmul.mubr.f32.gmra.mrb[0].mxu0 %v2981
      %v3074 = vpop.f32.mrb[0].mxu0
      %v3075 = vadd.f32 0.0, %v3074
      %v3076 = vpop.f32.mrb[0].mxu0
      %3077 = vmatprep.mubr.f32.mxu0 0.0
      %3078 = vmatmul.mubr.f32.gmra.mrb[0].mxu0 %v2984
      %v3079 = vpop.f32.mrb[0].mxu0
      %v3080 = vadd.f32 0.0, %v3079
      %v3081 = vpop.f32.mrb[0].mxu0
      %3082 = vmatprep.mubr.f32.mxu0 0.0
      %3083 = vmatmul.mubr.f32.gmra.mrb[0].mxu0 %v2987
      %v3084 = vpop.f32.mrb[0].mxu0
      %v3085 = vadd.f32 0.0, %v3084
      %v3086 = vpop.f32.mrb[0].mxu0
      %3087 = vmatprep.mubr.f32.mxu0 0.0
      %3088 = vmatmul.mubr.f32.gmra.mrb[0].mxu0 %v2990
      %v3089 = vpop.f32.mrb[0].mxu0
      %v3090 = vadd.f32 0.0, %v3089
      %v3091 = vpop.f32.mrb[0].mxu0
      %3092 = vmatprep.mubr.f32.mxu0 0.0
      %3093 = vmatmul.mubr.f32.gmra.mrb[0].mxu0 %v2993
      %v3094 = vpop.f32.mrb[0].mxu0
      %v3095 = vadd.f32 0.0, %v3094
      %v3096 = vpop.f32.mrb[0].mxu0
      %3097 = vmatprep.mubr.f32.mxu0 0.0
      %3098 = vmatmul.mubr.f32.gmra.mrb[0].mxu0 %v2996
      %v3099 = vpop.f32.mrb[0].mxu0
      %v3100 = vadd.f32 0.0, %v3099
      %v3101 = vpop.f32.mrb[0].mxu0
      %3102 = vdwg.mxu0
      %v3103 = vadd.f32 %v2949, %v3065
      %v3104 = vadd.f32 %v2950, %v3070
      %v3105 = vadd.f32 %v2951, %v3075
      %v3106 = vadd.f32 %v2952, %v3080
      %v3107 = vadd.f32 %v2953, %v3085
      %v3108 = vadd.f32 %v2954, %v3090
      %v3109 = vadd.f32 %v2955, %v3095
      %v3110 = vadd.f32 %v2956, %v3100
      %v3111 = vld [vmem:[%s2494 + $0x4] sm:$0xff]
      %v3112 = vld [vmem:[%s2494 + $0x14] sm:$0xff]
      %v3113 = vld [vmem:[%s2494 + $0x24] sm:$0xff]
      %v3114 = vld [vmem:[%s2494 + $0x34] sm:$0xff]
      %v3115 = vld [vmem:[%s2494 + $0x44] sm:$0xff]
      %v3116 = vld [vmem:[%s2494 + $0x54] sm:$0xff]
      %v3117 = vld [vmem:[%s2494 + $0x64] sm:$0xff]
      %v3118 = vld [vmem:[%s2494 + $0x74] sm:$0xff]
      %s3119 = scalar_lea.vmem %s1, 1216
      %v3120 = vld [vmem:[%s3119] sm:$0xff]
      %v3121 = vld [vmem:[%s3119 + $0x8] sm:$0xff]
      %v3122 = vld [vmem:[%s3119 + $0x10] sm:$0xff]
      %v3123 = vld [vmem:[%s3119 + $0x18] sm:$0xff]
      %v3124 = vld [vmem:[%s3119 + $0x20] sm:$0xff]
      %v3125 = vld [vmem:[%s3119 + $0x28] sm:$0xff]
      %v3126 = vld [vmem:[%s3119 + $0x30] sm:$0xff]
      %v3127 = vld [vmem:[%s3119 + $0x38] sm:$0xff]
      %v3129 = vsel %vm231, %v3111, 0
      %v3132 = vsel %vm231, %v3112, 0
      %v3135 = vsel %vm231, %v3113, 0
      %v3138 = vsel %vm231, %v3114, 0
      %v3141 = vsel %vm231, %v3115, 0
      %v3144 = vsel %vm231, %v3116, 0
      %v3147 = vsel %vm231, %v3117, 0
      %v3150 = vsel %vm231, %v3118, 0
      %3152 = vmatprep.subr.mxu0 0.0
      %3153 = vmatpush1.msra.mxu0 %v3120
      %3154 = vmatprep.subr.mxu0 0.0
      %3155 = vmatpush1.msra.mxu0 %v3121
      %3156 = vmatprep.subr.mxu0 0.0
      %3157 = vmatpush1.msra.mxu0 %v3122
      %3158 = vmatprep.subr.mxu0 0.0
      %3159 = vmatpush1.msra.mxu0 %v3123
      %3160 = vmatprep.subr.mxu0 0.0
      %3161 = vmatpush1.msra.mxu0 %v3124
      %3162 = vmatprep.subr.mxu0 0.0
      %3163 = vmatpush1.msra.mxu0 %v3125
      %3164 = vmatprep.subr.mxu0 0.0
      %3165 = vmatpush1.msra.mxu0 %v3126
      %3166 = vmatprep.subr.mxu0 0.0
      %3167 = vmatpush1.msra.mxu0 %v3127
      %3168 = vmatprep.subr.mxu0 0.0
      %3169 = vmatpush1.msra.mxu0 0.0
      %3170 = vmatprep.subr.mxu0 0.0
      %3171 = vmatpush1.msra.mxu0 0.0
      %3172 = vmatprep.subr.mxu0 0.0
      %3173 = vmatpush1.msra.mxu0 0.0
      %3174 = vmatprep.subr.mxu0 0.0
      %3175 = vmatpush1.msra.mxu0 0.0
      %3176 = vmatprep.subr.mxu0 0.0
      %3177 = vmatpush1.msra.mxu0 0.0
      %3178 = vmatprep.subr.mxu0 0.0
      %3179 = vmatpush1.msra.mxu0 0.0
      %3180 = vmatprep.subr.mxu0 0.0
      %3181 = vmatpush1.msra.mxu0 0.0
      %3182 = vmatprep.subr.mxu0 0.0
      %3183 = vmatpush1.msra.mxu0 0.0
      %3184 = vmatprep.subr.mxu0 0.0
      %3185 = vmatpush1.msra.mxu0 0.0
      %3186 = vmatprep.subr.mxu0 0.0
      %3187 = vmatpush1.msra.mxu0 0.0
      %3188 = vmatprep.subr.mxu0 0.0
      %3189 = vmatpush1.msra.mxu0 0.0
      %3190 = vmatprep.subr.mxu0 0.0
      %3191 = vmatpush1.msra.mxu0 0.0
      %3192 = vmatprep.subr.mxu0 0.0
      %3193 = vmatpush1.msra.mxu0 0.0
      %3194 = vmatprep.subr.mxu0 0.0
      %3195 = vmatpush1.msra.mxu0 0.0
      %3196 = vmatprep.subr.mxu0 0.0
      %3197 = vmatpush1.msra.mxu0 0.0
      %3198 = vmatprep.subr.mxu0 0.0
      %3199 = vmatpush1.msra.mxu0 0.0
      %3200 = vmatprep.subr.mxu0 0.0
      %3201 = vmatpush1.msra.mxu0 0.0
      %3202 = vmatprep.subr.mxu0 0.0
      %3203 = vmatpush1.msra.mxu0 0.0
      %3204 = vmatprep.subr.mxu0 0.0
      %3205 = vmatpush1.msra.mxu0 0.0
      %3206 = vmatprep.subr.mxu0 0.0
      %3207 = vmatpush1.msra.mxu0 0.0
      %3208 = vmatprep.subr.mxu0 0.0
      %3209 = vmatpush1.msra.mxu0 0.0
      %3210 = vmatprep.subr.mxu0 0.0
      %3211 = vmatpush1.msra.mxu0 0.0
      %3212 = vmatprep.subr.mxu0 0.0
      %3213 = vmatpush1.msra.mxu0 0.0
      %3214 = vmatprep.subr.mxu0 0.0
      %3215 = vmatpush1.msra.mxu0 0.0
      %3216 = vmatprep.mubr.f32.mxu0 0.0
      %3217 = vmatmul.mubr.f32.gmra.mrb[0].mxu0 %v3129
      %v3218 = vpop.f32.mrb[0].mxu0
      %v3219 = vadd.f32 0.0, %v3218
      %v3220 = vpop.f32.mrb[0].mxu0
      %3221 = vmatprep.mubr.f32.mxu0 0.0
      %3222 = vmatmul.mubr.f32.gmra.mrb[0].mxu0 %v3132
      %v3223 = vpop.f32.mrb[0].mxu0
      %v3224 = vadd.f32 0.0, %v3223
      %v3225 = vpop.f32.mrb[0].mxu0
      %3226 = vmatprep.mubr.f32.mxu0 0.0
      %3227 = vmatmul.mubr.f32.gmra.mrb[0].mxu0 %v3135
      %v3228 = vpop.f32.mrb[0].mxu0
      %v3229 = vadd.f32 0.0, %v3228
      %v3230 = vpop.f32.mrb[0].mxu0
      %3231 = vmatprep.mubr.f32.mxu0 0.0
      %3232 = vmatmul.mubr.f32.gmra.mrb[0].mxu0 %v3138
      %v3233 = vpop.f32.mrb[0].mxu0
      %v3234 = vadd.f32 0.0, %v3233
      %v3235 = vpop.f32.mrb[0].mxu0
      %3236 = vmatprep.mubr.f32.mxu0 0.0
      %3237 = vmatmul.mubr.f32.gmra.mrb[0].mxu0 %v3141
      %v3238 = vpop.f32.mrb[0].mxu0
      %v3239 = vadd.f32 0.0, %v3238
      %v3240 = vpop.f32.mrb[0].mxu0
      %3241 = vmatprep.mubr.f32.mxu0 0.0
      %3242 = vmatmul.mubr.f32.gmra.mrb[0].mxu0 %v3144
      %v3243 = vpop.f32.mrb[0].mxu0
      %v3244 = vadd.f32 0.0, %v3243
      %v3245 = vpop.f32.mrb[0].mxu0
      %3246 = vmatprep.mubr.f32.mxu0 0.0
      %3247 = vmatmul.mubr.f32.gmra.mrb[0].mxu0 %v3147
      %v3248 = vpop.f32.mrb[0].mxu0
      %v3249 = vadd.f32 0.0, %v3248
      %v3250 = vpop.f32.mrb[0].mxu0
      %3251 = vmatprep.mubr.f32.mxu0 0.0
      %3252 = vmatmul.mubr.f32.gmra.mrb[0].mxu0 %v3150
      %v3253 = vpop.f32.mrb[0].mxu0
      %v3254 = vadd.f32 0.0, %v3253
      %v3255 = vpop.f32.mrb[0].mxu0
      %3256 = vdwg.mxu0
      %v3257 = vadd.f32 %v3103, %v3219
      %v3258 = vadd.f32 %v3104, %v3224
      %v3259 = vadd.f32 %v3105, %v3229
      %v3260 = vadd.f32 %v3106, %v3234
      %v3261 = vadd.f32 %v3107, %v3239
      %v3262 = vadd.f32 %v3108, %v3244
      %v3263 = vadd.f32 %v3109, %v3249
      %v3264 = vadd.f32 %v3110, %v3254
      %s3265 = scalar_lea.vmem %s192, 64
      %v3266 = vld [vmem:[%s3265] sm:$0xff]
      %v3267 = vld [vmem:[%s3265 + $0x10] sm:$0xff]
      %v3268 = vld [vmem:[%s3265 + $0x20] sm:$0xff]
      %v3269 = vld [vmem:[%s3265 + $0x30] sm:$0xff]
      %v3270 = vld [vmem:[%s3265 + $0x40] sm:$0xff]
      %v3271 = vld [vmem:[%s3265 + $0x50] sm:$0xff]
      %v3272 = vld [vmem:[%s3265 + $0x60] sm:$0xff]
      %v3273 = vld [vmem:[%s3265 + $0x70] sm:$0xff]
      %s3274 = scalar_lea.vmem %s1, 1280
      %v3275 = vld [vmem:[%s3274] sm:$0xff]
      %v3276 = vld [vmem:[%s3274 + $0x8] sm:$0xff]
      %v3277 = vld [vmem:[%s3274 + $0x10] sm:$0xff]
      %v3278 = vld [vmem:[%s3274 + $0x18] sm:$0xff]
      %v3279 = vld [vmem:[%s3274 + $0x20] sm:$0xff]
      %v3280 = vld [vmem:[%s3274 + $0x28] sm:$0xff]
      %v3281 = vld [vmem:[%s3274 + $0x30] sm:$0xff]
      %v3282 = vld [vmem:[%s3274 + $0x38] sm:$0xff]
      %v3284 = vsel %vm231, %v3266, 0
      %v3287 = vsel %vm231, %v3267, 0
      %v3290 = vsel %vm231, %v3268, 0
      %v3293 = vsel %vm231, %v3269, 0
      %v3296 = vsel %vm231, %v3270, 0
      %v3299 = vsel %vm231, %v3271, 0
      %v3302 = vsel %vm231, %v3272, 0
      %v3305 = vsel %vm231, %v3273, 0
      %3307 = vmatprep.subr.mxu0 0.0
      %3308 = vmatpush1.msra.mxu0 %v3275
      %3309 = vmatprep.subr.mxu0 0.0
      %3310 = vmatpush1.msra.mxu0 %v3276
      %3311 = vmatprep.subr.mxu0 0.0
      %3312 = vmatpush1.msra.mxu0 %v3277
      %3313 = vmatprep.subr.mxu0 0.0
      %3314 = vmatpush1.msra.mxu0 %v3278
      %3315 = vmatprep.subr.mxu0 0.0
      %3316 = vmatpush1.msra.mxu0 %v3279
      %3317 = vmatprep.subr.mxu0 0.0
      %3318 = vmatpush1.msra.mxu0 %v3280
      %3319 = vmatprep.subr.mxu0 0.0
      %3320 = vmatpush1.msra.mxu0 %v3281
      %3321 = vmatprep.subr.mxu0 0.0
      %3322 = vmatpush1.msra.mxu0 %v3282
      %3323 = vmatprep.subr.mxu0 0.0
      %3324 = vmatpush1.msra.mxu0 0.0
      %3325 = vmatprep.subr.mxu0 0.0
      %3326 = vmatpush1.msra.mxu0 0.0
      %3327 = vmatprep.subr.mxu0 0.0
      %3328 = vmatpush1.msra.mxu0 0.0
      %3329 = vmatprep.subr.mxu0 0.0
      %3330 = vmatpush1.msra.mxu0 0.0
      %3331 = vmatprep.subr.mxu0 0.0
      %3332 = vmatpush1.msra.mxu0 0.0
      %3333 = vmatprep.subr.mxu0 0.0
      %3334 = vmatpush1.msra.mxu0 0.0
      %3335 = vmatprep.subr.mxu0 0.0
      %3336 = vmatpush1.msra.mxu0 0.0
      %3337 = vmatprep.subr.mxu0 0.0
      %3338 = vmatpush1.msra.mxu0 0.0
      %3339 = vmatprep.subr.mxu0 0.0
      %3340 = vmatpush1.msra.mxu0 0.0
      %3341 = vmatprep.subr.mxu0 0.0
      %3342 = vmatpush1.msra.mxu0 0.0
      %3343 = vmatprep.subr.mxu0 0.0
      %3344 = vmatpush1.msra.mxu0 0.0
      %3345 = vmatprep.subr.mxu0 0.0
      %3346 = vmatpush1.msra.mxu0 0.0
      %3347 = vmatprep.subr.mxu0 0.0
      %3348 = vmatpush1.msra.mxu0 0.0
      %3349 = vmatprep.subr.mxu0 0.0
      %3350 = vmatpush1.msra.mxu0 0.0
      %3351 = vmatprep.subr.mxu0 0.0
      %3352 = vmatpush1.msra.mxu0 0.0
      %3353 = vmatprep.subr.mxu0 0.0
      %3354 = vmatpush1.msra.mxu0 0.0
      %3355 = vmatprep.subr.mxu0 0.0
      %3356 = vmatpush1.msra.mxu0 0.0
      %3357 = vmatprep.subr.mxu0 0.0
      %3358 = vmatpush1.msra.mxu0 0.0
      %3359 = vmatprep.subr.mxu0 0.0
      %3360 = vmatpush1.msra.mxu0 0.0
      %3361 = vmatprep.subr.mxu0 0.0
      %3362 = vmatpush1.msra.mxu0 0.0
      %3363 = vmatprep.subr.mxu0 0.0
      %3364 = vmatpush1.msra.mxu0 0.0
      %3365 = vmatprep.subr.mxu0 0.0
      %3366 = vmatpush1.msra.mxu0 0.0
      %3367 = vmatprep.subr.mxu0 0.0
      %3368 = vmatpush1.msra.mxu0 0.0
      %3369 = vmatprep.subr.mxu0 0.0
      %3370 = vmatpush1.msra.mxu0 0.0
      %3371 = vmatprep.mubr.f32.mxu0 0.0
      %3372 = vmatmul.mubr.f32.gmra.mrb[0].mxu0 %v3284
      %v3373 = vpop.f32.mrb[0].mxu0
      %v3374 = vadd.f32 0.0, %v3373
      %v3375 = vpop.f32.mrb[0].mxu0
      %3376 = vmatprep.mubr.f32.mxu0 0.0
      %3377 = vmatmul.mubr.f32.gmra.mrb[0].mxu0 %v3287
      %v3378 = vpop.f32.mrb[0].mxu0
      %v3379 = vadd.f32 0.0, %v3378
      %v3380 = vpop.f32.mrb[0].mxu0
      %3381 = vmatprep.mubr.f32.mxu0 0.0
      %3382 = vmatmul.mubr.f32.gmra.mrb[0].mxu0 %v3290
      %v3383 = vpop.f32.mrb[0].mxu0
      %v3384 = vadd.f32 0.0, %v3383
      %v3385 = vpop.f32.mrb[0].mxu0
      %3386 = vmatprep.mubr.f32.mxu0 0.0
      %3387 = vmatmul.mubr.f32.gmra.mrb[0].mxu0 %v3293
      %v3388 = vpop.f32.mrb[0].mxu0
      %v3389 = vadd.f32 0.0, %v3388
      %v3390 = vpop.f32.mrb[0].mxu0
      %3391 = vmatprep.mubr.f32.mxu0 0.0
      %3392 = vmatmul.mubr.f32.gmra.mrb[0].mxu0 %v3296
      %v3393 = vpop.f32.mrb[0].mxu0
      %v3394 = vadd.f32 0.0, %v3393
      %v3395 = vpop.f32.mrb[0].mxu0
      %3396 = vmatprep.mubr.f32.mxu0 0.0
      %3397 = vmatmul.mubr.f32.gmra.mrb[0].mxu0 %v3299
      %v3398 = vpop.f32.mrb[0].mxu0
      %v3399 = vadd.f32 0.0, %v3398
      %v3400 = vpop.f32.mrb[0].mxu0
      %3401 = vmatprep.mubr.f32.mxu0 0.0
      %3402 = vmatmul.mubr.f32.gmra.mrb[0].mxu0 %v3302
      %v3403 = vpop.f32.mrb[0].mxu0
      %v3404 = vadd.f32 0.0, %v3403
      %v3405 = vpop.f32.mrb[0].mxu0
      %3406 = vmatprep.mubr.f32.mxu0 0.0
      %3407 = vmatmul.mubr.f32.gmra.mrb[0].mxu0 %v3305
      %v3408 = vpop.f32.mrb[0].mxu0
      %v3409 = vadd.f32 0.0, %v3408
      %v3410 = vpop.f32.mrb[0].mxu0
      %3411 = vdwg.mxu0
      %v3412 = vadd.f32 %v3257, %v3374
      %v3413 = vadd.f32 %v3258, %v3379
      %v3414 = vadd.f32 %v3259, %v3384
      %v3415 = vadd.f32 %v3260, %v3389
      %v3416 = vadd.f32 %v3261, %v3394
      %v3417 = vadd.f32 %v3262, %v3399
      %v3418 = vadd.f32 %v3263, %v3404
      %v3419 = vadd.f32 %v3264, %v3409
      %v3420 = vld [vmem:[%s3265 + $0x1] sm:$0xff]
      %v3421 = vld [vmem:[%s3265 + $0x11] sm:$0xff]
      %v3422 = vld [vmem:[%s3265 + $0x21] sm:$0xff]
      %v3423 = vld [vmem:[%s3265 + $0x31] sm:$0xff]
      %v3424 = vld [vmem:[%s3265 + $0x41] sm:$0xff]
      %v3425 = vld [vmem:[%s3265 + $0x51] sm:$0xff]
      %v3426 = vld [vmem:[%s3265 + $0x61] sm:$0xff]
      %v3427 = vld [vmem:[%s3265 + $0x71] sm:$0xff]
      %s3428 = scalar_lea.vmem %s1, 1344
      %v3429 = vld [vmem:[%s3428] sm:$0xff]
      %v3430 = vld [vmem:[%s3428 + $0x8] sm:$0xff]
      %v3431 = vld [vmem:[%s3428 + $0x10] sm:$0xff]
      %v3432 = vld [vmem:[%s3428 + $0x18] sm:$0xff]
      %v3433 = vld [vmem:[%s3428 + $0x20] sm:$0xff]
      %v3434 = vld [vmem:[%s3428 + $0x28] sm:$0xff]
      %v3435 = vld [vmem:[%s3428 + $0x30] sm:$0xff]
      %v3436 = vld [vmem:[%s3428 + $0x38] sm:$0xff]
      %v3438 = vsel %vm231, %v3420, 0
      %v3441 = vsel %vm231, %v3421, 0
      %v3444 = vsel %vm231, %v3422, 0
      %v3447 = vsel %vm231, %v3423, 0
      %v3450 = vsel %vm231, %v3424, 0
      %v3453 = vsel %vm231, %v3425, 0
      %v3456 = vsel %vm231, %v3426, 0
      %v3459 = vsel %vm231, %v3427, 0
      %3461 = vmatprep.subr.mxu0 0.0
      %3462 = vmatpush1.msra.mxu0 %v3429
      %3463 = vmatprep.subr.mxu0 0.0
      %3464 = vmatpush1.msra.mxu0 %v3430
      %3465 = vmatprep.subr.mxu0 0.0
      %3466 = vmatpush1.msra.mxu0 %v3431
      %3467 = vmatprep.subr.mxu0 0.0
      %3468 = vmatpush1.msra.mxu0 %v3432
      %3469 = vmatprep.subr.mxu0 0.0
      %3470 = vmatpush1.msra.mxu0 %v3433
      %3471 = vmatprep.subr.mxu0 0.0
      %3472 = vmatpush1.msra.mxu0 %v3434
      %3473 = vmatprep.subr.mxu0 0.0
      %3474 = vmatpush1.msra.mxu0 %v3435
      %3475 = vmatprep.subr.mxu0 0.0
      %3476 = vmatpush1.msra.mxu0 %v3436
      %3477 = vmatprep.subr.mxu0 0.0
      %3478 = vmatpush1.msra.mxu0 0.0
      %3479 = vmatprep.subr.mxu0 0.0
      %3480 = vmatpush1.msra.mxu0 0.0
      %3481 = vmatprep.subr.mxu0 0.0
      %3482 = vmatpush1.msra.mxu0 0.0
      %3483 = vmatprep.subr.mxu0 0.0
      %3484 = vmatpush1.msra.mxu0 0.0
      %3485 = vmatprep.subr.mxu0 0.0
      %3486 = vmatpush1.msra.mxu0 0.0
      %3487 = vmatprep.subr.mxu0 0.0
      %3488 = vmatpush1.msra.mxu0 0.0
      %3489 = vmatprep.subr.mxu0 0.0
      %3490 = vmatpush1.msra.mxu0 0.0
      %3491 = vmatprep.subr.mxu0 0.0
      %3492 = vmatpush1.msra.mxu0 0.0
      %3493 = vmatprep.subr.mxu0 0.0
      %3494 = vmatpush1.msra.mxu0 0.0
      %3495 = vmatprep.subr.mxu0 0.0
      %3496 = vmatpush1.msra.mxu0 0.0
      %3497 = vmatprep.subr.mxu0 0.0
      %3498 = vmatpush1.msra.mxu0 0.0
      %3499 = vmatprep.subr.mxu0 0.0
      %3500 = vmatpush1.msra.mxu0 0.0
      %3501 = vmatprep.subr.mxu0 0.0
      %3502 = vmatpush1.msra.mxu0 0.0
      %3503 = vmatprep.subr.mxu0 0.0
      %3504 = vmatpush1.msra.mxu0 0.0
      %3505 = vmatprep.subr.mxu0 0.0
      %3506 = vmatpush1.msra.mxu0 0.0
      %3507 = vmatprep.subr.mxu0 0.0
      %3508 = vmatpush1.msra.mxu0 0.0
      %3509 = vmatprep.subr.mxu0 0.0
      %3510 = vmatpush1.msra.mxu0 0.0
      %3511 = vmatprep.subr.mxu0 0.0
      %3512 = vmatpush1.msra.mxu0 0.0
      %3513 = vmatprep.subr.mxu0 0.0
      %3514 = vmatpush1.msra.mxu0 0.0
      %3515 = vmatprep.subr.mxu0 0.0
      %3516 = vmatpush1.msra.mxu0 0.0
      %3517 = vmatprep.subr.mxu0 0.0
      %3518 = vmatpush1.msra.mxu0 0.0
      %3519 = vmatprep.subr.mxu0 0.0
      %3520 = vmatpush1.msra.mxu0 0.0
      %3521 = vmatprep.subr.mxu0 0.0
      %3522 = vmatpush1.msra.mxu0 0.0
      %3523 = vmatprep.subr.mxu0 0.0
      %3524 = vmatpush1.msra.mxu0 0.0
      %3525 = vmatprep.mubr.f32.mxu0 0.0
      %3526 = vmatmul.mubr.f32.gmra.mrb[0].mxu0 %v3438
      %v3527 = vpop.f32.mrb[0].mxu0
      %v3528 = vadd.f32 0.0, %v3527
      %v3529 = vpop.f32.mrb[0].mxu0
      %3530 = vmatprep.mubr.f32.mxu0 0.0
      %3531 = vmatmul.mubr.f32.gmra.mrb[0].mxu0 %v3441
      %v3532 = vpop.f32.mrb[0].mxu0
      %v3533 = vadd.f32 0.0, %v3532
      %v3534 = vpop.f32.mrb[0].mxu0
      %3535 = vmatprep.mubr.f32.mxu0 0.0
      %3536 = vmatmul.mubr.f32.gmra.mrb[0].mxu0 %v3444
      %v3537 = vpop.f32.mrb[0].mxu0
      %v3538 = vadd.f32 0.0, %v3537
      %v3539 = vpop.f32.mrb[0].mxu0
      %3540 = vmatprep.mubr.f32.mxu0 0.0
      %3541 = vmatmul.mubr.f32.gmra.mrb[0].mxu0 %v3447
      %v3542 = vpop.f32.mrb[0].mxu0
      %v3543 = vadd.f32 0.0, %v3542
      %v3544 = vpop.f32.mrb[0].mxu0
      %3545 = vmatprep.mubr.f32.mxu0 0.0
      %3546 = vmatmul.mubr.f32.gmra.mrb[0].mxu0 %v3450
      %v3547 = vpop.f32.mrb[0].mxu0
      %v3548 = vadd.f32 0.0, %v3547
      %v3549 = vpop.f32.mrb[0].mxu0
      %3550 = vmatprep.mubr.f32.mxu0 0.0
      %3551 = vmatmul.mubr.f32.gmra.mrb[0].mxu0 %v3453
      %v3552 = vpop.f32.mrb[0].mxu0
      %v3553 = vadd.f32 0.0, %v3552
      %v3554 = vpop.f32.mrb[0].mxu0
      %3555 = vmatprep.mubr.f32.mxu0 0.0
      %3556 = vmatmul.mubr.f32.gmra.mrb[0].mxu0 %v3456
      %v3557 = vpop.f32.mrb[0].mxu0
      %v3558 = vadd.f32 0.0, %v3557
      %v3559 = vpop.f32.mrb[0].mxu0
      %3560 = vmatprep.mubr.f32.mxu0 0.0
      %3561 = vmatmul.mubr.f32.gmra.mrb[0].mxu0 %v3459
      %v3562 = vpop.f32.mrb[0].mxu0
      %v3563 = vadd.f32 0.0, %v3562
      %v3564 = vpop.f32.mrb[0].mxu0
      %3565 = vdwg.mxu0
      %v3566 = vadd.f32 %v3412, %v3528
      %v3567 = vadd.f32 %v3413, %v3533
      %v3568 = vadd.f32 %v3414, %v3538
      %v3569 = vadd.f32 %v3415, %v3543
      %v3570 = vadd.f32 %v3416, %v3548
      %v3571 = vadd.f32 %v3417, %v3553
      %v3572 = vadd.f32 %v3418, %v3558
      %v3573 = vadd.f32 %v3419, %v3563
      %v3574 = vld [vmem:[%s3265 + $0x2] sm:$0xff]
      %v3575 = vld [vmem:[%s3265 + $0x12] sm:$0xff]
      %v3576 = vld [vmem:[%s3265 + $0x22] sm:$0xff]
      %v3577 = vld [vmem:[%s3265 + $0x32] sm:$0xff]
      %v3578 = vld [vmem:[%s3265 + $0x42] sm:$0xff]
      %v3579 = vld [vmem:[%s3265 + $0x52] sm:$0xff]
      %v3580 = vld [vmem:[%s3265 + $0x62] sm:$0xff]
      %v3581 = vld [vmem:[%s3265 + $0x72] sm:$0xff]
      %s3582 = scalar_lea.vmem %s1, 1408
      %v3583 = vld [vmem:[%s3582] sm:$0xff]
      %v3584 = vld [vmem:[%s3582 + $0x8] sm:$0xff]
      %v3585 = vld [vmem:[%s3582 + $0x10] sm:$0xff]
      %v3586 = vld [vmem:[%s3582 + $0x18] sm:$0xff]
      %v3587 = vld [vmem:[%s3582 + $0x20] sm:$0xff]
      %v3588 = vld [vmem:[%s3582 + $0x28] sm:$0xff]
      %v3589 = vld [vmem:[%s3582 + $0x30] sm:$0xff]
      %v3590 = vld [vmem:[%s3582 + $0x38] sm:$0xff]
      %v3592 = vsel %vm231, %v3574, 0
      %v3595 = vsel %vm231, %v3575, 0
      %v3598 = vsel %vm231, %v3576, 0
      %v3601 = vsel %vm231, %v3577, 0
      %v3604 = vsel %vm231, %v3578, 0
      %v3607 = vsel %vm231, %v3579, 0
      %v3610 = vsel %vm231, %v3580, 0
      %v3613 = vsel %vm231, %v3581, 0
      %3615 = vmatprep.subr.mxu0 0.0
      %3616 = vmatpush1.msra.mxu0 %v3583
      %3617 = vmatprep.subr.mxu0 0.0
      %3618 = vmatpush1.msra.mxu0 %v3584
      %3619 = vmatprep.subr.mxu0 0.0
      %3620 = vmatpush1.msra.mxu0 %v3585
      %3621 = vmatprep.subr.mxu0 0.0
      %3622 = vmatpush1.msra.mxu0 %v3586
      %3623 = vmatprep.subr.mxu0 0.0
      %3624 = vmatpush1.msra.mxu0 %v3587
      %3625 = vmatprep.subr.mxu0 0.0
      %3626 = vmatpush1.msra.mxu0 %v3588
      %3627 = vmatprep.subr.mxu0 0.0
      %3628 = vmatpush1.msra.mxu0 %v3589
      %3629 = vmatprep.subr.mxu0 0.0
      %3630 = vmatpush1.msra.mxu0 %v3590
      %3631 = vmatprep.subr.mxu0 0.0
      %3632 = vmatpush1.msra.mxu0 0.0
      %3633 = vmatprep.subr.mxu0 0.0
      %3634 = vmatpush1.msra.mxu0 0.0
      %3635 = vmatprep.subr.mxu0 0.0
      %3636 = vmatpush1.msra.mxu0 0.0
      %3637 = vmatprep.subr.mxu0 0.0
      %3638 = vmatpush1.msra.mxu0 0.0
      %3639 = vmatprep.subr.mxu0 0.0
      %3640 = vmatpush1.msra.mxu0 0.0
      %3641 = vmatprep.subr.mxu0 0.0
      %3642 = vmatpush1.msra.mxu0 0.0
      %3643 = vmatprep.subr.mxu0 0.0
      %3644 = vmatpush1.msra.mxu0 0.0
      %3645 = vmatprep.subr.mxu0 0.0
      %3646 = vmatpush1.msra.mxu0 0.0
      %3647 = vmatprep.subr.mxu0 0.0
      %3648 = vmatpush1.msra.mxu0 0.0
      %3649 = vmatprep.subr.mxu0 0.0
      %3650 = vmatpush1.msra.mxu0 0.0
      %3651 = vmatprep.subr.mxu0 0.0
      %3652 = vmatpush1.msra.mxu0 0.0
      %3653 = vmatprep.subr.mxu0 0.0
      %3654 = vmatpush1.msra.mxu0 0.0
      %3655 = vmatprep.subr.mxu0 0.0
      %3656 = vmatpush1.msra.mxu0 0.0
      %3657 = vmatprep.subr.mxu0 0.0
      %3658 = vmatpush1.msra.mxu0 0.0
      %3659 = vmatprep.subr.mxu0 0.0
      %3660 = vmatpush1.msra.mxu0 0.0
      %3661 = vmatprep.subr.mxu0 0.0
      %3662 = vmatpush1.msra.mxu0 0.0
      %3663 = vmatprep.subr.mxu0 0.0
      %3664 = vmatpush1.msra.mxu0 0.0
      %3665 = vmatprep.subr.mxu0 0.0
      %3666 = vmatpush1.msra.mxu0 0.0
      %3667 = vmatprep.subr.mxu0 0.0
      %3668 = vmatpush1.msra.mxu0 0.0
      %3669 = vmatprep.subr.mxu0 0.0
      %3670 = vmatpush1.msra.mxu0 0.0
      %3671 = vmatprep.subr.mxu0 0.0
      %3672 = vmatpush1.msra.mxu0 0.0
      %3673 = vmatprep.subr.mxu0 0.0
      %3674 = vmatpush1.msra.mxu0 0.0
      %3675 = vmatprep.subr.mxu0 0.0
      %3676 = vmatpush1.msra.mxu0 0.0
      %3677 = vmatprep.subr.mxu0 0.0
      %3678 = vmatpush1.msra.mxu0 0.0
      %3679 = vmatprep.mubr.f32.mxu0 0.0
      %3680 = vmatmul.mubr.f32.gmra.mrb[0].mxu0 %v3592
      %v3681 = vpop.f32.mrb[0].mxu0
      %v3682 = vadd.f32 0.0, %v3681
      %v3683 = vpop.f32.mrb[0].mxu0
      %3684 = vmatprep.mubr.f32.mxu0 0.0
      %3685 = vmatmul.mubr.f32.gmra.mrb[0].mxu0 %v3595
      %v3686 = vpop.f32.mrb[0].mxu0
      %v3687 = vadd.f32 0.0, %v3686
      %v3688 = vpop.f32.mrb[0].mxu0
      %3689 = vmatprep.mubr.f32.mxu0 0.0
      %3690 = vmatmul.mubr.f32.gmra.mrb[0].mxu0 %v3598
      %v3691 = vpop.f32.mrb[0].mxu0
      %v3692 = vadd.f32 0.0, %v3691
      %v3693 = vpop.f32.mrb[0].mxu0
      %3694 = vmatprep.mubr.f32.mxu0 0.0
      %3695 = vmatmul.mubr.f32.gmra.mrb[0].mxu0 %v3601
      %v3696 = vpop.f32.mrb[0].mxu0
      %v3697 = vadd.f32 0.0, %v3696
      %v3698 = vpop.f32.mrb[0].mxu0
      %3699 = vmatprep.mubr.f32.mxu0 0.0
      %3700 = vmatmul.mubr.f32.gmra.mrb[0].mxu0 %v3604
      %v3701 = vpop.f32.mrb[0].mxu0
      %v3702 = vadd.f32 0.0, %v3701
      %v3703 = vpop.f32.mrb[0].mxu0
      %3704 = vmatprep.mubr.f32.mxu0 0.0
      %3705 = vmatmul.mubr.f32.gmra.mrb[0].mxu0 %v3607
      %v3706 = vpop.f32.mrb[0].mxu0
      %v3707 = vadd.f32 0.0, %v3706
      %v3708 = vpop.f32.mrb[0].mxu0
      %3709 = vmatprep.mubr.f32.mxu0 0.0
      %3710 = vmatmul.mubr.f32.gmra.mrb[0].mxu0 %v3610
      %v3711 = vpop.f32.mrb[0].mxu0
      %v3712 = vadd.f32 0.0, %v3711
      %v3713 = vpop.f32.mrb[0].mxu0
      %3714 = vmatprep.mubr.f32.mxu0 0.0
      %3715 = vmatmul.mubr.f32.gmra.mrb[0].mxu0 %v3613
      %v3716 = vpop.f32.mrb[0].mxu0
      %v3717 = vadd.f32 0.0, %v3716
      %v3718 = vpop.f32.mrb[0].mxu0
      %3719 = vdwg.mxu0
      %v3720 = vadd.f32 %v3566, %v3682
      %v3721 = vadd.f32 %v3567, %v3687
      %v3722 = vadd.f32 %v3568, %v3692
      %v3723 = vadd.f32 %v3569, %v3697
      %v3724 = vadd.f32 %v3570, %v3702
      %v3725 = vadd.f32 %v3571, %v3707
      %v3726 = vadd.f32 %v3572, %v3712
      %v3727 = vadd.f32 %v3573, %v3717
      %v3728 = vld [vmem:[%s3265 + $0x3] sm:$0xff]
      %v3729 = vld [vmem:[%s3265 + $0x13] sm:$0xff]
      %v3730 = vld [vmem:[%s3265 + $0x23] sm:$0xff]
      %v3731 = vld [vmem:[%s3265 + $0x33] sm:$0xff]
      %v3732 = vld [vmem:[%s3265 + $0x43] sm:$0xff]
      %v3733 = vld [vmem:[%s3265 + $0x53] sm:$0xff]
      %v3734 = vld [vmem:[%s3265 + $0x63] sm:$0xff]
      %v3735 = vld [vmem:[%s3265 + $0x73] sm:$0xff]
      %s3736 = scalar_lea.vmem %s1, 1472
      %v3737 = vld [vmem:[%s3736] sm:$0xff]
      %v3738 = vld [vmem:[%s3736 + $0x8] sm:$0xff]
      %v3739 = vld [vmem:[%s3736 + $0x10] sm:$0xff]
      %v3740 = vld [vmem:[%s3736 + $0x18] sm:$0xff]
      %v3741 = vld [vmem:[%s3736 + $0x20] sm:$0xff]
      %v3742 = vld [vmem:[%s3736 + $0x28] sm:$0xff]
      %v3743 = vld [vmem:[%s3736 + $0x30] sm:$0xff]
      %v3744 = vld [vmem:[%s3736 + $0x38] sm:$0xff]
      %v3746 = vsel %vm231, %v3728, 0
      %v3749 = vsel %vm231, %v3729, 0
      %v3752 = vsel %vm231, %v3730, 0
      %v3755 = vsel %vm231, %v3731, 0
      %v3758 = vsel %vm231, %v3732, 0
      %v3761 = vsel %vm231, %v3733, 0
      %v3764 = vsel %vm231, %v3734, 0
      %v3767 = vsel %vm231, %v3735, 0
      %3769 = vmatprep.subr.mxu0 0.0
      %3770 = vmatpush1.msra.mxu0 %v3737
      %3771 = vmatprep.subr.mxu0 0.0
      %3772 = vmatpush1.msra.mxu0 %v3738
      %3773 = vmatprep.subr.mxu0 0.0
      %3774 = vmatpush1.msra.mxu0 %v3739
      %3775 = vmatprep.subr.mxu0 0.0
      %3776 = vmatpush1.msra.mxu0 %v3740
      %3777 = vmatprep.subr.mxu0 0.0
      %3778 = vmatpush1.msra.mxu0 %v3741
      %3779 = vmatprep.subr.mxu0 0.0
      %3780 = vmatpush1.msra.mxu0 %v3742
      %3781 = vmatprep.subr.mxu0 0.0
      %3782 = vmatpush1.msra.mxu0 %v3743
      %3783 = vmatprep.subr.mxu0 0.0
      %3784 = vmatpush1.msra.mxu0 %v3744
      %3785 = vmatprep.subr.mxu0 0.0
      %3786 = vmatpush1.msra.mxu0 0.0
      %3787 = vmatprep.subr.mxu0 0.0
      %3788 = vmatpush1.msra.mxu0 0.0
      %3789 = vmatprep.subr.mxu0 0.0
      %3790 = vmatpush1.msra.mxu0 0.0
      %3791 = vmatprep.subr.mxu0 0.0
      %3792 = vmatpush1.msra.mxu0 0.0
      %3793 = vmatprep.subr.mxu0 0.0
      %3794 = vmatpush1.msra.mxu0 0.0
      %3795 = vmatprep.subr.mxu0 0.0
      %3796 = vmatpush1.msra.mxu0 0.0
      %3797 = vmatprep.subr.mxu0 0.0
      %3798 = vmatpush1.msra.mxu0 0.0
      %3799 = vmatprep.subr.mxu0 0.0
      %3800 = vmatpush1.msra.mxu0 0.0
      %3801 = vmatprep.subr.mxu0 0.0
      %3802 = vmatpush1.msra.mxu0 0.0
      %3803 = vmatprep.subr.mxu0 0.0
      %3804 = vmatpush1.msra.mxu0 0.0
      %3805 = vmatprep.subr.mxu0 0.0
      %3806 = vmatpush1.msra.mxu0 0.0
      %3807 = vmatprep.subr.mxu0 0.0
      %3808 = vmatpush1.msra.mxu0 0.0
      %3809 = vmatprep.subr.mxu0 0.0
      %3810 = vmatpush1.msra.mxu0 0.0
      %3811 = vmatprep.subr.mxu0 0.0
      %3812 = vmatpush1.msra.mxu0 0.0
      %3813 = vmatprep.subr.mxu0 0.0
      %3814 = vmatpush1.msra.mxu0 0.0
      %3815 = vmatprep.subr.mxu0 0.0
      %3816 = vmatpush1.msra.mxu0 0.0
      %3817 = vmatprep.subr.mxu0 0.0
      %3818 = vmatpush1.msra.mxu0 0.0
      %3819 = vmatprep.subr.mxu0 0.0
      %3820 = vmatpush1.msra.mxu0 0.0
      %3821 = vmatprep.subr.mxu0 0.0
      %3822 = vmatpush1.msra.mxu0 0.0
      %3823 = vmatprep.subr.mxu0 0.0
      %3824 = vmatpush1.msra.mxu0 0.0
      %3825 = vmatprep.subr.mxu0 0.0
      %3826 = vmatpush1.msra.mxu0 0.0
      %3827 = vmatprep.subr.mxu0 0.0
      %3828 = vmatpush1.msra.mxu0 0.0
      %3829 = vmatprep.subr.mxu0 0.0
      %3830 = vmatpush1.msra.mxu0 0.0
      %3831 = vmatprep.subr.mxu0 0.0
      %3832 = vmatpush1.msra.mxu0 0.0
      %3833 = vmatprep.mubr.f32.mxu0 0.0
      %3834 = vmatmul.mubr.f32.gmra.mrb[0].mxu0 %v3746
      %v3835 = vpop.f32.mrb[0].mxu0
      %v3836 = vadd.f32 0.0, %v3835
      %v3837 = vpop.f32.mrb[0].mxu0
      %3838 = vmatprep.mubr.f32.mxu0 0.0
      %3839 = vmatmul.mubr.f32.gmra.mrb[0].mxu0 %v3749
      %v3840 = vpop.f32.mrb[0].mxu0
      %v3841 = vadd.f32 0.0, %v3840
      %v3842 = vpop.f32.mrb[0].mxu0
      %3843 = vmatprep.mubr.f32.mxu0 0.0
      %3844 = vmatmul.mubr.f32.gmra.mrb[0].mxu0 %v3752
      %v3845 = vpop.f32.mrb[0].mxu0
      %v3846 = vadd.f32 0.0, %v3845
      %v3847 = vpop.f32.mrb[0].mxu0
      %3848 = vmatprep.mubr.f32.mxu0 0.0
      %3849 = vmatmul.mubr.f32.gmra.mrb[0].mxu0 %v3755
      %v3850 = vpop.f32.mrb[0].mxu0
      %v3851 = vadd.f32 0.0, %v3850
      %v3852 = vpop.f32.mrb[0].mxu0
      %3853 = vmatprep.mubr.f32.mxu0 0.0
      %3854 = vmatmul.mubr.f32.gmra.mrb[0].mxu0 %v3758
      %v3855 = vpop.f32.mrb[0].mxu0
      %v3856 = vadd.f32 0.0, %v3855
      %v3857 = vpop.f32.mrb[0].mxu0
      %3858 = vmatprep.mubr.f32.mxu0 0.0
      %3859 = vmatmul.mubr.f32.gmra.mrb[0].mxu0 %v3761
      %v3860 = vpop.f32.mrb[0].mxu0
      %v3861 = vadd.f32 0.0, %v3860
      %v3862 = vpop.f32.mrb[0].mxu0
      %3863 = vmatprep.mubr.f32.mxu0 0.0
      %3864 = vmatmul.mubr.f32.gmra.mrb[0].mxu0 %v3764
      %v3865 = vpop.f32.mrb[0].mxu0
      %v3866 = vadd.f32 0.0, %v3865
      %v3867 = vpop.f32.mrb[0].mxu0
      %3868 = vmatprep.mubr.f32.mxu0 0.0
      %3869 = vmatmul.mubr.f32.gmra.mrb[0].mxu0 %v3767
      %v3870 = vpop.f32.mrb[0].mxu0
      %v3871 = vadd.f32 0.0, %v3870
      %v3872 = vpop.f32.mrb[0].mxu0
      %3873 = vdwg.mxu0
      %v3874 = vadd.f32 %v3720, %v3836
      %v3875 = vadd.f32 %v3721, %v3841
      %v3876 = vadd.f32 %v3722, %v3846
      %v3877 = vadd.f32 %v3723, %v3851
      %v3878 = vadd.f32 %v3724, %v3856
      %v3879 = vadd.f32 %v3725, %v3861
      %v3880 = vadd.f32 %v3726, %v3866
      %v3881 = vadd.f32 %v3727, %v3871
      %v3882 = vld [vmem:[%s3265 + $0x4] sm:$0xff]
      %v3883 = vld [vmem:[%s3265 + $0x14] sm:$0xff]
      %v3884 = vld [vmem:[%s3265 + $0x24] sm:$0xff]
      %v3885 = vld [vmem:[%s3265 + $0x34] sm:$0xff]
      %v3886 = vld [vmem:[%s3265 + $0x44] sm:$0xff]
      %v3887 = vld [vmem:[%s3265 + $0x54] sm:$0xff]
      %v3888 = vld [vmem:[%s3265 + $0x64] sm:$0xff]
      %v3889 = vld [vmem:[%s3265 + $0x74] sm:$0xff]
      %s3890 = scalar_lea.vmem %s1, 1536
      %v3891 = vld [vmem:[%s3890] sm:$0xff]
      %v3892 = vld [vmem:[%s3890 + $0x8] sm:$0xff]
      %v3893 = vld [vmem:[%s3890 + $0x10] sm:$0xff]
      %v3894 = vld [vmem:[%s3890 + $0x18] sm:$0xff]
      %v3895 = vld [vmem:[%s3890 + $0x20] sm:$0xff]
      %v3896 = vld [vmem:[%s3890 + $0x28] sm:$0xff]
      %v3897 = vld [vmem:[%s3890 + $0x30] sm:$0xff]
      %v3898 = vld [vmem:[%s3890 + $0x38] sm:$0xff]
      %v3900 = vsel %vm231, %v3882, 0
      %v3903 = vsel %vm231, %v3883, 0
      %v3906 = vsel %vm231, %v3884, 0
      %v3909 = vsel %vm231, %v3885, 0
      %v3912 = vsel %vm231, %v3886, 0
      %v3915 = vsel %vm231, %v3887, 0
      %v3918 = vsel %vm231, %v3888, 0
      %v3921 = vsel %vm231, %v3889, 0
      %3923 = vmatprep.subr.mxu0 0.0
      %3924 = vmatpush1.msra.mxu0 %v3891
      %3925 = vmatprep.subr.mxu0 0.0
      %3926 = vmatpush1.msra.mxu0 %v3892
      %3927 = vmatprep.subr.mxu0 0.0
      %3928 = vmatpush1.msra.mxu0 %v3893
      %3929 = vmatprep.subr.mxu0 0.0
      %3930 = vmatpush1.msra.mxu0 %v3894
      %3931 = vmatprep.subr.mxu0 0.0
      %3932 = vmatpush1.msra.mxu0 %v3895
      %3933 = vmatprep.subr.mxu0 0.0
      %3934 = vmatpush1.msra.mxu0 %v3896
      %3935 = vmatprep.subr.mxu0 0.0
      %3936 = vmatpush1.msra.mxu0 %v3897
      %3937 = vmatprep.subr.mxu0 0.0
      %3938 = vmatpush1.msra.mxu0 %v3898
      %3939 = vmatprep.subr.mxu0 0.0
      %3940 = vmatpush1.msra.mxu0 0.0
      %3941 = vmatprep.subr.mxu0 0.0
      %3942 = vmatpush1.msra.mxu0 0.0
      %3943 = vmatprep.subr.mxu0 0.0
      %3944 = vmatpush1.msra.mxu0 0.0
      %3945 = vmatprep.subr.mxu0 0.0
      %3946 = vmatpush1.msra.mxu0 0.0
      %3947 = vmatprep.subr.mxu0 0.0
      %3948 = vmatpush1.msra.mxu0 0.0
      %3949 = vmatprep.subr.mxu0 0.0
      %3950 = vmatpush1.msra.mxu0 0.0
      %3951 = vmatprep.subr.mxu0 0.0
      %3952 = vmatpush1.msra.mxu0 0.0
      %3953 = vmatprep.subr.mxu0 0.0
      %3954 = vmatpush1.msra.mxu0 0.0
      %3955 = vmatprep.subr.mxu0 0.0
      %3956 = vmatpush1.msra.mxu0 0.0
      %3957 = vmatprep.subr.mxu0 0.0
      %3958 = vmatpush1.msra.mxu0 0.0
      %3959 = vmatprep.subr.mxu0 0.0
      %3960 = vmatpush1.msra.mxu0 0.0
      %3961 = vmatprep.subr.mxu0 0.0
      %3962 = vmatpush1.msra.mxu0 0.0
      %3963 = vmatprep.subr.mxu0 0.0
      %3964 = vmatpush1.msra.mxu0 0.0
      %3965 = vmatprep.subr.mxu0 0.0
      %3966 = vmatpush1.msra.mxu0 0.0
      %3967 = vmatprep.subr.mxu0 0.0
      %3968 = vmatpush1.msra.mxu0 0.0
      %3969 = vmatprep.subr.mxu0 0.0
      %3970 = vmatpush1.msra.mxu0 0.0
      %3971 = vmatprep.subr.mxu0 0.0
      %3972 = vmatpush1.msra.mxu0 0.0
      %3973 = vmatprep.subr.mxu0 0.0
      %3974 = vmatpush1.msra.mxu0 0.0
      %3975 = vmatprep.subr.mxu0 0.0
      %3976 = vmatpush1.msra.mxu0 0.0
      %3977 = vmatprep.subr.mxu0 0.0
      %3978 = vmatpush1.msra.mxu0 0.0
      %3979 = vmatprep.subr.mxu0 0.0
      %3980 = vmatpush1.msra.mxu0 0.0
      %3981 = vmatprep.subr.mxu0 0.0
      %3982 = vmatpush1.msra.mxu0 0.0
      %3983 = vmatprep.subr.mxu0 0.0
      %3984 = vmatpush1.msra.mxu0 0.0
      %3985 = vmatprep.subr.mxu0 0.0
      %3986 = vmatpush1.msra.mxu0 0.0
      %3987 = vmatprep.mubr.f32.mxu0 0.0
      %3988 = vmatmul.mubr.f32.gmra.mrb[0].mxu0 %v3900
      %v3989 = vpop.f32.mrb[0].mxu0
      %v3990 = vadd.f32 0.0, %v3989
      %v3991 = vpop.f32.mrb[0].mxu0
      %3992 = vmatprep.mubr.f32.mxu0 0.0
      %3993 = vmatmul.mubr.f32.gmra.mrb[0].mxu0 %v3903
      %v3994 = vpop.f32.mrb[0].mxu0
      %v3995 = vadd.f32 0.0, %v3994
      %v3996 = vpop.f32.mrb[0].mxu0
      %3997 = vmatprep.mubr.f32.mxu0 0.0
      %3998 = vmatmul.mubr.f32.gmra.mrb[0].mxu0 %v3906
      %v3999 = vpop.f32.mrb[0].mxu0
      %v4000 = vadd.f32 0.0, %v3999
      %v4001 = vpop.f32.mrb[0].mxu0
      %4002 = vmatprep.mubr.f32.mxu0 0.0
      %4003 = vmatmul.mubr.f32.gmra.mrb[0].mxu0 %v3909
      %v4004 = vpop.f32.mrb[0].mxu0
      %v4005 = vadd.f32 0.0, %v4004
      %v4006 = vpop.f32.mrb[0].mxu0
      %4007 = vmatprep.mubr.f32.mxu0 0.0
      %4008 = vmatmul.mubr.f32.gmra.mrb[0].mxu0 %v3912
      %v4009 = vpop.f32.mrb[0].mxu0
      %v4010 = vadd.f32 0.0, %v4009
      %v4011 = vpop.f32.mrb[0].mxu0
      %4012 = vmatprep.mubr.f32.mxu0 0.0
      %4013 = vmatmul.mubr.f32.gmra.mrb[0].mxu0 %v3915
      %v4014 = vpop.f32.mrb[0].mxu0
      %v4015 = vadd.f32 0.0, %v4014
      %v4016 = vpop.f32.mrb[0].mxu0
      %4017 = vmatprep.mubr.f32.mxu0 0.0
      %4018 = vmatmul.mubr.f32.gmra.mrb[0].mxu0 %v3918
      %v4019 = vpop.f32.mrb[0].mxu0
      %v4020 = vadd.f32 0.0, %v4019
      %v4021 = vpop.f32.mrb[0].mxu0
      %4022 = vmatprep.mubr.f32.mxu0 0.0
      %4023 = vmatmul.mubr.f32.gmra.mrb[0].mxu0 %v3921
      %v4024 = vpop.f32.mrb[0].mxu0
      %v4025 = vadd.f32 0.0, %v4024
      %v4026 = vpop.f32.mrb[0].mxu0
      %4027 = vdwg.mxu0
      %v4028 = vadd.f32 %v3874, %v3990
      %v4029 = vadd.f32 %v3875, %v3995
      %v4030 = vadd.f32 %v3876, %v4000
      %v4031 = vadd.f32 %v3877, %v4005
      %v4032 = vadd.f32 %v3878, %v4010
      %v4033 = vadd.f32 %v3879, %v4015
      %v4034 = vadd.f32 %v3880, %v4020
      %v4035 = vadd.f32 %v3881, %v4025
      %v4036 = vld [vmem:[%s2] sm:$0xff]
      %v4037 = vld [vmem:[%s2 + $0x8] sm:$0xff]
      %v4039 = vsel %vm231, %v4036, 0
      %v4042 = vsel %vm231, %v4037, 0
      %4044 = vmatprep.subr.mxu0 0.0
      %4045 = vmatpush1.msra.mxu0 %v4028
      %4046 = vmatprep.subr.mxu0 0.0
      %4047 = vmatpush1.msra.mxu0 %v4029
      %4048 = vmatprep.subr.mxu0 0.0
      %4049 = vmatpush1.msra.mxu0 %v4030
      %4050 = vmatprep.subr.mxu0 0.0
      %4051 = vmatpush1.msra.mxu0 %v4031
      %4052 = vmatprep.subr.mxu0 0.0
      %4053 = vmatpush1.msra.mxu0 %v4032
      %4054 = vmatprep.subr.mxu0 0.0
      %4055 = vmatpush1.msra.mxu0 %v4033
      %4056 = vmatprep.subr.mxu0 0.0
      %4057 = vmatpush1.msra.mxu0 %v4034
      %4058 = vmatprep.subr.mxu0 0.0
      %4059 = vmatpush1.msra.mxu0 %v4035
      %4060 = vmatprep.subr.mxu0 0.0
      %4061 = vmatpush1.msra.mxu0 0.0
      %4062 = vmatprep.subr.mxu0 0.0
      %4063 = vmatpush1.msra.mxu0 0.0
      %4064 = vmatprep.subr.mxu0 0.0
      %4065 = vmatpush1.msra.mxu0 0.0
      %4066 = vmatprep.subr.mxu0 0.0
      %4067 = vmatpush1.msra.mxu0 0.0
      %4068 = vmatprep.subr.mxu0 0.0
      %4069 = vmatpush1.msra.mxu0 0.0
      %4070 = vmatprep.subr.mxu0 0.0
      %4071 = vmatpush1.msra.mxu0 0.0
      %4072 = vmatprep.subr.mxu0 0.0
      %4073 = vmatpush1.msra.mxu0 0.0
      %4074 = vmatprep.subr.mxu0 0.0
      %4075 = vmatpush1.msra.mxu0 0.0
      %4076 = vmatprep.subr.mxu0 0.0
      %4077 = vmatpush1.msra.mxu0 0.0
      %4078 = vmatprep.subr.mxu0 0.0
      %4079 = vmatpush1.msra.mxu0 0.0
      %4080 = vmatprep.subr.mxu0 0.0
      %4081 = vmatpush1.msra.mxu0 0.0
      %4082 = vmatprep.subr.mxu0 0.0
      %4083 = vmatpush1.msra.mxu0 0.0
      %4084 = vmatprep.subr.mxu0 0.0
      %4085 = vmatpush1.msra.mxu0 0.0
      %4086 = vmatprep.subr.mxu0 0.0
      %4087 = vmatpush1.msra.mxu0 0.0
      %4088 = vmatprep.subr.mxu0 0.0
      %4089 = vmatpush1.msra.mxu0 0.0
      %4090 = vmatprep.subr.mxu0 0.0
      %4091 = vmatpush1.msra.mxu0 0.0
      %4092 = vmatprep.subr.mxu0 0.0
      %4093 = vmatpush1.msra.mxu0 0.0
      %4094 = vmatprep.subr.mxu0 0.0
      %4095 = vmatpush1.msra.mxu0 0.0
      %4096 = vmatprep.subr.mxu0 0.0
      %4097 = vmatpush1.msra.mxu0 0.0
      %4098 = vmatprep.subr.mxu0 0.0
      %4099 = vmatpush1.msra.mxu0 0.0
      %4100 = vmatprep.subr.mxu0 0.0
      %4101 = vmatpush1.msra.mxu0 0.0
      %4102 = vmatprep.subr.mxu0 0.0
      %4103 = vmatpush1.msra.mxu0 0.0
      %4104 = vmatprep.subr.mxu0 0.0
      %4105 = vmatpush1.msra.mxu0 0.0
      %4106 = vmatprep.subr.mxu0 0.0
      %4107 = vmatpush1.msra.mxu0 0.0
      %4108 = vmatprep.mubr.f32.mxu0 0.0
      %4109 = vmatmul.mubr.f32.gmra.mrb[0].mxu0 %v4039
      %v4110 = vpop.f32.mrb[0].mxu0
      %v4111 = vadd.f32 0.0, %v4110
      %v4112 = vpop.f32.mrb[0].mxu0
      %4113 = vmatprep.mubr.f32.mxu0 0.0
      %4114 = vmatmul.mubr.f32.gmra.mrb[0].mxu0 %v4042
      %v4115 = vpop.f32.mrb[0].mxu0
      %v4116 = vadd.f32 0.0, %v4115
      %v4117 = vpop.f32.mrb[0].mxu0
      %4118 = vdwg.mxu0
      %s4119 = scalar_lea.vmem %s2, 16
      %v4120 = vld [vmem:[%s4119] sm:$0xff]
      %v4121 = vld [vmem:[%s4119 + $0x8] sm:$0xff]
      %v4123 = vsel %vm231, %v4120, 0
      %v4126 = vsel %vm231, %v4121, 0
      %4128 = vmatprep.subr.mxu0 0.0
      %4129 = vmatpush1.msra.mxu0 %v4028
      %4130 = vmatprep.subr.mxu0 0.0
      %4131 = vmatpush1.msra.mxu0 %v4029
      %4132 = vmatprep.subr.mxu0 0.0
      %4133 = vmatpush1.msra.mxu0 %v4030
      %4134 = vmatprep.subr.mxu0 0.0
      %4135 = vmatpush1.msra.mxu0 %v4031
      %4136 = vmatprep.subr.mxu0 0.0
      %4137 = vmatpush1.msra.mxu0 %v4032
      %4138 = vmatprep.subr.mxu0 0.0
      %4139 = vmatpush1.msra.mxu0 %v4033
      %4140 = vmatprep.subr.mxu0 0.0
      %4141 = vmatpush1.msra.mxu0 %v4034
      %4142 = vmatprep.subr.mxu0 0.0
      %4143 = vmatpush1.msra.mxu0 %v4035
      %4144 = vmatprep.subr.mxu0 0.0
      %4145 = vmatpush1.msra.mxu0 0.0
      %4146 = vmatprep.subr.mxu0 0.0
      %4147 = vmatpush1.msra.mxu0 0.0
      %4148 = vmatprep.subr.mxu0 0.0
      %4149 = vmatpush1.msra.mxu0 0.0
      %4150 = vmatprep.subr.mxu0 0.0
      %4151 = vmatpush1.msra.mxu0 0.0
      %4152 = vmatprep.subr.mxu0 0.0
      %4153 = vmatpush1.msra.mxu0 0.0
      %4154 = vmatprep.subr.mxu0 0.0
      %4155 = vmatpush1.msra.mxu0 0.0
      %4156 = vmatprep.subr.mxu0 0.0
      %4157 = vmatpush1.msra.mxu0 0.0
      %4158 = vmatprep.subr.mxu0 0.0
      %4159 = vmatpush1.msra.mxu0 0.0
      %4160 = vmatprep.subr.mxu0 0.0
      %4161 = vmatpush1.msra.mxu0 0.0
      %4162 = vmatprep.subr.mxu0 0.0
      %4163 = vmatpush1.msra.mxu0 0.0
      %4164 = vmatprep.subr.mxu0 0.0
      %4165 = vmatpush1.msra.mxu0 0.0
      %4166 = vmatprep.subr.mxu0 0.0
      %4167 = vmatpush1.msra.mxu0 0.0
      %4168 = vmatprep.subr.mxu0 0.0
      %4169 = vmatpush1.msra.mxu0 0.0
      %4170 = vmatprep.subr.mxu0 0.0
      %4171 = vmatpush1.msra.mxu0 0.0
      %4172 = vmatprep.subr.mxu0 0.0
      %4173 = vmatpush1.msra.mxu0 0.0
      %4174 = vmatprep.subr.mxu0 0.0
      %4175 = vmatpush1.msra.mxu0 0.0
      %4176 = vmatprep.subr.mxu0 0.0
      %4177 = vmatpush1.msra.mxu0 0.0
      %4178 = vmatprep.subr.mxu0 0.0
      %4179 = vmatpush1.msra.mxu0 0.0
      %4180 = vmatprep.subr.mxu0 0.0
      %4181 = vmatpush1.msra.mxu0 0.0
      %4182 = vmatprep.subr.mxu0 0.0
      %4183 = vmatpush1.msra.mxu0 0.0
      %4184 = vmatprep.subr.mxu0 0.0
      %4185 = vmatpush1.msra.mxu0 0.0
      %4186 = vmatprep.subr.mxu0 0.0
      %4187 = vmatpush1.msra.mxu0 0.0
      %4188 = vmatprep.subr.mxu0 0.0
      %4189 = vmatpush1.msra.mxu0 0.0
      %4190 = vmatprep.subr.mxu0 0.0
      %4191 = vmatpush1.msra.mxu0 0.0
      %4192 = vmatprep.mubr.f32.mxu0 0.0
      %4193 = vmatmul.mubr.f32.gmra.mrb[0].mxu0 %v4123
      %v4194 = vpop.f32.mrb[0].mxu0
      %v4195 = vadd.f32 0.0, %v4194
      %v4196 = vpop.f32.mrb[0].mxu0
      %4197 = vmatprep.mubr.f32.mxu0 0.0
      %4198 = vmatmul.mubr.f32.gmra.mrb[0].mxu0 %v4126
      %v4199 = vpop.f32.mrb[0].mxu0
      %v4200 = vadd.f32 0.0, %v4199
      %v4201 = vpop.f32.mrb[0].mxu0
      %4202 = vdwg.mxu0
      %v4203 = vmax.f32 %v4111, %v4195
      %v4204 = vmax.f32 %v4116, %v4200
      %s4205 = scalar_lea.vmem %s2, 32
      %v4206 = vld [vmem:[%s4205] sm:$0xff]
      %v4207 = vld [vmem:[%s4205 + $0x8] sm:$0xff]
      %v4209 = vsel %vm231, %v4206, 0
      %v4212 = vsel %vm231, %v4207, 0
      %4214 = vmatprep.subr.mxu0 0.0
      %4215 = vmatpush1.msra.mxu0 %v4028
      %4216 = vmatprep.subr.mxu0 0.0
      %4217 = vmatpush1.msra.mxu0 %v4029
      %4218 = vmatprep.subr.mxu0 0.0
      %4219 = vmatpush1.msra.mxu0 %v4030
      %4220 = vmatprep.subr.mxu0 0.0
      %4221 = vmatpush1.msra.mxu0 %v4031
      %4222 = vmatprep.subr.mxu0 0.0
      %4223 = vmatpush1.msra.mxu0 %v4032
      %4224 = vmatprep.subr.mxu0 0.0
      %4225 = vmatpush1.msra.mxu0 %v4033
      %4226 = vmatprep.subr.mxu0 0.0
      %4227 = vmatpush1.msra.mxu0 %v4034
      %4228 = vmatprep.subr.mxu0 0.0
      %4229 = vmatpush1.msra.mxu0 %v4035
      %4230 = vmatprep.subr.mxu0 0.0
      %4231 = vmatpush1.msra.mxu0 0.0
      %4232 = vmatprep.subr.mxu0 0.0
      %4233 = vmatpush1.msra.mxu0 0.0
      %4234 = vmatprep.subr.mxu0 0.0
      %4235 = vmatpush1.msra.mxu0 0.0
      %4236 = vmatprep.subr.mxu0 0.0
      %4237 = vmatpush1.msra.mxu0 0.0
      %4238 = vmatprep.subr.mxu0 0.0
      %4239 = vmatpush1.msra.mxu0 0.0
      %4240 = vmatprep.subr.mxu0 0.0
      %4241 = vmatpush1.msra.mxu0 0.0
      %4242 = vmatprep.subr.mxu0 0.0
      %4243 = vmatpush1.msra.mxu0 0.0
      %4244 = vmatprep.subr.mxu0 0.0
      %4245 = vmatpush1.msra.mxu0 0.0
      %4246 = vmatprep.subr.mxu0 0.0
      %4247 = vmatpush1.msra.mxu0 0.0
      %4248 = vmatprep.subr.mxu0 0.0
      %4249 = vmatpush1.msra.mxu0 0.0
      %4250 = vmatprep.subr.mxu0 0.0
      %4251 = vmatpush1.msra.mxu0 0.0
      %4252 = vmatprep.subr.mxu0 0.0
      %4253 = vmatpush1.msra.mxu0 0.0
      %4254 = vmatprep.subr.mxu0 0.0
      %4255 = vmatpush1.msra.mxu0 0.0
      %4256 = vmatprep.subr.mxu0 0.0
      %4257 = vmatpush1.msra.mxu0 0.0
      %4258 = vmatprep.subr.mxu0 0.0
      %4259 = vmatpush1.msra.mxu0 0.0
      %4260 = vmatprep.subr.mxu0 0.0
      %4261 = vmatpush1.msra.mxu0 0.0
      %4262 = vmatprep.subr.mxu0 0.0
      %4263 = vmatpush1.msra.mxu0 0.0
      %4264 = vmatprep.subr.mxu0 0.0
      %4265 = vmatpush1.msra.mxu0 0.0
      %4266 = vmatprep.subr.mxu0 0.0
      %4267 = vmatpush1.msra.mxu0 0.0
      %4268 = vmatprep.subr.mxu0 0.0
      %4269 = vmatpush1.msra.mxu0 0.0
      %4270 = vmatprep.subr.mxu0 0.0
      %4271 = vmatpush1.msra.mxu0 0.0
      %4272 = vmatprep.subr.mxu0 0.0
      %4273 = vmatpush1.msra.mxu0 0.0
      %4274 = vmatprep.subr.mxu0 0.0
      %4275 = vmatpush1.msra.mxu0 0.0
      %4276 = vmatprep.subr.mxu0 0.0
      %4277 = vmatpush1.msra.mxu0 0.0
      %4278 = vmatprep.mubr.f32.mxu0 0.0
      %4279 = vmatmul.mubr.f32.gmra.mrb[0].mxu0 %v4209
      %v4280 = vpop.f32.mrb[0].mxu0
      %v4281 = vadd.f32 0.0, %v4280
      %v4282 = vpop.f32.mrb[0].mxu0
      %4283 = vmatprep.mubr.f32.mxu0 0.0
      %4284 = vmatmul.mubr.f32.gmra.mrb[0].mxu0 %v4212
      %v4285 = vpop.f32.mrb[0].mxu0
      %v4286 = vadd.f32 0.0, %v4285
      %v4287 = vpop.f32.mrb[0].mxu0
      %4288 = vdwg.mxu0
      %v4289 = vmax.f32 %v4203, %v4281
      %v4290 = vmax.f32 %v4204, %v4286
      %s4291 = scalar_lea.vmem %s2, 48
      %v4292 = vld [vmem:[%s4291] sm:$0xff]
      %v4293 = vld [vmem:[%s4291 + $0x8] sm:$0xff]
      %v4295 = vsel %vm231, %v4292, 0
      %v4298 = vsel %vm231, %v4293, 0
      %4300 = vmatprep.subr.mxu0 0.0
      %4301 = vmatpush1.msra.mxu0 %v4028
      %4302 = vmatprep.subr.mxu0 0.0
      %4303 = vmatpush1.msra.mxu0 %v4029
      %4304 = vmatprep.subr.mxu0 0.0
      %4305 = vmatpush1.msra.mxu0 %v4030
      %4306 = vmatprep.subr.mxu0 0.0
      %4307 = vmatpush1.msra.mxu0 %v4031
      %4308 = vmatprep.subr.mxu0 0.0
      %4309 = vmatpush1.msra.mxu0 %v4032
      %4310 = vmatprep.subr.mxu0 0.0
      %4311 = vmatpush1.msra.mxu0 %v4033
      %4312 = vmatprep.subr.mxu0 0.0
      %4313 = vmatpush1.msra.mxu0 %v4034
      %4314 = vmatprep.subr.mxu0 0.0
      %4315 = vmatpush1.msra.mxu0 %v4035
      %4316 = vmatprep.subr.mxu0 0.0
      %4317 = vmatpush1.msra.mxu0 0.0
      %4318 = vmatprep.subr.mxu0 0.0
      %4319 = vmatpush1.msra.mxu0 0.0
      %4320 = vmatprep.subr.mxu0 0.0
      %4321 = vmatpush1.msra.mxu0 0.0
      %4322 = vmatprep.subr.mxu0 0.0
      %4323 = vmatpush1.msra.mxu0 0.0
      %4324 = vmatprep.subr.mxu0 0.0
      %4325 = vmatpush1.msra.mxu0 0.0
      %4326 = vmatprep.subr.mxu0 0.0
      %4327 = vmatpush1.msra.mxu0 0.0
      %4328 = vmatprep.subr.mxu0 0.0
      %4329 = vmatpush1.msra.mxu0 0.0
      %4330 = vmatprep.subr.mxu0 0.0
      %4331 = vmatpush1.msra.mxu0 0.0
      %4332 = vmatprep.subr.mxu0 0.0
      %4333 = vmatpush1.msra.mxu0 0.0
      %4334 = vmatprep.subr.mxu0 0.0
      %4335 = vmatpush1.msra.mxu0 0.0
      %4336 = vmatprep.subr.mxu0 0.0
      %4337 = vmatpush1.msra.mxu0 0.0
      %4338 = vmatprep.subr.mxu0 0.0
      %4339 = vmatpush1.msra.mxu0 0.0
      %4340 = vmatprep.subr.mxu0 0.0
      %4341 = vmatpush1.msra.mxu0 0.0
      %4342 = vmatprep.subr.mxu0 0.0
      %4343 = vmatpush1.msra.mxu0 0.0
      %4344 = vmatprep.subr.mxu0 0.0
      %4345 = vmatpush1.msra.mxu0 0.0
      %4346 = vmatprep.subr.mxu0 0.0
      %4347 = vmatpush1.msra.mxu0 0.0
      %4348 = vmatprep.subr.mxu0 0.0
      %4349 = vmatpush1.msra.mxu0 0.0
      %4350 = vmatprep.subr.mxu0 0.0
      %4351 = vmatpush1.msra.mxu0 0.0
      %4352 = vmatprep.subr.mxu0 0.0
      %4353 = vmatpush1.msra.mxu0 0.0
      %4354 = vmatprep.subr.mxu0 0.0
      %4355 = vmatpush1.msra.mxu0 0.0
      %4356 = vmatprep.subr.mxu0 0.0
      %4357 = vmatpush1.msra.mxu0 0.0
      %4358 = vmatprep.subr.mxu0 0.0
      %4359 = vmatpush1.msra.mxu0 0.0
      %4360 = vmatprep.subr.mxu0 0.0
      %4361 = vmatpush1.msra.mxu0 0.0
      %4362 = vmatprep.subr.mxu0 0.0
      %4363 = vmatpush1.msra.mxu0 0.0
      %4364 = vmatprep.mubr.f32.mxu0 0.0
      %4365 = vmatmul.mubr.f32.gmra.mrb[0].mxu0 %v4295
      %v4366 = vpop.f32.mrb[0].mxu0
      %v4367 = vadd.f32 0.0, %v4366
      %v4368 = vpop.f32.mrb[0].mxu0
      %4369 = vmatprep.mubr.f32.mxu0 0.0
      %4370 = vmatmul.mubr.f32.gmra.mrb[0].mxu0 %v4298
      %v4371 = vpop.f32.mrb[0].mxu0
      %v4372 = vadd.f32 0.0, %v4371
      %v4373 = vpop.f32.mrb[0].mxu0
      %4374 = vdwg.mxu0
      %v4375 = vmax.f32 %v4289, %v4367
      %v4376 = vmax.f32 %v4290, %v4372
      %v4377 = vld [vmem:[%s3] sm:$0x1]
      %v4379 = vlaneseq
      %v4380 = vshrl.u32 %v4379, 7
      %v4381 = vsub.s32 0, %v4380
      %v4382 = vrot.slane %v4377, %v4381
      %v4384 = vadd.f32 %v4375, %v4382
      %v4385 = vadd.f32 %v4376, %v4382
      %v4386 = vmax.f32 %v4384, 0.0
      %v4387 = vmax.f32 %v4385, 0.0
      %v4388 = vpack.c.bf16 %v4387, %v4386
      %v4390 = vunpack.c.l.b16 %v4388
      %v4391 = vunpack.c.h.b16 %v4388
      %v4392 = vpack.c.b16 %v4390, %v4390
      %v4393 = vpack.c.b16 %v4391, %v4391
      %vm4396 = vcmask 519168
      %4397 = vst.msk [vmem:[%s197] sm:$0xf] %vm4396, %v4392
      %4398 = vst.msk [vmem:[%s197 + $0x4] sm:$0xf] %vm4396, %v4393
      %p4399 = scmp.lt.s32.totalorder %s15, 1
      %s4400 = scalar_select %p4399, %s15, 1
      %s4401 = smul.addr %s4400, 2
      %s4402 = smul.addr %s4401, 4
      %s4403 = scalar_lea.vmem %s4, %s4402
      // Predicated region
      $region37: #{mnist_conv_forward.4} parent=35 // pred_check
        %p4404 = pneg %p122
      $region38: #{mnist_conv_forward.4} parent=35 // pred_check_branch
        %4406 = sbr.rel (%p4404) target = $region40
      $region39: #{mnist_conv_forward.4} parent=35 // pred_region
        _
      $region40: #{mnist_conv_forward.4} parent=35 // pred_fallthru
        _
    $region36: #{mnist_conv_forward.4} parent=5 // pred_fallthru
      _
    %p4407 = scmp.le.s32.totalorder 2, %s10
    // Predicated region
    $region41: #{mnist_conv_forward.4} parent=5 // pred_check
      %p4408 = pneg %p4407
    $region42: #{mnist_conv_forward.4} parent=5 // pred_check_branch
      %4410 = sbr.rel (%p4408) target = $region44
    $region43: #{mnist_conv_forward.4} parent=5 // pred_region
      %s4411 = ssub.s32 %s10, 2
      // Predicated region
      $region45: #{mnist_conv_forward.4} parent=43 // pred_check
        %p4412 = pneg %p128
      $region46: #{mnist_conv_forward.4} parent=43 // pred_check_branch
        %4414 = sbr.rel (%p4412) target = $region48
      $region47: #{mnist_conv_forward.4} parent=43 // pred_region
        %p4415 = scmp.lt.s32.totalorder %s16, 1
        %s4416 = scalar_select %p4415, %s16, 1
        %s4417 = smul.addr %s4416, 2
        %s4418 = smul.addr %s4417, 4
        %s4419 = scalar_lea.vmem %s4, %s4418
      $region48: #{mnist_conv_forward.4} parent=43 // pred_fallthru
        _
    $region44: #{mnist_conv_forward.4} parent=5 // pred_fallthru
      _
  $region6: #{mnist_conv_forward.4} parent=0 // loop_footer
    %s14 = sadd.s32 1, %s10
  $region7: #{mnist_conv_forward.4} parent=0 // loop_footer_branch
    %9 = sbr.rel target = $region3
  $region8: #{mnist_conv_forward.4} parent=0 // loop_exit
    _

// kernel: mnist_conv_forward.5
$region0: #{mnist_conv_forward.5}
  #allocation0 [shape = 'u32[]', space=smem, size = 0x4, offset = 0x4, fixed_abs, tag = 'smem constant byte address 0x4 - core index']
  #allocation1 [shape = 'u32[144,128]{1,0:T(1,128)}', space=vmem, size = 0x12000, scoped, tag = 'internal scratch']
  %s0 = inlined_call_operand.vmem [shape: bf16[128,1024], index: 0, kind: input, shape index: {}]
  %s1 = inlined_call_operand.vmem [shape: bf16[1024,128], index: 1, kind: input, shape index: {}]
  %s2 = inlined_call_operand.vmem [shape: f32[1,128], index: 2, kind: input, shape index: {}]
  %s3 = inlined_call_operand.vmem [shape: bf16[128,128], index: 3, kind: input, shape index: {}]
  %s4 = inlined_call_operand.vmem [shape: f32[1,128], index: 4, kind: input, shape index: {}]
  %s5 = inlined_call_operand.vmem [shape: f32[128,128], index: 5, kind: output, shape index: {}]
  %s6 = sld [smem:[#allocation0]]
  $region30: #{mnist_conv_forward.5} parent=0
    _
  %s8 = ssub.s32 1, %s6
  %s9 = scalar_select 0, %s8, %s6
  // Predicated region
  $region2: #{mnist_conv_forward.5} parent=0 // pred_check
    _
  $region3: #{mnist_conv_forward.5} parent=0 // pred_check_branch
    %11 = sbr.rel (0) target = $region5
  $region4: #{mnist_conv_forward.5} parent=0 // pred_region
    _
  $region5: #{mnist_conv_forward.5} parent=0 // pred_fallthru
    _
  // Predicated region
  $region6: #{mnist_conv_forward.5} parent=0 // pred_check
    _
  $region7: #{mnist_conv_forward.5} parent=0 // pred_check_branch
    %13 = sbr.rel (0) target = $region9
  $region8: #{mnist_conv_forward.5} parent=0 // pred_region
    _
  $region9: #{mnist_conv_forward.5} parent=0 // pred_fallthru
    _
  // Predicated region
  $region10: #{mnist_conv_forward.5} parent=0 // pred_check
    _
  $region11: #{mnist_conv_forward.5} parent=0 // pred_check_branch
    %15 = sbr.rel (0) target = $region13
  $region12: #{mnist_conv_forward.5} parent=0 // pred_region
    _
  $region13: #{mnist_conv_forward.5} parent=0 // pred_fallthru
    _
  // Predicated region
  $region14: #{mnist_conv_forward.5} parent=0 // pred_check
    _
  $region15: #{mnist_conv_forward.5} parent=0 // pred_check_branch
    %17 = sbr.rel (0) target = $region17
  $region16: #{mnist_conv_forward.5} parent=0 // pred_region
    _
  $region17: #{mnist_conv_forward.5} parent=0 // pred_fallthru
    _
  // Predicated region
  $region18: #{mnist_conv_forward.5} parent=0 // pred_check
    _
  $region19: #{mnist_conv_forward.5} parent=0 // pred_check_branch
    %19 = sbr.rel (0) target = $region21
  $region20: #{mnist_conv_forward.5} parent=0 // pred_region
    _
  $region21: #{mnist_conv_forward.5} parent=0 // pred_fallthru
    _
  %v21 = vld [vmem:[%s0] sm:$0xff]
  %v22 = vld [vmem:[%s0 + $0x8] sm:$0xff]
  %v23 = vld [vmem:[%s0 + $0x10] sm:$0xff]
  %v24 = vld [vmem:[%s0 + $0x18] sm:$0xff]
  %v25 = vld [vmem:[%s0 + $0x20] sm:$0xff]
  %v26 = vld [vmem:[%s0 + $0x28] sm:$0xff]
  %v27 = vld [vmem:[%s0 + $0x30] sm:$0xff]
  %v28 = vld [vmem:[%s0 + $0x38] sm:$0xff]
  %v29 = vld [vmem:[%s0 + $0x40] sm:$0xff]
  %v30 = vld [vmem:[%s0 + $0x48] sm:$0xff]
  %v31 = vld [vmem:[%s0 + $0x50] sm:$0xff]
  %v32 = vld [vmem:[%s0 + $0x58] sm:$0xff]
  %v33 = vld [vmem:[%s0 + $0x60] sm:$0xff]
  %v34 = vld [vmem:[%s0 + $0x68] sm:$0xff]
  %v35 = vld [vmem:[%s0 + $0x70] sm:$0xff]
  %v36 = vld [vmem:[%s0 + $0x78] sm:$0xff]
  %v37 = vld [vmem:[%s0 + $0x80] sm:$0xff]
  %v38 = vld [vmem:[%s0 + $0x88] sm:$0xff]
  %v39 = vld [vmem:[%s0 + $0x90] sm:$0xff]
  %v40 = vld [vmem:[%s0 + $0x98] sm:$0xff]
  %v41 = vld [vmem:[%s0 + $0xa0] sm:$0xff]
  %v42 = vld [vmem:[%s0 + $0xa8] sm:$0xff]
  %v43 = vld [vmem:[%s0 + $0xb0] sm:$0xff]
  %v44 = vld [vmem:[%s0 + $0xb8] sm:$0xff]
  %v45 = vld [vmem:[%s0 + $0xc0] sm:$0xff]
  %v46 = vld [vmem:[%s0 + $0xc8] sm:$0xff]
  %v47 = vld [vmem:[%s0 + $0xd0] sm:$0xff]
  %v48 = vld [vmem:[%s0 + $0xd8] sm:$0xff]
  %v49 = vld [vmem:[%s0 + $0xe0] sm:$0xff]
  %v50 = vld [vmem:[%s0 + $0xe8] sm:$0xff]
  %v51 = vld [vmem:[%s0 + $0xf0] sm:$0xff]
  %v52 = vld [vmem:[%s0 + $0xf8] sm:$0xff]
  %v53 = vld [vmem:[%s0 + $0x100] sm:$0xff]
  %v54 = vld [vmem:[%s0 + $0x108] sm:$0xff]
  %v55 = vld [vmem:[%s0 + $0x110] sm:$0xff]
  %v56 = vld [vmem:[%s0 + $0x118] sm:$0xff]
  %v57 = vld [vmem:[%s0 + $0x120] sm:$0xff]
  %v58 = vld [vmem:[%s0 + $0x128] sm:$0xff]
  %v59 = vld [vmem:[%s0 + $0x130] sm:$0xff]
  %v60 = vld [vmem:[%s0 + $0x138] sm:$0xff]
  %v61 = vld [vmem:[%s0 + $0x140] sm:$0xff]
  %v62 = vld [vmem:[%s0 + $0x148] sm:$0xff]
  %v63 = vld [vmem:[%s0 + $0x150] sm:$0xff]
  %v64 = vld [vmem:[%s0 + $0x158] sm:$0xff]
  %v65 = vld [vmem:[%s0 + $0x160] sm:$0xff]
  %v66 = vld [vmem:[%s0 + $0x168] sm:$0xff]
  %v67 = vld [vmem:[%s0 + $0x170] sm:$0xff]
  %v68 = vld [vmem:[%s0 + $0x178] sm:$0xff]
  %v69 = vld [vmem:[%s0 + $0x180] sm:$0xff]
  %v70 = vld [vmem:[%s0 + $0x188] sm:$0xff]
  %v71 = vld [vmem:[%s0 + $0x190] sm:$0xff]
  %v72 = vld [vmem:[%s0 + $0x198] sm:$0xff]
  %v73 = vld [vmem:[%s0 + $0x1a0] sm:$0xff]
  %v74 = vld [vmem:[%s0 + $0x1a8] sm:$0xff]
  %v75 = vld [vmem:[%s0 + $0x1b0] sm:$0xff]
  %v76 = vld [vmem:[%s0 + $0x1b8] sm:$0xff]
  %v77 = vld [vmem:[%s0 + $0x1c0] sm:$0xff]
  %v78 = vld [vmem:[%s0 + $0x1c8] sm:$0xff]
  %v79 = vld [vmem:[%s0 + $0x1d0] sm:$0xff]
  %v80 = vld [vmem:[%s0 + $0x1d8] sm:$0xff]
  %v81 = vld [vmem:[%s0 + $0x1e0] sm:$0xff]
  %v82 = vld [vmem:[%s0 + $0x1e8] sm:$0xff]
  %v83 = vld [vmem:[%s0 + $0x1f0] sm:$0xff]
  %v84 = vld [vmem:[%s0 + $0x1f8] sm:$0xff]
  %v85 = vld [vmem:[%s1] sm:$0xf]
  %v86 = vld [vmem:[%s1 + $0x4] sm:$0xf]
  %v87 = vld [vmem:[%s1 + $0x8] sm:$0xf]
  %v88 = vld [vmem:[%s1 + $0xc] sm:$0xf]
  %v89 = vld [vmem:[%s1 + $0x10] sm:$0xf]
  %v90 = vld [vmem:[%s1 + $0x14] sm:$0xf]
  %v91 = vld [vmem:[%s1 + $0x18] sm:$0xf]
  %v92 = vld [vmem:[%s1 + $0x1c] sm:$0xf]
  %v93 = vld [vmem:[%s1 + $0x20] sm:$0xf]
  %v94 = vld [vmem:[%s1 + $0x24] sm:$0xf]
  %v95 = vld [vmem:[%s1 + $0x28] sm:$0xf]
  %v96 = vld [vmem:[%s1 + $0x2c] sm:$0xf]
  %v97 = vld [vmem:[%s1 + $0x30] sm:$0xf]
  %v98 = vld [vmem:[%s1 + $0x34] sm:$0xf]
  %v99 = vld [vmem:[%s1 + $0x38] sm:$0xf]
  %v100 = vld [vmem:[%s1 + $0x3c] sm:$0xf]
  %v101 = vld [vmem:[%s1 + $0x40] sm:$0xf]
  %v102 = vld [vmem:[%s1 + $0x44] sm:$0xf]
  %v103 = vld [vmem:[%s1 + $0x48] sm:$0xf]
  %v104 = vld [vmem:[%s1 + $0x4c] sm:$0xf]
  %v105 = vld [vmem:[%s1 + $0x50] sm:$0xf]
  %v106 = vld [vmem:[%s1 + $0x54] sm:$0xf]
  %v107 = vld [vmem:[%s1 + $0x58] sm:$0xf]
  %v108 = vld [vmem:[%s1 + $0x5c] sm:$0xf]
  %v109 = vld [vmem:[%s1 + $0x60] sm:$0xf]
  %v110 = vld [vmem:[%s1 + $0x64] sm:$0xf]
  %v111 = vld [vmem:[%s1 + $0x68] sm:$0xf]
  %v112 = vld [vmem:[%s1 + $0x6c] sm:$0xf]
  %v113 = vld [vmem:[%s1 + $0x70] sm:$0xf]
  %v114 = vld [vmem:[%s1 + $0x74] sm:$0xf]
  %v115 = vld [vmem:[%s1 + $0x78] sm:$0xf]
  %v116 = vld [vmem:[%s1 + $0x7c] sm:$0xf]
  %v117 = vld [vmem:[%s1 + $0x80] sm:$0xf]
  %v118 = vld [vmem:[%s1 + $0x84] sm:$0xf]
  %v119 = vld [vmem:[%s1 + $0x88] sm:$0xf]
  %v120 = vld [vmem:[%s1 + $0x8c] sm:$0xf]
  %v121 = vld [vmem:[%s1 + $0x90] sm:$0xf]
  %v122 = vld [vmem:[%s1 + $0x94] sm:$0xf]
  %v123 = vld [vmem:[%s1 + $0x98] sm:$0xf]
  %v124 = vld [vmem:[%s1 + $0x9c] sm:$0xf]
  %v125 = vld [vmem:[%s1 + $0xa0] sm:$0xf]
  %v126 = vld [vmem:[%s1 + $0xa4] sm:$0xf]
  %v127 = vld [vmem:[%s1 + $0xa8] sm:$0xf]
  %v128 = vld [vmem:[%s1 + $0xac] sm:$0xf]
  %v129 = vld [vmem:[%s1 + $0xb0] sm:$0xf]
  %v130 = vld [vmem:[%s1 + $0xb4] sm:$0xf]
  %v131 = vld [vmem:[%s1 + $0xb8] sm:$0xf]
  %v132 = vld [vmem:[%s1 + $0xbc] sm:$0xf]
  %v133 = vld [vmem:[%s1 + $0xc0] sm:$0xf]
  %v134 = vld [vmem:[%s1 + $0xc4] sm:$0xf]
  %v135 = vld [vmem:[%s1 + $0xc8] sm:$0xf]
  %v136 = vld [vmem:[%s1 + $0xcc] sm:$0xf]
  %v137 = vld [vmem:[%s1 + $0xd0] sm:$0xf]
  %v138 = vld [vmem:[%s1 + $0xd4] sm:$0xf]
  %v139 = vld [vmem:[%s1 + $0xd8] sm:$0xf]
  %v140 = vld [vmem:[%s1 + $0xdc] sm:$0xf]
  %v141 = vld [vmem:[%s1 + $0xe0] sm:$0xf]
  %v142 = vld [vmem:[%s1 + $0xe4] sm:$0xf]
  %v143 = vld [vmem:[%s1 + $0xe8] sm:$0xf]
  %v144 = vld [vmem:[%s1 + $0xec] sm:$0xf]
  %v145 = vld [vmem:[%s1 + $0xf0] sm:$0xf]
  %v146 = vld [vmem:[%s1 + $0xf4] sm:$0xf]
  %v147 = vld [vmem:[%s1 + $0xf8] sm:$0xf]
  %v148 = vld [vmem:[%s1 + $0xfc] sm:$0xf]
  %v149 = vld [vmem:[%s1 + $0x100] sm:$0xf]
  %v150 = vld [vmem:[%s1 + $0x104] sm:$0xf]
  %v151 = vld [vmem:[%s1 + $0x108] sm:$0xf]
  %v152 = vld [vmem:[%s1 + $0x10c] sm:$0xf]
  %v153 = vld [vmem:[%s1 + $0x110] sm:$0xf]
  %v154 = vld [vmem:[%s1 + $0x114] sm:$0xf]
  %v155 = vld [vmem:[%s1 + $0x118] sm:$0xf]
  %v156 = vld [vmem:[%s1 + $0x11c] sm:$0xf]
  %v157 = vld [vmem:[%s1 + $0x120] sm:$0xf]
  %v158 = vld [vmem:[%s1 + $0x124] sm:$0xf]
  %v159 = vld [vmem:[%s1 + $0x128] sm:$0xf]
  %v160 = vld [vmem:[%s1 + $0x12c] sm:$0xf]
  %v161 = vld [vmem:[%s1 + $0x130] sm:$0xf]
  %v162 = vld [vmem:[%s1 + $0x134] sm:$0xf]
  %v163 = vld [vmem:[%s1 + $0x138] sm:$0xf]
  %v164 = vld [vmem:[%s1 + $0x13c] sm:$0xf]
  %v165 = vld [vmem:[%s1 + $0x140] sm:$0xf]
  %v166 = vld [vmem:[%s1 + $0x144] sm:$0xf]
  %v167 = vld [vmem:[%s1 + $0x148] sm:$0xf]
  %v168 = vld [vmem:[%s1 + $0x14c] sm:$0xf]
  %v169 = vld [vmem:[%s1 + $0x150] sm:$0xf]
  %v170 = vld [vmem:[%s1 + $0x154] sm:$0xf]
  %v171 = vld [vmem:[%s1 + $0x158] sm:$0xf]
  %v172 = vld [vmem:[%s1 + $0x15c] sm:$0xf]
  %v173 = vld [vmem:[%s1 + $0x160] sm:$0xf]
  %v174 = vld [vmem:[%s1 + $0x164] sm:$0xf]
  %v175 = vld [vmem:[%s1 + $0x168] sm:$0xf]
  %v176 = vld [vmem:[%s1 + $0x16c] sm:$0xf]
  %v177 = vld [vmem:[%s1 + $0x170] sm:$0xf]
  %v178 = vld [vmem:[%s1 + $0x174] sm:$0xf]
  %v179 = vld [vmem:[%s1 + $0x178] sm:$0xf]
  %v180 = vld [vmem:[%s1 + $0x17c] sm:$0xf]
  %v181 = vld [vmem:[%s1 + $0x180] sm:$0xf]
  %v182 = vld [vmem:[%s1 + $0x184] sm:$0xf]
  %v183 = vld [vmem:[%s1 + $0x188] sm:$0xf]
  %v184 = vld [vmem:[%s1 + $0x18c] sm:$0xf]
  %v185 = vld [vmem:[%s1 + $0x190] sm:$0xf]
  %v186 = vld [vmem:[%s1 + $0x194] sm:$0xf]
  %v187 = vld [vmem:[%s1 + $0x198] sm:$0xf]
  %v188 = vld [vmem:[%s1 + $0x19c] sm:$0xf]
  %v189 = vld [vmem:[%s1 + $0x1a0] sm:$0xf]
  %v190 = vld [vmem:[%s1 + $0x1a4] sm:$0xf]
  %v191 = vld [vmem:[%s1 + $0x1a8] sm:$0xf]
  %v192 = vld [vmem:[%s1 + $0x1ac] sm:$0xf]
  %v193 = vld [vmem:[%s1 + $0x1b0] sm:$0xf]
  %v194 = vld [vmem:[%s1 + $0x1b4] sm:$0xf]
  %v195 = vld [vmem:[%s1 + $0x1b8] sm:$0xf]
  %v196 = vld [vmem:[%s1 + $0x1bc] sm:$0xf]
  %v197 = vld [vmem:[%s1 + $0x1c0] sm:$0xf]
  %v198 = vld [vmem:[%s1 + $0x1c4] sm:$0xf]
  %v199 = vld [vmem:[%s1 + $0x1c8] sm:$0xf]
  %v200 = vld [vmem:[%s1 + $0x1cc] sm:$0xf]
  %v201 = vld [vmem:[%s1 + $0x1d0] sm:$0xf]
  %v202 = vld [vmem:[%s1 + $0x1d4] sm:$0xf]
  %v203 = vld [vmem:[%s1 + $0x1d8] sm:$0xf]
  %v204 = vld [vmem:[%s1 + $0x1dc] sm:$0xf]
  %v205 = vld [vmem:[%s1 + $0x1e0] sm:$0xf]
  %v206 = vld [vmem:[%s1 + $0x1e4] sm:$0xf]
  %v207 = vld [vmem:[%s1 + $0x1e8] sm:$0xf]
  %v208 = vld [vmem:[%s1 + $0x1ec] sm:$0xf]
  %v209 = vld [vmem:[%s1 + $0x1f0] sm:$0xf]
  %v210 = vld [vmem:[%s1 + $0x1f4] sm:$0xf]
  %v211 = vld [vmem:[%s1 + $0x1f8] sm:$0xf]
  %v212 = vld [vmem:[%s1 + $0x1fc] sm:$0xf]
  %v213 = vld [vmem:[%s2] sm:$0x1]
  %v215 = vlaneseq
  %v216 = vshrl.u32 %v215, 7
  %v217 = vsub.s32 0, %v216
  %v218 = vrot.slane %v213, %v217
  %v284 = vunpack.c.l.b16 %v21
  %v285 = vunpack.c.h.b16 %v21
  %v286 = vunpack.c.l.b16 %v22
  %v287 = vunpack.c.h.b16 %v22
  %v288 = vunpack.c.l.b16 %v23
  %v289 = vunpack.c.h.b16 %v23
  %v290 = vunpack.c.l.b16 %v24
  %v291 = vunpack.c.h.b16 %v24
  %v292 = vunpack.c.l.b16 %v25
  %v293 = vunpack.c.h.b16 %v25
  %v294 = vunpack.c.l.b16 %v26
  %v295 = vunpack.c.h.b16 %v26
  %v296 = vunpack.c.l.b16 %v27
  %v297 = vunpack.c.h.b16 %v27
  %v298 = vunpack.c.l.b16 %v28
  %v299 = vunpack.c.h.b16 %v28
  %v300 = vunpack.c.l.b16 %v29
  %v301 = vunpack.c.h.b16 %v29
  %v302 = vunpack.c.l.b16 %v30
  %v303 = vunpack.c.h.b16 %v30
  %v304 = vunpack.c.l.b16 %v31
  %v305 = vunpack.c.h.b16 %v31
  %v306 = vunpack.c.l.b16 %v32
  %v307 = vunpack.c.h.b16 %v32
  %v308 = vunpack.c.l.b16 %v33
  %v309 = vunpack.c.h.b16 %v33
  %v310 = vunpack.c.l.b16 %v34
  %v311 = vunpack.c.h.b16 %v34
  %v312 = vunpack.c.l.b16 %v35
  %v313 = vunpack.c.h.b16 %v35
  %v314 = vunpack.c.l.b16 %v36
  %v315 = vunpack.c.h.b16 %v36
  %v316 = vunpack.c.l.b16 %v37
  %v317 = vunpack.c.h.b16 %v37
  %v318 = vunpack.c.l.b16 %v38
  %v319 = vunpack.c.h.b16 %v38
  %v320 = vunpack.c.l.b16 %v39
  %v321 = vunpack.c.h.b16 %v39
  %v322 = vunpack.c.l.b16 %v40
  %v323 = vunpack.c.h.b16 %v40
  %v324 = vunpack.c.l.b16 %v41
  %v325 = vunpack.c.h.b16 %v41
  %v326 = vunpack.c.l.b16 %v42
  %v327 = vunpack.c.h.b16 %v42
  %v328 = vunpack.c.l.b16 %v43
  %v329 = vunpack.c.h.b16 %v43
  %v330 = vunpack.c.l.b16 %v44
  %v331 = vunpack.c.h.b16 %v44
  %v332 = vunpack.c.l.b16 %v45
  %v333 = vunpack.c.h.b16 %v45
  %v334 = vunpack.c.l.b16 %v46
  %v335 = vunpack.c.h.b16 %v46
  %v336 = vunpack.c.l.b16 %v47
  %v337 = vunpack.c.h.b16 %v47
  %v338 = vunpack.c.l.b16 %v48
  %v339 = vunpack.c.h.b16 %v48
  %v340 = vunpack.c.l.b16 %v49
  %v341 = vunpack.c.h.b16 %v49
  %v342 = vunpack.c.l.b16 %v50
  %v343 = vunpack.c.h.b16 %v50
  %v344 = vunpack.c.l.b16 %v51
  %v345 = vunpack.c.h.b16 %v51
  %v346 = vunpack.c.l.b16 %v52
  %v347 = vunpack.c.h.b16 %v52
  %v348 = vunpack.c.l.b16 %v53
  %v349 = vunpack.c.h.b16 %v53
  %v350 = vunpack.c.l.b16 %v54
  %v351 = vunpack.c.h.b16 %v54
  %v352 = vunpack.c.l.b16 %v55
  %v353 = vunpack.c.h.b16 %v55
  %v354 = vunpack.c.l.b16 %v56
  %v355 = vunpack.c.h.b16 %v56
  %v356 = vunpack.c.l.b16 %v57
  %v357 = vunpack.c.h.b16 %v57
  %v358 = vunpack.c.l.b16 %v58
  %v359 = vunpack.c.h.b16 %v58
  %v360 = vunpack.c.l.b16 %v59
  %v361 = vunpack.c.h.b16 %v59
  %v362 = vunpack.c.l.b16 %v60
  %v363 = vunpack.c.h.b16 %v60
  %v364 = vunpack.c.l.b16 %v61
  %v365 = vunpack.c.h.b16 %v61
  %v366 = vunpack.c.l.b16 %v62
  %v367 = vunpack.c.h.b16 %v62
  %v368 = vunpack.c.l.b16 %v63
  %v369 = vunpack.c.h.b16 %v63
  %v370 = vunpack.c.l.b16 %v64
  %v371 = vunpack.c.h.b16 %v64
  %v372 = vunpack.c.l.b16 %v65
  %v373 = vunpack.c.h.b16 %v65
  %v374 = vunpack.c.l.b16 %v66
  %v375 = vunpack.c.h.b16 %v66
  %v376 = vunpack.c.l.b16 %v67
  %v377 = vunpack.c.h.b16 %v67
  %v378 = vunpack.c.l.b16 %v68
  %v379 = vunpack.c.h.b16 %v68
  %v380 = vunpack.c.l.b16 %v69
  %v381 = vunpack.c.h.b16 %v69
  %v382 = vunpack.c.l.b16 %v70
  %v383 = vunpack.c.h.b16 %v70
  %v384 = vunpack.c.l.b16 %v71
  %v385 = vunpack.c.h.b16 %v71
  %v386 = vunpack.c.l.b16 %v72
  %v387 = vunpack.c.h.b16 %v72
  %v388 = vunpack.c.l.b16 %v73
  %v389 = vunpack.c.h.b16 %v73
  %v390 = vunpack.c.l.b16 %v74
  %v391 = vunpack.c.h.b16 %v74
  %v392 = vunpack.c.l.b16 %v75
  %v393 = vunpack.c.h.b16 %v75
  %v394 = vunpack.c.l.b16 %v76
  %v395 = vunpack.c.h.b16 %v76
  %v396 = vunpack.c.l.b16 %v77
  %v397 = vunpack.c.h.b16 %v77
  %v398 = vunpack.c.l.b16 %v78
  %v399 = vunpack.c.h.b16 %v78
  %v400 = vunpack.c.l.b16 %v79
  %v401 = vunpack.c.h.b16 %v79
  %v402 = vunpack.c.l.b16 %v80
  %v403 = vunpack.c.h.b16 %v80
  %v404 = vunpack.c.l.b16 %v81
  %v405 = vunpack.c.h.b16 %v81
  %v406 = vunpack.c.l.b16 %v82
  %v407 = vunpack.c.h.b16 %v82
  %v408 = vunpack.c.l.b16 %v83
  %v409 = vunpack.c.h.b16 %v83
  %v410 = vunpack.c.l.b16 %v84
  %v411 = vunpack.c.h.b16 %v84
  %v412 = vpack.c.b16 %v292, %v284
  %v413 = vpack.c.b16 %v293, %v285
  %v414 = vpack.c.b16 %v294, %v286
  %v415 = vpack.c.b16 %v295, %v287
  %v416 = vpack.c.b16 %v296, %v288
  %v417 = vpack.c.b16 %v297, %v289
  %v418 = vpack.c.b16 %v298, %v290
  %v419 = vpack.c.b16 %v299, %v291
  %v420 = vpack.c.b16 %v308, %v300
  %v421 = vpack.c.b16 %v309, %v301
  %v422 = vpack.c.b16 %v310, %v302
  %v423 = vpack.c.b16 %v311, %v303
  %v424 = vpack.c.b16 %v312, %v304
  %v425 = vpack.c.b16 %v313, %v305
  %v426 = vpack.c.b16 %v314, %v306
  %v427 = vpack.c.b16 %v315, %v307
  %v428 = vpack.c.b16 %v324, %v316
  %v429 = vpack.c.b16 %v325, %v317
  %v430 = vpack.c.b16 %v326, %v318
  %v431 = vpack.c.b16 %v327, %v319
  %v432 = vpack.c.b16 %v328, %v320
  %v433 = vpack.c.b16 %v329, %v321
  %v434 = vpack.c.b16 %v330, %v322
  %v435 = vpack.c.b16 %v331, %v323
  %v436 = vpack.c.b16 %v340, %v332
  %v437 = vpack.c.b16 %v341, %v333
  %v438 = vpack.c.b16 %v342, %v334
  %v439 = vpack.c.b16 %v343, %v335
  %v440 = vpack.c.b16 %v344, %v336
  %v441 = vpack.c.b16 %v345, %v337
  %v442 = vpack.c.b16 %v346, %v338
  %v443 = vpack.c.b16 %v347, %v339
  %v444 = vpack.c.b16 %v356, %v348
  %v445 = vpack.c.b16 %v357, %v349
  %v446 = vpack.c.b16 %v358, %v350
  %v447 = vpack.c.b16 %v359, %v351
  %v448 = vpack.c.b16 %v360, %v352
  %v449 = vpack.c.b16 %v361, %v353
  %v450 = vpack.c.b16 %v362, %v354
  %v451 = vpack.c.b16 %v363, %v355
  %v452 = vpack.c.b16 %v372, %v364
  %v453 = vpack.c.b16 %v373, %v365
  %v454 = vpack.c.b16 %v374, %v366
  %v455 = vpack.c.b16 %v375, %v367
  %v456 = vpack.c.b16 %v376, %v368
  %v457 = vpack.c.b16 %v377, %v369
  %v458 = vpack.c.b16 %v378, %v370
  %v459 = vpack.c.b16 %v379, %v371
  %v460 = vpack.c.b16 %v388, %v380
  %v461 = vpack.c.b16 %v389, %v381
  %v462 = vpack.c.b16 %v390, %v382
  %v463 = vpack.c.b16 %v391, %v383
  %v464 = vpack.c.b16 %v392, %v384
  %v465 = vpack.c.b16 %v393, %v385
  %v466 = vpack.c.b16 %v394, %v386
  %v467 = vpack.c.b16 %v395, %v387
  %v468 = vpack.c.b16 %v404, %v396
  %v469 = vpack.c.b16 %v405, %v397
  %v470 = vpack.c.b16 %v406, %v398
  %v471 = vpack.c.b16 %v407, %v399
  %v472 = vpack.c.b16 %v408, %v400
  %v473 = vpack.c.b16 %v409, %v401
  %v474 = vpack.c.b16 %v410, %v402
  %v475 = vpack.c.b16 %v411, %v403
  %v668 = vunpack.c.l.b16 %v85
  %v669 = vunpack.c.l.b16 %v86
  %v670 = vunpack.c.l.b16 %v87
  %v671 = vunpack.c.l.b16 %v88
  %v672 = vunpack.c.l.b16 %v89
  %v673 = vunpack.c.l.b16 %v90
  %v674 = vunpack.c.l.b16 %v91
  %v675 = vunpack.c.l.b16 %v92
  %v676 = vunpack.c.l.b16 %v93
  %v677 = vunpack.c.l.b16 %v94
  %v678 = vunpack.c.l.b16 %v95
  %v679 = vunpack.c.l.b16 %v96
  %v680 = vunpack.c.l.b16 %v97
  %v681 = vunpack.c.l.b16 %v98
  %v682 = vunpack.c.l.b16 %v99
  %v683 = vunpack.c.l.b16 %v100
  %v684 = vunpack.c.l.b16 %v101
  %v685 = vunpack.c.l.b16 %v102
  %v686 = vunpack.c.l.b16 %v103
  %v687 = vunpack.c.l.b16 %v104
  %v688 = vunpack.c.l.b16 %v105
  %v689 = vunpack.c.l.b16 %v106
  %v690 = vunpack.c.l.b16 %v107
  %v691 = vunpack.c.l.b16 %v108
  %v692 = vunpack.c.l.b16 %v109
  %v693 = vunpack.c.l.b16 %v110
  %v694 = vunpack.c.l.b16 %v111
  %v695 = vunpack.c.l.b16 %v112
  %v696 = vunpack.c.l.b16 %v113
  %v697 = vunpack.c.l.b16 %v114
  %v698 = vunpack.c.l.b16 %v115
  %v699 = vunpack.c.l.b16 %v116
  %v700 = vunpack.c.l.b16 %v117
  %v701 = vunpack.c.l.b16 %v118
  %v702 = vunpack.c.l.b16 %v119
  %v703 = vunpack.c.l.b16 %v120
  %v704 = vunpack.c.l.b16 %v121
  %v705 = vunpack.c.l.b16 %v122
  %v706 = vunpack.c.l.b16 %v123
  %v707 = vunpack.c.l.b16 %v124
  %v708 = vunpack.c.l.b16 %v125
  %v709 = vunpack.c.l.b16 %v126
  %v710 = vunpack.c.l.b16 %v127
  %v711 = vunpack.c.l.b16 %v128
  %v712 = vunpack.c.l.b16 %v129
  %v713 = vunpack.c.l.b16 %v130
  %v714 = vunpack.c.l.b16 %v131
  %v715 = vunpack.c.l.b16 %v132
  %v716 = vunpack.c.l.b16 %v133
  %v717 = vunpack.c.l.b16 %v134
  %v718 = vunpack.c.l.b16 %v135
  %v719 = vunpack.c.l.b16 %v136
  %v720 = vunpack.c.l.b16 %v137
  %v721 = vunpack.c.l.b16 %v138
  %v722 = vunpack.c.l.b16 %v139
  %v723 = vunpack.c.l.b16 %v140
  %v724 = vunpack.c.l.b16 %v141
  %v725 = vunpack.c.l.b16 %v142
  %v726 = vunpack.c.l.b16 %v143
  %v727 = vunpack.c.l.b16 %v144
  %v728 = vunpack.c.l.b16 %v145
  %v729 = vunpack.c.l.b16 %v146
  %v730 = vunpack.c.l.b16 %v147
  %v731 = vunpack.c.l.b16 %v148
  %v732 = vunpack.c.l.b16 %v149
  %v733 = vunpack.c.l.b16 %v150
  %v734 = vunpack.c.l.b16 %v151
  %v735 = vunpack.c.l.b16 %v152
  %v736 = vunpack.c.l.b16 %v153
  %v737 = vunpack.c.l.b16 %v154
  %v738 = vunpack.c.l.b16 %v155
  %v739 = vunpack.c.l.b16 %v156
  %v740 = vunpack.c.l.b16 %v157
  %v741 = vunpack.c.l.b16 %v158
  %v742 = vunpack.c.l.b16 %v159
  %v743 = vunpack.c.l.b16 %v160
  %v744 = vunpack.c.l.b16 %v161
  %v745 = vunpack.c.l.b16 %v162
  %v746 = vunpack.c.l.b16 %v163
  %v747 = vunpack.c.l.b16 %v164
  %v748 = vunpack.c.l.b16 %v165
  %v749 = vunpack.c.l.b16 %v166
  %v750 = vunpack.c.l.b16 %v167
  %v751 = vunpack.c.l.b16 %v168
  %v752 = vunpack.c.l.b16 %v169
  %v753 = vunpack.c.l.b16 %v170
  %v754 = vunpack.c.l.b16 %v171
  %v755 = vunpack.c.l.b16 %v172
  %v756 = vunpack.c.l.b16 %v173
  %v757 = vunpack.c.l.b16 %v174
  %v758 = vunpack.c.l.b16 %v175
  %v759 = vunpack.c.l.b16 %v176
  %v760 = vunpack.c.l.b16 %v177
  %v761 = vunpack.c.l.b16 %v178
  %v762 = vunpack.c.l.b16 %v179
  %v763 = vunpack.c.l.b16 %v180
  %v764 = vunpack.c.l.b16 %v181
  %v765 = vunpack.c.l.b16 %v182
  %v766 = vunpack.c.l.b16 %v183
  %v767 = vunpack.c.l.b16 %v184
  %v768 = vunpack.c.l.b16 %v185
  %v769 = vunpack.c.l.b16 %v186
  %v770 = vunpack.c.l.b16 %v187
  %v771 = vunpack.c.l.b16 %v188
  %v772 = vunpack.c.l.b16 %v189
  %v773 = vunpack.c.l.b16 %v190
  %v774 = vunpack.c.l.b16 %v191
  %v775 = vunpack.c.l.b16 %v192
  %v776 = vunpack.c.l.b16 %v193
  %v777 = vunpack.c.l.b16 %v194
  %v778 = vunpack.c.l.b16 %v195
  %v779 = vunpack.c.l.b16 %v196
  %v780 = vunpack.c.l.b16 %v197
  %v781 = vunpack.c.l.b16 %v198
  %v782 = vunpack.c.l.b16 %v199
  %v783 = vunpack.c.l.b16 %v200
  %v784 = vunpack.c.l.b16 %v201
  %v785 = vunpack.c.l.b16 %v202
  %v786 = vunpack.c.l.b16 %v203
  %v787 = vunpack.c.l.b16 %v204
  %v788 = vunpack.c.l.b16 %v205
  %v789 = vunpack.c.l.b16 %v206
  %v790 = vunpack.c.l.b16 %v207
  %v791 = vunpack.c.l.b16 %v208
  %v792 = vunpack.c.l.b16 %v209
  %v793 = vunpack.c.l.b16 %v210
  %v794 = vunpack.c.l.b16 %v211
  %v795 = vunpack.c.l.b16 %v212
  %v796 = vpack.c.b16 %v669, %v668
  %v797 = vpack.c.b16 %v671, %v670
  %v798 = vpack.c.b16 %v673, %v672
  %v799 = vpack.c.b16 %v675, %v674
  %v800 = vpack.c.b16 %v677, %v676
  %v801 = vpack.c.b16 %v679, %v678
  %v802 = vpack.c.b16 %v681, %v680
  %v803 = vpack.c.b16 %v683, %v682
  %v804 = vpack.c.b16 %v685, %v684
  %v805 = vpack.c.b16 %v687, %v686
  %v806 = vpack.c.b16 %v689, %v688
  %v807 = vpack.c.b16 %v691, %v690
  %v808 = vpack.c.b16 %v693, %v692
  %v809 = vpack.c.b16 %v695, %v694
  %v810 = vpack.c.b16 %v697, %v696
  %v811 = vpack.c.b16 %v699, %v698
  %v812 = vpack.c.b16 %v701, %v700
  %v813 = vpack.c.b16 %v703, %v702
  %v814 = vpack.c.b16 %v705, %v704
  %v815 = vpack.c.b16 %v707, %v706
  %v816 = vpack.c.b16 %v709, %v708
  %v817 = vpack.c.b16 %v711, %v710
  %v818 = vpack.c.b16 %v713, %v712
  %v819 = vpack.c.b16 %v715, %v714
  %v820 = vpack.c.b16 %v717, %v716
  %v821 = vpack.c.b16 %v719, %v718
  %v822 = vpack.c.b16 %v721, %v720
  %v823 = vpack.c.b16 %v723, %v722
  %v824 = vpack.c.b16 %v725, %v724
  %v825 = vpack.c.b16 %v727, %v726
  %v826 = vpack.c.b16 %v729, %v728
  %v827 = vpack.c.b16 %v731, %v730
  %v828 = vpack.c.b16 %v733, %v732
  %v829 = vpack.c.b16 %v735, %v734
  %v830 = vpack.c.b16 %v737, %v736
  %v831 = vpack.c.b16 %v739, %v738
  %v832 = vpack.c.b16 %v741, %v740
  %v833 = vpack.c.b16 %v743, %v742
  %v834 = vpack.c.b16 %v745, %v744
  %v835 = vpack.c.b16 %v747, %v746
  %v836 = vpack.c.b16 %v749, %v748
  %v837 = vpack.c.b16 %v751, %v750
  %v838 = vpack.c.b16 %v753, %v752
  %v839 = vpack.c.b16 %v755, %v754
  %v840 = vpack.c.b16 %v757, %v756
  %v841 = vpack.c.b16 %v759, %v758
  %v842 = vpack.c.b16 %v761, %v760
  %v843 = vpack.c.b16 %v763, %v762
  %v844 = vpack.c.b16 %v765, %v764
  %v845 = vpack.c.b16 %v767, %v766
  %v846 = vpack.c.b16 %v769, %v768
  %v847 = vpack.c.b16 %v771, %v770
  %v848 = vpack.c.b16 %v773, %v772
  %v849 = vpack.c.b16 %v775, %v774
  %v850 = vpack.c.b16 %v777, %v776
  %v851 = vpack.c.b16 %v779, %v778
  %v852 = vpack.c.b16 %v781, %v780
  %v853 = vpack.c.b16 %v783, %v782
  %v854 = vpack.c.b16 %v785, %v784
  %v855 = vpack.c.b16 %v787, %v786
  %v856 = vpack.c.b16 %v789, %v788
  %v857 = vpack.c.b16 %v791, %v790
  %v858 = vpack.c.b16 %v793, %v792
  %v859 = vpack.c.b16 %v795, %v794
  %924 = vmatprep.subr.bf16.mxu0 0
  %925 = vmatpush1.bf16.msra.mxu0 %v796
  %926 = vmatprep.subr.bf16.mxu0 0
  %927 = vmatpush1.bf16.msra.mxu0 %v797
  %928 = vmatprep.subr.bf16.mxu0 0
  %929 = vmatpush1.bf16.msra.mxu0 %v798
  %930 = vmatprep.subr.bf16.mxu0 0
  %931 = vmatpush1.bf16.msra.mxu0 %v799
  %932 = vmatprep.subr.bf16.mxu0 0
  %933 = vmatpush1.bf16.msra.mxu0 %v800
  %934 = vmatprep.subr.bf16.mxu0 0
  %935 = vmatpush1.bf16.msra.mxu0 %v801
  %936 = vmatprep.subr.bf16.mxu0 0
  %937 = vmatpush1.bf16.msra.mxu0 %v802
  %938 = vmatprep.subr.bf16.mxu0 0
  %939 = vmatpush1.bf16.msra.mxu0 %v803
  %940 = vmatprep.subr.bf16.mxu0 0
  %941 = vmatpush1.bf16.msra.mxu0 %v804
  %942 = vmatprep.subr.bf16.mxu0 0
  %943 = vmatpush1.bf16.msra.mxu0 %v805
  %944 = vmatprep.subr.bf16.mxu0 0
  %945 = vmatpush1.bf16.msra.mxu0 %v806
  %946 = vmatprep.subr.bf16.mxu0 0
  %947 = vmatpush1.bf16.msra.mxu0 %v807
  %948 = vmatprep.subr.bf16.mxu0 0
  %949 = vmatpush1.bf16.msra.mxu0 %v808
  %950 = vmatprep.subr.bf16.mxu0 0
  %951 = vmatpush1.bf16.msra.mxu0 %v809
  %952 = vmatprep.subr.bf16.mxu0 0
  %953 = vmatpush1.bf16.msra.mxu0 %v810
  %954 = vmatprep.subr.bf16.mxu0 0
  %955 = vmatpush1.bf16.msra.mxu0 %v811
  %956 = vmatprep.mubr.bf16.mxu0 %v413
  %957 = vmatmul.mubr.bf16.gmra.mrb[0].mxu0 %v412
  %v958 = vpop.f32.mrb[0].mxu0
  %v959 = vadd.f32 %v218, %v958
  %v960 = vpop.f32.mrb[0].mxu0
  %v961 = vpop.f32.mrb[0].mxu0
  %v962 = vadd.f32 %v218, %v961
  %v963 = vpop.f32.mrb[0].mxu0
  %964 = vmatprep.mubr.bf16.mxu0 %v421
  %965 = vmatmul.mubr.bf16.gmra.mrb[0].mxu0 %v420
  %v966 = vpop.f32.mrb[0].mxu0
  %v967 = vadd.f32 %v218, %v966
  %v968 = vpop.f32.mrb[0].mxu0
  %v969 = vpop.f32.mrb[0].mxu0
  %v970 = vadd.f32 %v218, %v969
  %v971 = vpop.f32.mrb[0].mxu0
  %972 = vmatprep.mubr.bf16.mxu0 %v429
  %973 = vmatmul.mubr.bf16.gmra.mrb[0].mxu0 %v428
  %v974 = vpop.f32.mrb[0].mxu0
  %v975 = vadd.f32 %v218, %v974
  %v976 = vpop.f32.mrb[0].mxu0
  %v977 = vpop.f32.mrb[0].mxu0
  %v978 = vadd.f32 %v218, %v977
  %v979 = vpop.f32.mrb[0].mxu0
  %980 = vmatprep.mubr.bf16.mxu0 %v437
  %981 = vmatmul.mubr.bf16.gmra.mrb[0].mxu0 %v436
  %v982 = vpop.f32.mrb[0].mxu0
  %v983 = vadd.f32 %v218, %v982
  %v984 = vpop.f32.mrb[0].mxu0
  %v985 = vpop.f32.mrb[0].mxu0
  %v986 = vadd.f32 %v218, %v985
  %v987 = vpop.f32.mrb[0].mxu0
  %988 = vmatprep.mubr.bf16.mxu0 %v445
  %989 = vmatmul.mubr.bf16.gmra.mrb[0].mxu0 %v444
  %v990 = vpop.f32.mrb[0].mxu0
  %v991 = vadd.f32 %v218, %v990
  %v992 = vpop.f32.mrb[0].mxu0
  %v993 = vpop.f32.mrb[0].mxu0
  %v994 = vadd.f32 %v218, %v993
  %v995 = vpop.f32.mrb[0].mxu0
  %996 = vmatprep.mubr.bf16.mxu0 %v453
  %997 = vmatmul.mubr.bf16.gmra.mrb[0].mxu0 %v452
  %v998 = vpop.f32.mrb[0].mxu0
  %v999 = vadd.f32 %v218, %v998
  %v1000 = vpop.f32.mrb[0].mxu0
  %v1001 = vpop.f32.mrb[0].mxu0
  %v1002 = vadd.f32 %v218, %v1001
  %v1003 = vpop.f32.mrb[0].mxu0
  %1004 = vmatprep.mubr.bf16.mxu0 %v461
  %1005 = vmatmul.mubr.bf16.gmra.mrb[0].mxu0 %v460
  %v1006 = vpop.f32.mrb[0].mxu0
  %v1007 = vadd.f32 %v218, %v1006
  %v1008 = vpop.f32.mrb[0].mxu0
  %v1009 = vpop.f32.mrb[0].mxu0
  %v1010 = vadd.f32 %v218, %v1009
  %v1011 = vpop.f32.mrb[0].mxu0
  %1012 = vmatprep.mubr.bf16.mxu0 %v469
  %1013 = vmatmul.mubr.bf16.gmra.mrb[0].mxu0 %v468
  %v1014 = vpop.f32.mrb[0].mxu0
  %v1015 = vadd.f32 %v218, %v1014
  %v1016 = vpop.f32.mrb[0].mxu0
  %v1017 = vpop.f32.mrb[0].mxu0
  %v1018 = vadd.f32 %v218, %v1017
  %v1019 = vpop.f32.mrb[0].mxu0
  %1020 = vdwg.mxu0
  %1021 = vmatprep.subr.bf16.mxu0 0
  %1022 = vmatpush1.bf16.msra.mxu0 %v812
  %1023 = vmatprep.subr.bf16.mxu0 0
  %1024 = vmatpush1.bf16.msra.mxu0 %v813
  %1025 = vmatprep.subr.bf16.mxu0 0
  %1026 = vmatpush1.bf16.msra.mxu0 %v814
  %1027 = vmatprep.subr.bf16.mxu0 0
  %1028 = vmatpush1.bf16.msra.mxu0 %v815
  %1029 = vmatprep.subr.bf16.mxu0 0
  %1030 = vmatpush1.bf16.msra.mxu0 %v816
  %1031 = vmatprep.subr.bf16.mxu0 0
  %1032 = vmatpush1.bf16.msra.mxu0 %v817
  %1033 = vmatprep.subr.bf16.mxu0 0
  %1034 = vmatpush1.bf16.msra.mxu0 %v818
  %1035 = vmatprep.subr.bf16.mxu0 0
  %1036 = vmatpush1.bf16.msra.mxu0 %v819
  %1037 = vmatprep.subr.bf16.mxu0 0
  %1038 = vmatpush1.bf16.msra.mxu0 %v820
  %1039 = vmatprep.subr.bf16.mxu0 0
  %1040 = vmatpush1.bf16.msra.mxu0 %v821
  %1041 = vmatprep.subr.bf16.mxu0 0
  %1042 = vmatpush1.bf16.msra.mxu0 %v822
  %1043 = vmatprep.subr.bf16.mxu0 0
  %1044 = vmatpush1.bf16.msra.mxu0 %v823
  %1045 = vmatprep.subr.bf16.mxu0 0
  %1046 = vmatpush1.bf16.msra.mxu0 %v824
  %1047 = vmatprep.subr.bf16.mxu0 0
  %1048 = vmatpush1.bf16.msra.mxu0 %v825
  %1049 = vmatprep.subr.bf16.mxu0 0
  %1050 = vmatpush1.bf16.msra.mxu0 %v826
  %1051 = vmatprep.subr.bf16.mxu0 0
  %1052 = vmatpush1.bf16.msra.mxu0 %v827
  %1053 = vmatprep.mubr.bf16.mxu0 %v415
  %1054 = vmatmul.mubr.bf16.gmra.mrb[0].mxu0 %v414
  %v1055 = vpop.f32.mrb[0].mxu0
  %v1056 = vadd.f32 %v959, %v1055
  %v1057 = vpop.f32.mrb[0].mxu0
  %v1058 = vpop.f32.mrb[0].mxu0
  %v1059 = vadd.f32 %v962, %v1058
  %v1060 = vpop.f32.mrb[0].mxu0
  %1061 = vmatprep.mubr.bf16.mxu0 %v423
  %1062 = vmatmul.mubr.bf16.gmra.mrb[0].mxu0 %v422
  %v1063 = vpop.f32.mrb[0].mxu0
  %v1064 = vadd.f32 %v967, %v1063
  %v1065 = vpop.f32.mrb[0].mxu0
  %v1066 = vpop.f32.mrb[0].mxu0
  %v1067 = vadd.f32 %v970, %v1066
  %v1068 = vpop.f32.mrb[0].mxu0
  %1069 = vmatprep.mubr.bf16.mxu0 %v431
  %1070 = vmatmul.mubr.bf16.gmra.mrb[0].mxu0 %v430
  %v1071 = vpop.f32.mrb[0].mxu0
  %v1072 = vadd.f32 %v975, %v1071
  %v1073 = vpop.f32.mrb[0].mxu0
  %v1074 = vpop.f32.mrb[0].mxu0
  %v1075 = vadd.f32 %v978, %v1074
  %v1076 = vpop.f32.mrb[0].mxu0
  %1077 = vmatprep.mubr.bf16.mxu0 %v439
  %1078 = vmatmul.mubr.bf16.gmra.mrb[0].mxu0 %v438
  %v1079 = vpop.f32.mrb[0].mxu0
  %v1080 = vadd.f32 %v983, %v1079
  %v1081 = vpop.f32.mrb[0].mxu0
  %v1082 = vpop.f32.mrb[0].mxu0
  %v1083 = vadd.f32 %v986, %v1082
  %v1084 = vpop.f32.mrb[0].mxu0
  %1085 = vmatprep.mubr.bf16.mxu0 %v447
  %1086 = vmatmul.mubr.bf16.gmra.mrb[0].mxu0 %v446
  %v1087 = vpop.f32.mrb[0].mxu0
  %v1088 = vadd.f32 %v991, %v1087
  %v1089 = vpop.f32.mrb[0].mxu0
  %v1090 = vpop.f32.mrb[0].mxu0
  %v1091 = vadd.f32 %v994, %v1090
  %v1092 = vpop.f32.mrb[0].mxu0
  %1093 = vmatprep.mubr.bf16.mxu0 %v455
  %1094 = vmatmul.mubr.bf16.gmra.mrb[0].mxu0 %v454
  %v1095 = vpop.f32.mrb[0].mxu0
  %v1096 = vadd.f32 %v999, %v1095
  %v1097 = vpop.f32.mrb[0].mxu0
  %v1098 = vpop.f32.mrb[0].mxu0
  %v1099 = vadd.f32 %v1002, %v1098
  %v1100 = vpop.f32.mrb[0].mxu0
  %1101 = vmatprep.mubr.bf16.mxu0 %v463
  %1102 = vmatmul.mubr.bf16.gmra.mrb[0].mxu0 %v462
  %v1103 = vpop.f32.mrb[0].mxu0
  %v1104 = vadd.f32 %v1007, %v1103
  %v1105 = vpop.f32.mrb[0].mxu0
  %v1106 = vpop.f32.mrb[0].mxu0
  %v1107 = vadd.f32 %v1010, %v1106
  %v1108 = vpop.f32.mrb[0].mxu0
  %1109 = vmatprep.mubr.bf16.mxu0 %v471
  %1110 = vmatmul.mubr.bf16.gmra.mrb[0].mxu0 %v470
  %v1111 = vpop.f32.mrb[0].mxu0
  %v1112 = vadd.f32 %v1015, %v1111
  %v1113 = vpop.f32.mrb[0].mxu0
  %v1114 = vpop.f32.mrb[0].mxu0
  %v1115 = vadd.f32 %v1018, %v1114
  %v1116 = vpop.f32.mrb[0].mxu0
  %1117 = vdwg.mxu0
  %1118 = vmatprep.subr.bf16.mxu0 0
  %1119 = vmatpush1.bf16.msra.mxu0 %v828
  %1120 = vmatprep.subr.bf16.mxu0 0
  %1121 = vmatpush1.bf16.msra.mxu0 %v829
  %1122 = vmatprep.subr.bf16.mxu0 0
  %1123 = vmatpush1.bf16.msra.mxu0 %v830
  %1124 = vmatprep.subr.bf16.mxu0 0
  %1125 = vmatpush1.bf16.msra.mxu0 %v831
  %1126 = vmatprep.subr.bf16.mxu0 0
  %1127 = vmatpush1.bf16.msra.mxu0 %v832
  %1128 = vmatprep.subr.bf16.mxu0 0
  %1129 = vmatpush1.bf16.msra.mxu0 %v833
  %1130 = vmatprep.subr.bf16.mxu0 0
  %1131 = vmatpush1.bf16.msra.mxu0 %v834
  %1132 = vmatprep.subr.bf16.mxu0 0
  %1133 = vmatpush1.bf16.msra.mxu0 %v835
  %1134 = vmatprep.subr.bf16.mxu0 0
  %1135 = vmatpush1.bf16.msra.mxu0 %v836
  %1136 = vmatprep.subr.bf16.mxu0 0
  %1137 = vmatpush1.bf16.msra.mxu0 %v837
  %1138 = vmatprep.subr.bf16.mxu0 0
  %1139 = vmatpush1.bf16.msra.mxu0 %v838
  %1140 = vmatprep.subr.bf16.mxu0 0
  %1141 = vmatpush1.bf16.msra.mxu0 %v839
  %1142 = vmatprep.subr.bf16.mxu0 0
  %1143 = vmatpush1.bf16.msra.mxu0 %v840
  %1144 = vmatprep.subr.bf16.mxu0 0
  %1145 = vmatpush1.bf16.msra.mxu0 %v841
  %1146 = vmatprep.subr.bf16.mxu0 0
  %1147 = vmatpush1.bf16.msra.mxu0 %v842
  %1148 = vmatprep.subr.bf16.mxu0 0
  %1149 = vmatpush1.bf16.msra.mxu0 %v843
  %1150 = vmatprep.mubr.bf16.mxu0 %v417
  %1151 = vmatmul.mubr.bf16.gmra.mrb[0].mxu0 %v416
  %v1152 = vpop.f32.mrb[0].mxu0
  %v1153 = vadd.f32 %v1056, %v1152
  %v1154 = vpop.f32.mrb[0].mxu0
  %v1155 = vpop.f32.mrb[0].mxu0
  %v1156 = vadd.f32 %v1059, %v1155
  %v1157 = vpop.f32.mrb[0].mxu0
  %1158 = vmatprep.mubr.bf16.mxu0 %v425
  %1159 = vmatmul.mubr.bf16.gmra.mrb[0].mxu0 %v424
  %v1160 = vpop.f32.mrb[0].mxu0
  %v1161 = vadd.f32 %v1064, %v1160
  %v1162 = vpop.f32.mrb[0].mxu0
  %v1163 = vpop.f32.mrb[0].mxu0
  %v1164 = vadd.f32 %v1067, %v1163
  %v1165 = vpop.f32.mrb[0].mxu0
  %1166 = vmatprep.mubr.bf16.mxu0 %v433
  %1167 = vmatmul.mubr.bf16.gmra.mrb[0].mxu0 %v432
  %v1168 = vpop.f32.mrb[0].mxu0
  %v1169 = vadd.f32 %v1072, %v1168
  %v1170 = vpop.f32.mrb[0].mxu0
  %v1171 = vpop.f32.mrb[0].mxu0
  %v1172 = vadd.f32 %v1075, %v1171
  %v1173 = vpop.f32.mrb[0].mxu0
  %1174 = vmatprep.mubr.bf16.mxu0 %v441
  %1175 = vmatmul.mubr.bf16.gmra.mrb[0].mxu0 %v440
  %v1176 = vpop.f32.mrb[0].mxu0
  %v1177 = vadd.f32 %v1080, %v1176
  %v1178 = vpop.f32.mrb[0].mxu0
  %v1179 = vpop.f32.mrb[0].mxu0
  %v1180 = vadd.f32 %v1083, %v1179
  %v1181 = vpop.f32.mrb[0].mxu0
  %1182 = vmatprep.mubr.bf16.mxu0 %v449
  %1183 = vmatmul.mubr.bf16.gmra.mrb[0].mxu0 %v448
  %v1184 = vpop.f32.mrb[0].mxu0
  %v1185 = vadd.f32 %v1088, %v1184
  %v1186 = vpop.f32.mrb[0].mxu0
  %v1187 = vpop.f32.mrb[0].mxu0
  %v1188 = vadd.f32 %v1091, %v1187
  %v1189 = vpop.f32.mrb[0].mxu0
  %1190 = vmatprep.mubr.bf16.mxu0 %v457
  %1191 = vmatmul.mubr.bf16.gmra.mrb[0].mxu0 %v456
  %v1192 = vpop.f32.mrb[0].mxu0
  %v1193 = vadd.f32 %v1096, %v1192
  %v1194 = vpop.f32.mrb[0].mxu0
  %v1195 = vpop.f32.mrb[0].mxu0
  %v1196 = vadd.f32 %v1099, %v1195
  %v1197 = vpop.f32.mrb[0].mxu0
  %1198 = vmatprep.mubr.bf16.mxu0 %v465
  %1199 = vmatmul.mubr.bf16.gmra.mrb[0].mxu0 %v464
  %v1200 = vpop.f32.mrb[0].mxu0
  %v1201 = vadd.f32 %v1104, %v1200
  %v1202 = vpop.f32.mrb[0].mxu0
  %v1203 = vpop.f32.mrb[0].mxu0
  %v1204 = vadd.f32 %v1107, %v1203
  %v1205 = vpop.f32.mrb[0].mxu0
  %1206 = vmatprep.mubr.bf16.mxu0 %v473
  %1207 = vmatmul.mubr.bf16.gmra.mrb[0].mxu0 %v472
  %v1208 = vpop.f32.mrb[0].mxu0
  %v1209 = vadd.f32 %v1112, %v1208
  %v1210 = vpop.f32.mrb[0].mxu0
  %v1211 = vpop.f32.mrb[0].mxu0
  %v1212 = vadd.f32 %v1115, %v1211
  %v1213 = vpop.f32.mrb[0].mxu0
  %1214 = vdwg.mxu0
  %1215 = vmatprep.subr.bf16.mxu0 0
  %1216 = vmatpush1.bf16.msra.mxu0 %v844
  %1217 = vmatprep.subr.bf16.mxu0 0
  %1218 = vmatpush1.bf16.msra.mxu0 %v845
  %1219 = vmatprep.subr.bf16.mxu0 0
  %1220 = vmatpush1.bf16.msra.mxu0 %v846
  %1221 = vmatprep.subr.bf16.mxu0 0
  %1222 = vmatpush1.bf16.msra.mxu0 %v847
  %1223 = vmatprep.subr.bf16.mxu0 0
  %1224 = vmatpush1.bf16.msra.mxu0 %v848
  %1225 = vmatprep.subr.bf16.mxu0 0
  %1226 = vmatpush1.bf16.msra.mxu0 %v849
  %1227 = vmatprep.subr.bf16.mxu0 0
  %1228 = vmatpush1.bf16.msra.mxu0 %v850
  %1229 = vmatprep.subr.bf16.mxu0 0
  %1230 = vmatpush1.bf16.msra.mxu0 %v851
  %1231 = vmatprep.subr.bf16.mxu0 0
  %1232 = vmatpush1.bf16.msra.mxu0 %v852
  %1233 = vmatprep.subr.bf16.mxu0 0
  %1234 = vmatpush1.bf16.msra.mxu0 %v853
  %1235 = vmatprep.subr.bf16.mxu0 0
  %1236 = vmatpush1.bf16.msra.mxu0 %v854
  %1237 = vmatprep.subr.bf16.mxu0 0
  %1238 = vmatpush1.bf16.msra.mxu0 %v855
  %1239 = vmatprep.subr.bf16.mxu0 0
  %1240 = vmatpush1.bf16.msra.mxu0 %v856
  %1241 = vmatprep.subr.bf16.mxu0 0
  %1242 = vmatpush1.bf16.msra.mxu0 %v857
  %1243 = vmatprep.subr.bf16.mxu0 0
  %1244 = vmatpush1.bf16.msra.mxu0 %v858
  %1245 = vmatprep.subr.bf16.mxu0 0
  %1246 = vmatpush1.bf16.msra.mxu0 %v859
  %1247 = vmatprep.mubr.bf16.mxu0 %v419
  %1248 = vmatmul.mubr.bf16.gmra.mrb[0].mxu0 %v418
  %v1249 = vpop.f32.mrb[0].mxu0
  %v1250 = vadd.f32 %v1153, %v1249
  %v1251 = vpop.f32.mrb[0].mxu0
  %v1252 = vpop.f32.mrb[0].mxu0
  %v1253 = vadd.f32 %v1156, %v1252
  %v1254 = vpop.f32.mrb[0].mxu0
  %1255 = vmatprep.mubr.bf16.mxu0 %v427
  %1256 = vmatmul.mubr.bf16.gmra.mrb[0].mxu0 %v426
  %v1257 = vpop.f32.mrb[0].mxu0
  %v1258 = vadd.f32 %v1161, %v1257
  %v1259 = vpop.f32.mrb[0].mxu0
  %v1260 = vpop.f32.mrb[0].mxu0
  %v1261 = vadd.f32 %v1164, %v1260
  %v1262 = vpop.f32.mrb[0].mxu0
  %1263 = vmatprep.mubr.bf16.mxu0 %v435
  %1264 = vmatmul.mubr.bf16.gmra.mrb[0].mxu0 %v434
  %v1265 = vpop.f32.mrb[0].mxu0
  %v1266 = vadd.f32 %v1169, %v1265
  %v1267 = vpop.f32.mrb[0].mxu0
  %v1268 = vpop.f32.mrb[0].mxu0
  %v1269 = vadd.f32 %v1172, %v1268
  %v1270 = vpop.f32.mrb[0].mxu0
  %1271 = vmatprep.mubr.bf16.mxu0 %v443
  %1272 = vmatmul.mubr.bf16.gmra.mrb[0].mxu0 %v442
  %v1273 = vpop.f32.mrb[0].mxu0
  %v1274 = vadd.f32 %v1177, %v1273
  %v1275 = vpop.f32.mrb[0].mxu0
  %v1276 = vpop.f32.mrb[0].mxu0
  %v1277 = vadd.f32 %v1180, %v1276
  %v1278 = vpop.f32.mrb[0].mxu0
  %1279 = vmatprep.mubr.bf16.mxu0 %v451
  %1280 = vmatmul.mubr.bf16.gmra.mrb[0].mxu0 %v450
  %v1281 = vpop.f32.mrb[0].mxu0
  %v1282 = vadd.f32 %v1185, %v1281
  %v1283 = vpop.f32.mrb[0].mxu0
  %v1284 = vpop.f32.mrb[0].mxu0
  %v1285 = vadd.f32 %v1188, %v1284
  %v1286 = vpop.f32.mrb[0].mxu0
  %1287 = vmatprep.mubr.bf16.mxu0 %v459
  %1288 = vmatmul.mubr.bf16.gmra.mrb[0].mxu0 %v458
  %v1289 = vpop.f32.mrb[0].mxu0
  %v1290 = vadd.f32 %v1193, %v1289
  %v1291 = vpop.f32.mrb[0].mxu0
  %v1292 = vpop.f32.mrb[0].mxu0
  %v1293 = vadd.f32 %v1196, %v1292
  %v1294 = vpop.f32.mrb[0].mxu0
  %1295 = vmatprep.mubr.bf16.mxu0 %v467
  %1296 = vmatmul.mubr.bf16.gmra.mrb[0].mxu0 %v466
  %v1297 = vpop.f32.mrb[0].mxu0
  %v1298 = vadd.f32 %v1201, %v1297
  %v1299 = vpop.f32.mrb[0].mxu0
  %v1300 = vpop.f32.mrb[0].mxu0
  %v1301 = vadd.f32 %v1204, %v1300
  %v1302 = vpop.f32.mrb[0].mxu0
  %1303 = vmatprep.mubr.bf16.mxu0 %v475
  %1304 = vmatmul.mubr.bf16.gmra.mrb[0].mxu0 %v474
  %v1305 = vpop.f32.mrb[0].mxu0
  %v1306 = vadd.f32 %v1209, %v1305
  %v1307 = vpop.f32.mrb[0].mxu0
  %v1308 = vpop.f32.mrb[0].mxu0
  %v1309 = vadd.f32 %v1212, %v1308
  %v1310 = vpop.f32.mrb[0].mxu0
  %1311 = vdwg.mxu0
  %v1312 = vmax.f32 %v1250, 0.0
  %v1313 = vmax.f32 %v1253, 0.0
  %v1314 = vmax.f32 %v1258, 0.0
  %v1315 = vmax.f32 %v1261, 0.0
  %v1316 = vmax.f32 %v1266, 0.0
  %v1317 = vmax.f32 %v1269, 0.0
  %v1318 = vmax.f32 %v1274, 0.0
  %v1319 = vmax.f32 %v1277, 0.0
  %v1320 = vmax.f32 %v1282, 0.0
  %v1321 = vmax.f32 %v1285, 0.0
  %v1322 = vmax.f32 %v1290, 0.0
  %v1323 = vmax.f32 %v1293, 0.0
  %v1324 = vmax.f32 %v1298, 0.0
  %v1325 = vmax.f32 %v1301, 0.0
  %v1326 = vmax.f32 %v1306, 0.0
  %v1327 = vmax.f32 %v1309, 0.0
  %v1328 = vpack.c.bf16 %v1313, %v1312
  %v1329 = vpack.c.bf16 %v1315, %v1314
  %v1330 = vpack.c.bf16 %v1317, %v1316
  %v1331 = vpack.c.bf16 %v1319, %v1318
  %v1332 = vpack.c.bf16 %v1321, %v1320
  %v1333 = vpack.c.bf16 %v1323, %v1322
  %v1334 = vpack.c.bf16 %v1325, %v1324
  %v1335 = vpack.c.bf16 %v1327, %v1326
  %v1336 = vld [vmem:[%s3] sm:$0xf]
  %v1337 = vld [vmem:[%s3 + $0x4] sm:$0xf]
  %v1338 = vld [vmem:[%s3 + $0x8] sm:$0xf]
  %v1339 = vld [vmem:[%s3 + $0xc] sm:$0xf]
  %v1340 = vld [vmem:[%s3 + $0x10] sm:$0xf]
  %v1341 = vld [vmem:[%s3 + $0x14] sm:$0xf]
  %v1342 = vld [vmem:[%s3 + $0x18] sm:$0xf]
  %v1343 = vld [vmem:[%s3 + $0x1c] sm:$0xf]
  %v1344 = vld [vmem:[%s3 + $0x20] sm:$0xf]
  %v1345 = vld [vmem:[%s3 + $0x24] sm:$0xf]
  %v1346 = vld [vmem:[%s3 + $0x28] sm:$0xf]
  %v1347 = vld [vmem:[%s3 + $0x2c] sm:$0xf]
  %v1348 = vld [vmem:[%s3 + $0x30] sm:$0xf]
  %v1349 = vld [vmem:[%s3 + $0x34] sm:$0xf]
  %v1350 = vld [vmem:[%s3 + $0x38] sm:$0xf]
  %v1351 = vld [vmem:[%s3 + $0x3c] sm:$0xf]
  %v1352 = vld [vmem:[%s4] sm:$0x1]
  %v1354 = vlaneseq
  %v1355 = vshrl.u32 %v1354, 7
  %v1356 = vsub.s32 0, %v1355
  %v1357 = vrot.slane %v1352, %v1356
  %v1375 = vunpack.c.l.b16 %v1336
  %v1376 = vunpack.c.l.b16 %v1337
  %v1377 = vunpack.c.l.b16 %v1338
  %v1378 = vunpack.c.l.b16 %v1339
  %v1379 = vunpack.c.l.b16 %v1340
  %v1380 = vunpack.c.l.b16 %v1341
  %v1381 = vunpack.c.l.b16 %v1342
  %v1382 = vunpack.c.l.b16 %v1343
  %v1383 = vunpack.c.l.b16 %v1344
  %v1384 = vunpack.c.l.b16 %v1345
  %v1385 = vunpack.c.l.b16 %v1346
  %v1386 = vunpack.c.l.b16 %v1347
  %v1387 = vunpack.c.l.b16 %v1348
  %v1388 = vunpack.c.l.b16 %v1349
  %v1389 = vunpack.c.l.b16 %v1350
  %v1390 = vunpack.c.l.b16 %v1351
  %v1391 = vpack.c.b16 %v1376, %v1375
  %v1392 = vpack.c.b16 %v1378, %v1377
  %v1393 = vpack.c.b16 %v1380, %v1379
  %v1394 = vpack.c.b16 %v1382, %v1381
  %v1395 = vpack.c.b16 %v1384, %v1383
  %v1396 = vpack.c.b16 %v1386, %v1385
  %v1397 = vpack.c.b16 %v1388, %v1387
  %v1398 = vpack.c.b16 %v1390, %v1389
  %1407 = vmatprep.subr.bf16.mxu0 0
  %1408 = vmatpush1.bf16.msra.mxu0 %v1391
  %1409 = vmatprep.subr.bf16.mxu0 0
  %1410 = vmatpush1.bf16.msra.mxu0 %v1392
  %1411 = vmatprep.subr.bf16.mxu0 0
  %1412 = vmatpush1.bf16.msra.mxu0 %v1393
  %1413 = vmatprep.subr.bf16.mxu0 0
  %1414 = vmatpush1.bf16.msra.mxu0 %v1394
  %1415 = vmatprep.subr.bf16.mxu0 0
  %1416 = vmatpush1.bf16.msra.mxu0 %v1395
  %1417 = vmatprep.subr.bf16.mxu0 0
  %1418 = vmatpush1.bf16.msra.mxu0 %v1396
  %1419 = vmatprep.subr.bf16.mxu0 0
  %1420 = vmatpush1.bf16.msra.mxu0 %v1397
  %1421 = vmatprep.subr.bf16.mxu0 0
  %1422 = vmatpush1.bf16.msra.mxu0 %v1398
  %1423 = vmatprep.subr.bf16.mxu0 0
  %1424 = vmatpush1.bf16.msra.mxu0 0
  %1425 = vmatprep.subr.bf16.mxu0 0
  %1426 = vmatpush1.bf16.msra.mxu0 0
  %1427 = vmatprep.subr.bf16.mxu0 0
  %1428 = vmatpush1.bf16.msra.mxu0 0
  %1429 = vmatprep.subr.bf16.mxu0 0
  %1430 = vmatpush1.bf16.msra.mxu0 0
  %1431 = vmatprep.subr.bf16.mxu0 0
  %1432 = vmatpush1.bf16.msra.mxu0 0
  %1433 = vmatprep.subr.bf16.mxu0 0
  %1434 = vmatpush1.bf16.msra.mxu0 0
  %1435 = vmatprep.subr.bf16.mxu0 0
  %1436 = vmatpush1.bf16.msra.mxu0 0
  %1437 = vmatprep.subr.bf16.mxu0 0
  %1438 = vmatpush1.bf16.msra.mxu0 0
  %1439 = vmatprep.mubr.bf16.mxu0 0
  %1440 = vmatmul.mubr.bf16.gmra.mrb[0].mxu0 %v1328
  %v1441 = vpop.f32.mrb[0].mxu0
  %v1442 = vadd.f32 %v1357, %v1441
  %v1443 = vpop.f32.mrb[0].mxu0
  %v1444 = vpop.f32.mrb[0].mxu0
  %v1445 = vadd.f32 %v1357, %v1444
  %v1446 = vpop.f32.mrb[0].mxu0
  %1447 = vmatprep.mubr.bf16.mxu0 0
  %1448 = vmatmul.mubr.bf16.gmra.mrb[0].mxu0 %v1329
  %v1449 = vpop.f32.mrb[0].mxu0
  %v1450 = vadd.f32 %v1357, %v1449
  %v1451 = vpop.f32.mrb[0].mxu0
  %v1452 = vpop.f32.mrb[0].mxu0
  %v1453 = vadd.f32 %v1357, %v1452
  %v1454 = vpop.f32.mrb[0].mxu0
  %1455 = vmatprep.mubr.bf16.mxu0 0
  %1456 = vmatmul.mubr.bf16.gmra.mrb[0].mxu0 %v1330
  %v1457 = vpop.f32.mrb[0].mxu0
  %v1458 = vadd.f32 %v1357, %v1457
  %v1459 = vpop.f32.mrb[0].mxu0
  %v1460 = vpop.f32.mrb[0].mxu0
  %v1461 = vadd.f32 %v1357, %v1460
  %v1462 = vpop.f32.mrb[0].mxu0
  %1463 = vmatprep.mubr.bf16.mxu0 0
  %1464 = vmatmul.mubr.bf16.gmra.mrb[0].mxu0 %v1331
  %v1465 = vpop.f32.mrb[0].mxu0
  %v1466 = vadd.f32 %v1357, %v1465
  %v1467 = vpop.f32.mrb[0].mxu0
  %v1468 = vpop.f32.mrb[0].mxu0
  %v1469 = vadd.f32 %v1357, %v1468
  %v1470 = vpop.f32.mrb[0].mxu0
  %1471 = vmatprep.mubr.bf16.mxu0 0
  %1472 = vmatmul.mubr.bf16.gmra.mrb[0].mxu0 %v1332
  %v1473 = vpop.f32.mrb[0].mxu0
  %v1474 = vadd.f32 %v1357, %v1473
  %v1475 = vpop.f32.mrb[0].mxu0
  %v1476 = vpop.f32.mrb[0].mxu0
  %v1477 = vadd.f32 %v1357, %v1476
  %v1478 = vpop.f32.mrb[0].mxu0
  %1479 = vmatprep.mubr.bf16.mxu0 0
  %1480 = vmatmul.mubr.bf16.gmra.mrb[0].mxu0 %v1333
  %v1481 = vpop.f32.mrb[0].mxu0
  %v1482 = vadd.f32 %v1357, %v1481
  %v1483 = vpop.f32.mrb[0].mxu0
  %v1484 = vpop.f32.mrb[0].mxu0
  %v1485 = vadd.f32 %v1357, %v1484
  %v1486 = vpop.f32.mrb[0].mxu0
  %1487 = vmatprep.mubr.bf16.mxu0 0
  %1488 = vmatmul.mubr.bf16.gmra.mrb[0].mxu0 %v1334
  %v1489 = vpop.f32.mrb[0].mxu0
  %v1490 = vadd.f32 %v1357, %v1489
  %v1491 = vpop.f32.mrb[0].mxu0
  %v1492 = vpop.f32.mrb[0].mxu0
  %v1493 = vadd.f32 %v1357, %v1492
  %v1494 = vpop.f32.mrb[0].mxu0
  %1495 = vmatprep.mubr.bf16.mxu0 0
  %1496 = vmatmul.mubr.bf16.gmra.mrb[0].mxu0 %v1335
  %v1497 = vpop.f32.mrb[0].mxu0
  %v1498 = vadd.f32 %v1357, %v1497
  %v1499 = vpop.f32.mrb[0].mxu0
  %v1500 = vpop.f32.mrb[0].mxu0
  %v1501 = vadd.f32 %v1357, %v1500
  %v1502 = vpop.f32.mrb[0].mxu0
  %1503 = vdwg.mxu0
  %1504 = vst [vmem:[%s5] sm:$0xff] %v1442
  %1505 = vst [vmem:[%s5 + $0x8] sm:$0xff] %v1445
  %1506 = vst [vmem:[%s5 + $0x10] sm:$0xff] %v1450
  %1507 = vst [vmem:[%s5 + $0x18] sm:$0xff] %v1453
  %1508 = vst [vmem:[%s5 + $0x20] sm:$0xff] %v1458
  %1509 = vst [vmem:[%s5 + $0x28] sm:$0xff] %v1461
  %1510 = vst [vmem:[%s5 + $0x30] sm:$0xff] %v1466
  %1511 = vst [vmem:[%s5 + $0x38] sm:$0xff] %v1469
  %1512 = vst [vmem:[%s5 + $0x40] sm:$0xff] %v1474
  %1513 = vst [vmem:[%s5 + $0x48] sm:$0xff] %v1477
  %1514 = vst [vmem:[%s5 + $0x50] sm:$0xff] %v1482
  %1515 = vst [vmem:[%s5 + $0x58] sm:$0xff] %v1485
  %1516 = vst [vmem:[%s5 + $0x60] sm:$0xff] %v1490
  %1517 = vst [vmem:[%s5 + $0x68] sm:$0xff] %v1493
  %1518 = vst [vmem:[%s5 + $0x70] sm:$0xff] %v1498
  %1519 = vst [vmem:[%s5 + $0x78] sm:$0xff] %v1501
  // Predicated region
  $region22: #{mnist_conv_forward.5} parent=0 // pred_check
    _
  $region23: #{mnist_conv_forward.5} parent=0 // pred_check_branch
    %1521 = sbr.rel (0) target = $region25
  $region24: #{mnist_conv_forward.5} parent=0 // pred_region
    _
  $region25: #{mnist_conv_forward.5} parent=0 // pred_fallthru
    _
  // Predicated region
  $region26: #{mnist_conv_forward.5} parent=0 // pred_check
    _
  $region27: #{mnist_conv_forward.5} parent=0 // pred_check_branch
    %1523 = sbr.rel (0) target = $region29
  $region28: #{mnist_conv_forward.5} parent=0 // pred_region
    _
  $region29: #{mnist_conv_forward.5} parent=0 // pred_fallthru
    _

</llo_original>
